<compile_context>
chip_gen: v5e
topology: v5e:2x2
jax: 0.10.0
libtpu: 0.0.40
codegen_flags: <defaults>
</compile_context>

<pallas_src>
from functools import partial

import numpy as np
import jax
import jax.numpy as jnp
from jax.experimental import pallas as pl
from jax.experimental.pallas import tpu as pltpu

D_K = D_V = 64
D_MODEL = 512
N_HEADS = 8
D_FF = 2048
IN_FEATURES = 5
LN_EPS = 1e-5
NEG_INF = -1.0e9


def _layer_norm(x, eps=LN_EPS):
    mu = jnp.mean(x, axis=-1, keepdims=True)
    var = jnp.mean((x - mu) ** 2, axis=-1, keepdims=True)
    return (x - mu) * jax.lax.rsqrt(var + eps)


def encoder_kernel(x_ref, posb_ref, wemb_ref, wvo_ref, w1_ref, w2_ref, out_ref,
                   *, batch, seq):
    # --- embedding: (B*L, 5) x (5, 512) as a 5-term rank-1 VPU accumulation ---
    x = x_ref[...]                                                  # (B*L, 5) f32
    h = x[:, 0:1] * wemb_ref[0:1, :]
    for f in range(1, IN_FEATURES):
        h = h + x[:, f:f + 1] * wemb_ref[f:f + 1, :]                # (B*L, 512)

    # --- positional encoding + Linear bias, broadcast over batch in-kernel ---
    # (B*L, 512) -> (B, L, 512) is a free relayout here because L == 8 sublanes.
    h3 = h.reshape(batch, seq, D_MODEL) + posb_ref[...]             # (B, L, 512)
    h = h3.reshape(batch * seq, D_MODEL)

    # --- MHA under the all-ones pad mask: uniform attention == mean over keys ---
    #   context = mean_k(h) @ Wv  ;  output = context @ Wo  ==  mean_k(h) @ (Wv @ Wo)
    hm = jnp.mean(h3, axis=1)                                       # (B, 512)
    mha_row = jnp.dot(hm.astype(jnp.bfloat16), wvo_ref[...],
                      preferred_element_type=jnp.float32)           # (B, 512)
    mha = jnp.broadcast_to(mha_row[:, None, :],
                           (batch, seq, D_MODEL)).reshape(batch * seq, D_MODEL)
    y1 = _layer_norm(mha + h)

    # --- position-wise feed forward + LayerNorm (bf16 weights, f32 accumulation) ---
    ff = jnp.maximum(
        jnp.dot(y1.astype(jnp.bfloat16), w1_ref[...],
                preferred_element_type=jnp.float32), 0.0)
    ff = jnp.dot(ff.astype(jnp.bfloat16), w2_ref[...],
                 preferred_element_type=jnp.float32)
    out_ref[...] = _layer_norm(ff + y1)


def make_pos_table(seq_len, d_model):
    pos = jnp.arange(seq_len, dtype=jnp.float32)[:, None]            # (L, 1)
    i = jnp.arange(d_model, dtype=jnp.float32)[None, :]              # (1, D)
    angle = pos / jnp.power(10000.0, 2.0 * i / d_model)
    angle = jnp.where(pos == 0.0, 0.0, angle)                        # pos==0 row is zeros
    col = jnp.arange(d_model)[None, :]
    return jnp.where(col % 2 == 0, jnp.sin(angle), jnp.cos(angle)).astype(jnp.float32)


def init_params(key):
    ks = jax.random.split(key, 8)
    s = 0.02
    return {
        # stored as (in_features, out_features) so the kernel does x @ W directly
        "w_emb": (jax.random.normal(ks[0], (IN_FEATURES, D_MODEL)) * s).astype(jnp.float32),
        "b_emb": (jax.random.normal(ks[1], (1, D_MODEL)) * s).astype(jnp.float32),
        "wq": (jax.random.normal(ks[2], (D_MODEL, N_HEADS * D_K)) * s).astype(jnp.float32),
        "wk": (jax.random.normal(ks[3], (D_MODEL, N_HEADS * D_K)) * s).astype(jnp.float32),
        "wv": (jax.random.normal(ks[4], (D_MODEL, N_HEADS * D_V)) * s).astype(jnp.float32),
        "wo": (jax.random.normal(ks[5], (N_HEADS * D_V, D_MODEL)) * s).astype(jnp.float32),
        "w1": (jax.random.normal(ks[6], (D_MODEL, D_FF)) * s).astype(jnp.float32),
        "w2": (jax.random.normal(ks[7], (D_FF, D_MODEL)) * s).astype(jnp.float32),
    }


def encoder_forward(x, params, pos_table):
    B, L, F = x.shape
    x2d = x.reshape(B * L, F)
    # One (L, 512) bias: positional table + Linear bias; broadcast over batch in-kernel.
    posb = pos_table + params["b_emb"]
    # Fold Wv @ Wo into one (512, 512) weight (Wq/Wk are dead under uniform attention);
    # cast big weights to bf16 — the kernel is HBM weight-DMA bound.
    wvo = jnp.dot(params["wv"], params["wo"]).astype(jnp.bfloat16)
    w1 = params["w1"].astype(jnp.bfloat16)
    w2 = params["w2"].astype(jnp.bfloat16)

    bytes_accessed = int(x2d.size * 4 + posb.size * 4 + params["w_emb"].size * 4
                         + wvo.size * 2 + w1.size * 2 + w2.size * 2
                         + B * L * D_MODEL * 4)
    flops = int(2 * B * D_MODEL * D_MODEL                # folded Wv·Wo pass
                + 4 * B * L * D_MODEL * D_FF             # FFN (two matmuls)
                + 2 * B * L * IN_FEATURES * D_MODEL)     # embedding rank-1 sum

    vmem = pl.BlockSpec(memory_space=pltpu.MemorySpace.VMEM)
    out2d = pl.pallas_call(
        partial(encoder_kernel, batch=B, seq=L),
        out_shape=jax.ShapeDtypeStruct((B * L, D_MODEL), jnp.float32),
        # No grid: single invocation, every weight resident exactly once in VMEM
        # (~4.5 MiB after the bf16 + Wq/Wk/Wo cuts), no double buffering.
        in_specs=[vmem] * 6,
        out_specs=vmem,
        compiler_params=pltpu.CompilerParams(vmem_limit_bytes=32 * 1024 * 1024),
        cost_estimate=pl.CostEstimate(flops=flops,
                                      transcendentals=2 * B * L,
                                      bytes_accessed=bytes_accessed),
    )(x2d, posb, params["w_emb"], wvo, w1, w2)

    out = out2d.reshape(B, L, D_MODEL)
    # Uniform attention map is a compile-time constant under the all-ones pad mask;
    # produced here instead of being written back from the kernel.
    attn = jnp.full((B, N_HEADS, L, L), 1.0 / L, dtype=jnp.float32)
    return out, attn


def encoder_ref(x, params, pos_table):
    """Pure-JAX fp32 reference mirroring the PyTorch forward pass (for validation)."""
    B, L, _ = x.shape
    h = x @ params["w_emb"] + params["b_emb"] + pos_table[None]
    q = (h @ params["wq"]).reshape(B, L, N_HEADS, D_K).transpose(0, 2, 1, 3)
    k = (h @ params["wk"]).reshape(B, L, N_HEADS, D_K).transpose(0, 2, 1, 3)
    v = (h @ params["wv"]).reshape(B, L, N_HEADS, D_V).transpose(0, 2, 1, 3)
    scores = jnp.einsum("bhqd,bhkd->bhqk", q, k) / np.sqrt(D_K)
    scores = jnp.full_like(scores, NEG_INF)                # mask is all ones -> all masked
    attn = jax.nn.softmax(scores, axis=-1)
    ctx = jnp.einsum("bhqk,bhkd->bhqd", attn, v)
    ctx = ctx.transpose(0, 2, 1, 3).reshape(B, L, N_HEADS * D_V)
    y1 = _layer_norm(ctx @ params["wo"] + h)
    ff = jnp.maximum(y1 @ params["w1"], 0.0) @ params["w2"]
    return _layer_norm(ff + y1), attn


if __name__ == "__main__":
    B, L = 2, 8
    key = jax.random.PRNGKey(0)
    k_x, k_p = jax.random.split(key)
    x = jax.random.normal(k_x, (B, L, IN_FEATURES), dtype=jnp.float32)
    params = init_params(k_p)
    pos_table = make_pos_table(L, D_MODEL)

    out, attn = jax.jit(encoder_forward)(x, params, pos_table)
    out = jax.block_until_ready(out)
    attn = jax.block_until_ready(attn)

    ref_out, ref_attn = encoder_ref(x, params, pos_table)
    # Tolerance loosened vs. the fp32 version: bf16 weights + folded Wv·Wo introduce
    # small (few e-3) fp differences against the fp32 reference.
    np.testing.assert_allclose(np.asarray(out), np.asarray(ref_out), rtol=5e-2, atol=5e-2)
    np.testing.assert_allclose(np.asarray(attn), np.asarray(ref_attn), rtol=1e-6, atol=1e-6)

    print("KERNEL_OK")
</pallas_src>

<mosaic_0001>
module attributes {stable_mosaic.version = 11 : i64} {
  func.func @encoder_kernel(%arg0: memref<16x5xf32, #tpu.memory_space<vmem>>, %arg1: memref<8x512xf32, #tpu.memory_space<vmem>>, %arg2: memref<5x512xf32, #tpu.memory_space<vmem>>, %arg3: memref<512x512xbf16, #tpu.memory_space<vmem>>, %arg4: memref<512x2048xbf16, #tpu.memory_space<vmem>>, %arg5: memref<2048x512xbf16, #tpu.memory_space<vmem>>, %arg6: memref<16x512xf32, #tpu.memory_space<vmem>>) attributes {dimension_semantics = [], scalar_prefetch = 0 : i64, scratch_operands = 0 : i64, tpu.core_type = #tpu.core_type<tc>} {
    %c0 = arith.constant 0 : index
    %c0_0 = arith.constant 0 : index
    %0 = vector.load %arg0[%c0, %c0_0] : memref<16x5xf32, #tpu.memory_space<vmem>>, vector<16x5xf32>
    %1 = vector.extract_strided_slice %0 {offsets = [0, 0], sizes = [16, 1], strides = [1, 1]} : vector<16x5xf32> to vector<16x1xf32>
    %c0_1 = arith.constant 0 : index
    %c0_2 = arith.constant 0 : index
    %2 = vector.load %arg2[%c0_1, %c0_2] : memref<5x512xf32, #tpu.memory_space<vmem>>, vector<1x512xf32>
    %3 = vector.broadcast %1 : vector<16x1xf32> to vector<16x512xf32>
    %4 = vector.broadcast %2 : vector<1x512xf32> to vector<16x512xf32>
    %5 = arith.mulf %3, %4 : vector<16x512xf32>
    %6 = vector.extract_strided_slice %0 {offsets = [0, 1], sizes = [16, 1], strides = [1, 1]} : vector<16x5xf32> to vector<16x1xf32>
    %c1 = arith.constant 1 : index
    %c0_3 = arith.constant 0 : index
    %7 = vector.load %arg2[%c1, %c0_3] : memref<5x512xf32, #tpu.memory_space<vmem>>, vector<1x512xf32>
    %8 = vector.broadcast %6 : vector<16x1xf32> to vector<16x512xf32>
    %9 = vector.broadcast %7 : vector<1x512xf32> to vector<16x512xf32>
    %10 = arith.mulf %8, %9 : vector<16x512xf32>
    %11 = arith.addf %5, %10 : vector<16x512xf32>
    %12 = vector.extract_strided_slice %0 {offsets = [0, 2], sizes = [16, 1], strides = [1, 1]} : vector<16x5xf32> to vector<16x1xf32>
    %c2 = arith.constant 2 : index
    %c0_4 = arith.constant 0 : index
    %13 = vector.load %arg2[%c2, %c0_4] : memref<5x512xf32, #tpu.memory_space<vmem>>, vector<1x512xf32>
    %14 = vector.broadcast %12 : vector<16x1xf32> to vector<16x512xf32>
    %15 = vector.broadcast %13 : vector<1x512xf32> to vector<16x512xf32>
    %16 = arith.mulf %14, %15 : vector<16x512xf32>
    %17 = arith.addf %11, %16 : vector<16x512xf32>
    %18 = vector.extract_strided_slice %0 {offsets = [0, 3], sizes = [16, 1], strides = [1, 1]} : vector<16x5xf32> to vector<16x1xf32>
    %c3 = arith.constant 3 : index
    %c0_5 = arith.constant 0 : index
    %19 = vector.load %arg2[%c3, %c0_5] : memref<5x512xf32, #tpu.memory_space<vmem>>, vector<1x512xf32>
    %20 = vector.broadcast %18 : vector<16x1xf32> to vector<16x512xf32>
    %21 = vector.broadcast %19 : vector<1x512xf32> to vector<16x512xf32>
    %22 = arith.mulf %20, %21 : vector<16x512xf32>
    %23 = arith.addf %17, %22 : vector<16x512xf32>
    %24 = vector.extract_strided_slice %0 {offsets = [0, 4], sizes = [16, 1], strides = [1, 1]} : vector<16x5xf32> to vector<16x1xf32>
    %c4 = arith.constant 4 : index
    %c0_6 = arith.constant 0 : index
    %25 = vector.load %arg2[%c4, %c0_6] : memref<5x512xf32, #tpu.memory_space<vmem>>, vector<1x512xf32>
    %26 = vector.broadcast %24 : vector<16x1xf32> to vector<16x512xf32>
    %27 = vector.broadcast %25 : vector<1x512xf32> to vector<16x512xf32>
    %28 = arith.mulf %26, %27 : vector<16x512xf32>
    %29 = arith.addf %23, %28 : vector<16x512xf32>
    %30 = vector.shape_cast %29 : vector<16x512xf32> to vector<2x8x512xf32>
    %c0_7 = arith.constant 0 : index
    %c0_8 = arith.constant 0 : index
    %31 = vector.load %arg1[%c0_7, %c0_8] : memref<8x512xf32, #tpu.memory_space<vmem>>, vector<8x512xf32>
    %32 = vector.shape_cast %31 : vector<8x512xf32> to vector<1x8x512xf32>
    %33 = vector.broadcast %32 : vector<1x8x512xf32> to vector<2x8x512xf32>
    %34 = arith.addf %30, %33 : vector<2x8x512xf32>
    %35 = vector.shape_cast %34 : vector<2x8x512xf32> to vector<16x512xf32>
    %cst = arith.constant dense<0.000000e+00> : vector<2x512xf32>
    %36 = vector.multi_reduction <add>, %34, %cst [1] : vector<2x8x512xf32> to vector<2x512xf32>
    %cst_9 = arith.constant 8.000000e+00 : f32
    %37 = vector.broadcast %cst_9 : f32 to vector<2x512xf32>
    %38 = arith.divf %36, %37 : vector<2x512xf32>
    %39 = arith.truncf %38 : vector<2x512xf32> to vector<2x512xbf16>
    %c0_10 = arith.constant 0 : index
    %c0_11 = arith.constant 0 : index
    %40 = vector.load %arg3[%c0_10, %c0_11] : memref<512x512xbf16, #tpu.memory_space<vmem>>, vector<512x512xbf16>
    %cst_12 = arith.constant dense<0.000000e+00> : vector<2x512xf32>
    %41 = tpu.matmul %39, %40, %cst_12 {dimension_numbers = #tpu.dot_dimension_numbers<[1], [0], [0], [1], [0, 0, 1, 1], [], []>} : vector<2x512xbf16>, vector<512x512xbf16>, vector<2x512xf32> -> vector<2x512xf32>
    %42 = vector.shape_cast %41 : vector<2x512xf32> to vector<2x1x512xf32>
    %43 = vector.shape_cast %42 : vector<2x1x512xf32> to vector<2x1x512xf32>
    %44 = vector.broadcast %43 : vector<2x1x512xf32> to vector<2x8x512xf32>
    %45 = vector.shape_cast %44 : vector<2x8x512xf32> to vector<16x512xf32>
    %46 = arith.addf %45, %35 : vector<16x512xf32>
    %cst_13 = arith.constant dense<0.000000e+00> : vector<16xf32>
    %47 = vector.multi_reduction <add>, %46, %cst_13 [1] : vector<16x512xf32> to vector<16xf32>
    %48 = vector.shape_cast %47 : vector<16xf32> to vector<16x1xf32>
    %cst_14 = arith.constant 5.120000e+02 : f32
    %49 = vector.broadcast %cst_14 : f32 to vector<16x1xf32>
    %50 = arith.divf %48, %49 : vector<16x1xf32>
    %51 = vector.broadcast %50 : vector<16x1xf32> to vector<16x512xf32>
    %52 = arith.subf %46, %51 : vector<16x512xf32>
    %53 = arith.mulf %52, %52 : vector<16x512xf32>
    %cst_15 = arith.constant dense<0.000000e+00> : vector<16xf32>
    %54 = vector.multi_reduction <add>, %53, %cst_15 [1] : vector<16x512xf32> to vector<16xf32>
    %55 = vector.shape_cast %54 : vector<16xf32> to vector<16x1xf32>
    %cst_16 = arith.constant 5.120000e+02 : f32
    %56 = vector.broadcast %cst_16 : f32 to vector<16x1xf32>
    %57 = arith.divf %55, %56 : vector<16x1xf32>
    %58 = vector.broadcast %50 : vector<16x1xf32> to vector<16x512xf32>
    %59 = arith.subf %46, %58 : vector<16x512xf32>
    %cst_17 = arith.constant 9.99999974E-6 : f32
    %60 = vector.broadcast %cst_17 : f32 to vector<16x1xf32>
    %61 = arith.addf %57, %60 : vector<16x1xf32>
    %62 = math.rsqrt %61 : vector<16x1xf32>
    %63 = vector.broadcast %62 : vector<16x1xf32> to vector<16x512xf32>
    %64 = arith.mulf %59, %63 : vector<16x512xf32>
    %65 = arith.truncf %64 : vector<16x512xf32> to vector<16x512xbf16>
    %c0_18 = arith.constant 0 : index
    %c0_19 = arith.constant 0 : index
    %66 = vector.load %arg4[%c0_18, %c0_19] : memref<512x2048xbf16, #tpu.memory_space<vmem>>, vector<512x2048xbf16>
    %cst_20 = arith.constant dense<0.000000e+00> : vector<16x2048xf32>
    %67 = tpu.matmul %65, %66, %cst_20 {dimension_numbers = #tpu.dot_dimension_numbers<[1], [0], [0], [1], [0, 0, 1, 1], [], []>} : vector<16x512xbf16>, vector<512x2048xbf16>, vector<16x2048xf32> -> vector<16x2048xf32>
    %cst_21 = arith.constant 0.000000e+00 : f32
    %68 = vector.broadcast %cst_21 : f32 to vector<16x2048xf32>
    %69 = arith.maximumf %67, %68 : vector<16x2048xf32>
    %70 = arith.truncf %69 : vector<16x2048xf32> to vector<16x2048xbf16>
    %c0_22 = arith.constant 0 : index
    %c0_23 = arith.constant 0 : index
    %71 = vector.load %arg5[%c0_22, %c0_23] : memref<2048x512xbf16, #tpu.memory_space<vmem>>, vector<2048x512xbf16>
    %cst_24 = arith.constant dense<0.000000e+00> : vector<16x512xf32>
    %72 = tpu.matmul %70, %71, %cst_24 {dimension_numbers = #tpu.dot_dimension_numbers<[1], [0], [0], [1], [0, 0, 1, 1], [], []>} : vector<16x2048xbf16>, vector<2048x512xbf16>, vector<16x512xf32> -> vector<16x512xf32>
    %73 = arith.addf %72, %64 : vector<16x512xf32>
    %cst_25 = arith.constant dense<0.000000e+00> : vector<16xf32>
    %74 = vector.multi_reduction <add>, %73, %cst_25 [1] : vector<16x512xf32> to vector<16xf32>
    %75 = vector.shape_cast %74 : vector<16xf32> to vector<16x1xf32>
    %cst_26 = arith.constant 5.120000e+02 : f32
    %76 = vector.broadcast %cst_26 : f32 to vector<16x1xf32>
    %77 = arith.divf %75, %76 : vector<16x1xf32>
    %78 = vector.broadcast %77 : vector<16x1xf32> to vector<16x512xf32>
    %79 = arith.subf %73, %78 : vector<16x512xf32>
    %80 = arith.mulf %79, %79 : vector<16x512xf32>
    %cst_27 = arith.constant dense<0.000000e+00> : vector<16xf32>
    %81 = vector.multi_reduction <add>, %80, %cst_27 [1] : vector<16x512xf32> to vector<16xf32>
    %82 = vector.shape_cast %81 : vector<16xf32> to vector<16x1xf32>
    %cst_28 = arith.constant 5.120000e+02 : f32
    %83 = vector.broadcast %cst_28 : f32 to vector<16x1xf32>
    %84 = arith.divf %82, %83 : vector<16x1xf32>
    %85 = vector.broadcast %77 : vector<16x1xf32> to vector<16x512xf32>
    %86 = arith.subf %73, %85 : vector<16x512xf32>
    %cst_29 = arith.constant 9.99999974E-6 : f32
    %87 = vector.broadcast %cst_29 : f32 to vector<16x1xf32>
    %88 = arith.addf %84, %87 : vector<16x1xf32>
    %89 = math.rsqrt %88 : vector<16x1xf32>
    %90 = vector.broadcast %89 : vector<16x1xf32> to vector<16x512xf32>
    %91 = arith.mulf %86, %90 : vector<16x512xf32>
    %c0_30 = arith.constant 0 : index
    %c0_31 = arith.constant 0 : index
    %92 = vector.load %arg6[%c0_30, %c0_31] : memref<16x512xf32, #tpu.memory_space<vmem>>, vector<16x512xf32>
    tpu.vector_store %arg6[%c0_30, %c0_31], %91 {strides = array<i32>} : memref<16x512xf32, #tpu.memory_space<vmem>>, vector<16x512xf32>,
    return
  }
}

</mosaic_0001>

<llo_original>
// kernel: encoder_forward.1
$region0: #{encoder_forward.1}
  #allocation0 [shape = 'u32[]', space=smem, size = 0x4, offset = 0x4, fixed_abs, tag = 'smem constant byte address 0x4 - core index']
  #allocation1 [shape = 'u32[72,128]{1,0:T(1,128)}', space=vmem, size = 0x9000, scoped, tag = 'internal scratch']
  %s0 = inlined_call_operand.vmem [shape: f32[16,5], index: 0, kind: input, shape index: {}]
  %s1 = inlined_call_operand.vmem [shape: f32[8,512], index: 1, kind: input, shape index: {}]
  %s2 = inlined_call_operand.vmem [shape: f32[5,512], index: 2, kind: input, shape index: {}]
  %s3 = inlined_call_operand.vmem [shape: bf16[512,512], index: 3, kind: input, shape index: {}]
  %s4 = inlined_call_operand.vmem [shape: bf16[512,2048], index: 4, kind: input, shape index: {}]
  %s5 = inlined_call_operand.vmem [shape: bf16[2048,512], index: 5, kind: input, shape index: {}]
  %s6 = inlined_call_operand.hbm [shape: f32[16,512], index: 6, kind: output, shape index: {}]
  %s7 = sld [smem:[#allocation0]]
  $region34: #{encoder_forward.1} parent=0
    _
  %s9 = ssub.s32 1, %s7
  %s10 = scalar_select 0, %s9, %s7
  $region1: #{encoder_forward.1} parent=0
    #allocation2 [shape = 'u8[32768]{0}', space=vmem, size = 0x8000, scoped, tag = 'output window, operand 0, single buffered']
    #allocation3 [shape = 's32[1]{0}', space=sflag, size = 0x4, scoped, tag = 'scoped memory for encoder_forward.1']
    %11 = vsyncpa [#allocation3], 0
    // Predicated region
    $region2: #{encoder_forward.1} parent=1 // pred_check
      _
    $region3: #{encoder_forward.1} parent=1 // pred_check_branch
      %13 = sbr.rel (0) target = $region5
    $region4: #{encoder_forward.1} parent=1 // pred_region
      _
    $region5: #{encoder_forward.1} parent=1 // pred_fallthru
      _
    // Predicated region
    $region6: #{encoder_forward.1} parent=1 // pred_check
      _
    $region7: #{encoder_forward.1} parent=1 // pred_check_branch
      %15 = sbr.rel (0) target = $region9
    $region8: #{encoder_forward.1} parent=1 // pred_region
      _
    $region9: #{encoder_forward.1} parent=1 // pred_fallthru
      _
    // Predicated region
    $region10: #{encoder_forward.1} parent=1 // pred_check
      _
    $region11: #{encoder_forward.1} parent=1 // pred_check_branch
      %17 = sbr.rel (0) target = $region13
    $region12: #{encoder_forward.1} parent=1 // pred_region
      _
    $region13: #{encoder_forward.1} parent=1 // pred_fallthru
      _
    // Predicated region
    $region14: #{encoder_forward.1} parent=1 // pred_check
      _
    $region15: #{encoder_forward.1} parent=1 // pred_check_branch
      %19 = sbr.rel (0) target = $region17
    $region16: #{encoder_forward.1} parent=1 // pred_region
      _
    $region17: #{encoder_forward.1} parent=1 // pred_fallthru
      _
    // Predicated region
    $region18: #{encoder_forward.1} parent=1 // pred_check
      _
    $region19: #{encoder_forward.1} parent=1 // pred_check_branch
      %21 = sbr.rel (0) target = $region21
    $region20: #{encoder_forward.1} parent=1 // pred_region
      _
    $region21: #{encoder_forward.1} parent=1 // pred_fallthru
      _
    // Predicated region
    $region22: #{encoder_forward.1} parent=1 // pred_check
      _
    $region23: #{encoder_forward.1} parent=1 // pred_check_branch
      %23 = sbr.rel (0) target = $region25
    $region24: #{encoder_forward.1} parent=1 // pred_region
      _
    $region25: #{encoder_forward.1} parent=1 // pred_fallthru
      _
    %v24 = vld [vmem:[%s0] sm:$0xff]
    %v25 = vld [vmem:[%s0 + $0x8] sm:$0xff]
    %v26 = vld [vmem:[%s2] ss:$8 sm:$0xf]
    %28 = vset.pattern.permute.xlu0 0
    %29 = vperm.xlu0 %28, %v24
    %v30 = vpop.permute.xlu0 %29
    %33 = vset.pattern.permute.xlu0 0
    %34 = vperm.xlu0 %33, %v25
    %v35 = vpop.permute.xlu0 %34
    %v38 = vperm.slane %v26, 0
    %v39 = vperm.slane %v26, 1
    %v40 = vperm.slane %v26, 2
    %v41 = vperm.slane %v26, 3
    %v46 = vmul.f32 %v30, %v38
    %v47 = vmul.f32 %v30, %v39
    %v48 = vmul.f32 %v30, %v40
    %v49 = vmul.f32 %v30, %v41
    %v50 = vmul.f32 %v35, %v38
    %v51 = vmul.f32 %v35, %v39
    %v52 = vmul.f32 %v35, %v40
    %v53 = vmul.f32 %v35, %v41
    %s54 = scalar_lea.vmem %s2, 1
    %v55 = vld [vmem:[%s54] ss:$8 sm:$0xf]
    %56 = vset.pattern.permute.xlu0 1
    %57 = vperm.xlu0 %56, %v24
    %v58 = vpop.permute.xlu0 %57
    %60 = vset.pattern.permute.xlu0 1
    %61 = vperm.xlu0 %60, %v25
    %v62 = vpop.permute.xlu0 %61
    %v65 = vperm.slane %v55, 0
    %v66 = vperm.slane %v55, 1
    %v67 = vperm.slane %v55, 2
    %v68 = vperm.slane %v55, 3
    %v73 = vmul.f32 %v58, %v65
    %v74 = vmul.f32 %v58, %v66
    %v75 = vmul.f32 %v58, %v67
    %v76 = vmul.f32 %v58, %v68
    %v77 = vmul.f32 %v62, %v65
    %v78 = vmul.f32 %v62, %v66
    %v79 = vmul.f32 %v62, %v67
    %v80 = vmul.f32 %v62, %v68
    %v81 = vadd.f32 %v46, %v73
    %v82 = vadd.f32 %v47, %v74
    %v83 = vadd.f32 %v48, %v75
    %v84 = vadd.f32 %v49, %v76
    %v85 = vadd.f32 %v50, %v77
    %v86 = vadd.f32 %v51, %v78
    %v87 = vadd.f32 %v52, %v79
    %v88 = vadd.f32 %v53, %v80
    %s89 = scalar_lea.vmem %s2, 2
    %v90 = vld [vmem:[%s89] ss:$8 sm:$0xf]
    %91 = vset.pattern.permute.xlu0 2
    %92 = vperm.xlu0 %91, %v24
    %v93 = vpop.permute.xlu0 %92
    %95 = vset.pattern.permute.xlu0 2
    %96 = vperm.xlu0 %95, %v25
    %v97 = vpop.permute.xlu0 %96
    %v100 = vperm.slane %v90, 0
    %v101 = vperm.slane %v90, 1
    %v102 = vperm.slane %v90, 2
    %v103 = vperm.slane %v90, 3
    %v108 = vmul.f32 %v93, %v100
    %v109 = vmul.f32 %v93, %v101
    %v110 = vmul.f32 %v93, %v102
    %v111 = vmul.f32 %v93, %v103
    %v112 = vmul.f32 %v97, %v100
    %v113 = vmul.f32 %v97, %v101
    %v114 = vmul.f32 %v97, %v102
    %v115 = vmul.f32 %v97, %v103
    %v116 = vadd.f32 %v81, %v108
    %v117 = vadd.f32 %v82, %v109
    %v118 = vadd.f32 %v83, %v110
    %v119 = vadd.f32 %v84, %v111
    %v120 = vadd.f32 %v85, %v112
    %v121 = vadd.f32 %v86, %v113
    %v122 = vadd.f32 %v87, %v114
    %v123 = vadd.f32 %v88, %v115
    %s124 = scalar_lea.vmem %s2, 3
    %v125 = vld [vmem:[%s124] ss:$8 sm:$0xf]
    %126 = vset.pattern.permute.xlu0 3
    %127 = vperm.xlu0 %126, %v24
    %v128 = vpop.permute.xlu0 %127
    %130 = vset.pattern.permute.xlu0 3
    %131 = vperm.xlu0 %130, %v25
    %v132 = vpop.permute.xlu0 %131
    %v135 = vperm.slane %v125, 0
    %v136 = vperm.slane %v125, 1
    %v137 = vperm.slane %v125, 2
    %v138 = vperm.slane %v125, 3
    %v143 = vmul.f32 %v128, %v135
    %v144 = vmul.f32 %v128, %v136
    %v145 = vmul.f32 %v128, %v137
    %v146 = vmul.f32 %v128, %v138
    %v147 = vmul.f32 %v132, %v135
    %v148 = vmul.f32 %v132, %v136
    %v149 = vmul.f32 %v132, %v137
    %v150 = vmul.f32 %v132, %v138
    %v151 = vadd.f32 %v116, %v143
    %v152 = vadd.f32 %v117, %v144
    %v153 = vadd.f32 %v118, %v145
    %v154 = vadd.f32 %v119, %v146
    %v155 = vadd.f32 %v120, %v147
    %v156 = vadd.f32 %v121, %v148
    %v157 = vadd.f32 %v122, %v149
    %v158 = vadd.f32 %v123, %v150
    %s159 = scalar_lea.vmem %s2, 4
    %v160 = vld [vmem:[%s159] ss:$8 sm:$0xf]
    %161 = vset.pattern.permute.xlu0 4
    %162 = vperm.xlu0 %161, %v24
    %v163 = vpop.permute.xlu0 %162
    %165 = vset.pattern.permute.xlu0 4
    %166 = vperm.xlu0 %165, %v25
    %v167 = vpop.permute.xlu0 %166
    %v170 = vperm.slane %v160, 0
    %v171 = vperm.slane %v160, 1
    %v172 = vperm.slane %v160, 2
    %v173 = vperm.slane %v160, 3
    %v178 = vmul.f32 %v163, %v170
    %v179 = vmul.f32 %v163, %v171
    %v180 = vmul.f32 %v163, %v172
    %v181 = vmul.f32 %v163, %v173
    %v182 = vmul.f32 %v167, %v170
    %v183 = vmul.f32 %v167, %v171
    %v184 = vmul.f32 %v167, %v172
    %v185 = vmul.f32 %v167, %v173
    %v186 = vadd.f32 %v151, %v178
    %v187 = vadd.f32 %v152, %v179
    %v188 = vadd.f32 %v153, %v180
    %v189 = vadd.f32 %v154, %v181
    %v190 = vadd.f32 %v155, %v182
    %v191 = vadd.f32 %v156, %v183
    %v192 = vadd.f32 %v157, %v184
    %v193 = vadd.f32 %v158, %v185
    %v194 = vld [vmem:[%s1] sm:$0xff]
    %v195 = vld [vmem:[%s1 + $0x8] sm:$0xff]
    %v196 = vld [vmem:[%s1 + $0x10] sm:$0xff]
    %v197 = vld [vmem:[%s1 + $0x18] sm:$0xff]
    %v198 = vadd.f32 %v186, %v194
    %v199 = vadd.f32 %v187, %v195
    %v200 = vadd.f32 %v188, %v196
    %v201 = vadd.f32 %v189, %v197
    %v202 = vadd.f32 %v190, %v194
    %v203 = vadd.f32 %v191, %v195
    %v204 = vadd.f32 %v192, %v196
    %v205 = vadd.f32 %v193, %v197
    %v206 = vrot.slane %v198, 4
    %v207 = vadd.f32 %v198, %v206
    %v208 = vrot.slane %v207, 2
    %v209 = vadd.f32 %v207, %v208
    %v210 = vrot.slane %v209, 1
    %v211 = vadd.f32 %v209, %v210
    %v212 = vrot.slane %v199, 4
    %v213 = vadd.f32 %v199, %v212
    %v214 = vrot.slane %v213, 2
    %v215 = vadd.f32 %v213, %v214
    %v216 = vrot.slane %v215, 1
    %v217 = vadd.f32 %v215, %v216
    %v218 = vrot.slane %v200, 4
    %v219 = vadd.f32 %v200, %v218
    %v220 = vrot.slane %v219, 2
    %v221 = vadd.f32 %v219, %v220
    %v222 = vrot.slane %v221, 1
    %v223 = vadd.f32 %v221, %v222
    %v224 = vrot.slane %v201, 4
    %v225 = vadd.f32 %v201, %v224
    %v226 = vrot.slane %v225, 2
    %v227 = vadd.f32 %v225, %v226
    %v228 = vrot.slane %v227, 1
    %v229 = vadd.f32 %v227, %v228
    %v230 = vrot.slane %v202, 4
    %v231 = vadd.f32 %v202, %v230
    %v232 = vrot.slane %v231, 2
    %v233 = vadd.f32 %v231, %v232
    %v234 = vrot.slane %v233, 1
    %v235 = vadd.f32 %v233, %v234
    %v236 = vrot.slane %v203, 4
    %v237 = vadd.f32 %v203, %v236
    %v238 = vrot.slane %v237, 2
    %v239 = vadd.f32 %v237, %v238
    %v240 = vrot.slane %v239, 1
    %v241 = vadd.f32 %v239, %v240
    %v242 = vrot.slane %v204, 4
    %v243 = vadd.f32 %v204, %v242
    %v244 = vrot.slane %v243, 2
    %v245 = vadd.f32 %v243, %v244
    %v246 = vrot.slane %v245, 1
    %v247 = vadd.f32 %v245, %v246
    %v248 = vrot.slane %v205, 4
    %v249 = vadd.f32 %v205, %v248
    %v250 = vrot.slane %v249, 2
    %v251 = vadd.f32 %v249, %v250
    %v252 = vrot.slane %v251, 1
    %v253 = vadd.f32 %v251, %v252
    %v254 = vrcp.pop 8.0
    %v255 = vmul.f32 8.0, %v254
    %v256 = vsub.f32 1.0, %v255
    %v257 = vmul.f32 %v254, %v256
    %v258 = vadd.f32 %v254, %v257
    %vm259 = vweird.f32 %v254
    %v260 = vsel %vm259, %v254, %v258
    %v261 = vmul.f32 %v211, %v260
    %v262 = vmul.f32 %v217, %v260
    %v263 = vmul.f32 %v223, %v260
    %v264 = vmul.f32 %v229, %v260
    %v265 = vmul.f32 %v235, %v260
    %v266 = vmul.f32 %v241, %v260
    %v267 = vmul.f32 %v247, %v260
    %v268 = vmul.f32 %v253, %v260
    %v269 = vpack.c.bf16 %v261, %v261
    %v270 = vpack.c.bf16 %v262, %v262
    %v271 = vpack.c.bf16 %v263, %v263
    %v272 = vpack.c.bf16 %v264, %v264
    %v273 = vpack.c.bf16 %v265, %v265
    %v274 = vpack.c.bf16 %v266, %v266
    %v275 = vpack.c.bf16 %v267, %v267
    %v276 = vpack.c.bf16 %v268, %v268
    %v277 = vld [vmem:[%s3] sm:$0xff]
    %v278 = vld [vmem:[%s3 + $0x8] sm:$0xff]
    %v279 = vld [vmem:[%s3 + $0x10] sm:$0xff]
    %v280 = vld [vmem:[%s3 + $0x18] sm:$0xff]
    %v281 = vld [vmem:[%s3 + $0x20] sm:$0xff]
    %v282 = vld [vmem:[%s3 + $0x28] sm:$0xff]
    %v283 = vld [vmem:[%s3 + $0x30] sm:$0xff]
    %v284 = vld [vmem:[%s3 + $0x38] sm:$0xff]
    %v285 = vld [vmem:[%s3 + $0x40] sm:$0xff]
    %v286 = vld [vmem:[%s3 + $0x48] sm:$0xff]
    %v287 = vld [vmem:[%s3 + $0x50] sm:$0xff]
    %v288 = vld [vmem:[%s3 + $0x58] sm:$0xff]
    %v289 = vld [vmem:[%s3 + $0x60] sm:$0xff]
    %v290 = vld [vmem:[%s3 + $0x68] sm:$0xff]
    %v291 = vld [vmem:[%s3 + $0x70] sm:$0xff]
    %v292 = vld [vmem:[%s3 + $0x78] sm:$0xff]
    %v293 = vld [vmem:[%s3 + $0x80] sm:$0xff]
    %v294 = vld [vmem:[%s3 + $0x88] sm:$0xff]
    %v295 = vld [vmem:[%s3 + $0x90] sm:$0xff]
    %v296 = vld [vmem:[%s3 + $0x98] sm:$0xff]
    %v297 = vld [vmem:[%s3 + $0xa0] sm:$0xff]
    %v298 = vld [vmem:[%s3 + $0xa8] sm:$0xff]
    %v299 = vld [vmem:[%s3 + $0xb0] sm:$0xff]
    %v300 = vld [vmem:[%s3 + $0xb8] sm:$0xff]
    %v301 = vld [vmem:[%s3 + $0xc0] sm:$0xff]
    %v302 = vld [vmem:[%s3 + $0xc8] sm:$0xff]
    %v303 = vld [vmem:[%s3 + $0xd0] sm:$0xff]
    %v304 = vld [vmem:[%s3 + $0xd8] sm:$0xff]
    %v305 = vld [vmem:[%s3 + $0xe0] sm:$0xff]
    %v306 = vld [vmem:[%s3 + $0xe8] sm:$0xff]
    %v307 = vld [vmem:[%s3 + $0xf0] sm:$0xff]
    %v308 = vld [vmem:[%s3 + $0xf8] sm:$0xff]
    %v309 = vld [vmem:[%s3 + $0x100] sm:$0xff]
    %v310 = vld [vmem:[%s3 + $0x108] sm:$0xff]
    %v311 = vld [vmem:[%s3 + $0x110] sm:$0xff]
    %v312 = vld [vmem:[%s3 + $0x118] sm:$0xff]
    %v313 = vld [vmem:[%s3 + $0x120] sm:$0xff]
    %v314 = vld [vmem:[%s3 + $0x128] sm:$0xff]
    %v315 = vld [vmem:[%s3 + $0x130] sm:$0xff]
    %v316 = vld [vmem:[%s3 + $0x138] sm:$0xff]
    %v317 = vld [vmem:[%s3 + $0x140] sm:$0xff]
    %v318 = vld [vmem:[%s3 + $0x148] sm:$0xff]
    %v319 = vld [vmem:[%s3 + $0x150] sm:$0xff]
    %v320 = vld [vmem:[%s3 + $0x158] sm:$0xff]
    %v321 = vld [vmem:[%s3 + $0x160] sm:$0xff]
    %v322 = vld [vmem:[%s3 + $0x168] sm:$0xff]
    %v323 = vld [vmem:[%s3 + $0x170] sm:$0xff]
    %v324 = vld [vmem:[%s3 + $0x178] sm:$0xff]
    %v325 = vld [vmem:[%s3 + $0x180] sm:$0xff]
    %v326 = vld [vmem:[%s3 + $0x188] sm:$0xff]
    %v327 = vld [vmem:[%s3 + $0x190] sm:$0xff]
    %v328 = vld [vmem:[%s3 + $0x198] sm:$0xff]
    %v329 = vld [vmem:[%s3 + $0x1a0] sm:$0xff]
    %v330 = vld [vmem:[%s3 + $0x1a8] sm:$0xff]
    %v331 = vld [vmem:[%s3 + $0x1b0] sm:$0xff]
    %v332 = vld [vmem:[%s3 + $0x1b8] sm:$0xff]
    %v333 = vld [vmem:[%s3 + $0x1c0] sm:$0xff]
    %v334 = vld [vmem:[%s3 + $0x1c8] sm:$0xff]
    %v335 = vld [vmem:[%s3 + $0x1d0] sm:$0xff]
    %v336 = vld [vmem:[%s3 + $0x1d8] sm:$0xff]
    %v337 = vld [vmem:[%s3 + $0x1e0] sm:$0xff]
    %v338 = vld [vmem:[%s3 + $0x1e8] sm:$0xff]
    %v339 = vld [vmem:[%s3 + $0x1f0] sm:$0xff]
    %v340 = vld [vmem:[%s3 + $0x1f8] sm:$0xff]
    %v341 = vld [vmem:[%s3 + $0x200] sm:$0xff]
    %v342 = vld [vmem:[%s3 + $0x208] sm:$0xff]
    %v343 = vld [vmem:[%s3 + $0x210] sm:$0xff]
    %v344 = vld [vmem:[%s3 + $0x218] sm:$0xff]
    %v345 = vld [vmem:[%s3 + $0x220] sm:$0xff]
    %v346 = vld [vmem:[%s3 + $0x228] sm:$0xff]
    %v347 = vld [vmem:[%s3 + $0x230] sm:$0xff]
    %v348 = vld [vmem:[%s3 + $0x238] sm:$0xff]
    %v349 = vld [vmem:[%s3 + $0x240] sm:$0xff]
    %v350 = vld [vmem:[%s3 + $0x248] sm:$0xff]
    %v351 = vld [vmem:[%s3 + $0x250] sm:$0xff]
    %v352 = vld [vmem:[%s3 + $0x258] sm:$0xff]
    %v353 = vld [vmem:[%s3 + $0x260] sm:$0xff]
    %v354 = vld [vmem:[%s3 + $0x268] sm:$0xff]
    %v355 = vld [vmem:[%s3 + $0x270] sm:$0xff]
    %v356 = vld [vmem:[%s3 + $0x278] sm:$0xff]
    %v357 = vld [vmem:[%s3 + $0x280] sm:$0xff]
    %v358 = vld [vmem:[%s3 + $0x288] sm:$0xff]
    %v359 = vld [vmem:[%s3 + $0x290] sm:$0xff]
    %v360 = vld [vmem:[%s3 + $0x298] sm:$0xff]
    %v361 = vld [vmem:[%s3 + $0x2a0] sm:$0xff]
    %v362 = vld [vmem:[%s3 + $0x2a8] sm:$0xff]
    %v363 = vld [vmem:[%s3 + $0x2b0] sm:$0xff]
    %v364 = vld [vmem:[%s3 + $0x2b8] sm:$0xff]
    %v365 = vld [vmem:[%s3 + $0x2c0] sm:$0xff]
    %v366 = vld [vmem:[%s3 + $0x2c8] sm:$0xff]
    %v367 = vld [vmem:[%s3 + $0x2d0] sm:$0xff]
    %v368 = vld [vmem:[%s3 + $0x2d8] sm:$0xff]
    %v369 = vld [vmem:[%s3 + $0x2e0] sm:$0xff]
    %v370 = vld [vmem:[%s3 + $0x2e8] sm:$0xff]
    %v371 = vld [vmem:[%s3 + $0x2f0] sm:$0xff]
    %v372 = vld [vmem:[%s3 + $0x2f8] sm:$0xff]
    %v373 = vld [vmem:[%s3 + $0x300] sm:$0xff]
    %v374 = vld [vmem:[%s3 + $0x308] sm:$0xff]
    %v375 = vld [vmem:[%s3 + $0x310] sm:$0xff]
    %v376 = vld [vmem:[%s3 + $0x318] sm:$0xff]
    %v377 = vld [vmem:[%s3 + $0x320] sm:$0xff]
    %v378 = vld [vmem:[%s3 + $0x328] sm:$0xff]
    %v379 = vld [vmem:[%s3 + $0x330] sm:$0xff]
    %v380 = vld [vmem:[%s3 + $0x338] sm:$0xff]
    %v381 = vld [vmem:[%s3 + $0x340] sm:$0xff]
    %v382 = vld [vmem:[%s3 + $0x348] sm:$0xff]
    %v383 = vld [vmem:[%s3 + $0x350] sm:$0xff]
    %v384 = vld [vmem:[%s3 + $0x358] sm:$0xff]
    %v385 = vld [vmem:[%s3 + $0x360] sm:$0xff]
    %v386 = vld [vmem:[%s3 + $0x368] sm:$0xff]
    %v387 = vld [vmem:[%s3 + $0x370] sm:$0xff]
    %v388 = vld [vmem:[%s3 + $0x378] sm:$0xff]
    %v389 = vld [vmem:[%s3 + $0x380] sm:$0xff]
    %v390 = vld [vmem:[%s3 + $0x388] sm:$0xff]
    %v391 = vld [vmem:[%s3 + $0x390] sm:$0xff]
    %v392 = vld [vmem:[%s3 + $0x398] sm:$0xff]
    %v393 = vld [vmem:[%s3 + $0x3a0] sm:$0xff]
    %v394 = vld [vmem:[%s3 + $0x3a8] sm:$0xff]
    %v395 = vld [vmem:[%s3 + $0x3b0] sm:$0xff]
    %v396 = vld [vmem:[%s3 + $0x3b8] sm:$0xff]
    %v397 = vld [vmem:[%s3 + $0x3c0] sm:$0xff]
    %v398 = vld [vmem:[%s3 + $0x3c8] sm:$0xff]
    %v399 = vld [vmem:[%s3 + $0x3d0] sm:$0xff]
    %v400 = vld [vmem:[%s3 + $0x3d8] sm:$0xff]
    %v401 = vld [vmem:[%s3 + $0x3e0] sm:$0xff]
    %v402 = vld [vmem:[%s3 + $0x3e8] sm:$0xff]
    %v403 = vld [vmem:[%s3 + $0x3f0] sm:$0xff]
    %v404 = vld [vmem:[%s3 + $0x3f8] sm:$0xff]
    %v413 = vunpack.c.l.b16 %v269
    %v414 = vunpack.c.l.b16 %v270
    %v415 = vunpack.c.l.b16 %v271
    %v416 = vunpack.c.l.b16 %v272
    %v417 = vunpack.c.l.b16 %v273
    %v418 = vunpack.c.l.b16 %v274
    %v419 = vunpack.c.l.b16 %v275
    %v420 = vunpack.c.l.b16 %v276
    %vm421 = vcmask 1041409
    %v422 = vsel %vm421, %v417, %v413
    %v423 = vsel %vm421, %v418, %v414
    %v424 = vsel %vm421, %v419, %v415
    %v425 = vsel %vm421, %v420, %v416
    %v426 = vpack.c.b16 %v422, %v422
    %v427 = vpack.c.b16 %v423, %v423
    %v428 = vpack.c.b16 %v424, %v424
    %v429 = vpack.c.b16 %v425, %v425
    %v562 = vunpack.c.l.b16 %v277
    %v563 = vunpack.c.h.b16 %v277
    %v564 = vunpack.c.l.b16 %v278
    %v565 = vunpack.c.h.b16 %v278
    %v566 = vunpack.c.l.b16 %v279
    %v567 = vunpack.c.h.b16 %v279
    %v568 = vunpack.c.l.b16 %v280
    %v569 = vunpack.c.h.b16 %v280
    %v570 = vunpack.c.l.b16 %v281
    %v571 = vunpack.c.h.b16 %v281
    %v572 = vunpack.c.l.b16 %v282
    %v573 = vunpack.c.h.b16 %v282
    %v574 = vunpack.c.l.b16 %v283
    %v575 = vunpack.c.h.b16 %v283
    %v576 = vunpack.c.l.b16 %v284
    %v577 = vunpack.c.h.b16 %v284
    %v578 = vunpack.c.l.b16 %v285
    %v579 = vunpack.c.h.b16 %v285
    %v580 = vunpack.c.l.b16 %v286
    %v581 = vunpack.c.h.b16 %v286
    %v582 = vunpack.c.l.b16 %v287
    %v583 = vunpack.c.h.b16 %v287
    %v584 = vunpack.c.l.b16 %v288
    %v585 = vunpack.c.h.b16 %v288
    %v586 = vunpack.c.l.b16 %v289
    %v587 = vunpack.c.h.b16 %v289
    %v588 = vunpack.c.l.b16 %v290
    %v589 = vunpack.c.h.b16 %v290
    %v590 = vunpack.c.l.b16 %v291
    %v591 = vunpack.c.h.b16 %v291
    %v592 = vunpack.c.l.b16 %v292
    %v593 = vunpack.c.h.b16 %v292
    %v594 = vunpack.c.l.b16 %v293
    %v595 = vunpack.c.h.b16 %v293
    %v596 = vunpack.c.l.b16 %v294
    %v597 = vunpack.c.h.b16 %v294
    %v598 = vunpack.c.l.b16 %v295
    %v599 = vunpack.c.h.b16 %v295
    %v600 = vunpack.c.l.b16 %v296
    %v601 = vunpack.c.h.b16 %v296
    %v602 = vunpack.c.l.b16 %v297
    %v603 = vunpack.c.h.b16 %v297
    %v604 = vunpack.c.l.b16 %v298
    %v605 = vunpack.c.h.b16 %v298
    %v606 = vunpack.c.l.b16 %v299
    %v607 = vunpack.c.h.b16 %v299
    %v608 = vunpack.c.l.b16 %v300
    %v609 = vunpack.c.h.b16 %v300
    %v610 = vunpack.c.l.b16 %v301
    %v611 = vunpack.c.h.b16 %v301
    %v612 = vunpack.c.l.b16 %v302
    %v613 = vunpack.c.h.b16 %v302
    %v614 = vunpack.c.l.b16 %v303
    %v615 = vunpack.c.h.b16 %v303
    %v616 = vunpack.c.l.b16 %v304
    %v617 = vunpack.c.h.b16 %v304
    %v618 = vunpack.c.l.b16 %v305
    %v619 = vunpack.c.h.b16 %v305
    %v620 = vunpack.c.l.b16 %v306
    %v621 = vunpack.c.h.b16 %v306
    %v622 = vunpack.c.l.b16 %v307
    %v623 = vunpack.c.h.b16 %v307
    %v624 = vunpack.c.l.b16 %v308
    %v625 = vunpack.c.h.b16 %v308
    %v626 = vunpack.c.l.b16 %v309
    %v627 = vunpack.c.h.b16 %v309
    %v628 = vunpack.c.l.b16 %v310
    %v629 = vunpack.c.h.b16 %v310
    %v630 = vunpack.c.l.b16 %v311
    %v631 = vunpack.c.h.b16 %v311
    %v632 = vunpack.c.l.b16 %v312
    %v633 = vunpack.c.h.b16 %v312
    %v634 = vunpack.c.l.b16 %v313
    %v635 = vunpack.c.h.b16 %v313
    %v636 = vunpack.c.l.b16 %v314
    %v637 = vunpack.c.h.b16 %v314
    %v638 = vunpack.c.l.b16 %v315
    %v639 = vunpack.c.h.b16 %v315
    %v640 = vunpack.c.l.b16 %v316
    %v641 = vunpack.c.h.b16 %v316
    %v642 = vunpack.c.l.b16 %v317
    %v643 = vunpack.c.h.b16 %v317
    %v644 = vunpack.c.l.b16 %v318
    %v645 = vunpack.c.h.b16 %v318
    %v646 = vunpack.c.l.b16 %v319
    %v647 = vunpack.c.h.b16 %v319
    %v648 = vunpack.c.l.b16 %v320
    %v649 = vunpack.c.h.b16 %v320
    %v650 = vunpack.c.l.b16 %v321
    %v651 = vunpack.c.h.b16 %v321
    %v652 = vunpack.c.l.b16 %v322
    %v653 = vunpack.c.h.b16 %v322
    %v654 = vunpack.c.l.b16 %v323
    %v655 = vunpack.c.h.b16 %v323
    %v656 = vunpack.c.l.b16 %v324
    %v657 = vunpack.c.h.b16 %v324
    %v658 = vunpack.c.l.b16 %v325
    %v659 = vunpack.c.h.b16 %v325
    %v660 = vunpack.c.l.b16 %v326
    %v661 = vunpack.c.h.b16 %v326
    %v662 = vunpack.c.l.b16 %v327
    %v663 = vunpack.c.h.b16 %v327
    %v664 = vunpack.c.l.b16 %v328
    %v665 = vunpack.c.h.b16 %v328
    %v666 = vunpack.c.l.b16 %v329
    %v667 = vunpack.c.h.b16 %v329
    %v668 = vunpack.c.l.b16 %v330
    %v669 = vunpack.c.h.b16 %v330
    %v670 = vunpack.c.l.b16 %v331
    %v671 = vunpack.c.h.b16 %v331
    %v672 = vunpack.c.l.b16 %v332
    %v673 = vunpack.c.h.b16 %v332
    %v674 = vunpack.c.l.b16 %v333
    %v675 = vunpack.c.h.b16 %v333
    %v676 = vunpack.c.l.b16 %v334
    %v677 = vunpack.c.h.b16 %v334
    %v678 = vunpack.c.l.b16 %v335
    %v679 = vunpack.c.h.b16 %v335
    %v680 = vunpack.c.l.b16 %v336
    %v681 = vunpack.c.h.b16 %v336
    %v682 = vunpack.c.l.b16 %v337
    %v683 = vunpack.c.h.b16 %v337
    %v684 = vunpack.c.l.b16 %v338
    %v685 = vunpack.c.h.b16 %v338
    %v686 = vunpack.c.l.b16 %v339
    %v687 = vunpack.c.h.b16 %v339
    %v688 = vunpack.c.l.b16 %v340
    %v689 = vunpack.c.h.b16 %v340
    %v690 = vunpack.c.l.b16 %v341
    %v691 = vunpack.c.h.b16 %v341
    %v692 = vunpack.c.l.b16 %v342
    %v693 = vunpack.c.h.b16 %v342
    %v694 = vunpack.c.l.b16 %v343
    %v695 = vunpack.c.h.b16 %v343
    %v696 = vunpack.c.l.b16 %v344
    %v697 = vunpack.c.h.b16 %v344
    %v698 = vunpack.c.l.b16 %v345
    %v699 = vunpack.c.h.b16 %v345
    %v700 = vunpack.c.l.b16 %v346
    %v701 = vunpack.c.h.b16 %v346
    %v702 = vunpack.c.l.b16 %v347
    %v703 = vunpack.c.h.b16 %v347
    %v704 = vunpack.c.l.b16 %v348
    %v705 = vunpack.c.h.b16 %v348
    %v706 = vunpack.c.l.b16 %v349
    %v707 = vunpack.c.h.b16 %v349
    %v708 = vunpack.c.l.b16 %v350
    %v709 = vunpack.c.h.b16 %v350
    %v710 = vunpack.c.l.b16 %v351
    %v711 = vunpack.c.h.b16 %v351
    %v712 = vunpack.c.l.b16 %v352
    %v713 = vunpack.c.h.b16 %v352
    %v714 = vunpack.c.l.b16 %v353
    %v715 = vunpack.c.h.b16 %v353
    %v716 = vunpack.c.l.b16 %v354
    %v717 = vunpack.c.h.b16 %v354
    %v718 = vunpack.c.l.b16 %v355
    %v719 = vunpack.c.h.b16 %v355
    %v720 = vunpack.c.l.b16 %v356
    %v721 = vunpack.c.h.b16 %v356
    %v722 = vunpack.c.l.b16 %v357
    %v723 = vunpack.c.h.b16 %v357
    %v724 = vunpack.c.l.b16 %v358
    %v725 = vunpack.c.h.b16 %v358
    %v726 = vunpack.c.l.b16 %v359
    %v727 = vunpack.c.h.b16 %v359
    %v728 = vunpack.c.l.b16 %v360
    %v729 = vunpack.c.h.b16 %v360
    %v730 = vunpack.c.l.b16 %v361
    %v731 = vunpack.c.h.b16 %v361
    %v732 = vunpack.c.l.b16 %v362
    %v733 = vunpack.c.h.b16 %v362
    %v734 = vunpack.c.l.b16 %v363
    %v735 = vunpack.c.h.b16 %v363
    %v736 = vunpack.c.l.b16 %v364
    %v737 = vunpack.c.h.b16 %v364
    %v738 = vunpack.c.l.b16 %v365
    %v739 = vunpack.c.h.b16 %v365
    %v740 = vunpack.c.l.b16 %v366
    %v741 = vunpack.c.h.b16 %v366
    %v742 = vunpack.c.l.b16 %v367
    %v743 = vunpack.c.h.b16 %v367
    %v744 = vunpack.c.l.b16 %v368
    %v745 = vunpack.c.h.b16 %v368
    %v746 = vunpack.c.l.b16 %v369
    %v747 = vunpack.c.h.b16 %v369
    %v748 = vunpack.c.l.b16 %v370
    %v749 = vunpack.c.h.b16 %v370
    %v750 = vunpack.c.l.b16 %v371
    %v751 = vunpack.c.h.b16 %v371
    %v752 = vunpack.c.l.b16 %v372
    %v753 = vunpack.c.h.b16 %v372
    %v754 = vunpack.c.l.b16 %v373
    %v755 = vunpack.c.h.b16 %v373
    %v756 = vunpack.c.l.b16 %v374
    %v757 = vunpack.c.h.b16 %v374
    %v758 = vunpack.c.l.b16 %v375
    %v759 = vunpack.c.h.b16 %v375
    %v760 = vunpack.c.l.b16 %v376
    %v761 = vunpack.c.h.b16 %v376
    %v762 = vunpack.c.l.b16 %v377
    %v763 = vunpack.c.h.b16 %v377
    %v764 = vunpack.c.l.b16 %v378
    %v765 = vunpack.c.h.b16 %v378
    %v766 = vunpack.c.l.b16 %v379
    %v767 = vunpack.c.h.b16 %v379
    %v768 = vunpack.c.l.b16 %v380
    %v769 = vunpack.c.h.b16 %v380
    %v770 = vunpack.c.l.b16 %v381
    %v771 = vunpack.c.h.b16 %v381
    %v772 = vunpack.c.l.b16 %v382
    %v773 = vunpack.c.h.b16 %v382
    %v774 = vunpack.c.l.b16 %v383
    %v775 = vunpack.c.h.b16 %v383
    %v776 = vunpack.c.l.b16 %v384
    %v777 = vunpack.c.h.b16 %v384
    %v778 = vunpack.c.l.b16 %v385
    %v779 = vunpack.c.h.b16 %v385
    %v780 = vunpack.c.l.b16 %v386
    %v781 = vunpack.c.h.b16 %v386
    %v782 = vunpack.c.l.b16 %v387
    %v783 = vunpack.c.h.b16 %v387
    %v784 = vunpack.c.l.b16 %v388
    %v785 = vunpack.c.h.b16 %v388
    %v786 = vunpack.c.l.b16 %v389
    %v787 = vunpack.c.h.b16 %v389
    %v788 = vunpack.c.l.b16 %v390
    %v789 = vunpack.c.h.b16 %v390
    %v790 = vunpack.c.l.b16 %v391
    %v791 = vunpack.c.h.b16 %v391
    %v792 = vunpack.c.l.b16 %v392
    %v793 = vunpack.c.h.b16 %v392
    %v794 = vunpack.c.l.b16 %v393
    %v795 = vunpack.c.h.b16 %v393
    %v796 = vunpack.c.l.b16 %v394
    %v797 = vunpack.c.h.b16 %v394
    %v798 = vunpack.c.l.b16 %v395
    %v799 = vunpack.c.h.b16 %v395
    %v800 = vunpack.c.l.b16 %v396
    %v801 = vunpack.c.h.b16 %v396
    %v802 = vunpack.c.l.b16 %v397
    %v803 = vunpack.c.h.b16 %v397
    %v804 = vunpack.c.l.b16 %v398
    %v805 = vunpack.c.h.b16 %v398
    %v806 = vunpack.c.l.b16 %v399
    %v807 = vunpack.c.h.b16 %v399
    %v808 = vunpack.c.l.b16 %v400
    %v809 = vunpack.c.h.b16 %v400
    %v810 = vunpack.c.l.b16 %v401
    %v811 = vunpack.c.h.b16 %v401
    %v812 = vunpack.c.l.b16 %v402
    %v813 = vunpack.c.h.b16 %v402
    %v814 = vunpack.c.l.b16 %v403
    %v815 = vunpack.c.h.b16 %v403
    %v816 = vunpack.c.l.b16 %v404
    %v817 = vunpack.c.h.b16 %v404
    %v818 = vpack.c.b16 %v566, %v562
    %v819 = vpack.c.b16 %v567, %v563
    %v820 = vpack.c.b16 %v568, %v564
    %v821 = vpack.c.b16 %v569, %v565
    %v822 = vpack.c.b16 %v574, %v570
    %v823 = vpack.c.b16 %v575, %v571
    %v824 = vpack.c.b16 %v576, %v572
    %v825 = vpack.c.b16 %v577, %v573
    %v826 = vpack.c.b16 %v582, %v578
    %v827 = vpack.c.b16 %v583, %v579
    %v828 = vpack.c.b16 %v584, %v580
    %v829 = vpack.c.b16 %v585, %v581
    %v830 = vpack.c.b16 %v590, %v586
    %v831 = vpack.c.b16 %v591, %v587
    %v832 = vpack.c.b16 %v592, %v588
    %v833 = vpack.c.b16 %v593, %v589
    %v834 = vpack.c.b16 %v598, %v594
    %v835 = vpack.c.b16 %v599, %v595
    %v836 = vpack.c.b16 %v600, %v596
    %v837 = vpack.c.b16 %v601, %v597
    %v838 = vpack.c.b16 %v606, %v602
    %v839 = vpack.c.b16 %v607, %v603
    %v840 = vpack.c.b16 %v608, %v604
    %v841 = vpack.c.b16 %v609, %v605
    %v842 = vpack.c.b16 %v614, %v610
    %v843 = vpack.c.b16 %v615, %v611
    %v844 = vpack.c.b16 %v616, %v612
    %v845 = vpack.c.b16 %v617, %v613
    %v846 = vpack.c.b16 %v622, %v618
    %v847 = vpack.c.b16 %v623, %v619
    %v848 = vpack.c.b16 %v624, %v620
    %v849 = vpack.c.b16 %v625, %v621
    %v850 = vpack.c.b16 %v630, %v626
    %v851 = vpack.c.b16 %v631, %v627
    %v852 = vpack.c.b16 %v632, %v628
    %v853 = vpack.c.b16 %v633, %v629
    %v854 = vpack.c.b16 %v638, %v634
    %v855 = vpack.c.b16 %v639, %v635
    %v856 = vpack.c.b16 %v640, %v636
    %v857 = vpack.c.b16 %v641, %v637
    %v858 = vpack.c.b16 %v646, %v642
    %v859 = vpack.c.b16 %v647, %v643
    %v860 = vpack.c.b16 %v648, %v644
    %v861 = vpack.c.b16 %v649, %v645
    %v862 = vpack.c.b16 %v654, %v650
    %v863 = vpack.c.b16 %v655, %v651
    %v864 = vpack.c.b16 %v656, %v652
    %v865 = vpack.c.b16 %v657, %v653
    %v866 = vpack.c.b16 %v662, %v658
    %v867 = vpack.c.b16 %v663, %v659
    %v868 = vpack.c.b16 %v664, %v660
    %v869 = vpack.c.b16 %v665, %v661
    %v870 = vpack.c.b16 %v670, %v666
    %v871 = vpack.c.b16 %v671, %v667
    %v872 = vpack.c.b16 %v672, %v668
    %v873 = vpack.c.b16 %v673, %v669
    %v874 = vpack.c.b16 %v678, %v674
    %v875 = vpack.c.b16 %v679, %v675
    %v876 = vpack.c.b16 %v680, %v676
    %v877 = vpack.c.b16 %v681, %v677
    %v878 = vpack.c.b16 %v686, %v682
    %v879 = vpack.c.b16 %v687, %v683
    %v880 = vpack.c.b16 %v688, %v684
    %v881 = vpack.c.b16 %v689, %v685
    %v882 = vpack.c.b16 %v694, %v690
    %v883 = vpack.c.b16 %v695, %v691
    %v884 = vpack.c.b16 %v696, %v692
    %v885 = vpack.c.b16 %v697, %v693
    %v886 = vpack.c.b16 %v702, %v698
    %v887 = vpack.c.b16 %v703, %v699
    %v888 = vpack.c.b16 %v704, %v700
    %v889 = vpack.c.b16 %v705, %v701
    %v890 = vpack.c.b16 %v710, %v706
    %v891 = vpack.c.b16 %v711, %v707
    %v892 = vpack.c.b16 %v712, %v708
    %v893 = vpack.c.b16 %v713, %v709
    %v894 = vpack.c.b16 %v718, %v714
    %v895 = vpack.c.b16 %v719, %v715
    %v896 = vpack.c.b16 %v720, %v716
    %v897 = vpack.c.b16 %v721, %v717
    %v898 = vpack.c.b16 %v726, %v722
    %v899 = vpack.c.b16 %v727, %v723
    %v900 = vpack.c.b16 %v728, %v724
    %v901 = vpack.c.b16 %v729, %v725
    %v902 = vpack.c.b16 %v734, %v730
    %v903 = vpack.c.b16 %v735, %v731
    %v904 = vpack.c.b16 %v736, %v732
    %v905 = vpack.c.b16 %v737, %v733
    %v906 = vpack.c.b16 %v742, %v738
    %v907 = vpack.c.b16 %v743, %v739
    %v908 = vpack.c.b16 %v744, %v740
    %v909 = vpack.c.b16 %v745, %v741
    %v910 = vpack.c.b16 %v750, %v746
    %v911 = vpack.c.b16 %v751, %v747
    %v912 = vpack.c.b16 %v752, %v748
    %v913 = vpack.c.b16 %v753, %v749
    %v914 = vpack.c.b16 %v758, %v754
    %v915 = vpack.c.b16 %v759, %v755
    %v916 = vpack.c.b16 %v760, %v756
    %v917 = vpack.c.b16 %v761, %v757
    %v918 = vpack.c.b16 %v766, %v762
    %v919 = vpack.c.b16 %v767, %v763
    %v920 = vpack.c.b16 %v768, %v764
    %v921 = vpack.c.b16 %v769, %v765
    %v922 = vpack.c.b16 %v774, %v770
    %v923 = vpack.c.b16 %v775, %v771
    %v924 = vpack.c.b16 %v776, %v772
    %v925 = vpack.c.b16 %v777, %v773
    %v926 = vpack.c.b16 %v782, %v778
    %v927 = vpack.c.b16 %v783, %v779
    %v928 = vpack.c.b16 %v784, %v780
    %v929 = vpack.c.b16 %v785, %v781
    %v930 = vpack.c.b16 %v790, %v786
    %v931 = vpack.c.b16 %v791, %v787
    %v932 = vpack.c.b16 %v792, %v788
    %v933 = vpack.c.b16 %v793, %v789
    %v934 = vpack.c.b16 %v798, %v794
    %v935 = vpack.c.b16 %v799, %v795
    %v936 = vpack.c.b16 %v800, %v796
    %v937 = vpack.c.b16 %v801, %v797
    %v938 = vpack.c.b16 %v806, %v802
    %v939 = vpack.c.b16 %v807, %v803
    %v940 = vpack.c.b16 %v808, %v804
    %v941 = vpack.c.b16 %v809, %v805
    %v942 = vpack.c.b16 %v814, %v810
    %v943 = vpack.c.b16 %v815, %v811
    %v944 = vpack.c.b16 %v816, %v812
    %v945 = vpack.c.b16 %v817, %v813
    %1074 = vmatpush.bf16.msra.mxu0 %v846
    %1075 = vmatpush.bf16.msra.mxu0 %v842
    %1076 = vmatpush.bf16.msra.mxu0 %v838
    %1077 = vmatpush.bf16.msra.mxu0 %v834
    %1078 = vmatpush.bf16.msra.mxu0 %v830
    %1079 = vmatpush.bf16.msra.mxu0 %v826
    %1080 = vmatpush.bf16.msra.mxu0 %v822
    %1081 = vmatpush.bf16.msra.mxu0 %v818
    %1082 = vmatmul.bf16.gmra.mxu0 %v426
    %v1083 = vpop.f32.mrf.mxu0
    %v1084 = vadd.f32 0.0, %v1083
    %v1085 = vpop.f32.mrf.mxu0
    %1086 = vdwg.mxu0
    %1087 = vmatpush.bf16.msra.mxu0 %v878
    %1088 = vmatpush.bf16.msra.mxu0 %v874
    %1089 = vmatpush.bf16.msra.mxu0 %v870
    %1090 = vmatpush.bf16.msra.mxu0 %v866
    %1091 = vmatpush.bf16.msra.mxu0 %v862
    %1092 = vmatpush.bf16.msra.mxu0 %v858
    %1093 = vmatpush.bf16.msra.mxu0 %v854
    %1094 = vmatpush.bf16.msra.mxu0 %v850
    %1095 = vmatmul.bf16.gmra.mxu0 %v427
    %v1096 = vpop.f32.mrf.mxu0
    %v1097 = vadd.f32 %v1084, %v1096
    %v1098 = vpop.f32.mrf.mxu0
    %1099 = vdwg.mxu0
    %1100 = vmatpush.bf16.msra.mxu0 %v910
    %1101 = vmatpush.bf16.msra.mxu0 %v906
    %1102 = vmatpush.bf16.msra.mxu0 %v902
    %1103 = vmatpush.bf16.msra.mxu0 %v898
    %1104 = vmatpush.bf16.msra.mxu0 %v894
    %1105 = vmatpush.bf16.msra.mxu0 %v890
    %1106 = vmatpush.bf16.msra.mxu0 %v886
    %1107 = vmatpush.bf16.msra.mxu0 %v882
    %1108 = vmatmul.bf16.gmra.mxu0 %v428
    %v1109 = vpop.f32.mrf.mxu0
    %v1110 = vadd.f32 %v1097, %v1109
    %v1111 = vpop.f32.mrf.mxu0
    %1112 = vdwg.mxu0
    %1113 = vmatpush.bf16.msra.mxu0 %v942
    %1114 = vmatpush.bf16.msra.mxu0 %v938
    %1115 = vmatpush.bf16.msra.mxu0 %v934
    %1116 = vmatpush.bf16.msra.mxu0 %v930
    %1117 = vmatpush.bf16.msra.mxu0 %v926
    %1118 = vmatpush.bf16.msra.mxu0 %v922
    %1119 = vmatpush.bf16.msra.mxu0 %v918
    %1120 = vmatpush.bf16.msra.mxu0 %v914
    %1121 = vmatmul.bf16.gmra.mxu0 %v429
    %v1122 = vpop.f32.mrf.mxu0
    %v1123 = vadd.f32 %v1110, %v1122
    %v1124 = vpop.f32.mrf.mxu0
    %1125 = vdwg.mxu0
    %1126 = vmatpush.bf16.msra.mxu0 %v847
    %1127 = vmatpush.bf16.msra.mxu0 %v843
    %1128 = vmatpush.bf16.msra.mxu0 %v839
    %1129 = vmatpush.bf16.msra.mxu0 %v835
    %1130 = vmatpush.bf16.msra.mxu0 %v831
    %1131 = vmatpush.bf16.msra.mxu0 %v827
    %1132 = vmatpush.bf16.msra.mxu0 %v823
    %1133 = vmatpush.bf16.msra.mxu0 %v819
    %1134 = vmatmul.bf16.gmra.mxu0 %v426
    %v1135 = vpop.f32.mrf.mxu0
    %v1136 = vadd.f32 0.0, %v1135
    %v1137 = vpop.f32.mrf.mxu0
    %1138 = vdwg.mxu0
    %1139 = vmatpush.bf16.msra.mxu0 %v879
    %1140 = vmatpush.bf16.msra.mxu0 %v875
    %1141 = vmatpush.bf16.msra.mxu0 %v871
    %1142 = vmatpush.bf16.msra.mxu0 %v867
    %1143 = vmatpush.bf16.msra.mxu0 %v863
    %1144 = vmatpush.bf16.msra.mxu0 %v859
    %1145 = vmatpush.bf16.msra.mxu0 %v855
    %1146 = vmatpush.bf16.msra.mxu0 %v851
    %1147 = vmatmul.bf16.gmra.mxu0 %v427
    %v1148 = vpop.f32.mrf.mxu0
    %v1149 = vadd.f32 %v1136, %v1148
    %v1150 = vpop.f32.mrf.mxu0
    %1151 = vdwg.mxu0
    %1152 = vmatpush.bf16.msra.mxu0 %v911
    %1153 = vmatpush.bf16.msra.mxu0 %v907
    %1154 = vmatpush.bf16.msra.mxu0 %v903
    %1155 = vmatpush.bf16.msra.mxu0 %v899
    %1156 = vmatpush.bf16.msra.mxu0 %v895
    %1157 = vmatpush.bf16.msra.mxu0 %v891
    %1158 = vmatpush.bf16.msra.mxu0 %v887
    %1159 = vmatpush.bf16.msra.mxu0 %v883
    %1160 = vmatmul.bf16.gmra.mxu0 %v428
    %v1161 = vpop.f32.mrf.mxu0
    %v1162 = vadd.f32 %v1149, %v1161
    %v1163 = vpop.f32.mrf.mxu0
    %1164 = vdwg.mxu0
    %1165 = vmatpush.bf16.msra.mxu0 %v943
    %1166 = vmatpush.bf16.msra.mxu0 %v939
    %1167 = vmatpush.bf16.msra.mxu0 %v935
    %1168 = vmatpush.bf16.msra.mxu0 %v931
    %1169 = vmatpush.bf16.msra.mxu0 %v927
    %1170 = vmatpush.bf16.msra.mxu0 %v923
    %1171 = vmatpush.bf16.msra.mxu0 %v919
    %1172 = vmatpush.bf16.msra.mxu0 %v915
    %1173 = vmatmul.bf16.gmra.mxu0 %v429
    %v1174 = vpop.f32.mrf.mxu0
    %v1175 = vadd.f32 %v1162, %v1174
    %v1176 = vpop.f32.mrf.mxu0
    %1177 = vdwg.mxu0
    %1178 = vmatpush.bf16.msra.mxu0 %v848
    %1179 = vmatpush.bf16.msra.mxu0 %v844
    %1180 = vmatpush.bf16.msra.mxu0 %v840
    %1181 = vmatpush.bf16.msra.mxu0 %v836
    %1182 = vmatpush.bf16.msra.mxu0 %v832
    %1183 = vmatpush.bf16.msra.mxu0 %v828
    %1184 = vmatpush.bf16.msra.mxu0 %v824
    %1185 = vmatpush.bf16.msra.mxu0 %v820
    %1186 = vmatmul.bf16.gmra.mxu0 %v426
    %v1187 = vpop.f32.mrf.mxu0
    %v1188 = vadd.f32 0.0, %v1187
    %v1189 = vpop.f32.mrf.mxu0
    %1190 = vdwg.mxu0
    %1191 = vmatpush.bf16.msra.mxu0 %v880
    %1192 = vmatpush.bf16.msra.mxu0 %v876
    %1193 = vmatpush.bf16.msra.mxu0 %v872
    %1194 = vmatpush.bf16.msra.mxu0 %v868
    %1195 = vmatpush.bf16.msra.mxu0 %v864
    %1196 = vmatpush.bf16.msra.mxu0 %v860
    %1197 = vmatpush.bf16.msra.mxu0 %v856
    %1198 = vmatpush.bf16.msra.mxu0 %v852
    %1199 = vmatmul.bf16.gmra.mxu0 %v427
    %v1200 = vpop.f32.mrf.mxu0
    %v1201 = vadd.f32 %v1188, %v1200
    %v1202 = vpop.f32.mrf.mxu0
    %1203 = vdwg.mxu0
    %1204 = vmatpush.bf16.msra.mxu0 %v912
    %1205 = vmatpush.bf16.msra.mxu0 %v908
    %1206 = vmatpush.bf16.msra.mxu0 %v904
    %1207 = vmatpush.bf16.msra.mxu0 %v900
    %1208 = vmatpush.bf16.msra.mxu0 %v896
    %1209 = vmatpush.bf16.msra.mxu0 %v892
    %1210 = vmatpush.bf16.msra.mxu0 %v888
    %1211 = vmatpush.bf16.msra.mxu0 %v884
    %1212 = vmatmul.bf16.gmra.mxu0 %v428
    %v1213 = vpop.f32.mrf.mxu0
    %v1214 = vadd.f32 %v1201, %v1213
    %v1215 = vpop.f32.mrf.mxu0
    %1216 = vdwg.mxu0
    %1217 = vmatpush.bf16.msra.mxu0 %v944
    %1218 = vmatpush.bf16.msra.mxu0 %v940
    %1219 = vmatpush.bf16.msra.mxu0 %v936
    %1220 = vmatpush.bf16.msra.mxu0 %v932
    %1221 = vmatpush.bf16.msra.mxu0 %v928
    %1222 = vmatpush.bf16.msra.mxu0 %v924
    %1223 = vmatpush.bf16.msra.mxu0 %v920
    %1224 = vmatpush.bf16.msra.mxu0 %v916
    %1225 = vmatmul.bf16.gmra.mxu0 %v429
    %v1226 = vpop.f32.mrf.mxu0
    %v1227 = vadd.f32 %v1214, %v1226
    %v1228 = vpop.f32.mrf.mxu0
    %1229 = vdwg.mxu0
    %1230 = vmatpush.bf16.msra.mxu0 %v849
    %1231 = vmatpush.bf16.msra.mxu0 %v845
    %1232 = vmatpush.bf16.msra.mxu0 %v841
    %1233 = vmatpush.bf16.msra.mxu0 %v837
    %1234 = vmatpush.bf16.msra.mxu0 %v833
    %1235 = vmatpush.bf16.msra.mxu0 %v829
    %1236 = vmatpush.bf16.msra.mxu0 %v825
    %1237 = vmatpush.bf16.msra.mxu0 %v821
    %1238 = vmatmul.bf16.gmra.mxu0 %v426
    %v1239 = vpop.f32.mrf.mxu0
    %v1240 = vadd.f32 0.0, %v1239
    %v1241 = vpop.f32.mrf.mxu0
    %1242 = vdwg.mxu0
    %1243 = vmatpush.bf16.msra.mxu0 %v881
    %1244 = vmatpush.bf16.msra.mxu0 %v877
    %1245 = vmatpush.bf16.msra.mxu0 %v873
    %1246 = vmatpush.bf16.msra.mxu0 %v869
    %1247 = vmatpush.bf16.msra.mxu0 %v865
    %1248 = vmatpush.bf16.msra.mxu0 %v861
    %1249 = vmatpush.bf16.msra.mxu0 %v857
    %1250 = vmatpush.bf16.msra.mxu0 %v853
    %1251 = vmatmul.bf16.gmra.mxu0 %v427
    %v1252 = vpop.f32.mrf.mxu0
    %v1253 = vadd.f32 %v1240, %v1252
    %v1254 = vpop.f32.mrf.mxu0
    %1255 = vdwg.mxu0
    %1256 = vmatpush.bf16.msra.mxu0 %v913
    %1257 = vmatpush.bf16.msra.mxu0 %v909
    %1258 = vmatpush.bf16.msra.mxu0 %v905
    %1259 = vmatpush.bf16.msra.mxu0 %v901
    %1260 = vmatpush.bf16.msra.mxu0 %v897
    %1261 = vmatpush.bf16.msra.mxu0 %v893
    %1262 = vmatpush.bf16.msra.mxu0 %v889
    %1263 = vmatpush.bf16.msra.mxu0 %v885
    %1264 = vmatmul.bf16.gmra.mxu0 %v428
    %v1265 = vpop.f32.mrf.mxu0
    %v1266 = vadd.f32 %v1253, %v1265
    %v1267 = vpop.f32.mrf.mxu0
    %1268 = vdwg.mxu0
    %1269 = vmatpush.bf16.msra.mxu0 %v945
    %1270 = vmatpush.bf16.msra.mxu0 %v941
    %1271 = vmatpush.bf16.msra.mxu0 %v937
    %1272 = vmatpush.bf16.msra.mxu0 %v933
    %1273 = vmatpush.bf16.msra.mxu0 %v929
    %1274 = vmatpush.bf16.msra.mxu0 %v925
    %1275 = vmatpush.bf16.msra.mxu0 %v921
    %1276 = vmatpush.bf16.msra.mxu0 %v917
    %1277 = vmatmul.bf16.gmra.mxu0 %v429
    %v1278 = vpop.f32.mrf.mxu0
    %v1279 = vadd.f32 %v1266, %v1278
    %v1280 = vpop.f32.mrf.mxu0
    %1281 = vdwg.mxu0
    %v1286 = vrot.slane %v1175, 7
    %v1287 = vrot.slane %v1227, 6
    %v1288 = vrot.slane %v1279, 5
    %vm1289 = vcmask 1040384
    %v1290 = vsel %vm1289, %v1123, %v1286
    %vm1291 = vcmask 1042434
    %v1292 = vsel %vm1291, %v1287, %v1288
    %vm1293 = vcmask 1041408
    %v1294 = vsel %vm1293, %v1290, %v1292
    %v1295 = vsel %vm421, %v1123, %v1286
    %vm1296 = vcmask 1043459
    %v1297 = vsel %vm1296, %v1287, %v1288
    %vm1298 = vcmask 1042433
    %v1299 = vsel %vm1298, %v1295, %v1297
    %v1300 = vrot.slane %v1299, 1
    %v1301 = vperm.slane %v1294, 0
    %v1302 = vperm.slane %v1294, 1
    %v1303 = vperm.slane %v1294, 2
    %v1304 = vperm.slane %v1294, 3
    %v1305 = vperm.slane %v1300, 0
    %v1306 = vperm.slane %v1300, 1
    %v1307 = vperm.slane %v1300, 2
    %v1308 = vperm.slane %v1300, 3
    %v1317 = vadd.f32 %v1301, %v198
    %v1318 = vadd.f32 %v1302, %v199
    %v1319 = vadd.f32 %v1303, %v200
    %v1320 = vadd.f32 %v1304, %v201
    %v1321 = vadd.f32 %v1305, %v202
    %v1322 = vadd.f32 %v1306, %v203
    %v1323 = vadd.f32 %v1307, %v204
    %v1324 = vadd.f32 %v1308, %v205
    %v1325 = vadd.f32 %v1317, %v1318
    %v1326 = vadd.f32 %v1325, %v1319
    %v1327 = vadd.f32 %v1326, %v1320
    %1328 = vadd.xlane.f32.xlu0 %v1327
    %v1329 = vpop.xlane.xlu0 %1328
    %v1330 = vadd.f32 %v1321, %v1322
    %v1331 = vadd.f32 %v1330, %v1323
    %v1332 = vadd.f32 %v1331, %v1324
    %1333 = vadd.xlane.f32.xlu0 %v1332
    %v1334 = vpop.xlane.xlu0 %1333
    %v1335 = vrcp.pop 512.0
    %v1336 = vmul.f32 512.0, %v1335
    %v1337 = vsub.f32 1.0, %v1336
    %v1338 = vmul.f32 %v1335, %v1337
    %v1339 = vadd.f32 %v1335, %v1338
    %vm1340 = vweird.f32 %v1335
    %v1341 = vsel %vm1340, %v1335, %v1339
    %v1342 = vmul.f32 %v1329, %v1341
    %v1343 = vmul.f32 %v1334, %v1341
    %v1344 = vsub.f32 %v1317, %v1342
    %v1345 = vsub.f32 %v1318, %v1342
    %v1346 = vsub.f32 %v1319, %v1342
    %v1347 = vsub.f32 %v1320, %v1342
    %v1348 = vsub.f32 %v1321, %v1343
    %v1349 = vsub.f32 %v1322, %v1343
    %v1350 = vsub.f32 %v1323, %v1343
    %v1351 = vsub.f32 %v1324, %v1343
    %v1352 = vmul.f32 %v1344, %v1344
    %v1353 = vmul.f32 %v1345, %v1345
    %v1354 = vmul.f32 %v1346, %v1346
    %v1355 = vmul.f32 %v1347, %v1347
    %v1356 = vmul.f32 %v1348, %v1348
    %v1357 = vmul.f32 %v1349, %v1349
    %v1358 = vmul.f32 %v1350, %v1350
    %v1359 = vmul.f32 %v1351, %v1351
    %v1360 = vadd.f32 %v1352, %v1353
    %v1361 = vadd.f32 %v1360, %v1354
    %v1362 = vadd.f32 %v1361, %v1355
    %1363 = vadd.xlane.f32.xlu0 %v1362
    %v1364 = vpop.xlane.xlu0 %1363
    %v1365 = vadd.f32 %v1356, %v1357
    %v1366 = vadd.f32 %v1365, %v1358
    %v1367 = vadd.f32 %v1366, %v1359
    %1368 = vadd.xlane.f32.xlu0 %v1367
    %v1369 = vpop.xlane.xlu0 %1368
    %v1370 = vmul.f32 %v1364, %v1341
    %v1371 = vmul.f32 %v1369, %v1341
    %v1372 = vadd.f32 %v1370, 1e-05
    %v1373 = vadd.f32 %v1371, 1e-05
    %v1374 = vrsqrt.pop %v1372
    %v1375 = vmul.f32 %v1374, %v1372
    %v1376 = vmul.f32 %v1375, %v1374
    %v1377 = vmul.f32 0.5, %v1376
    %v1378 = vsub.f32 1.5, %v1377
    %v1379 = vmul.f32 %v1374, %v1378
    %vm1380 = vweird.f32 %v1372
    %vm1381 = vweird.f32 %v1374
    %vm1382 = vmor %vm1380, %vm1381
    %v1383 = vsel %vm1382, %v1374, %v1379
    %v1384 = vrsqrt.pop %v1373
    %v1385 = vmul.f32 %v1384, %v1373
    %v1386 = vmul.f32 %v1385, %v1384
    %v1387 = vmul.f32 0.5, %v1386
    %v1388 = vsub.f32 1.5, %v1387
    %v1389 = vmul.f32 %v1384, %v1388
    %vm1390 = vweird.f32 %v1373
    %vm1391 = vweird.f32 %v1384
    %vm1392 = vmor %vm1390, %vm1391
    %v1393 = vsel %vm1392, %v1384, %v1389
    %v1394 = vmul.f32 %v1344, %v1383
    %v1395 = vmul.f32 %v1345, %v1383
    %v1396 = vmul.f32 %v1346, %v1383
    %v1397 = vmul.f32 %v1347, %v1383
    %v1398 = vmul.f32 %v1348, %v1393
    %v1399 = vmul.f32 %v1349, %v1393
    %v1400 = vmul.f32 %v1350, %v1393
    %v1401 = vmul.f32 %v1351, %v1393
    %v1402 = vpack.c.bf16 %v1398, %v1394
    %v1403 = vpack.c.bf16 %v1399, %v1395
    %v1404 = vpack.c.bf16 %v1400, %v1396
    %v1405 = vpack.c.bf16 %v1401, %v1397
    %v1406 = vld [vmem:[%s4] sm:$0xff]
    %v1407 = vld [vmem:[%s4 + $0x8] sm:$0xff]
    %v1408 = vld [vmem:[%s4 + $0x10] sm:$0xff]
    %v1409 = vld [vmem:[%s4 + $0x18] sm:$0xff]
    %v1410 = vld [vmem:[%s4 + $0x20] sm:$0xff]
    %v1411 = vld [vmem:[%s4 + $0x28] sm:$0xff]
    %v1412 = vld [vmem:[%s4 + $0x30] sm:$0xff]
    %v1413 = vld [vmem:[%s4 + $0x38] sm:$0xff]
    %v1414 = vld [vmem:[%s4 + $0x40] sm:$0xff]
    %v1415 = vld [vmem:[%s4 + $0x48] sm:$0xff]
    %v1416 = vld [vmem:[%s4 + $0x50] sm:$0xff]
    %v1417 = vld [vmem:[%s4 + $0x58] sm:$0xff]
    %v1418 = vld [vmem:[%s4 + $0x60] sm:$0xff]
    %v1419 = vld [vmem:[%s4 + $0x68] sm:$0xff]
    %v1420 = vld [vmem:[%s4 + $0x70] sm:$0xff]
    %v1421 = vld [vmem:[%s4 + $0x78] sm:$0xff]
    %v1422 = vld [vmem:[%s4 + $0x80] sm:$0xff]
    %v1423 = vld [vmem:[%s4 + $0x88] sm:$0xff]
    %v1424 = vld [vmem:[%s4 + $0x90] sm:$0xff]
    %v1425 = vld [vmem:[%s4 + $0x98] sm:$0xff]
    %v1426 = vld [vmem:[%s4 + $0xa0] sm:$0xff]
    %v1427 = vld [vmem:[%s4 + $0xa8] sm:$0xff]
    %v1428 = vld [vmem:[%s4 + $0xb0] sm:$0xff]
    %v1429 = vld [vmem:[%s4 + $0xb8] sm:$0xff]
    %v1430 = vld [vmem:[%s4 + $0xc0] sm:$0xff]
    %v1431 = vld [vmem:[%s4 + $0xc8] sm:$0xff]
    %v1432 = vld [vmem:[%s4 + $0xd0] sm:$0xff]
    %v1433 = vld [vmem:[%s4 + $0xd8] sm:$0xff]
    %v1434 = vld [vmem:[%s4 + $0xe0] sm:$0xff]
    %v1435 = vld [vmem:[%s4 + $0xe8] sm:$0xff]
    %v1436 = vld [vmem:[%s4 + $0xf0] sm:$0xff]
    %v1437 = vld [vmem:[%s4 + $0xf8] sm:$0xff]
    %v1438 = vld [vmem:[%s4 + $0x100] sm:$0xff]
    %v1439 = vld [vmem:[%s4 + $0x108] sm:$0xff]
    %v1440 = vld [vmem:[%s4 + $0x110] sm:$0xff]
    %v1441 = vld [vmem:[%s4 + $0x118] sm:$0xff]
    %v1442 = vld [vmem:[%s4 + $0x120] sm:$0xff]
    %v1443 = vld [vmem:[%s4 + $0x128] sm:$0xff]
    %v1444 = vld [vmem:[%s4 + $0x130] sm:$0xff]
    %v1445 = vld [vmem:[%s4 + $0x138] sm:$0xff]
    %v1446 = vld [vmem:[%s4 + $0x140] sm:$0xff]
    %v1447 = vld [vmem:[%s4 + $0x148] sm:$0xff]
    %v1448 = vld [vmem:[%s4 + $0x150] sm:$0xff]
    %v1449 = vld [vmem:[%s4 + $0x158] sm:$0xff]
    %v1450 = vld [vmem:[%s4 + $0x160] sm:$0xff]
    %v1451 = vld [vmem:[%s4 + $0x168] sm:$0xff]
    %v1452 = vld [vmem:[%s4 + $0x170] sm:$0xff]
    %v1453 = vld [vmem:[%s4 + $0x178] sm:$0xff]
    %v1454 = vld [vmem:[%s4 + $0x180] sm:$0xff]
    %v1455 = vld [vmem:[%s4 + $0x188] sm:$0xff]
    %v1456 = vld [vmem:[%s4 + $0x190] sm:$0xff]
    %v1457 = vld [vmem:[%s4 + $0x198] sm:$0xff]
    %v1458 = vld [vmem:[%s4 + $0x1a0] sm:$0xff]
    %v1459 = vld [vmem:[%s4 + $0x1a8] sm:$0xff]
    %v1460 = vld [vmem:[%s4 + $0x1b0] sm:$0xff]
    %v1461 = vld [vmem:[%s4 + $0x1b8] sm:$0xff]
    %v1462 = vld [vmem:[%s4 + $0x1c0] sm:$0xff]
    %v1463 = vld [vmem:[%s4 + $0x1c8] sm:$0xff]
    %v1464 = vld [vmem:[%s4 + $0x1d0] sm:$0xff]
    %v1465 = vld [vmem:[%s4 + $0x1d8] sm:$0xff]
    %v1466 = vld [vmem:[%s4 + $0x1e0] sm:$0xff]
    %v1467 = vld [vmem:[%s4 + $0x1e8] sm:$0xff]
    %v1468 = vld [vmem:[%s4 + $0x1f0] sm:$0xff]
    %v1469 = vld [vmem:[%s4 + $0x1f8] sm:$0xff]
    %v1470 = vld [vmem:[%s4 + $0x200] sm:$0xff]
    %v1471 = vld [vmem:[%s4 + $0x208] sm:$0xff]
    %v1472 = vld [vmem:[%s4 + $0x210] sm:$0xff]
    %v1473 = vld [vmem:[%s4 + $0x218] sm:$0xff]
    %v1474 = vld [vmem:[%s4 + $0x220] sm:$0xff]
    %v1475 = vld [vmem:[%s4 + $0x228] sm:$0xff]
    %v1476 = vld [vmem:[%s4 + $0x230] sm:$0xff]
    %v1477 = vld [vmem:[%s4 + $0x238] sm:$0xff]
    %v1478 = vld [vmem:[%s4 + $0x240] sm:$0xff]
    %v1479 = vld [vmem:[%s4 + $0x248] sm:$0xff]
    %v1480 = vld [vmem:[%s4 + $0x250] sm:$0xff]
    %v1481 = vld [vmem:[%s4 + $0x258] sm:$0xff]
    %v1482 = vld [vmem:[%s4 + $0x260] sm:$0xff]
    %v1483 = vld [vmem:[%s4 + $0x268] sm:$0xff]
    %v1484 = vld [vmem:[%s4 + $0x270] sm:$0xff]
    %v1485 = vld [vmem:[%s4 + $0x278] sm:$0xff]
    %v1486 = vld [vmem:[%s4 + $0x280] sm:$0xff]
    %v1487 = vld [vmem:[%s4 + $0x288] sm:$0xff]
    %v1488 = vld [vmem:[%s4 + $0x290] sm:$0xff]
    %v1489 = vld [vmem:[%s4 + $0x298] sm:$0xff]
    %v1490 = vld [vmem:[%s4 + $0x2a0] sm:$0xff]
    %v1491 = vld [vmem:[%s4 + $0x2a8] sm:$0xff]
    %v1492 = vld [vmem:[%s4 + $0x2b0] sm:$0xff]
    %v1493 = vld [vmem:[%s4 + $0x2b8] sm:$0xff]
    %v1494 = vld [vmem:[%s4 + $0x2c0] sm:$0xff]
    %v1495 = vld [vmem:[%s4 + $0x2c8] sm:$0xff]
    %v1496 = vld [vmem:[%s4 + $0x2d0] sm:$0xff]
    %v1497 = vld [vmem:[%s4 + $0x2d8] sm:$0xff]
    %v1498 = vld [vmem:[%s4 + $0x2e0] sm:$0xff]
    %v1499 = vld [vmem:[%s4 + $0x2e8] sm:$0xff]
    %v1500 = vld [vmem:[%s4 + $0x2f0] sm:$0xff]
    %v1501 = vld [vmem:[%s4 + $0x2f8] sm:$0xff]
    %v1502 = vld [vmem:[%s4 + $0x300] sm:$0xff]
    %v1503 = vld [vmem:[%s4 + $0x308] sm:$0xff]
    %v1504 = vld [vmem:[%s4 + $0x310] sm:$0xff]
    %v1505 = vld [vmem:[%s4 + $0x318] sm:$0xff]
    %v1506 = vld [vmem:[%s4 + $0x320] sm:$0xff]
    %v1507 = vld [vmem:[%s4 + $0x328] sm:$0xff]
    %v1508 = vld [vmem:[%s4 + $0x330] sm:$0xff]
    %v1509 = vld [vmem:[%s4 + $0x338] sm:$0xff]
    %v1510 = vld [vmem:[%s4 + $0x340] sm:$0xff]
    %v1511 = vld [vmem:[%s4 + $0x348] sm:$0xff]
    %v1512 = vld [vmem:[%s4 + $0x350] sm:$0xff]
    %v1513 = vld [vmem:[%s4 + $0x358] sm:$0xff]
    %v1514 = vld [vmem:[%s4 + $0x360] sm:$0xff]
    %v1515 = vld [vmem:[%s4 + $0x368] sm:$0xff]
    %v1516 = vld [vmem:[%s4 + $0x370] sm:$0xff]
    %v1517 = vld [vmem:[%s4 + $0x378] sm:$0xff]
    %v1518 = vld [vmem:[%s4 + $0x380] sm:$0xff]
    %v1519 = vld [vmem:[%s4 + $0x388] sm:$0xff]
    %v1520 = vld [vmem:[%s4 + $0x390] sm:$0xff]
    %v1521 = vld [vmem:[%s4 + $0x398] sm:$0xff]
    %v1522 = vld [vmem:[%s4 + $0x3a0] sm:$0xff]
    %v1523 = vld [vmem:[%s4 + $0x3a8] sm:$0xff]
    %v1524 = vld [vmem:[%s4 + $0x3b0] sm:$0xff]
    %v1525 = vld [vmem:[%s4 + $0x3b8] sm:$0xff]
    %v1526 = vld [vmem:[%s4 + $0x3c0] sm:$0xff]
    %v1527 = vld [vmem:[%s4 + $0x3c8] sm:$0xff]
    %v1528 = vld [vmem:[%s4 + $0x3d0] sm:$0xff]
    %v1529 = vld [vmem:[%s4 + $0x3d8] sm:$0xff]
    %v1530 = vld [vmem:[%s4 + $0x3e0] sm:$0xff]
    %v1531 = vld [vmem:[%s4 + $0x3e8] sm:$0xff]
    %v1532 = vld [vmem:[%s4 + $0x3f0] sm:$0xff]
    %v1533 = vld [vmem:[%s4 + $0x3f8] sm:$0xff]
    %v1534 = vld [vmem:[%s4 + $0x400] sm:$0xff]
    %v1535 = vld [vmem:[%s4 + $0x408] sm:$0xff]
    %v1536 = vld [vmem:[%s4 + $0x410] sm:$0xff]
    %v1537 = vld [vmem:[%s4 + $0x418] sm:$0xff]
    %v1538 = vld [vmem:[%s4 + $0x420] sm:$0xff]
    %v1539 = vld [vmem:[%s4 + $0x428] sm:$0xff]
    %v1540 = vld [vmem:[%s4 + $0x430] sm:$0xff]
    %v1541 = vld [vmem:[%s4 + $0x438] sm:$0xff]
    %v1542 = vld [vmem:[%s4 + $0x440] sm:$0xff]
    %v1543 = vld [vmem:[%s4 + $0x448] sm:$0xff]
    %v1544 = vld [vmem:[%s4 + $0x450] sm:$0xff]
    %v1545 = vld [vmem:[%s4 + $0x458] sm:$0xff]
    %v1546 = vld [vmem:[%s4 + $0x460] sm:$0xff]
    %v1547 = vld [vmem:[%s4 + $0x468] sm:$0xff]
    %v1548 = vld [vmem:[%s4 + $0x470] sm:$0xff]
    %v1549 = vld [vmem:[%s4 + $0x478] sm:$0xff]
    %v1550 = vld [vmem:[%s4 + $0x480] sm:$0xff]
    %v1551 = vld [vmem:[%s4 + $0x488] sm:$0xff]
    %v1552 = vld [vmem:[%s4 + $0x490] sm:$0xff]
    %v1553 = vld [vmem:[%s4 + $0x498] sm:$0xff]
    %v1554 = vld [vmem:[%s4 + $0x4a0] sm:$0xff]
    %v1555 = vld [vmem:[%s4 + $0x4a8] sm:$0xff]
    %v1556 = vld [vmem:[%s4 + $0x4b0] sm:$0xff]
    %v1557 = vld [vmem:[%s4 + $0x4b8] sm:$0xff]
    %v1558 = vld [vmem:[%s4 + $0x4c0] sm:$0xff]
    %v1559 = vld [vmem:[%s4 + $0x4c8] sm:$0xff]
    %v1560 = vld [vmem:[%s4 + $0x4d0] sm:$0xff]
    %v1561 = vld [vmem:[%s4 + $0x4d8] sm:$0xff]
    %v1562 = vld [vmem:[%s4 + $0x4e0] sm:$0xff]
    %v1563 = vld [vmem:[%s4 + $0x4e8] sm:$0xff]
    %v1564 = vld [vmem:[%s4 + $0x4f0] sm:$0xff]
    %v1565 = vld [vmem:[%s4 + $0x4f8] sm:$0xff]
    %v1566 = vld [vmem:[%s4 + $0x500] sm:$0xff]
    %v1567 = vld [vmem:[%s4 + $0x508] sm:$0xff]
    %v1568 = vld [vmem:[%s4 + $0x510] sm:$0xff]
    %v1569 = vld [vmem:[%s4 + $0x518] sm:$0xff]
    %v1570 = vld [vmem:[%s4 + $0x520] sm:$0xff]
    %v1571 = vld [vmem:[%s4 + $0x528] sm:$0xff]
    %v1572 = vld [vmem:[%s4 + $0x530] sm:$0xff]
    %v1573 = vld [vmem:[%s4 + $0x538] sm:$0xff]
    %v1574 = vld [vmem:[%s4 + $0x540] sm:$0xff]
    %v1575 = vld [vmem:[%s4 + $0x548] sm:$0xff]
    %v1576 = vld [vmem:[%s4 + $0x550] sm:$0xff]
    %v1577 = vld [vmem:[%s4 + $0x558] sm:$0xff]
    %v1578 = vld [vmem:[%s4 + $0x560] sm:$0xff]
    %v1579 = vld [vmem:[%s4 + $0x568] sm:$0xff]
    %v1580 = vld [vmem:[%s4 + $0x570] sm:$0xff]
    %v1581 = vld [vmem:[%s4 + $0x578] sm:$0xff]
    %v1582 = vld [vmem:[%s4 + $0x580] sm:$0xff]
    %v1583 = vld [vmem:[%s4 + $0x588] sm:$0xff]
    %v1584 = vld [vmem:[%s4 + $0x590] sm:$0xff]
    %v1585 = vld [vmem:[%s4 + $0x598] sm:$0xff]
    %v1586 = vld [vmem:[%s4 + $0x5a0] sm:$0xff]
    %v1587 = vld [vmem:[%s4 + $0x5a8] sm:$0xff]
    %v1588 = vld [vmem:[%s4 + $0x5b0] sm:$0xff]
    %v1589 = vld [vmem:[%s4 + $0x5b8] sm:$0xff]
    %v1590 = vld [vmem:[%s4 + $0x5c0] sm:$0xff]
    %v1591 = vld [vmem:[%s4 + $0x5c8] sm:$0xff]
    %v1592 = vld [vmem:[%s4 + $0x5d0] sm:$0xff]
    %v1593 = vld [vmem:[%s4 + $0x5d8] sm:$0xff]
    %v1594 = vld [vmem:[%s4 + $0x5e0] sm:$0xff]
    %v1595 = vld [vmem:[%s4 + $0x5e8] sm:$0xff]
    %v1596 = vld [vmem:[%s4 + $0x5f0] sm:$0xff]
    %v1597 = vld [vmem:[%s4 + $0x5f8] sm:$0xff]
    %v1598 = vld [vmem:[%s4 + $0x600] sm:$0xff]
    %v1599 = vld [vmem:[%s4 + $0x608] sm:$0xff]
    %v1600 = vld [vmem:[%s4 + $0x610] sm:$0xff]
    %v1601 = vld [vmem:[%s4 + $0x618] sm:$0xff]
    %v1602 = vld [vmem:[%s4 + $0x620] sm:$0xff]
    %v1603 = vld [vmem:[%s4 + $0x628] sm:$0xff]
    %v1604 = vld [vmem:[%s4 + $0x630] sm:$0xff]
    %v1605 = vld [vmem:[%s4 + $0x638] sm:$0xff]
    %v1606 = vld [vmem:[%s4 + $0x640] sm:$0xff]
    %v1607 = vld [vmem:[%s4 + $0x648] sm:$0xff]
    %v1608 = vld [vmem:[%s4 + $0x650] sm:$0xff]
    %v1609 = vld [vmem:[%s4 + $0x658] sm:$0xff]
    %v1610 = vld [vmem:[%s4 + $0x660] sm:$0xff]
    %v1611 = vld [vmem:[%s4 + $0x668] sm:$0xff]
    %v1612 = vld [vmem:[%s4 + $0x670] sm:$0xff]
    %v1613 = vld [vmem:[%s4 + $0x678] sm:$0xff]
    %v1614 = vld [vmem:[%s4 + $0x680] sm:$0xff]
    %v1615 = vld [vmem:[%s4 + $0x688] sm:$0xff]
    %v1616 = vld [vmem:[%s4 + $0x690] sm:$0xff]
    %v1617 = vld [vmem:[%s4 + $0x698] sm:$0xff]
    %v1618 = vld [vmem:[%s4 + $0x6a0] sm:$0xff]
    %v1619 = vld [vmem:[%s4 + $0x6a8] sm:$0xff]
    %v1620 = vld [vmem:[%s4 + $0x6b0] sm:$0xff]
    %v1621 = vld [vmem:[%s4 + $0x6b8] sm:$0xff]
    %v1622 = vld [vmem:[%s4 + $0x6c0] sm:$0xff]
    %v1623 = vld [vmem:[%s4 + $0x6c8] sm:$0xff]
    %v1624 = vld [vmem:[%s4 + $0x6d0] sm:$0xff]
    %v1625 = vld [vmem:[%s4 + $0x6d8] sm:$0xff]
    %v1626 = vld [vmem:[%s4 + $0x6e0] sm:$0xff]
    %v1627 = vld [vmem:[%s4 + $0x6e8] sm:$0xff]
    %v1628 = vld [vmem:[%s4 + $0x6f0] sm:$0xff]
    %v1629 = vld [vmem:[%s4 + $0x6f8] sm:$0xff]
    %v1630 = vld [vmem:[%s4 + $0x700] sm:$0xff]
    %v1631 = vld [vmem:[%s4 + $0x708] sm:$0xff]
    %v1632 = vld [vmem:[%s4 + $0x710] sm:$0xff]
    %v1633 = vld [vmem:[%s4 + $0x718] sm:$0xff]
    %v1634 = vld [vmem:[%s4 + $0x720] sm:$0xff]
    %v1635 = vld [vmem:[%s4 + $0x728] sm:$0xff]
    %v1636 = vld [vmem:[%s4 + $0x730] sm:$0xff]
    %v1637 = vld [vmem:[%s4 + $0x738] sm:$0xff]
    %v1638 = vld [vmem:[%s4 + $0x740] sm:$0xff]
    %v1639 = vld [vmem:[%s4 + $0x748] sm:$0xff]
    %v1640 = vld [vmem:[%s4 + $0x750] sm:$0xff]
    %v1641 = vld [vmem:[%s4 + $0x758] sm:$0xff]
    %v1642 = vld [vmem:[%s4 + $0x760] sm:$0xff]
    %v1643 = vld [vmem:[%s4 + $0x768] sm:$0xff]
    %v1644 = vld [vmem:[%s4 + $0x770] sm:$0xff]
    %v1645 = vld [vmem:[%s4 + $0x778] sm:$0xff]
    %v1646 = vld [vmem:[%s4 + $0x780] sm:$0xff]
    %v1647 = vld [vmem:[%s4 + $0x788] sm:$0xff]
    %v1648 = vld [vmem:[%s4 + $0x790] sm:$0xff]
    %v1649 = vld [vmem:[%s4 + $0x798] sm:$0xff]
    %v1650 = vld [vmem:[%s4 + $0x7a0] sm:$0xff]
    %v1651 = vld [vmem:[%s4 + $0x7a8] sm:$0xff]
    %v1652 = vld [vmem:[%s4 + $0x7b0] sm:$0xff]
    %v1653 = vld [vmem:[%s4 + $0x7b8] sm:$0xff]
    %v1654 = vld [vmem:[%s4 + $0x7c0] sm:$0xff]
    %v1655 = vld [vmem:[%s4 + $0x7c8] sm:$0xff]
    %v1656 = vld [vmem:[%s4 + $0x7d0] sm:$0xff]
    %v1657 = vld [vmem:[%s4 + $0x7d8] sm:$0xff]
    %v1658 = vld [vmem:[%s4 + $0x7e0] sm:$0xff]
    %v1659 = vld [vmem:[%s4 + $0x7e8] sm:$0xff]
    %v1660 = vld [vmem:[%s4 + $0x7f0] sm:$0xff]
    %v1661 = vld [vmem:[%s4 + $0x7f8] sm:$0xff]
    %v1662 = vld [vmem:[%s4 + $0x800] sm:$0xff]
    %v1663 = vld [vmem:[%s4 + $0x808] sm:$0xff]
    %v1664 = vld [vmem:[%s4 + $0x810] sm:$0xff]
    %v1665 = vld [vmem:[%s4 + $0x818] sm:$0xff]
    %v1666 = vld [vmem:[%s4 + $0x820] sm:$0xff]
    %v1667 = vld [vmem:[%s4 + $0x828] sm:$0xff]
    %v1668 = vld [vmem:[%s4 + $0x830] sm:$0xff]
    %v1669 = vld [vmem:[%s4 + $0x838] sm:$0xff]
    %v1670 = vld [vmem:[%s4 + $0x840] sm:$0xff]
    %v1671 = vld [vmem:[%s4 + $0x848] sm:$0xff]
    %v1672 = vld [vmem:[%s4 + $0x850] sm:$0xff]
    %v1673 = vld [vmem:[%s4 + $0x858] sm:$0xff]
    %v1674 = vld [vmem:[%s4 + $0x860] sm:$0xff]
    %v1675 = vld [vmem:[%s4 + $0x868] sm:$0xff]
    %v1676 = vld [vmem:[%s4 + $0x870] sm:$0xff]
    %v1677 = vld [vmem:[%s4 + $0x878] sm:$0xff]
    %v1678 = vld [vmem:[%s4 + $0x880] sm:$0xff]
    %v1679 = vld [vmem:[%s4 + $0x888] sm:$0xff]
    %v1680 = vld [vmem:[%s4 + $0x890] sm:$0xff]
    %v1681 = vld [vmem:[%s4 + $0x898] sm:$0xff]
    %v1682 = vld [vmem:[%s4 + $0x8a0] sm:$0xff]
    %v1683 = vld [vmem:[%s4 + $0x8a8] sm:$0xff]
    %v1684 = vld [vmem:[%s4 + $0x8b0] sm:$0xff]
    %v1685 = vld [vmem:[%s4 + $0x8b8] sm:$0xff]
    %v1686 = vld [vmem:[%s4 + $0x8c0] sm:$0xff]
    %v1687 = vld [vmem:[%s4 + $0x8c8] sm:$0xff]
    %v1688 = vld [vmem:[%s4 + $0x8d0] sm:$0xff]
    %v1689 = vld [vmem:[%s4 + $0x8d8] sm:$0xff]
    %v1690 = vld [vmem:[%s4 + $0x8e0] sm:$0xff]
    %v1691 = vld [vmem:[%s4 + $0x8e8] sm:$0xff]
    %v1692 = vld [vmem:[%s4 + $0x8f0] sm:$0xff]
    %v1693 = vld [vmem:[%s4 + $0x8f8] sm:$0xff]
    %v1694 = vld [vmem:[%s4 + $0x900] sm:$0xff]
    %v1695 = vld [vmem:[%s4 + $0x908] sm:$0xff]
    %v1696 = vld [vmem:[%s4 + $0x910] sm:$0xff]
    %v1697 = vld [vmem:[%s4 + $0x918] sm:$0xff]
    %v1698 = vld [vmem:[%s4 + $0x920] sm:$0xff]
    %v1699 = vld [vmem:[%s4 + $0x928] sm:$0xff]
    %v1700 = vld [vmem:[%s4 + $0x930] sm:$0xff]
    %v1701 = vld [vmem:[%s4 + $0x938] sm:$0xff]
    %v1702 = vld [vmem:[%s4 + $0x940] sm:$0xff]
    %v1703 = vld [vmem:[%s4 + $0x948] sm:$0xff]
    %v1704 = vld [vmem:[%s4 + $0x950] sm:$0xff]
    %v1705 = vld [vmem:[%s4 + $0x958] sm:$0xff]
    %v1706 = vld [vmem:[%s4 + $0x960] sm:$0xff]
    %v1707 = vld [vmem:[%s4 + $0x968] sm:$0xff]
    %v1708 = vld [vmem:[%s4 + $0x970] sm:$0xff]
    %v1709 = vld [vmem:[%s4 + $0x978] sm:$0xff]
    %v1710 = vld [vmem:[%s4 + $0x980] sm:$0xff]
    %v1711 = vld [vmem:[%s4 + $0x988] sm:$0xff]
    %v1712 = vld [vmem:[%s4 + $0x990] sm:$0xff]
    %v1713 = vld [vmem:[%s4 + $0x998] sm:$0xff]
    %v1714 = vld [vmem:[%s4 + $0x9a0] sm:$0xff]
    %v1715 = vld [vmem:[%s4 + $0x9a8] sm:$0xff]
    %v1716 = vld [vmem:[%s4 + $0x9b0] sm:$0xff]
    %v1717 = vld [vmem:[%s4 + $0x9b8] sm:$0xff]
    %v1718 = vld [vmem:[%s4 + $0x9c0] sm:$0xff]
    %v1719 = vld [vmem:[%s4 + $0x9c8] sm:$0xff]
    %v1720 = vld [vmem:[%s4 + $0x9d0] sm:$0xff]
    %v1721 = vld [vmem:[%s4 + $0x9d8] sm:$0xff]
    %v1722 = vld [vmem:[%s4 + $0x9e0] sm:$0xff]
    %v1723 = vld [vmem:[%s4 + $0x9e8] sm:$0xff]
    %v1724 = vld [vmem:[%s4 + $0x9f0] sm:$0xff]
    %v1725 = vld [vmem:[%s4 + $0x9f8] sm:$0xff]
    %v1726 = vld [vmem:[%s4 + $0xa00] sm:$0xff]
    %v1727 = vld [vmem:[%s4 + $0xa08] sm:$0xff]
    %v1728 = vld [vmem:[%s4 + $0xa10] sm:$0xff]
    %v1729 = vld [vmem:[%s4 + $0xa18] sm:$0xff]
    %v1730 = vld [vmem:[%s4 + $0xa20] sm:$0xff]
    %v1731 = vld [vmem:[%s4 + $0xa28] sm:$0xff]
    %v1732 = vld [vmem:[%s4 + $0xa30] sm:$0xff]
    %v1733 = vld [vmem:[%s4 + $0xa38] sm:$0xff]
    %v1734 = vld [vmem:[%s4 + $0xa40] sm:$0xff]
    %v1735 = vld [vmem:[%s4 + $0xa48] sm:$0xff]
    %v1736 = vld [vmem:[%s4 + $0xa50] sm:$0xff]
    %v1737 = vld [vmem:[%s4 + $0xa58] sm:$0xff]
    %v1738 = vld [vmem:[%s4 + $0xa60] sm:$0xff]
    %v1739 = vld [vmem:[%s4 + $0xa68] sm:$0xff]
    %v1740 = vld [vmem:[%s4 + $0xa70] sm:$0xff]
    %v1741 = vld [vmem:[%s4 + $0xa78] sm:$0xff]
    %v1742 = vld [vmem:[%s4 + $0xa80] sm:$0xff]
    %v1743 = vld [vmem:[%s4 + $0xa88] sm:$0xff]
    %v1744 = vld [vmem:[%s4 + $0xa90] sm:$0xff]
    %v1745 = vld [vmem:[%s4 + $0xa98] sm:$0xff]
    %v1746 = vld [vmem:[%s4 + $0xaa0] sm:$0xff]
    %v1747 = vld [vmem:[%s4 + $0xaa8] sm:$0xff]
    %v1748 = vld [vmem:[%s4 + $0xab0] sm:$0xff]
    %v1749 = vld [vmem:[%s4 + $0xab8] sm:$0xff]
    %v1750 = vld [vmem:[%s4 + $0xac0] sm:$0xff]
    %v1751 = vld [vmem:[%s4 + $0xac8] sm:$0xff]
    %v1752 = vld [vmem:[%s4 + $0xad0] sm:$0xff]
    %v1753 = vld [vmem:[%s4 + $0xad8] sm:$0xff]
    %v1754 = vld [vmem:[%s4 + $0xae0] sm:$0xff]
    %v1755 = vld [vmem:[%s4 + $0xae8] sm:$0xff]
    %v1756 = vld [vmem:[%s4 + $0xaf0] sm:$0xff]
    %v1757 = vld [vmem:[%s4 + $0xaf8] sm:$0xff]
    %v1758 = vld [vmem:[%s4 + $0xb00] sm:$0xff]
    %v1759 = vld [vmem:[%s4 + $0xb08] sm:$0xff]
    %v1760 = vld [vmem:[%s4 + $0xb10] sm:$0xff]
    %v1761 = vld [vmem:[%s4 + $0xb18] sm:$0xff]
    %v1762 = vld [vmem:[%s4 + $0xb20] sm:$0xff]
    %v1763 = vld [vmem:[%s4 + $0xb28] sm:$0xff]
    %v1764 = vld [vmem:[%s4 + $0xb30] sm:$0xff]
    %v1765 = vld [vmem:[%s4 + $0xb38] sm:$0xff]
    %v1766 = vld [vmem:[%s4 + $0xb40] sm:$0xff]
    %v1767 = vld [vmem:[%s4 + $0xb48] sm:$0xff]
    %v1768 = vld [vmem:[%s4 + $0xb50] sm:$0xff]
    %v1769 = vld [vmem:[%s4 + $0xb58] sm:$0xff]
    %v1770 = vld [vmem:[%s4 + $0xb60] sm:$0xff]
    %v1771 = vld [vmem:[%s4 + $0xb68] sm:$0xff]
    %v1772 = vld [vmem:[%s4 + $0xb70] sm:$0xff]
    %v1773 = vld [vmem:[%s4 + $0xb78] sm:$0xff]
    %v1774 = vld [vmem:[%s4 + $0xb80] sm:$0xff]
    %v1775 = vld [vmem:[%s4 + $0xb88] sm:$0xff]
    %v1776 = vld [vmem:[%s4 + $0xb90] sm:$0xff]
    %v1777 = vld [vmem:[%s4 + $0xb98] sm:$0xff]
    %v1778 = vld [vmem:[%s4 + $0xba0] sm:$0xff]
    %v1779 = vld [vmem:[%s4 + $0xba8] sm:$0xff]
    %v1780 = vld [vmem:[%s4 + $0xbb0] sm:$0xff]
    %v1781 = vld [vmem:[%s4 + $0xbb8] sm:$0xff]
    %v1782 = vld [vmem:[%s4 + $0xbc0] sm:$0xff]
    %v1783 = vld [vmem:[%s4 + $0xbc8] sm:$0xff]
    %v1784 = vld [vmem:[%s4 + $0xbd0] sm:$0xff]
    %v1785 = vld [vmem:[%s4 + $0xbd8] sm:$0xff]
    %v1786 = vld [vmem:[%s4 + $0xbe0] sm:$0xff]
    %v1787 = vld [vmem:[%s4 + $0xbe8] sm:$0xff]
    %v1788 = vld [vmem:[%s4 + $0xbf0] sm:$0xff]
    %v1789 = vld [vmem:[%s4 + $0xbf8] sm:$0xff]
    %v1790 = vld [vmem:[%s4 + $0xc00] sm:$0xff]
    %v1791 = vld [vmem:[%s4 + $0xc08] sm:$0xff]
    %v1792 = vld [vmem:[%s4 + $0xc10] sm:$0xff]
    %v1793 = vld [vmem:[%s4 + $0xc18] sm:$0xff]
    %v1794 = vld [vmem:[%s4 + $0xc20] sm:$0xff]
    %v1795 = vld [vmem:[%s4 + $0xc28] sm:$0xff]
    %v1796 = vld [vmem:[%s4 + $0xc30] sm:$0xff]
    %v1797 = vld [vmem:[%s4 + $0xc38] sm:$0xff]
    %v1798 = vld [vmem:[%s4 + $0xc40] sm:$0xff]
    %v1799 = vld [vmem:[%s4 + $0xc48] sm:$0xff]
    %v1800 = vld [vmem:[%s4 + $0xc50] sm:$0xff]
    %v1801 = vld [vmem:[%s4 + $0xc58] sm:$0xff]
    %v1802 = vld [vmem:[%s4 + $0xc60] sm:$0xff]
    %v1803 = vld [vmem:[%s4 + $0xc68] sm:$0xff]
    %v1804 = vld [vmem:[%s4 + $0xc70] sm:$0xff]
    %v1805 = vld [vmem:[%s4 + $0xc78] sm:$0xff]
    %v1806 = vld [vmem:[%s4 + $0xc80] sm:$0xff]
    %v1807 = vld [vmem:[%s4 + $0xc88] sm:$0xff]
    %v1808 = vld [vmem:[%s4 + $0xc90] sm:$0xff]
    %v1809 = vld [vmem:[%s4 + $0xc98] sm:$0xff]
    %v1810 = vld [vmem:[%s4 + $0xca0] sm:$0xff]
    %v1811 = vld [vmem:[%s4 + $0xca8] sm:$0xff]
    %v1812 = vld [vmem:[%s4 + $0xcb0] sm:$0xff]
    %v1813 = vld [vmem:[%s4 + $0xcb8] sm:$0xff]
    %v1814 = vld [vmem:[%s4 + $0xcc0] sm:$0xff]
    %v1815 = vld [vmem:[%s4 + $0xcc8] sm:$0xff]
    %v1816 = vld [vmem:[%s4 + $0xcd0] sm:$0xff]
    %v1817 = vld [vmem:[%s4 + $0xcd8] sm:$0xff]
    %v1818 = vld [vmem:[%s4 + $0xce0] sm:$0xff]
    %v1819 = vld [vmem:[%s4 + $0xce8] sm:$0xff]
    %v1820 = vld [vmem:[%s4 + $0xcf0] sm:$0xff]
    %v1821 = vld [vmem:[%s4 + $0xcf8] sm:$0xff]
    %v1822 = vld [vmem:[%s4 + $0xd00] sm:$0xff]
    %v1823 = vld [vmem:[%s4 + $0xd08] sm:$0xff]
    %v1824 = vld [vmem:[%s4 + $0xd10] sm:$0xff]
    %v1825 = vld [vmem:[%s4 + $0xd18] sm:$0xff]
    %v1826 = vld [vmem:[%s4 + $0xd20] sm:$0xff]
    %v1827 = vld [vmem:[%s4 + $0xd28] sm:$0xff]
    %v1828 = vld [vmem:[%s4 + $0xd30] sm:$0xff]
    %v1829 = vld [vmem:[%s4 + $0xd38] sm:$0xff]
    %v1830 = vld [vmem:[%s4 + $0xd40] sm:$0xff]
    %v1831 = vld [vmem:[%s4 + $0xd48] sm:$0xff]
    %v1832 = vld [vmem:[%s4 + $0xd50] sm:$0xff]
    %v1833 = vld [vmem:[%s4 + $0xd58] sm:$0xff]
    %v1834 = vld [vmem:[%s4 + $0xd60] sm:$0xff]
    %v1835 = vld [vmem:[%s4 + $0xd68] sm:$0xff]
    %v1836 = vld [vmem:[%s4 + $0xd70] sm:$0xff]
    %v1837 = vld [vmem:[%s4 + $0xd78] sm:$0xff]
    %v1838 = vld [vmem:[%s4 + $0xd80] sm:$0xff]
    %v1839 = vld [vmem:[%s4 + $0xd88] sm:$0xff]
    %v1840 = vld [vmem:[%s4 + $0xd90] sm:$0xff]
    %v1841 = vld [vmem:[%s4 + $0xd98] sm:$0xff]
    %v1842 = vld [vmem:[%s4 + $0xda0] sm:$0xff]
    %v1843 = vld [vmem:[%s4 + $0xda8] sm:$0xff]
    %v1844 = vld [vmem:[%s4 + $0xdb0] sm:$0xff]
    %v1845 = vld [vmem:[%s4 + $0xdb8] sm:$0xff]
    %v1846 = vld [vmem:[%s4 + $0xdc0] sm:$0xff]
    %v1847 = vld [vmem:[%s4 + $0xdc8] sm:$0xff]
    %v1848 = vld [vmem:[%s4 + $0xdd0] sm:$0xff]
    %v1849 = vld [vmem:[%s4 + $0xdd8] sm:$0xff]
    %v1850 = vld [vmem:[%s4 + $0xde0] sm:$0xff]
    %v1851 = vld [vmem:[%s4 + $0xde8] sm:$0xff]
    %v1852 = vld [vmem:[%s4 + $0xdf0] sm:$0xff]
    %v1853 = vld [vmem:[%s4 + $0xdf8] sm:$0xff]
    %v1854 = vld [vmem:[%s4 + $0xe00] sm:$0xff]
    %v1855 = vld [vmem:[%s4 + $0xe08] sm:$0xff]
    %v1856 = vld [vmem:[%s4 + $0xe10] sm:$0xff]
    %v1857 = vld [vmem:[%s4 + $0xe18] sm:$0xff]
    %v1858 = vld [vmem:[%s4 + $0xe20] sm:$0xff]
    %v1859 = vld [vmem:[%s4 + $0xe28] sm:$0xff]
    %v1860 = vld [vmem:[%s4 + $0xe30] sm:$0xff]
    %v1861 = vld [vmem:[%s4 + $0xe38] sm:$0xff]
    %v1862 = vld [vmem:[%s4 + $0xe40] sm:$0xff]
    %v1863 = vld [vmem:[%s4 + $0xe48] sm:$0xff]
    %v1864 = vld [vmem:[%s4 + $0xe50] sm:$0xff]
    %v1865 = vld [vmem:[%s4 + $0xe58] sm:$0xff]
    %v1866 = vld [vmem:[%s4 + $0xe60] sm:$0xff]
    %v1867 = vld [vmem:[%s4 + $0xe68] sm:$0xff]
    %v1868 = vld [vmem:[%s4 + $0xe70] sm:$0xff]
    %v1869 = vld [vmem:[%s4 + $0xe78] sm:$0xff]
    %v1870 = vld [vmem:[%s4 + $0xe80] sm:$0xff]
    %v1871 = vld [vmem:[%s4 + $0xe88] sm:$0xff]
    %v1872 = vld [vmem:[%s4 + $0xe90] sm:$0xff]
    %v1873 = vld [vmem:[%s4 + $0xe98] sm:$0xff]
    %v1874 = vld [vmem:[%s4 + $0xea0] sm:$0xff]
    %v1875 = vld [vmem:[%s4 + $0xea8] sm:$0xff]
    %v1876 = vld [vmem:[%s4 + $0xeb0] sm:$0xff]
    %v1877 = vld [vmem:[%s4 + $0xeb8] sm:$0xff]
    %v1878 = vld [vmem:[%s4 + $0xec0] sm:$0xff]
    %v1879 = vld [vmem:[%s4 + $0xec8] sm:$0xff]
    %v1880 = vld [vmem:[%s4 + $0xed0] sm:$0xff]
    %v1881 = vld [vmem:[%s4 + $0xed8] sm:$0xff]
    %v1882 = vld [vmem:[%s4 + $0xee0] sm:$0xff]
    %v1883 = vld [vmem:[%s4 + $0xee8] sm:$0xff]
    %v1884 = vld [vmem:[%s4 + $0xef0] sm:$0xff]
    %v1885 = vld [vmem:[%s4 + $0xef8] sm:$0xff]
    %v1886 = vld [vmem:[%s4 + $0xf00] sm:$0xff]
    %v1887 = vld [vmem:[%s4 + $0xf08] sm:$0xff]
    %v1888 = vld [vmem:[%s4 + $0xf10] sm:$0xff]
    %v1889 = vld [vmem:[%s4 + $0xf18] sm:$0xff]
    %v1890 = vld [vmem:[%s4 + $0xf20] sm:$0xff]
    %v1891 = vld [vmem:[%s4 + $0xf28] sm:$0xff]
    %v1892 = vld [vmem:[%s4 + $0xf30] sm:$0xff]
    %v1893 = vld [vmem:[%s4 + $0xf38] sm:$0xff]
    %v1894 = vld [vmem:[%s4 + $0xf40] sm:$0xff]
    %v1895 = vld [vmem:[%s4 + $0xf48] sm:$0xff]
    %v1896 = vld [vmem:[%s4 + $0xf50] sm:$0xff]
    %v1897 = vld [vmem:[%s4 + $0xf58] sm:$0xff]
    %v1898 = vld [vmem:[%s4 + $0xf60] sm:$0xff]
    %v1899 = vld [vmem:[%s4 + $0xf68] sm:$0xff]
    %v1900 = vld [vmem:[%s4 + $0xf70] sm:$0xff]
    %v1901 = vld [vmem:[%s4 + $0xf78] sm:$0xff]
    %v1902 = vld [vmem:[%s4 + $0xf80] sm:$0xff]
    %v1903 = vld [vmem:[%s4 + $0xf88] sm:$0xff]
    %v1904 = vld [vmem:[%s4 + $0xf90] sm:$0xff]
    %v1905 = vld [vmem:[%s4 + $0xf98] sm:$0xff]
    %v1906 = vld [vmem:[%s4 + $0xfa0] sm:$0xff]
    %v1907 = vld [vmem:[%s4 + $0xfa8] sm:$0xff]
    %v1908 = vld [vmem:[%s4 + $0xfb0] sm:$0xff]
    %v1909 = vld [vmem:[%s4 + $0xfb8] sm:$0xff]
    %v1910 = vld [vmem:[%s4 + $0xfc0] sm:$0xff]
    %v1911 = vld [vmem:[%s4 + $0xfc8] sm:$0xff]
    %v1912 = vld [vmem:[%s4 + $0xfd0] sm:$0xff]
    %v1913 = vld [vmem:[%s4 + $0xfd8] sm:$0xff]
    %v1914 = vld [vmem:[%s4 + $0xfe0] sm:$0xff]
    %v1915 = vld [vmem:[%s4 + $0xfe8] sm:$0xff]
    %v1916 = vld [vmem:[%s4 + $0xff0] sm:$0xff]
    %v1917 = vld [vmem:[%s4 + $0xff8] sm:$0xff]
    %v2430 = vunpack.c.l.b16 %v1406
    %v2431 = vunpack.c.h.b16 %v1406
    %v2432 = vunpack.c.l.b16 %v1407
    %v2433 = vunpack.c.h.b16 %v1407
    %v2434 = vunpack.c.l.b16 %v1408
    %v2435 = vunpack.c.h.b16 %v1408
    %v2436 = vunpack.c.l.b16 %v1409
    %v2437 = vunpack.c.h.b16 %v1409
    %v2438 = vunpack.c.l.b16 %v1410
    %v2439 = vunpack.c.h.b16 %v1410
    %v2440 = vunpack.c.l.b16 %v1411
    %v2441 = vunpack.c.h.b16 %v1411
    %v2442 = vunpack.c.l.b16 %v1412
    %v2443 = vunpack.c.h.b16 %v1412
    %v2444 = vunpack.c.l.b16 %v1413
    %v2445 = vunpack.c.h.b16 %v1413
    %v2446 = vunpack.c.l.b16 %v1414
    %v2447 = vunpack.c.h.b16 %v1414
    %v2448 = vunpack.c.l.b16 %v1415
    %v2449 = vunpack.c.h.b16 %v1415
    %v2450 = vunpack.c.l.b16 %v1416
    %v2451 = vunpack.c.h.b16 %v1416
    %v2452 = vunpack.c.l.b16 %v1417
    %v2453 = vunpack.c.h.b16 %v1417
    %v2454 = vunpack.c.l.b16 %v1418
    %v2455 = vunpack.c.h.b16 %v1418
    %v2456 = vunpack.c.l.b16 %v1419
    %v2457 = vunpack.c.h.b16 %v1419
    %v2458 = vunpack.c.l.b16 %v1420
    %v2459 = vunpack.c.h.b16 %v1420
    %v2460 = vunpack.c.l.b16 %v1421
    %v2461 = vunpack.c.h.b16 %v1421
    %v2462 = vunpack.c.l.b16 %v1422
    %v2463 = vunpack.c.h.b16 %v1422
    %v2464 = vunpack.c.l.b16 %v1423
    %v2465 = vunpack.c.h.b16 %v1423
    %v2466 = vunpack.c.l.b16 %v1424
    %v2467 = vunpack.c.h.b16 %v1424
    %v2468 = vunpack.c.l.b16 %v1425
    %v2469 = vunpack.c.h.b16 %v1425
    %v2470 = vunpack.c.l.b16 %v1426
    %v2471 = vunpack.c.h.b16 %v1426
    %v2472 = vunpack.c.l.b16 %v1427
    %v2473 = vunpack.c.h.b16 %v1427
    %v2474 = vunpack.c.l.b16 %v1428
    %v2475 = vunpack.c.h.b16 %v1428
    %v2476 = vunpack.c.l.b16 %v1429
    %v2477 = vunpack.c.h.b16 %v1429
    %v2478 = vunpack.c.l.b16 %v1430
    %v2479 = vunpack.c.h.b16 %v1430
    %v2480 = vunpack.c.l.b16 %v1431
    %v2481 = vunpack.c.h.b16 %v1431
    %v2482 = vunpack.c.l.b16 %v1432
    %v2483 = vunpack.c.h.b16 %v1432
    %v2484 = vunpack.c.l.b16 %v1433
    %v2485 = vunpack.c.h.b16 %v1433
    %v2486 = vunpack.c.l.b16 %v1434
    %v2487 = vunpack.c.h.b16 %v1434
    %v2488 = vunpack.c.l.b16 %v1435
    %v2489 = vunpack.c.h.b16 %v1435
    %v2490 = vunpack.c.l.b16 %v1436
    %v2491 = vunpack.c.h.b16 %v1436
    %v2492 = vunpack.c.l.b16 %v1437
    %v2493 = vunpack.c.h.b16 %v1437
    %v2494 = vunpack.c.l.b16 %v1438
    %v2495 = vunpack.c.h.b16 %v1438
    %v2496 = vunpack.c.l.b16 %v1439
    %v2497 = vunpack.c.h.b16 %v1439
    %v2498 = vunpack.c.l.b16 %v1440
    %v2499 = vunpack.c.h.b16 %v1440
    %v2500 = vunpack.c.l.b16 %v1441
    %v2501 = vunpack.c.h.b16 %v1441
    %v2502 = vunpack.c.l.b16 %v1442
    %v2503 = vunpack.c.h.b16 %v1442
    %v2504 = vunpack.c.l.b16 %v1443
    %v2505 = vunpack.c.h.b16 %v1443
    %v2506 = vunpack.c.l.b16 %v1444
    %v2507 = vunpack.c.h.b16 %v1444
    %v2508 = vunpack.c.l.b16 %v1445
    %v2509 = vunpack.c.h.b16 %v1445
    %v2510 = vunpack.c.l.b16 %v1446
    %v2511 = vunpack.c.h.b16 %v1446
    %v2512 = vunpack.c.l.b16 %v1447
    %v2513 = vunpack.c.h.b16 %v1447
    %v2514 = vunpack.c.l.b16 %v1448
    %v2515 = vunpack.c.h.b16 %v1448
    %v2516 = vunpack.c.l.b16 %v1449
    %v2517 = vunpack.c.h.b16 %v1449
    %v2518 = vunpack.c.l.b16 %v1450
    %v2519 = vunpack.c.h.b16 %v1450
    %v2520 = vunpack.c.l.b16 %v1451
    %v2521 = vunpack.c.h.b16 %v1451
    %v2522 = vunpack.c.l.b16 %v1452
    %v2523 = vunpack.c.h.b16 %v1452
    %v2524 = vunpack.c.l.b16 %v1453
    %v2525 = vunpack.c.h.b16 %v1453
    %v2526 = vunpack.c.l.b16 %v1454
    %v2527 = vunpack.c.h.b16 %v1454
    %v2528 = vunpack.c.l.b16 %v1455
    %v2529 = vunpack.c.h.b16 %v1455
    %v2530 = vunpack.c.l.b16 %v1456
    %v2531 = vunpack.c.h.b16 %v1456
    %v2532 = vunpack.c.l.b16 %v1457
    %v2533 = vunpack.c.h.b16 %v1457
    %v2534 = vunpack.c.l.b16 %v1458
    %v2535 = vunpack.c.h.b16 %v1458
    %v2536 = vunpack.c.l.b16 %v1459
    %v2537 = vunpack.c.h.b16 %v1459
    %v2538 = vunpack.c.l.b16 %v1460
    %v2539 = vunpack.c.h.b16 %v1460
    %v2540 = vunpack.c.l.b16 %v1461
    %v2541 = vunpack.c.h.b16 %v1461
    %v2542 = vunpack.c.l.b16 %v1462
    %v2543 = vunpack.c.h.b16 %v1462
    %v2544 = vunpack.c.l.b16 %v1463
    %v2545 = vunpack.c.h.b16 %v1463
    %v2546 = vunpack.c.l.b16 %v1464
    %v2547 = vunpack.c.h.b16 %v1464
    %v2548 = vunpack.c.l.b16 %v1465
    %v2549 = vunpack.c.h.b16 %v1465
    %v2550 = vunpack.c.l.b16 %v1466
    %v2551 = vunpack.c.h.b16 %v1466
    %v2552 = vunpack.c.l.b16 %v1467
    %v2553 = vunpack.c.h.b16 %v1467
    %v2554 = vunpack.c.l.b16 %v1468
    %v2555 = vunpack.c.h.b16 %v1468
    %v2556 = vunpack.c.l.b16 %v1469
    %v2557 = vunpack.c.h.b16 %v1469
    %v2558 = vunpack.c.l.b16 %v1470
    %v2559 = vunpack.c.h.b16 %v1470
    %v2560 = vunpack.c.l.b16 %v1471
    %v2561 = vunpack.c.h.b16 %v1471
    %v2562 = vunpack.c.l.b16 %v1472
    %v2563 = vunpack.c.h.b16 %v1472
    %v2564 = vunpack.c.l.b16 %v1473
    %v2565 = vunpack.c.h.b16 %v1473
    %v2566 = vunpack.c.l.b16 %v1474
    %v2567 = vunpack.c.h.b16 %v1474
    %v2568 = vunpack.c.l.b16 %v1475
    %v2569 = vunpack.c.h.b16 %v1475
    %v2570 = vunpack.c.l.b16 %v1476
    %v2571 = vunpack.c.h.b16 %v1476
    %v2572 = vunpack.c.l.b16 %v1477
    %v2573 = vunpack.c.h.b16 %v1477
    %v2574 = vunpack.c.l.b16 %v1478
    %v2575 = vunpack.c.h.b16 %v1478
    %v2576 = vunpack.c.l.b16 %v1479
    %v2577 = vunpack.c.h.b16 %v1479
    %v2578 = vunpack.c.l.b16 %v1480
    %v2579 = vunpack.c.h.b16 %v1480
    %v2580 = vunpack.c.l.b16 %v1481
    %v2581 = vunpack.c.h.b16 %v1481
    %v2582 = vunpack.c.l.b16 %v1482
    %v2583 = vunpack.c.h.b16 %v1482
    %v2584 = vunpack.c.l.b16 %v1483
    %v2585 = vunpack.c.h.b16 %v1483
    %v2586 = vunpack.c.l.b16 %v1484
    %v2587 = vunpack.c.h.b16 %v1484
    %v2588 = vunpack.c.l.b16 %v1485
    %v2589 = vunpack.c.h.b16 %v1485
    %v2590 = vunpack.c.l.b16 %v1486
    %v2591 = vunpack.c.h.b16 %v1486
    %v2592 = vunpack.c.l.b16 %v1487
    %v2593 = vunpack.c.h.b16 %v1487
    %v2594 = vunpack.c.l.b16 %v1488
    %v2595 = vunpack.c.h.b16 %v1488
    %v2596 = vunpack.c.l.b16 %v1489
    %v2597 = vunpack.c.h.b16 %v1489
    %v2598 = vunpack.c.l.b16 %v1490
    %v2599 = vunpack.c.h.b16 %v1490
    %v2600 = vunpack.c.l.b16 %v1491
    %v2601 = vunpack.c.h.b16 %v1491
    %v2602 = vunpack.c.l.b16 %v1492
    %v2603 = vunpack.c.h.b16 %v1492
    %v2604 = vunpack.c.l.b16 %v1493
    %v2605 = vunpack.c.h.b16 %v1493
    %v2606 = vunpack.c.l.b16 %v1494
    %v2607 = vunpack.c.h.b16 %v1494
    %v2608 = vunpack.c.l.b16 %v1495
    %v2609 = vunpack.c.h.b16 %v1495
    %v2610 = vunpack.c.l.b16 %v1496
    %v2611 = vunpack.c.h.b16 %v1496
    %v2612 = vunpack.c.l.b16 %v1497
    %v2613 = vunpack.c.h.b16 %v1497
    %v2614 = vunpack.c.l.b16 %v1498
    %v2615 = vunpack.c.h.b16 %v1498
    %v2616 = vunpack.c.l.b16 %v1499
    %v2617 = vunpack.c.h.b16 %v1499
    %v2618 = vunpack.c.l.b16 %v1500
    %v2619 = vunpack.c.h.b16 %v1500
    %v2620 = vunpack.c.l.b16 %v1501
    %v2621 = vunpack.c.h.b16 %v1501
    %v2622 = vunpack.c.l.b16 %v1502
    %v2623 = vunpack.c.h.b16 %v1502
    %v2624 = vunpack.c.l.b16 %v1503
    %v2625 = vunpack.c.h.b16 %v1503
    %v2626 = vunpack.c.l.b16 %v1504
    %v2627 = vunpack.c.h.b16 %v1504
    %v2628 = vunpack.c.l.b16 %v1505
    %v2629 = vunpack.c.h.b16 %v1505
    %v2630 = vunpack.c.l.b16 %v1506
    %v2631 = vunpack.c.h.b16 %v1506
    %v2632 = vunpack.c.l.b16 %v1507
    %v2633 = vunpack.c.h.b16 %v1507
    %v2634 = vunpack.c.l.b16 %v1508
    %v2635 = vunpack.c.h.b16 %v1508
    %v2636 = vunpack.c.l.b16 %v1509
    %v2637 = vunpack.c.h.b16 %v1509
    %v2638 = vunpack.c.l.b16 %v1510
    %v2639 = vunpack.c.h.b16 %v1510
    %v2640 = vunpack.c.l.b16 %v1511
    %v2641 = vunpack.c.h.b16 %v1511
    %v2642 = vunpack.c.l.b16 %v1512
    %v2643 = vunpack.c.h.b16 %v1512
    %v2644 = vunpack.c.l.b16 %v1513
    %v2645 = vunpack.c.h.b16 %v1513
    %v2646 = vunpack.c.l.b16 %v1514
    %v2647 = vunpack.c.h.b16 %v1514
    %v2648 = vunpack.c.l.b16 %v1515
    %v2649 = vunpack.c.h.b16 %v1515
    %v2650 = vunpack.c.l.b16 %v1516
    %v2651 = vunpack.c.h.b16 %v1516
    %v2652 = vunpack.c.l.b16 %v1517
    %v2653 = vunpack.c.h.b16 %v1517
    %v2654 = vunpack.c.l.b16 %v1518
    %v2655 = vunpack.c.h.b16 %v1518
    %v2656 = vunpack.c.l.b16 %v1519
    %v2657 = vunpack.c.h.b16 %v1519
    %v2658 = vunpack.c.l.b16 %v1520
    %v2659 = vunpack.c.h.b16 %v1520
    %v2660 = vunpack.c.l.b16 %v1521
    %v2661 = vunpack.c.h.b16 %v1521
    %v2662 = vunpack.c.l.b16 %v1522
    %v2663 = vunpack.c.h.b16 %v1522
    %v2664 = vunpack.c.l.b16 %v1523
    %v2665 = vunpack.c.h.b16 %v1523
    %v2666 = vunpack.c.l.b16 %v1524
    %v2667 = vunpack.c.h.b16 %v1524
    %v2668 = vunpack.c.l.b16 %v1525
    %v2669 = vunpack.c.h.b16 %v1525
    %v2670 = vunpack.c.l.b16 %v1526
    %v2671 = vunpack.c.h.b16 %v1526
    %v2672 = vunpack.c.l.b16 %v1527
    %v2673 = vunpack.c.h.b16 %v1527
    %v2674 = vunpack.c.l.b16 %v1528
    %v2675 = vunpack.c.h.b16 %v1528
    %v2676 = vunpack.c.l.b16 %v1529
    %v2677 = vunpack.c.h.b16 %v1529
    %v2678 = vunpack.c.l.b16 %v1530
    %v2679 = vunpack.c.h.b16 %v1530
    %v2680 = vunpack.c.l.b16 %v1531
    %v2681 = vunpack.c.h.b16 %v1531
    %v2682 = vunpack.c.l.b16 %v1532
    %v2683 = vunpack.c.h.b16 %v1532
    %v2684 = vunpack.c.l.b16 %v1533
    %v2685 = vunpack.c.h.b16 %v1533
    %v2686 = vunpack.c.l.b16 %v1534
    %v2687 = vunpack.c.h.b16 %v1534
    %v2688 = vunpack.c.l.b16 %v1535
    %v2689 = vunpack.c.h.b16 %v1535
    %v2690 = vunpack.c.l.b16 %v1536
    %v2691 = vunpack.c.h.b16 %v1536
    %v2692 = vunpack.c.l.b16 %v1537
    %v2693 = vunpack.c.h.b16 %v1537
    %v2694 = vunpack.c.l.b16 %v1538
    %v2695 = vunpack.c.h.b16 %v1538
    %v2696 = vunpack.c.l.b16 %v1539
    %v2697 = vunpack.c.h.b16 %v1539
    %v2698 = vunpack.c.l.b16 %v1540
    %v2699 = vunpack.c.h.b16 %v1540
    %v2700 = vunpack.c.l.b16 %v1541
    %v2701 = vunpack.c.h.b16 %v1541
    %v2702 = vunpack.c.l.b16 %v1542
    %v2703 = vunpack.c.h.b16 %v1542
    %v2704 = vunpack.c.l.b16 %v1543
    %v2705 = vunpack.c.h.b16 %v1543
    %v2706 = vunpack.c.l.b16 %v1544
    %v2707 = vunpack.c.h.b16 %v1544
    %v2708 = vunpack.c.l.b16 %v1545
    %v2709 = vunpack.c.h.b16 %v1545
    %v2710 = vunpack.c.l.b16 %v1546
    %v2711 = vunpack.c.h.b16 %v1546
    %v2712 = vunpack.c.l.b16 %v1547
    %v2713 = vunpack.c.h.b16 %v1547
    %v2714 = vunpack.c.l.b16 %v1548
    %v2715 = vunpack.c.h.b16 %v1548
    %v2716 = vunpack.c.l.b16 %v1549
    %v2717 = vunpack.c.h.b16 %v1549
    %v2718 = vunpack.c.l.b16 %v1550
    %v2719 = vunpack.c.h.b16 %v1550
    %v2720 = vunpack.c.l.b16 %v1551
    %v2721 = vunpack.c.h.b16 %v1551
    %v2722 = vunpack.c.l.b16 %v1552
    %v2723 = vunpack.c.h.b16 %v1552
    %v2724 = vunpack.c.l.b16 %v1553
    %v2725 = vunpack.c.h.b16 %v1553
    %v2726 = vunpack.c.l.b16 %v1554
    %v2727 = vunpack.c.h.b16 %v1554
    %v2728 = vunpack.c.l.b16 %v1555
    %v2729 = vunpack.c.h.b16 %v1555
    %v2730 = vunpack.c.l.b16 %v1556
    %v2731 = vunpack.c.h.b16 %v1556
    %v2732 = vunpack.c.l.b16 %v1557
    %v2733 = vunpack.c.h.b16 %v1557
    %v2734 = vunpack.c.l.b16 %v1558
    %v2735 = vunpack.c.h.b16 %v1558
    %v2736 = vunpack.c.l.b16 %v1559
    %v2737 = vunpack.c.h.b16 %v1559
    %v2738 = vunpack.c.l.b16 %v1560
    %v2739 = vunpack.c.h.b16 %v1560
    %v2740 = vunpack.c.l.b16 %v1561
    %v2741 = vunpack.c.h.b16 %v1561
    %v2742 = vunpack.c.l.b16 %v1562
    %v2743 = vunpack.c.h.b16 %v1562
    %v2744 = vunpack.c.l.b16 %v1563
    %v2745 = vunpack.c.h.b16 %v1563
    %v2746 = vunpack.c.l.b16 %v1564
    %v2747 = vunpack.c.h.b16 %v1564
    %v2748 = vunpack.c.l.b16 %v1565
    %v2749 = vunpack.c.h.b16 %v1565
    %v2750 = vunpack.c.l.b16 %v1566
    %v2751 = vunpack.c.h.b16 %v1566
    %v2752 = vunpack.c.l.b16 %v1567
    %v2753 = vunpack.c.h.b16 %v1567
    %v2754 = vunpack.c.l.b16 %v1568
    %v2755 = vunpack.c.h.b16 %v1568
    %v2756 = vunpack.c.l.b16 %v1569
    %v2757 = vunpack.c.h.b16 %v1569
    %v2758 = vunpack.c.l.b16 %v1570
    %v2759 = vunpack.c.h.b16 %v1570
    %v2760 = vunpack.c.l.b16 %v1571
    %v2761 = vunpack.c.h.b16 %v1571
    %v2762 = vunpack.c.l.b16 %v1572
    %v2763 = vunpack.c.h.b16 %v1572
    %v2764 = vunpack.c.l.b16 %v1573
    %v2765 = vunpack.c.h.b16 %v1573
    %v2766 = vunpack.c.l.b16 %v1574
    %v2767 = vunpack.c.h.b16 %v1574
    %v2768 = vunpack.c.l.b16 %v1575
    %v2769 = vunpack.c.h.b16 %v1575
    %v2770 = vunpack.c.l.b16 %v1576
    %v2771 = vunpack.c.h.b16 %v1576
    %v2772 = vunpack.c.l.b16 %v1577
    %v2773 = vunpack.c.h.b16 %v1577
    %v2774 = vunpack.c.l.b16 %v1578
    %v2775 = vunpack.c.h.b16 %v1578
    %v2776 = vunpack.c.l.b16 %v1579
    %v2777 = vunpack.c.h.b16 %v1579
    %v2778 = vunpack.c.l.b16 %v1580
    %v2779 = vunpack.c.h.b16 %v1580
    %v2780 = vunpack.c.l.b16 %v1581
    %v2781 = vunpack.c.h.b16 %v1581
    %v2782 = vunpack.c.l.b16 %v1582
    %v2783 = vunpack.c.h.b16 %v1582
    %v2784 = vunpack.c.l.b16 %v1583
    %v2785 = vunpack.c.h.b16 %v1583
    %v2786 = vunpack.c.l.b16 %v1584
    %v2787 = vunpack.c.h.b16 %v1584
    %v2788 = vunpack.c.l.b16 %v1585
    %v2789 = vunpack.c.h.b16 %v1585
    %v2790 = vunpack.c.l.b16 %v1586
    %v2791 = vunpack.c.h.b16 %v1586
    %v2792 = vunpack.c.l.b16 %v1587
    %v2793 = vunpack.c.h.b16 %v1587
    %v2794 = vunpack.c.l.b16 %v1588
    %v2795 = vunpack.c.h.b16 %v1588
    %v2796 = vunpack.c.l.b16 %v1589
    %v2797 = vunpack.c.h.b16 %v1589
    %v2798 = vunpack.c.l.b16 %v1590
    %v2799 = vunpack.c.h.b16 %v1590
    %v2800 = vunpack.c.l.b16 %v1591
    %v2801 = vunpack.c.h.b16 %v1591
    %v2802 = vunpack.c.l.b16 %v1592
    %v2803 = vunpack.c.h.b16 %v1592
    %v2804 = vunpack.c.l.b16 %v1593
    %v2805 = vunpack.c.h.b16 %v1593
    %v2806 = vunpack.c.l.b16 %v1594
    %v2807 = vunpack.c.h.b16 %v1594
    %v2808 = vunpack.c.l.b16 %v1595
    %v2809 = vunpack.c.h.b16 %v1595
    %v2810 = vunpack.c.l.b16 %v1596
    %v2811 = vunpack.c.h.b16 %v1596
    %v2812 = vunpack.c.l.b16 %v1597
    %v2813 = vunpack.c.h.b16 %v1597
    %v2814 = vunpack.c.l.b16 %v1598
    %v2815 = vunpack.c.h.b16 %v1598
    %v2816 = vunpack.c.l.b16 %v1599
    %v2817 = vunpack.c.h.b16 %v1599
    %v2818 = vunpack.c.l.b16 %v1600
    %v2819 = vunpack.c.h.b16 %v1600
    %v2820 = vunpack.c.l.b16 %v1601
    %v2821 = vunpack.c.h.b16 %v1601
    %v2822 = vunpack.c.l.b16 %v1602
    %v2823 = vunpack.c.h.b16 %v1602
    %v2824 = vunpack.c.l.b16 %v1603
    %v2825 = vunpack.c.h.b16 %v1603
    %v2826 = vunpack.c.l.b16 %v1604
    %v2827 = vunpack.c.h.b16 %v1604
    %v2828 = vunpack.c.l.b16 %v1605
    %v2829 = vunpack.c.h.b16 %v1605
    %v2830 = vunpack.c.l.b16 %v1606
    %v2831 = vunpack.c.h.b16 %v1606
    %v2832 = vunpack.c.l.b16 %v1607
    %v2833 = vunpack.c.h.b16 %v1607
    %v2834 = vunpack.c.l.b16 %v1608
    %v2835 = vunpack.c.h.b16 %v1608
    %v2836 = vunpack.c.l.b16 %v1609
    %v2837 = vunpack.c.h.b16 %v1609
    %v2838 = vunpack.c.l.b16 %v1610
    %v2839 = vunpack.c.h.b16 %v1610
    %v2840 = vunpack.c.l.b16 %v1611
    %v2841 = vunpack.c.h.b16 %v1611
    %v2842 = vunpack.c.l.b16 %v1612
    %v2843 = vunpack.c.h.b16 %v1612
    %v2844 = vunpack.c.l.b16 %v1613
    %v2845 = vunpack.c.h.b16 %v1613
    %v2846 = vunpack.c.l.b16 %v1614
    %v2847 = vunpack.c.h.b16 %v1614
    %v2848 = vunpack.c.l.b16 %v1615
    %v2849 = vunpack.c.h.b16 %v1615
    %v2850 = vunpack.c.l.b16 %v1616
    %v2851 = vunpack.c.h.b16 %v1616
    %v2852 = vunpack.c.l.b16 %v1617
    %v2853 = vunpack.c.h.b16 %v1617
    %v2854 = vunpack.c.l.b16 %v1618
    %v2855 = vunpack.c.h.b16 %v1618
    %v2856 = vunpack.c.l.b16 %v1619
    %v2857 = vunpack.c.h.b16 %v1619
    %v2858 = vunpack.c.l.b16 %v1620
    %v2859 = vunpack.c.h.b16 %v1620
    %v2860 = vunpack.c.l.b16 %v1621
    %v2861 = vunpack.c.h.b16 %v1621
    %v2862 = vunpack.c.l.b16 %v1622
    %v2863 = vunpack.c.h.b16 %v1622
    %v2864 = vunpack.c.l.b16 %v1623
    %v2865 = vunpack.c.h.b16 %v1623
    %v2866 = vunpack.c.l.b16 %v1624
    %v2867 = vunpack.c.h.b16 %v1624
    %v2868 = vunpack.c.l.b16 %v1625
    %v2869 = vunpack.c.h.b16 %v1625
    %v2870 = vunpack.c.l.b16 %v1626
    %v2871 = vunpack.c.h.b16 %v1626
    %v2872 = vunpack.c.l.b16 %v1627
    %v2873 = vunpack.c.h.b16 %v1627
    %v2874 = vunpack.c.l.b16 %v1628
    %v2875 = vunpack.c.h.b16 %v1628
    %v2876 = vunpack.c.l.b16 %v1629
    %v2877 = vunpack.c.h.b16 %v1629
    %v2878 = vunpack.c.l.b16 %v1630
    %v2879 = vunpack.c.h.b16 %v1630
    %v2880 = vunpack.c.l.b16 %v1631
    %v2881 = vunpack.c.h.b16 %v1631
    %v2882 = vunpack.c.l.b16 %v1632
    %v2883 = vunpack.c.h.b16 %v1632
    %v2884 = vunpack.c.l.b16 %v1633
    %v2885 = vunpack.c.h.b16 %v1633
    %v2886 = vunpack.c.l.b16 %v1634
    %v2887 = vunpack.c.h.b16 %v1634
    %v2888 = vunpack.c.l.b16 %v1635
    %v2889 = vunpack.c.h.b16 %v1635
    %v2890 = vunpack.c.l.b16 %v1636
    %v2891 = vunpack.c.h.b16 %v1636
    %v2892 = vunpack.c.l.b16 %v1637
    %v2893 = vunpack.c.h.b16 %v1637
    %v2894 = vunpack.c.l.b16 %v1638
    %v2895 = vunpack.c.h.b16 %v1638
    %v2896 = vunpack.c.l.b16 %v1639
    %v2897 = vunpack.c.h.b16 %v1639
    %v2898 = vunpack.c.l.b16 %v1640
    %v2899 = vunpack.c.h.b16 %v1640
    %v2900 = vunpack.c.l.b16 %v1641
    %v2901 = vunpack.c.h.b16 %v1641
    %v2902 = vunpack.c.l.b16 %v1642
    %v2903 = vunpack.c.h.b16 %v1642
    %v2904 = vunpack.c.l.b16 %v1643
    %v2905 = vunpack.c.h.b16 %v1643
    %v2906 = vunpack.c.l.b16 %v1644
    %v2907 = vunpack.c.h.b16 %v1644
    %v2908 = vunpack.c.l.b16 %v1645
    %v2909 = vunpack.c.h.b16 %v1645
    %v2910 = vunpack.c.l.b16 %v1646
    %v2911 = vunpack.c.h.b16 %v1646
    %v2912 = vunpack.c.l.b16 %v1647
    %v2913 = vunpack.c.h.b16 %v1647
    %v2914 = vunpack.c.l.b16 %v1648
    %v2915 = vunpack.c.h.b16 %v1648
    %v2916 = vunpack.c.l.b16 %v1649
    %v2917 = vunpack.c.h.b16 %v1649
    %v2918 = vunpack.c.l.b16 %v1650
    %v2919 = vunpack.c.h.b16 %v1650
    %v2920 = vunpack.c.l.b16 %v1651
    %v2921 = vunpack.c.h.b16 %v1651
    %v2922 = vunpack.c.l.b16 %v1652
    %v2923 = vunpack.c.h.b16 %v1652
    %v2924 = vunpack.c.l.b16 %v1653
    %v2925 = vunpack.c.h.b16 %v1653
    %v2926 = vunpack.c.l.b16 %v1654
    %v2927 = vunpack.c.h.b16 %v1654
    %v2928 = vunpack.c.l.b16 %v1655
    %v2929 = vunpack.c.h.b16 %v1655
    %v2930 = vunpack.c.l.b16 %v1656
    %v2931 = vunpack.c.h.b16 %v1656
    %v2932 = vunpack.c.l.b16 %v1657
    %v2933 = vunpack.c.h.b16 %v1657
    %v2934 = vunpack.c.l.b16 %v1658
    %v2935 = vunpack.c.h.b16 %v1658
    %v2936 = vunpack.c.l.b16 %v1659
    %v2937 = vunpack.c.h.b16 %v1659
    %v2938 = vunpack.c.l.b16 %v1660
    %v2939 = vunpack.c.h.b16 %v1660
    %v2940 = vunpack.c.l.b16 %v1661
    %v2941 = vunpack.c.h.b16 %v1661
    %v2942 = vunpack.c.l.b16 %v1662
    %v2943 = vunpack.c.h.b16 %v1662
    %v2944 = vunpack.c.l.b16 %v1663
    %v2945 = vunpack.c.h.b16 %v1663
    %v2946 = vunpack.c.l.b16 %v1664
    %v2947 = vunpack.c.h.b16 %v1664
    %v2948 = vunpack.c.l.b16 %v1665
    %v2949 = vunpack.c.h.b16 %v1665
    %v2950 = vunpack.c.l.b16 %v1666
    %v2951 = vunpack.c.h.b16 %v1666
    %v2952 = vunpack.c.l.b16 %v1667
    %v2953 = vunpack.c.h.b16 %v1667
    %v2954 = vunpack.c.l.b16 %v1668
    %v2955 = vunpack.c.h.b16 %v1668
    %v2956 = vunpack.c.l.b16 %v1669
    %v2957 = vunpack.c.h.b16 %v1669
    %v2958 = vunpack.c.l.b16 %v1670
    %v2959 = vunpack.c.h.b16 %v1670
    %v2960 = vunpack.c.l.b16 %v1671
    %v2961 = vunpack.c.h.b16 %v1671
    %v2962 = vunpack.c.l.b16 %v1672
    %v2963 = vunpack.c.h.b16 %v1672
    %v2964 = vunpack.c.l.b16 %v1673
    %v2965 = vunpack.c.h.b16 %v1673
    %v2966 = vunpack.c.l.b16 %v1674
    %v2967 = vunpack.c.h.b16 %v1674
    %v2968 = vunpack.c.l.b16 %v1675
    %v2969 = vunpack.c.h.b16 %v1675
    %v2970 = vunpack.c.l.b16 %v1676
    %v2971 = vunpack.c.h.b16 %v1676
    %v2972 = vunpack.c.l.b16 %v1677
    %v2973 = vunpack.c.h.b16 %v1677
    %v2974 = vunpack.c.l.b16 %v1678
    %v2975 = vunpack.c.h.b16 %v1678
    %v2976 = vunpack.c.l.b16 %v1679
    %v2977 = vunpack.c.h.b16 %v1679
    %v2978 = vunpack.c.l.b16 %v1680
    %v2979 = vunpack.c.h.b16 %v1680
    %v2980 = vunpack.c.l.b16 %v1681
    %v2981 = vunpack.c.h.b16 %v1681
    %v2982 = vunpack.c.l.b16 %v1682
    %v2983 = vunpack.c.h.b16 %v1682
    %v2984 = vunpack.c.l.b16 %v1683
    %v2985 = vunpack.c.h.b16 %v1683
    %v2986 = vunpack.c.l.b16 %v1684
    %v2987 = vunpack.c.h.b16 %v1684
    %v2988 = vunpack.c.l.b16 %v1685
    %v2989 = vunpack.c.h.b16 %v1685
    %v2990 = vunpack.c.l.b16 %v1686
    %v2991 = vunpack.c.h.b16 %v1686
    %v2992 = vunpack.c.l.b16 %v1687
    %v2993 = vunpack.c.h.b16 %v1687
    %v2994 = vunpack.c.l.b16 %v1688
    %v2995 = vunpack.c.h.b16 %v1688
    %v2996 = vunpack.c.l.b16 %v1689
    %v2997 = vunpack.c.h.b16 %v1689
    %v2998 = vunpack.c.l.b16 %v1690
    %v2999 = vunpack.c.h.b16 %v1690
    %v3000 = vunpack.c.l.b16 %v1691
    %v3001 = vunpack.c.h.b16 %v1691
    %v3002 = vunpack.c.l.b16 %v1692
    %v3003 = vunpack.c.h.b16 %v1692
    %v3004 = vunpack.c.l.b16 %v1693
    %v3005 = vunpack.c.h.b16 %v1693
    %v3006 = vunpack.c.l.b16 %v1694
    %v3007 = vunpack.c.h.b16 %v1694
    %v3008 = vunpack.c.l.b16 %v1695
    %v3009 = vunpack.c.h.b16 %v1695
    %v3010 = vunpack.c.l.b16 %v1696
    %v3011 = vunpack.c.h.b16 %v1696
    %v3012 = vunpack.c.l.b16 %v1697
    %v3013 = vunpack.c.h.b16 %v1697
    %v3014 = vunpack.c.l.b16 %v1698
    %v3015 = vunpack.c.h.b16 %v1698
    %v3016 = vunpack.c.l.b16 %v1699
    %v3017 = vunpack.c.h.b16 %v1699
    %v3018 = vunpack.c.l.b16 %v1700
    %v3019 = vunpack.c.h.b16 %v1700
    %v3020 = vunpack.c.l.b16 %v1701
    %v3021 = vunpack.c.h.b16 %v1701
    %v3022 = vunpack.c.l.b16 %v1702
    %v3023 = vunpack.c.h.b16 %v1702
    %v3024 = vunpack.c.l.b16 %v1703
    %v3025 = vunpack.c.h.b16 %v1703
    %v3026 = vunpack.c.l.b16 %v1704
    %v3027 = vunpack.c.h.b16 %v1704
    %v3028 = vunpack.c.l.b16 %v1705
    %v3029 = vunpack.c.h.b16 %v1705
    %v3030 = vunpack.c.l.b16 %v1706
    %v3031 = vunpack.c.h.b16 %v1706
    %v3032 = vunpack.c.l.b16 %v1707
    %v3033 = vunpack.c.h.b16 %v1707
    %v3034 = vunpack.c.l.b16 %v1708
    %v3035 = vunpack.c.h.b16 %v1708
    %v3036 = vunpack.c.l.b16 %v1709
    %v3037 = vunpack.c.h.b16 %v1709
    %v3038 = vunpack.c.l.b16 %v1710
    %v3039 = vunpack.c.h.b16 %v1710
    %v3040 = vunpack.c.l.b16 %v1711
    %v3041 = vunpack.c.h.b16 %v1711
    %v3042 = vunpack.c.l.b16 %v1712
    %v3043 = vunpack.c.h.b16 %v1712
    %v3044 = vunpack.c.l.b16 %v1713
    %v3045 = vunpack.c.h.b16 %v1713
    %v3046 = vunpack.c.l.b16 %v1714
    %v3047 = vunpack.c.h.b16 %v1714
    %v3048 = vunpack.c.l.b16 %v1715
    %v3049 = vunpack.c.h.b16 %v1715
    %v3050 = vunpack.c.l.b16 %v1716
    %v3051 = vunpack.c.h.b16 %v1716
    %v3052 = vunpack.c.l.b16 %v1717
    %v3053 = vunpack.c.h.b16 %v1717
    %v3054 = vunpack.c.l.b16 %v1718
    %v3055 = vunpack.c.h.b16 %v1718
    %v3056 = vunpack.c.l.b16 %v1719
    %v3057 = vunpack.c.h.b16 %v1719
    %v3058 = vunpack.c.l.b16 %v1720
    %v3059 = vunpack.c.h.b16 %v1720
    %v3060 = vunpack.c.l.b16 %v1721
    %v3061 = vunpack.c.h.b16 %v1721
    %v3062 = vunpack.c.l.b16 %v1722
    %v3063 = vunpack.c.h.b16 %v1722
    %v3064 = vunpack.c.l.b16 %v1723
    %v3065 = vunpack.c.h.b16 %v1723
    %v3066 = vunpack.c.l.b16 %v1724
    %v3067 = vunpack.c.h.b16 %v1724
    %v3068 = vunpack.c.l.b16 %v1725
    %v3069 = vunpack.c.h.b16 %v1725
    %v3070 = vunpack.c.l.b16 %v1726
    %v3071 = vunpack.c.h.b16 %v1726
    %v3072 = vunpack.c.l.b16 %v1727
    %v3073 = vunpack.c.h.b16 %v1727
    %v3074 = vunpack.c.l.b16 %v1728
    %v3075 = vunpack.c.h.b16 %v1728
    %v3076 = vunpack.c.l.b16 %v1729
    %v3077 = vunpack.c.h.b16 %v1729
    %v3078 = vunpack.c.l.b16 %v1730
    %v3079 = vunpack.c.h.b16 %v1730
    %v3080 = vunpack.c.l.b16 %v1731
    %v3081 = vunpack.c.h.b16 %v1731
    %v3082 = vunpack.c.l.b16 %v1732
    %v3083 = vunpack.c.h.b16 %v1732
    %v3084 = vunpack.c.l.b16 %v1733
    %v3085 = vunpack.c.h.b16 %v1733
    %v3086 = vunpack.c.l.b16 %v1734
    %v3087 = vunpack.c.h.b16 %v1734
    %v3088 = vunpack.c.l.b16 %v1735
    %v3089 = vunpack.c.h.b16 %v1735
    %v3090 = vunpack.c.l.b16 %v1736
    %v3091 = vunpack.c.h.b16 %v1736
    %v3092 = vunpack.c.l.b16 %v1737
    %v3093 = vunpack.c.h.b16 %v1737
    %v3094 = vunpack.c.l.b16 %v1738
    %v3095 = vunpack.c.h.b16 %v1738
    %v3096 = vunpack.c.l.b16 %v1739
    %v3097 = vunpack.c.h.b16 %v1739
    %v3098 = vunpack.c.l.b16 %v1740
    %v3099 = vunpack.c.h.b16 %v1740
    %v3100 = vunpack.c.l.b16 %v1741
    %v3101 = vunpack.c.h.b16 %v1741
    %v3102 = vunpack.c.l.b16 %v1742
    %v3103 = vunpack.c.h.b16 %v1742
    %v3104 = vunpack.c.l.b16 %v1743
    %v3105 = vunpack.c.h.b16 %v1743
    %v3106 = vunpack.c.l.b16 %v1744
    %v3107 = vunpack.c.h.b16 %v1744
    %v3108 = vunpack.c.l.b16 %v1745
    %v3109 = vunpack.c.h.b16 %v1745
    %v3110 = vunpack.c.l.b16 %v1746
    %v3111 = vunpack.c.h.b16 %v1746
    %v3112 = vunpack.c.l.b16 %v1747
    %v3113 = vunpack.c.h.b16 %v1747
    %v3114 = vunpack.c.l.b16 %v1748
    %v3115 = vunpack.c.h.b16 %v1748
    %v3116 = vunpack.c.l.b16 %v1749
    %v3117 = vunpack.c.h.b16 %v1749
    %v3118 = vunpack.c.l.b16 %v1750
    %v3119 = vunpack.c.h.b16 %v1750
    %v3120 = vunpack.c.l.b16 %v1751
    %v3121 = vunpack.c.h.b16 %v1751
    %v3122 = vunpack.c.l.b16 %v1752
    %v3123 = vunpack.c.h.b16 %v1752
    %v3124 = vunpack.c.l.b16 %v1753
    %v3125 = vunpack.c.h.b16 %v1753
    %v3126 = vunpack.c.l.b16 %v1754
    %v3127 = vunpack.c.h.b16 %v1754
    %v3128 = vunpack.c.l.b16 %v1755
    %v3129 = vunpack.c.h.b16 %v1755
    %v3130 = vunpack.c.l.b16 %v1756
    %v3131 = vunpack.c.h.b16 %v1756
    %v3132 = vunpack.c.l.b16 %v1757
    %v3133 = vunpack.c.h.b16 %v1757
    %v3134 = vunpack.c.l.b16 %v1758
    %v3135 = vunpack.c.h.b16 %v1758
    %v3136 = vunpack.c.l.b16 %v1759
    %v3137 = vunpack.c.h.b16 %v1759
    %v3138 = vunpack.c.l.b16 %v1760
    %v3139 = vunpack.c.h.b16 %v1760
    %v3140 = vunpack.c.l.b16 %v1761
    %v3141 = vunpack.c.h.b16 %v1761
    %v3142 = vunpack.c.l.b16 %v1762
    %v3143 = vunpack.c.h.b16 %v1762
    %v3144 = vunpack.c.l.b16 %v1763
    %v3145 = vunpack.c.h.b16 %v1763
    %v3146 = vunpack.c.l.b16 %v1764
    %v3147 = vunpack.c.h.b16 %v1764
    %v3148 = vunpack.c.l.b16 %v1765
    %v3149 = vunpack.c.h.b16 %v1765
    %v3150 = vunpack.c.l.b16 %v1766
    %v3151 = vunpack.c.h.b16 %v1766
    %v3152 = vunpack.c.l.b16 %v1767
    %v3153 = vunpack.c.h.b16 %v1767
    %v3154 = vunpack.c.l.b16 %v1768
    %v3155 = vunpack.c.h.b16 %v1768
    %v3156 = vunpack.c.l.b16 %v1769
    %v3157 = vunpack.c.h.b16 %v1769
    %v3158 = vunpack.c.l.b16 %v1770
    %v3159 = vunpack.c.h.b16 %v1770
    %v3160 = vunpack.c.l.b16 %v1771
    %v3161 = vunpack.c.h.b16 %v1771
    %v3162 = vunpack.c.l.b16 %v1772
    %v3163 = vunpack.c.h.b16 %v1772
    %v3164 = vunpack.c.l.b16 %v1773
    %v3165 = vunpack.c.h.b16 %v1773
    %v3166 = vunpack.c.l.b16 %v1774
    %v3167 = vunpack.c.h.b16 %v1774
    %v3168 = vunpack.c.l.b16 %v1775
    %v3169 = vunpack.c.h.b16 %v1775
    %v3170 = vunpack.c.l.b16 %v1776
    %v3171 = vunpack.c.h.b16 %v1776
    %v3172 = vunpack.c.l.b16 %v1777
    %v3173 = vunpack.c.h.b16 %v1777
    %v3174 = vunpack.c.l.b16 %v1778
    %v3175 = vunpack.c.h.b16 %v1778
    %v3176 = vunpack.c.l.b16 %v1779
    %v3177 = vunpack.c.h.b16 %v1779
    %v3178 = vunpack.c.l.b16 %v1780
    %v3179 = vunpack.c.h.b16 %v1780
    %v3180 = vunpack.c.l.b16 %v1781
    %v3181 = vunpack.c.h.b16 %v1781
    %v3182 = vunpack.c.l.b16 %v1782
    %v3183 = vunpack.c.h.b16 %v1782
    %v3184 = vunpack.c.l.b16 %v1783
    %v3185 = vunpack.c.h.b16 %v1783
    %v3186 = vunpack.c.l.b16 %v1784
    %v3187 = vunpack.c.h.b16 %v1784
    %v3188 = vunpack.c.l.b16 %v1785
    %v3189 = vunpack.c.h.b16 %v1785
    %v3190 = vunpack.c.l.b16 %v1786
    %v3191 = vunpack.c.h.b16 %v1786
    %v3192 = vunpack.c.l.b16 %v1787
    %v3193 = vunpack.c.h.b16 %v1787
    %v3194 = vunpack.c.l.b16 %v1788
    %v3195 = vunpack.c.h.b16 %v1788
    %v3196 = vunpack.c.l.b16 %v1789
    %v3197 = vunpack.c.h.b16 %v1789
    %v3198 = vunpack.c.l.b16 %v1790
    %v3199 = vunpack.c.h.b16 %v1790
    %v3200 = vunpack.c.l.b16 %v1791
    %v3201 = vunpack.c.h.b16 %v1791
    %v3202 = vunpack.c.l.b16 %v1792
    %v3203 = vunpack.c.h.b16 %v1792
    %v3204 = vunpack.c.l.b16 %v1793
    %v3205 = vunpack.c.h.b16 %v1793
    %v3206 = vunpack.c.l.b16 %v1794
    %v3207 = vunpack.c.h.b16 %v1794
    %v3208 = vunpack.c.l.b16 %v1795
    %v3209 = vunpack.c.h.b16 %v1795
    %v3210 = vunpack.c.l.b16 %v1796
    %v3211 = vunpack.c.h.b16 %v1796
    %v3212 = vunpack.c.l.b16 %v1797
    %v3213 = vunpack.c.h.b16 %v1797
    %v3214 = vunpack.c.l.b16 %v1798
    %v3215 = vunpack.c.h.b16 %v1798
    %v3216 = vunpack.c.l.b16 %v1799
    %v3217 = vunpack.c.h.b16 %v1799
    %v3218 = vunpack.c.l.b16 %v1800
    %v3219 = vunpack.c.h.b16 %v1800
    %v3220 = vunpack.c.l.b16 %v1801
    %v3221 = vunpack.c.h.b16 %v1801
    %v3222 = vunpack.c.l.b16 %v1802
    %v3223 = vunpack.c.h.b16 %v1802
    %v3224 = vunpack.c.l.b16 %v1803
    %v3225 = vunpack.c.h.b16 %v1803
    %v3226 = vunpack.c.l.b16 %v1804
    %v3227 = vunpack.c.h.b16 %v1804
    %v3228 = vunpack.c.l.b16 %v1805
    %v3229 = vunpack.c.h.b16 %v1805
    %v3230 = vunpack.c.l.b16 %v1806
    %v3231 = vunpack.c.h.b16 %v1806
    %v3232 = vunpack.c.l.b16 %v1807
    %v3233 = vunpack.c.h.b16 %v1807
    %v3234 = vunpack.c.l.b16 %v1808
    %v3235 = vunpack.c.h.b16 %v1808
    %v3236 = vunpack.c.l.b16 %v1809
    %v3237 = vunpack.c.h.b16 %v1809
    %v3238 = vunpack.c.l.b16 %v1810
    %v3239 = vunpack.c.h.b16 %v1810
    %v3240 = vunpack.c.l.b16 %v1811
    %v3241 = vunpack.c.h.b16 %v1811
    %v3242 = vunpack.c.l.b16 %v1812
    %v3243 = vunpack.c.h.b16 %v1812
    %v3244 = vunpack.c.l.b16 %v1813
    %v3245 = vunpack.c.h.b16 %v1813
    %v3246 = vunpack.c.l.b16 %v1814
    %v3247 = vunpack.c.h.b16 %v1814
    %v3248 = vunpack.c.l.b16 %v1815
    %v3249 = vunpack.c.h.b16 %v1815
    %v3250 = vunpack.c.l.b16 %v1816
    %v3251 = vunpack.c.h.b16 %v1816
    %v3252 = vunpack.c.l.b16 %v1817
    %v3253 = vunpack.c.h.b16 %v1817
    %v3254 = vunpack.c.l.b16 %v1818
    %v3255 = vunpack.c.h.b16 %v1818
    %v3256 = vunpack.c.l.b16 %v1819
    %v3257 = vunpack.c.h.b16 %v1819
    %v3258 = vunpack.c.l.b16 %v1820
    %v3259 = vunpack.c.h.b16 %v1820
    %v3260 = vunpack.c.l.b16 %v1821
    %v3261 = vunpack.c.h.b16 %v1821
    %v3262 = vunpack.c.l.b16 %v1822
    %v3263 = vunpack.c.h.b16 %v1822
    %v3264 = vunpack.c.l.b16 %v1823
    %v3265 = vunpack.c.h.b16 %v1823
    %v3266 = vunpack.c.l.b16 %v1824
    %v3267 = vunpack.c.h.b16 %v1824
    %v3268 = vunpack.c.l.b16 %v1825
    %v3269 = vunpack.c.h.b16 %v1825
    %v3270 = vunpack.c.l.b16 %v1826
    %v3271 = vunpack.c.h.b16 %v1826
    %v3272 = vunpack.c.l.b16 %v1827
    %v3273 = vunpack.c.h.b16 %v1827
    %v3274 = vunpack.c.l.b16 %v1828
    %v3275 = vunpack.c.h.b16 %v1828
    %v3276 = vunpack.c.l.b16 %v1829
    %v3277 = vunpack.c.h.b16 %v1829
    %v3278 = vunpack.c.l.b16 %v1830
    %v3279 = vunpack.c.h.b16 %v1830
    %v3280 = vunpack.c.l.b16 %v1831
    %v3281 = vunpack.c.h.b16 %v1831
    %v3282 = vunpack.c.l.b16 %v1832
    %v3283 = vunpack.c.h.b16 %v1832
    %v3284 = vunpack.c.l.b16 %v1833
    %v3285 = vunpack.c.h.b16 %v1833
    %v3286 = vunpack.c.l.b16 %v1834
    %v3287 = vunpack.c.h.b16 %v1834
    %v3288 = vunpack.c.l.b16 %v1835
    %v3289 = vunpack.c.h.b16 %v1835
    %v3290 = vunpack.c.l.b16 %v1836
    %v3291 = vunpack.c.h.b16 %v1836
    %v3292 = vunpack.c.l.b16 %v1837
    %v3293 = vunpack.c.h.b16 %v1837
    %v3294 = vunpack.c.l.b16 %v1838
    %v3295 = vunpack.c.h.b16 %v1838
    %v3296 = vunpack.c.l.b16 %v1839
    %v3297 = vunpack.c.h.b16 %v1839
    %v3298 = vunpack.c.l.b16 %v1840
    %v3299 = vunpack.c.h.b16 %v1840
    %v3300 = vunpack.c.l.b16 %v1841
    %v3301 = vunpack.c.h.b16 %v1841
    %v3302 = vunpack.c.l.b16 %v1842
    %v3303 = vunpack.c.h.b16 %v1842
    %v3304 = vunpack.c.l.b16 %v1843
    %v3305 = vunpack.c.h.b16 %v1843
    %v3306 = vunpack.c.l.b16 %v1844
    %v3307 = vunpack.c.h.b16 %v1844
    %v3308 = vunpack.c.l.b16 %v1845
    %v3309 = vunpack.c.h.b16 %v1845
    %v3310 = vunpack.c.l.b16 %v1846
    %v3311 = vunpack.c.h.b16 %v1846
    %v3312 = vunpack.c.l.b16 %v1847
    %v3313 = vunpack.c.h.b16 %v1847
    %v3314 = vunpack.c.l.b16 %v1848
    %v3315 = vunpack.c.h.b16 %v1848
    %v3316 = vunpack.c.l.b16 %v1849
    %v3317 = vunpack.c.h.b16 %v1849
    %v3318 = vunpack.c.l.b16 %v1850
    %v3319 = vunpack.c.h.b16 %v1850
    %v3320 = vunpack.c.l.b16 %v1851
    %v3321 = vunpack.c.h.b16 %v1851
    %v3322 = vunpack.c.l.b16 %v1852
    %v3323 = vunpack.c.h.b16 %v1852
    %v3324 = vunpack.c.l.b16 %v1853
    %v3325 = vunpack.c.h.b16 %v1853
    %v3326 = vunpack.c.l.b16 %v1854
    %v3327 = vunpack.c.h.b16 %v1854
    %v3328 = vunpack.c.l.b16 %v1855
    %v3329 = vunpack.c.h.b16 %v1855
    %v3330 = vunpack.c.l.b16 %v1856
    %v3331 = vunpack.c.h.b16 %v1856
    %v3332 = vunpack.c.l.b16 %v1857
    %v3333 = vunpack.c.h.b16 %v1857
    %v3334 = vunpack.c.l.b16 %v1858
    %v3335 = vunpack.c.h.b16 %v1858
    %v3336 = vunpack.c.l.b16 %v1859
    %v3337 = vunpack.c.h.b16 %v1859
    %v3338 = vunpack.c.l.b16 %v1860
    %v3339 = vunpack.c.h.b16 %v1860
    %v3340 = vunpack.c.l.b16 %v1861
    %v3341 = vunpack.c.h.b16 %v1861
    %v3342 = vunpack.c.l.b16 %v1862
    %v3343 = vunpack.c.h.b16 %v1862
    %v3344 = vunpack.c.l.b16 %v1863
    %v3345 = vunpack.c.h.b16 %v1863
    %v3346 = vunpack.c.l.b16 %v1864
    %v3347 = vunpack.c.h.b16 %v1864
    %v3348 = vunpack.c.l.b16 %v1865
    %v3349 = vunpack.c.h.b16 %v1865
    %v3350 = vunpack.c.l.b16 %v1866
    %v3351 = vunpack.c.h.b16 %v1866
    %v3352 = vunpack.c.l.b16 %v1867
    %v3353 = vunpack.c.h.b16 %v1867
    %v3354 = vunpack.c.l.b16 %v1868
    %v3355 = vunpack.c.h.b16 %v1868
    %v3356 = vunpack.c.l.b16 %v1869
    %v3357 = vunpack.c.h.b16 %v1869
    %v3358 = vunpack.c.l.b16 %v1870
    %v3359 = vunpack.c.h.b16 %v1870
    %v3360 = vunpack.c.l.b16 %v1871
    %v3361 = vunpack.c.h.b16 %v1871
    %v3362 = vunpack.c.l.b16 %v1872
    %v3363 = vunpack.c.h.b16 %v1872
    %v3364 = vunpack.c.l.b16 %v1873
    %v3365 = vunpack.c.h.b16 %v1873
    %v3366 = vunpack.c.l.b16 %v1874
    %v3367 = vunpack.c.h.b16 %v1874
    %v3368 = vunpack.c.l.b16 %v1875
    %v3369 = vunpack.c.h.b16 %v1875
    %v3370 = vunpack.c.l.b16 %v1876
    %v3371 = vunpack.c.h.b16 %v1876
    %v3372 = vunpack.c.l.b16 %v1877
    %v3373 = vunpack.c.h.b16 %v1877
    %v3374 = vunpack.c.l.b16 %v1878
    %v3375 = vunpack.c.h.b16 %v1878
    %v3376 = vunpack.c.l.b16 %v1879
    %v3377 = vunpack.c.h.b16 %v1879
    %v3378 = vunpack.c.l.b16 %v1880
    %v3379 = vunpack.c.h.b16 %v1880
    %v3380 = vunpack.c.l.b16 %v1881
    %v3381 = vunpack.c.h.b16 %v1881
    %v3382 = vunpack.c.l.b16 %v1882
    %v3383 = vunpack.c.h.b16 %v1882
    %v3384 = vunpack.c.l.b16 %v1883
    %v3385 = vunpack.c.h.b16 %v1883
    %v3386 = vunpack.c.l.b16 %v1884
    %v3387 = vunpack.c.h.b16 %v1884
    %v3388 = vunpack.c.l.b16 %v1885
    %v3389 = vunpack.c.h.b16 %v1885
    %v3390 = vunpack.c.l.b16 %v1886
    %v3391 = vunpack.c.h.b16 %v1886
    %v3392 = vunpack.c.l.b16 %v1887
    %v3393 = vunpack.c.h.b16 %v1887
    %v3394 = vunpack.c.l.b16 %v1888
    %v3395 = vunpack.c.h.b16 %v1888
    %v3396 = vunpack.c.l.b16 %v1889
    %v3397 = vunpack.c.h.b16 %v1889
    %v3398 = vunpack.c.l.b16 %v1890
    %v3399 = vunpack.c.h.b16 %v1890
    %v3400 = vunpack.c.l.b16 %v1891
    %v3401 = vunpack.c.h.b16 %v1891
    %v3402 = vunpack.c.l.b16 %v1892
    %v3403 = vunpack.c.h.b16 %v1892
    %v3404 = vunpack.c.l.b16 %v1893
    %v3405 = vunpack.c.h.b16 %v1893
    %v3406 = vunpack.c.l.b16 %v1894
    %v3407 = vunpack.c.h.b16 %v1894
    %v3408 = vunpack.c.l.b16 %v1895
    %v3409 = vunpack.c.h.b16 %v1895
    %v3410 = vunpack.c.l.b16 %v1896
    %v3411 = vunpack.c.h.b16 %v1896
    %v3412 = vunpack.c.l.b16 %v1897
    %v3413 = vunpack.c.h.b16 %v1897
    %v3414 = vunpack.c.l.b16 %v1898
    %v3415 = vunpack.c.h.b16 %v1898
    %v3416 = vunpack.c.l.b16 %v1899
    %v3417 = vunpack.c.h.b16 %v1899
    %v3418 = vunpack.c.l.b16 %v1900
    %v3419 = vunpack.c.h.b16 %v1900
    %v3420 = vunpack.c.l.b16 %v1901
    %v3421 = vunpack.c.h.b16 %v1901
    %v3422 = vunpack.c.l.b16 %v1902
    %v3423 = vunpack.c.h.b16 %v1902
    %v3424 = vunpack.c.l.b16 %v1903
    %v3425 = vunpack.c.h.b16 %v1903
    %v3426 = vunpack.c.l.b16 %v1904
    %v3427 = vunpack.c.h.b16 %v1904
    %v3428 = vunpack.c.l.b16 %v1905
    %v3429 = vunpack.c.h.b16 %v1905
    %v3430 = vunpack.c.l.b16 %v1906
    %v3431 = vunpack.c.h.b16 %v1906
    %v3432 = vunpack.c.l.b16 %v1907
    %v3433 = vunpack.c.h.b16 %v1907
    %v3434 = vunpack.c.l.b16 %v1908
    %v3435 = vunpack.c.h.b16 %v1908
    %v3436 = vunpack.c.l.b16 %v1909
    %v3437 = vunpack.c.h.b16 %v1909
    %v3438 = vunpack.c.l.b16 %v1910
    %v3439 = vunpack.c.h.b16 %v1910
    %v3440 = vunpack.c.l.b16 %v1911
    %v3441 = vunpack.c.h.b16 %v1911
    %v3442 = vunpack.c.l.b16 %v1912
    %v3443 = vunpack.c.h.b16 %v1912
    %v3444 = vunpack.c.l.b16 %v1913
    %v3445 = vunpack.c.h.b16 %v1913
    %v3446 = vunpack.c.l.b16 %v1914
    %v3447 = vunpack.c.h.b16 %v1914
    %v3448 = vunpack.c.l.b16 %v1915
    %v3449 = vunpack.c.h.b16 %v1915
    %v3450 = vunpack.c.l.b16 %v1916
    %v3451 = vunpack.c.h.b16 %v1916
    %v3452 = vunpack.c.l.b16 %v1917
    %v3453 = vunpack.c.h.b16 %v1917
    %v3454 = vpack.c.b16 %v2446, %v2430
    %v3455 = vpack.c.b16 %v2447, %v2431
    %v3456 = vpack.c.b16 %v2448, %v2432
    %v3457 = vpack.c.b16 %v2449, %v2433
    %v3458 = vpack.c.b16 %v2450, %v2434
    %v3459 = vpack.c.b16 %v2451, %v2435
    %v3460 = vpack.c.b16 %v2452, %v2436
    %v3461 = vpack.c.b16 %v2453, %v2437
    %v3462 = vpack.c.b16 %v2454, %v2438
    %v3463 = vpack.c.b16 %v2455, %v2439
    %v3464 = vpack.c.b16 %v2456, %v2440
    %v3465 = vpack.c.b16 %v2457, %v2441
    %v3466 = vpack.c.b16 %v2458, %v2442
    %v3467 = vpack.c.b16 %v2459, %v2443
    %v3468 = vpack.c.b16 %v2460, %v2444
    %v3469 = vpack.c.b16 %v2461, %v2445
    %v3470 = vpack.c.b16 %v2478, %v2462
    %v3471 = vpack.c.b16 %v2479, %v2463
    %v3472 = vpack.c.b16 %v2480, %v2464
    %v3473 = vpack.c.b16 %v2481, %v2465
    %v3474 = vpack.c.b16 %v2482, %v2466
    %v3475 = vpack.c.b16 %v2483, %v2467
    %v3476 = vpack.c.b16 %v2484, %v2468
    %v3477 = vpack.c.b16 %v2485, %v2469
    %v3478 = vpack.c.b16 %v2486, %v2470
    %v3479 = vpack.c.b16 %v2487, %v2471
    %v3480 = vpack.c.b16 %v2488, %v2472
    %v3481 = vpack.c.b16 %v2489, %v2473
    %v3482 = vpack.c.b16 %v2490, %v2474
    %v3483 = vpack.c.b16 %v2491, %v2475
    %v3484 = vpack.c.b16 %v2492, %v2476
    %v3485 = vpack.c.b16 %v2493, %v2477
    %v3486 = vpack.c.b16 %v2510, %v2494
    %v3487 = vpack.c.b16 %v2511, %v2495
    %v3488 = vpack.c.b16 %v2512, %v2496
    %v3489 = vpack.c.b16 %v2513, %v2497
    %v3490 = vpack.c.b16 %v2514, %v2498
    %v3491 = vpack.c.b16 %v2515, %v2499
    %v3492 = vpack.c.b16 %v2516, %v2500
    %v3493 = vpack.c.b16 %v2517, %v2501
    %v3494 = vpack.c.b16 %v2518, %v2502
    %v3495 = vpack.c.b16 %v2519, %v2503
    %v3496 = vpack.c.b16 %v2520, %v2504
    %v3497 = vpack.c.b16 %v2521, %v2505
    %v3498 = vpack.c.b16 %v2522, %v2506
    %v3499 = vpack.c.b16 %v2523, %v2507
    %v3500 = vpack.c.b16 %v2524, %v2508
    %v3501 = vpack.c.b16 %v2525, %v2509
    %v3502 = vpack.c.b16 %v2542, %v2526
    %v3503 = vpack.c.b16 %v2543, %v2527
    %v3504 = vpack.c.b16 %v2544, %v2528
    %v3505 = vpack.c.b16 %v2545, %v2529
    %v3506 = vpack.c.b16 %v2546, %v2530
    %v3507 = vpack.c.b16 %v2547, %v2531
    %v3508 = vpack.c.b16 %v2548, %v2532
    %v3509 = vpack.c.b16 %v2549, %v2533
    %v3510 = vpack.c.b16 %v2550, %v2534
    %v3511 = vpack.c.b16 %v2551, %v2535
    %v3512 = vpack.c.b16 %v2552, %v2536
    %v3513 = vpack.c.b16 %v2553, %v2537
    %v3514 = vpack.c.b16 %v2554, %v2538
    %v3515 = vpack.c.b16 %v2555, %v2539
    %v3516 = vpack.c.b16 %v2556, %v2540
    %v3517 = vpack.c.b16 %v2557, %v2541
    %v3518 = vpack.c.b16 %v2574, %v2558
    %v3519 = vpack.c.b16 %v2575, %v2559
    %v3520 = vpack.c.b16 %v2576, %v2560
    %v3521 = vpack.c.b16 %v2577, %v2561
    %v3522 = vpack.c.b16 %v2578, %v2562
    %v3523 = vpack.c.b16 %v2579, %v2563
    %v3524 = vpack.c.b16 %v2580, %v2564
    %v3525 = vpack.c.b16 %v2581, %v2565
    %v3526 = vpack.c.b16 %v2582, %v2566
    %v3527 = vpack.c.b16 %v2583, %v2567
    %v3528 = vpack.c.b16 %v2584, %v2568
    %v3529 = vpack.c.b16 %v2585, %v2569
    %v3530 = vpack.c.b16 %v2586, %v2570
    %v3531 = vpack.c.b16 %v2587, %v2571
    %v3532 = vpack.c.b16 %v2588, %v2572
    %v3533 = vpack.c.b16 %v2589, %v2573
    %v3534 = vpack.c.b16 %v2606, %v2590
    %v3535 = vpack.c.b16 %v2607, %v2591
    %v3536 = vpack.c.b16 %v2608, %v2592
    %v3537 = vpack.c.b16 %v2609, %v2593
    %v3538 = vpack.c.b16 %v2610, %v2594
    %v3539 = vpack.c.b16 %v2611, %v2595
    %v3540 = vpack.c.b16 %v2612, %v2596
    %v3541 = vpack.c.b16 %v2613, %v2597
    %v3542 = vpack.c.b16 %v2614, %v2598
    %v3543 = vpack.c.b16 %v2615, %v2599
    %v3544 = vpack.c.b16 %v2616, %v2600
    %v3545 = vpack.c.b16 %v2617, %v2601
    %v3546 = vpack.c.b16 %v2618, %v2602
    %v3547 = vpack.c.b16 %v2619, %v2603
    %v3548 = vpack.c.b16 %v2620, %v2604
    %v3549 = vpack.c.b16 %v2621, %v2605
    %v3550 = vpack.c.b16 %v2638, %v2622
    %v3551 = vpack.c.b16 %v2639, %v2623
    %v3552 = vpack.c.b16 %v2640, %v2624
    %v3553 = vpack.c.b16 %v2641, %v2625
    %v3554 = vpack.c.b16 %v2642, %v2626
    %v3555 = vpack.c.b16 %v2643, %v2627
    %v3556 = vpack.c.b16 %v2644, %v2628
    %v3557 = vpack.c.b16 %v2645, %v2629
    %v3558 = vpack.c.b16 %v2646, %v2630
    %v3559 = vpack.c.b16 %v2647, %v2631
    %v3560 = vpack.c.b16 %v2648, %v2632
    %v3561 = vpack.c.b16 %v2649, %v2633
    %v3562 = vpack.c.b16 %v2650, %v2634
    %v3563 = vpack.c.b16 %v2651, %v2635
    %v3564 = vpack.c.b16 %v2652, %v2636
    %v3565 = vpack.c.b16 %v2653, %v2637
    %v3566 = vpack.c.b16 %v2670, %v2654
    %v3567 = vpack.c.b16 %v2671, %v2655
    %v3568 = vpack.c.b16 %v2672, %v2656
    %v3569 = vpack.c.b16 %v2673, %v2657
    %v3570 = vpack.c.b16 %v2674, %v2658
    %v3571 = vpack.c.b16 %v2675, %v2659
    %v3572 = vpack.c.b16 %v2676, %v2660
    %v3573 = vpack.c.b16 %v2677, %v2661
    %v3574 = vpack.c.b16 %v2678, %v2662
    %v3575 = vpack.c.b16 %v2679, %v2663
    %v3576 = vpack.c.b16 %v2680, %v2664
    %v3577 = vpack.c.b16 %v2681, %v2665
    %v3578 = vpack.c.b16 %v2682, %v2666
    %v3579 = vpack.c.b16 %v2683, %v2667
    %v3580 = vpack.c.b16 %v2684, %v2668
    %v3581 = vpack.c.b16 %v2685, %v2669
    %v3582 = vpack.c.b16 %v2702, %v2686
    %v3583 = vpack.c.b16 %v2703, %v2687
    %v3584 = vpack.c.b16 %v2704, %v2688
    %v3585 = vpack.c.b16 %v2705, %v2689
    %v3586 = vpack.c.b16 %v2706, %v2690
    %v3587 = vpack.c.b16 %v2707, %v2691
    %v3588 = vpack.c.b16 %v2708, %v2692
    %v3589 = vpack.c.b16 %v2709, %v2693
    %v3590 = vpack.c.b16 %v2710, %v2694
    %v3591 = vpack.c.b16 %v2711, %v2695
    %v3592 = vpack.c.b16 %v2712, %v2696
    %v3593 = vpack.c.b16 %v2713, %v2697
    %v3594 = vpack.c.b16 %v2714, %v2698
    %v3595 = vpack.c.b16 %v2715, %v2699
    %v3596 = vpack.c.b16 %v2716, %v2700
    %v3597 = vpack.c.b16 %v2717, %v2701
    %v3598 = vpack.c.b16 %v2734, %v2718
    %v3599 = vpack.c.b16 %v2735, %v2719
    %v3600 = vpack.c.b16 %v2736, %v2720
    %v3601 = vpack.c.b16 %v2737, %v2721
    %v3602 = vpack.c.b16 %v2738, %v2722
    %v3603 = vpack.c.b16 %v2739, %v2723
    %v3604 = vpack.c.b16 %v2740, %v2724
    %v3605 = vpack.c.b16 %v2741, %v2725
    %v3606 = vpack.c.b16 %v2742, %v2726
    %v3607 = vpack.c.b16 %v2743, %v2727
    %v3608 = vpack.c.b16 %v2744, %v2728
    %v3609 = vpack.c.b16 %v2745, %v2729
    %v3610 = vpack.c.b16 %v2746, %v2730
    %v3611 = vpack.c.b16 %v2747, %v2731
    %v3612 = vpack.c.b16 %v2748, %v2732
    %v3613 = vpack.c.b16 %v2749, %v2733
    %v3614 = vpack.c.b16 %v2766, %v2750
    %v3615 = vpack.c.b16 %v2767, %v2751
    %v3616 = vpack.c.b16 %v2768, %v2752
    %v3617 = vpack.c.b16 %v2769, %v2753
    %v3618 = vpack.c.b16 %v2770, %v2754
    %v3619 = vpack.c.b16 %v2771, %v2755
    %v3620 = vpack.c.b16 %v2772, %v2756
    %v3621 = vpack.c.b16 %v2773, %v2757
    %v3622 = vpack.c.b16 %v2774, %v2758
    %v3623 = vpack.c.b16 %v2775, %v2759
    %v3624 = vpack.c.b16 %v2776, %v2760
    %v3625 = vpack.c.b16 %v2777, %v2761
    %v3626 = vpack.c.b16 %v2778, %v2762
    %v3627 = vpack.c.b16 %v2779, %v2763
    %v3628 = vpack.c.b16 %v2780, %v2764
    %v3629 = vpack.c.b16 %v2781, %v2765
    %v3630 = vpack.c.b16 %v2798, %v2782
    %v3631 = vpack.c.b16 %v2799, %v2783
    %v3632 = vpack.c.b16 %v2800, %v2784
    %v3633 = vpack.c.b16 %v2801, %v2785
    %v3634 = vpack.c.b16 %v2802, %v2786
    %v3635 = vpack.c.b16 %v2803, %v2787
    %v3636 = vpack.c.b16 %v2804, %v2788
    %v3637 = vpack.c.b16 %v2805, %v2789
    %v3638 = vpack.c.b16 %v2806, %v2790
    %v3639 = vpack.c.b16 %v2807, %v2791
    %v3640 = vpack.c.b16 %v2808, %v2792
    %v3641 = vpack.c.b16 %v2809, %v2793
    %v3642 = vpack.c.b16 %v2810, %v2794
    %v3643 = vpack.c.b16 %v2811, %v2795
    %v3644 = vpack.c.b16 %v2812, %v2796
    %v3645 = vpack.c.b16 %v2813, %v2797
    %v3646 = vpack.c.b16 %v2830, %v2814
    %v3647 = vpack.c.b16 %v2831, %v2815
    %v3648 = vpack.c.b16 %v2832, %v2816
    %v3649 = vpack.c.b16 %v2833, %v2817
    %v3650 = vpack.c.b16 %v2834, %v2818
    %v3651 = vpack.c.b16 %v2835, %v2819
    %v3652 = vpack.c.b16 %v2836, %v2820
    %v3653 = vpack.c.b16 %v2837, %v2821
    %v3654 = vpack.c.b16 %v2838, %v2822
    %v3655 = vpack.c.b16 %v2839, %v2823
    %v3656 = vpack.c.b16 %v2840, %v2824
    %v3657 = vpack.c.b16 %v2841, %v2825
    %v3658 = vpack.c.b16 %v2842, %v2826
    %v3659 = vpack.c.b16 %v2843, %v2827
    %v3660 = vpack.c.b16 %v2844, %v2828
    %v3661 = vpack.c.b16 %v2845, %v2829
    %v3662 = vpack.c.b16 %v2862, %v2846
    %v3663 = vpack.c.b16 %v2863, %v2847
    %v3664 = vpack.c.b16 %v2864, %v2848
    %v3665 = vpack.c.b16 %v2865, %v2849
    %v3666 = vpack.c.b16 %v2866, %v2850
    %v3667 = vpack.c.b16 %v2867, %v2851
    %v3668 = vpack.c.b16 %v2868, %v2852
    %v3669 = vpack.c.b16 %v2869, %v2853
    %v3670 = vpack.c.b16 %v2870, %v2854
    %v3671 = vpack.c.b16 %v2871, %v2855
    %v3672 = vpack.c.b16 %v2872, %v2856
    %v3673 = vpack.c.b16 %v2873, %v2857
    %v3674 = vpack.c.b16 %v2874, %v2858
    %v3675 = vpack.c.b16 %v2875, %v2859
    %v3676 = vpack.c.b16 %v2876, %v2860
    %v3677 = vpack.c.b16 %v2877, %v2861
    %v3678 = vpack.c.b16 %v2894, %v2878
    %v3679 = vpack.c.b16 %v2895, %v2879
    %v3680 = vpack.c.b16 %v2896, %v2880
    %v3681 = vpack.c.b16 %v2897, %v2881
    %v3682 = vpack.c.b16 %v2898, %v2882
    %v3683 = vpack.c.b16 %v2899, %v2883
    %v3684 = vpack.c.b16 %v2900, %v2884
    %v3685 = vpack.c.b16 %v2901, %v2885
    %v3686 = vpack.c.b16 %v2902, %v2886
    %v3687 = vpack.c.b16 %v2903, %v2887
    %v3688 = vpack.c.b16 %v2904, %v2888
    %v3689 = vpack.c.b16 %v2905, %v2889
    %v3690 = vpack.c.b16 %v2906, %v2890
    %v3691 = vpack.c.b16 %v2907, %v2891
    %v3692 = vpack.c.b16 %v2908, %v2892
    %v3693 = vpack.c.b16 %v2909, %v2893
    %v3694 = vpack.c.b16 %v2926, %v2910
    %v3695 = vpack.c.b16 %v2927, %v2911
    %v3696 = vpack.c.b16 %v2928, %v2912
    %v3697 = vpack.c.b16 %v2929, %v2913
    %v3698 = vpack.c.b16 %v2930, %v2914
    %v3699 = vpack.c.b16 %v2931, %v2915
    %v3700 = vpack.c.b16 %v2932, %v2916
    %v3701 = vpack.c.b16 %v2933, %v2917
    %v3702 = vpack.c.b16 %v2934, %v2918
    %v3703 = vpack.c.b16 %v2935, %v2919
    %v3704 = vpack.c.b16 %v2936, %v2920
    %v3705 = vpack.c.b16 %v2937, %v2921
    %v3706 = vpack.c.b16 %v2938, %v2922
    %v3707 = vpack.c.b16 %v2939, %v2923
    %v3708 = vpack.c.b16 %v2940, %v2924
    %v3709 = vpack.c.b16 %v2941, %v2925
    %v3710 = vpack.c.b16 %v2958, %v2942
    %v3711 = vpack.c.b16 %v2959, %v2943
    %v3712 = vpack.c.b16 %v2960, %v2944
    %v3713 = vpack.c.b16 %v2961, %v2945
    %v3714 = vpack.c.b16 %v2962, %v2946
    %v3715 = vpack.c.b16 %v2963, %v2947
    %v3716 = vpack.c.b16 %v2964, %v2948
    %v3717 = vpack.c.b16 %v2965, %v2949
    %v3718 = vpack.c.b16 %v2966, %v2950
    %v3719 = vpack.c.b16 %v2967, %v2951
    %v3720 = vpack.c.b16 %v2968, %v2952
    %v3721 = vpack.c.b16 %v2969, %v2953
    %v3722 = vpack.c.b16 %v2970, %v2954
    %v3723 = vpack.c.b16 %v2971, %v2955
    %v3724 = vpack.c.b16 %v2972, %v2956
    %v3725 = vpack.c.b16 %v2973, %v2957
    %v3726 = vpack.c.b16 %v2990, %v2974
    %v3727 = vpack.c.b16 %v2991, %v2975
    %v3728 = vpack.c.b16 %v2992, %v2976
    %v3729 = vpack.c.b16 %v2993, %v2977
    %v3730 = vpack.c.b16 %v2994, %v2978
    %v3731 = vpack.c.b16 %v2995, %v2979
    %v3732 = vpack.c.b16 %v2996, %v2980
    %v3733 = vpack.c.b16 %v2997, %v2981
    %v3734 = vpack.c.b16 %v2998, %v2982
    %v3735 = vpack.c.b16 %v2999, %v2983
    %v3736 = vpack.c.b16 %v3000, %v2984
    %v3737 = vpack.c.b16 %v3001, %v2985
    %v3738 = vpack.c.b16 %v3002, %v2986
    %v3739 = vpack.c.b16 %v3003, %v2987
    %v3740 = vpack.c.b16 %v3004, %v2988
    %v3741 = vpack.c.b16 %v3005, %v2989
    %v3742 = vpack.c.b16 %v3022, %v3006
    %v3743 = vpack.c.b16 %v3023, %v3007
    %v3744 = vpack.c.b16 %v3024, %v3008
    %v3745 = vpack.c.b16 %v3025, %v3009
    %v3746 = vpack.c.b16 %v3026, %v3010
    %v3747 = vpack.c.b16 %v3027, %v3011
    %v3748 = vpack.c.b16 %v3028, %v3012
    %v3749 = vpack.c.b16 %v3029, %v3013
    %v3750 = vpack.c.b16 %v3030, %v3014
    %v3751 = vpack.c.b16 %v3031, %v3015
    %v3752 = vpack.c.b16 %v3032, %v3016
    %v3753 = vpack.c.b16 %v3033, %v3017
    %v3754 = vpack.c.b16 %v3034, %v3018
    %v3755 = vpack.c.b16 %v3035, %v3019
    %v3756 = vpack.c.b16 %v3036, %v3020
    %v3757 = vpack.c.b16 %v3037, %v3021
    %v3758 = vpack.c.b16 %v3054, %v3038
    %v3759 = vpack.c.b16 %v3055, %v3039
    %v3760 = vpack.c.b16 %v3056, %v3040
    %v3761 = vpack.c.b16 %v3057, %v3041
    %v3762 = vpack.c.b16 %v3058, %v3042
    %v3763 = vpack.c.b16 %v3059, %v3043
    %v3764 = vpack.c.b16 %v3060, %v3044
    %v3765 = vpack.c.b16 %v3061, %v3045
    %v3766 = vpack.c.b16 %v3062, %v3046
    %v3767 = vpack.c.b16 %v3063, %v3047
    %v3768 = vpack.c.b16 %v3064, %v3048
    %v3769 = vpack.c.b16 %v3065, %v3049
    %v3770 = vpack.c.b16 %v3066, %v3050
    %v3771 = vpack.c.b16 %v3067, %v3051
    %v3772 = vpack.c.b16 %v3068, %v3052
    %v3773 = vpack.c.b16 %v3069, %v3053
    %v3774 = vpack.c.b16 %v3086, %v3070
    %v3775 = vpack.c.b16 %v3087, %v3071
    %v3776 = vpack.c.b16 %v3088, %v3072
    %v3777 = vpack.c.b16 %v3089, %v3073
    %v3778 = vpack.c.b16 %v3090, %v3074
    %v3779 = vpack.c.b16 %v3091, %v3075
    %v3780 = vpack.c.b16 %v3092, %v3076
    %v3781 = vpack.c.b16 %v3093, %v3077
    %v3782 = vpack.c.b16 %v3094, %v3078
    %v3783 = vpack.c.b16 %v3095, %v3079
    %v3784 = vpack.c.b16 %v3096, %v3080
    %v3785 = vpack.c.b16 %v3097, %v3081
    %v3786 = vpack.c.b16 %v3098, %v3082
    %v3787 = vpack.c.b16 %v3099, %v3083
    %v3788 = vpack.c.b16 %v3100, %v3084
    %v3789 = vpack.c.b16 %v3101, %v3085
    %v3790 = vpack.c.b16 %v3118, %v3102
    %v3791 = vpack.c.b16 %v3119, %v3103
    %v3792 = vpack.c.b16 %v3120, %v3104
    %v3793 = vpack.c.b16 %v3121, %v3105
    %v3794 = vpack.c.b16 %v3122, %v3106
    %v3795 = vpack.c.b16 %v3123, %v3107
    %v3796 = vpack.c.b16 %v3124, %v3108
    %v3797 = vpack.c.b16 %v3125, %v3109
    %v3798 = vpack.c.b16 %v3126, %v3110
    %v3799 = vpack.c.b16 %v3127, %v3111
    %v3800 = vpack.c.b16 %v3128, %v3112
    %v3801 = vpack.c.b16 %v3129, %v3113
    %v3802 = vpack.c.b16 %v3130, %v3114
    %v3803 = vpack.c.b16 %v3131, %v3115
    %v3804 = vpack.c.b16 %v3132, %v3116
    %v3805 = vpack.c.b16 %v3133, %v3117
    %v3806 = vpack.c.b16 %v3150, %v3134
    %v3807 = vpack.c.b16 %v3151, %v3135
    %v3808 = vpack.c.b16 %v3152, %v3136
    %v3809 = vpack.c.b16 %v3153, %v3137
    %v3810 = vpack.c.b16 %v3154, %v3138
    %v3811 = vpack.c.b16 %v3155, %v3139
    %v3812 = vpack.c.b16 %v3156, %v3140
    %v3813 = vpack.c.b16 %v3157, %v3141
    %v3814 = vpack.c.b16 %v3158, %v3142
    %v3815 = vpack.c.b16 %v3159, %v3143
    %v3816 = vpack.c.b16 %v3160, %v3144
    %v3817 = vpack.c.b16 %v3161, %v3145
    %v3818 = vpack.c.b16 %v3162, %v3146
    %v3819 = vpack.c.b16 %v3163, %v3147
    %v3820 = vpack.c.b16 %v3164, %v3148
    %v3821 = vpack.c.b16 %v3165, %v3149
    %v3822 = vpack.c.b16 %v3182, %v3166
    %v3823 = vpack.c.b16 %v3183, %v3167
    %v3824 = vpack.c.b16 %v3184, %v3168
    %v3825 = vpack.c.b16 %v3185, %v3169
    %v3826 = vpack.c.b16 %v3186, %v3170
    %v3827 = vpack.c.b16 %v3187, %v3171
    %v3828 = vpack.c.b16 %v3188, %v3172
    %v3829 = vpack.c.b16 %v3189, %v3173
    %v3830 = vpack.c.b16 %v3190, %v3174
    %v3831 = vpack.c.b16 %v3191, %v3175
    %v3832 = vpack.c.b16 %v3192, %v3176
    %v3833 = vpack.c.b16 %v3193, %v3177
    %v3834 = vpack.c.b16 %v3194, %v3178
    %v3835 = vpack.c.b16 %v3195, %v3179
    %v3836 = vpack.c.b16 %v3196, %v3180
    %v3837 = vpack.c.b16 %v3197, %v3181
    %v3838 = vpack.c.b16 %v3214, %v3198
    %v3839 = vpack.c.b16 %v3215, %v3199
    %v3840 = vpack.c.b16 %v3216, %v3200
    %v3841 = vpack.c.b16 %v3217, %v3201
    %v3842 = vpack.c.b16 %v3218, %v3202
    %v3843 = vpack.c.b16 %v3219, %v3203
    %v3844 = vpack.c.b16 %v3220, %v3204
    %v3845 = vpack.c.b16 %v3221, %v3205
    %v3846 = vpack.c.b16 %v3222, %v3206
    %v3847 = vpack.c.b16 %v3223, %v3207
    %v3848 = vpack.c.b16 %v3224, %v3208
    %v3849 = vpack.c.b16 %v3225, %v3209
    %v3850 = vpack.c.b16 %v3226, %v3210
    %v3851 = vpack.c.b16 %v3227, %v3211
    %v3852 = vpack.c.b16 %v3228, %v3212
    %v3853 = vpack.c.b16 %v3229, %v3213
    %v3854 = vpack.c.b16 %v3246, %v3230
    %v3855 = vpack.c.b16 %v3247, %v3231
    %v3856 = vpack.c.b16 %v3248, %v3232
    %v3857 = vpack.c.b16 %v3249, %v3233
    %v3858 = vpack.c.b16 %v3250, %v3234
    %v3859 = vpack.c.b16 %v3251, %v3235
    %v3860 = vpack.c.b16 %v3252, %v3236
    %v3861 = vpack.c.b16 %v3253, %v3237
    %v3862 = vpack.c.b16 %v3254, %v3238
    %v3863 = vpack.c.b16 %v3255, %v3239
    %v3864 = vpack.c.b16 %v3256, %v3240
    %v3865 = vpack.c.b16 %v3257, %v3241
    %v3866 = vpack.c.b16 %v3258, %v3242
    %v3867 = vpack.c.b16 %v3259, %v3243
    %v3868 = vpack.c.b16 %v3260, %v3244
    %v3869 = vpack.c.b16 %v3261, %v3245
    %v3870 = vpack.c.b16 %v3278, %v3262
    %v3871 = vpack.c.b16 %v3279, %v3263
    %v3872 = vpack.c.b16 %v3280, %v3264
    %v3873 = vpack.c.b16 %v3281, %v3265
    %v3874 = vpack.c.b16 %v3282, %v3266
    %v3875 = vpack.c.b16 %v3283, %v3267
    %v3876 = vpack.c.b16 %v3284, %v3268
    %v3877 = vpack.c.b16 %v3285, %v3269
    %v3878 = vpack.c.b16 %v3286, %v3270
    %v3879 = vpack.c.b16 %v3287, %v3271
    %v3880 = vpack.c.b16 %v3288, %v3272
    %v3881 = vpack.c.b16 %v3289, %v3273
    %v3882 = vpack.c.b16 %v3290, %v3274
    %v3883 = vpack.c.b16 %v3291, %v3275
    %v3884 = vpack.c.b16 %v3292, %v3276
    %v3885 = vpack.c.b16 %v3293, %v3277
    %v3886 = vpack.c.b16 %v3310, %v3294
    %v3887 = vpack.c.b16 %v3311, %v3295
    %v3888 = vpack.c.b16 %v3312, %v3296
    %v3889 = vpack.c.b16 %v3313, %v3297
    %v3890 = vpack.c.b16 %v3314, %v3298
    %v3891 = vpack.c.b16 %v3315, %v3299
    %v3892 = vpack.c.b16 %v3316, %v3300
    %v3893 = vpack.c.b16 %v3317, %v3301
    %v3894 = vpack.c.b16 %v3318, %v3302
    %v3895 = vpack.c.b16 %v3319, %v3303
    %v3896 = vpack.c.b16 %v3320, %v3304
    %v3897 = vpack.c.b16 %v3321, %v3305
    %v3898 = vpack.c.b16 %v3322, %v3306
    %v3899 = vpack.c.b16 %v3323, %v3307
    %v3900 = vpack.c.b16 %v3324, %v3308
    %v3901 = vpack.c.b16 %v3325, %v3309
    %v3902 = vpack.c.b16 %v3342, %v3326
    %v3903 = vpack.c.b16 %v3343, %v3327
    %v3904 = vpack.c.b16 %v3344, %v3328
    %v3905 = vpack.c.b16 %v3345, %v3329
    %v3906 = vpack.c.b16 %v3346, %v3330
    %v3907 = vpack.c.b16 %v3347, %v3331
    %v3908 = vpack.c.b16 %v3348, %v3332
    %v3909 = vpack.c.b16 %v3349, %v3333
    %v3910 = vpack.c.b16 %v3350, %v3334
    %v3911 = vpack.c.b16 %v3351, %v3335
    %v3912 = vpack.c.b16 %v3352, %v3336
    %v3913 = vpack.c.b16 %v3353, %v3337
    %v3914 = vpack.c.b16 %v3354, %v3338
    %v3915 = vpack.c.b16 %v3355, %v3339
    %v3916 = vpack.c.b16 %v3356, %v3340
    %v3917 = vpack.c.b16 %v3357, %v3341
    %v3918 = vpack.c.b16 %v3374, %v3358
    %v3919 = vpack.c.b16 %v3375, %v3359
    %v3920 = vpack.c.b16 %v3376, %v3360
    %v3921 = vpack.c.b16 %v3377, %v3361
    %v3922 = vpack.c.b16 %v3378, %v3362
    %v3923 = vpack.c.b16 %v3379, %v3363
    %v3924 = vpack.c.b16 %v3380, %v3364
    %v3925 = vpack.c.b16 %v3381, %v3365
    %v3926 = vpack.c.b16 %v3382, %v3366
    %v3927 = vpack.c.b16 %v3383, %v3367
    %v3928 = vpack.c.b16 %v3384, %v3368
    %v3929 = vpack.c.b16 %v3385, %v3369
    %v3930 = vpack.c.b16 %v3386, %v3370
    %v3931 = vpack.c.b16 %v3387, %v3371
    %v3932 = vpack.c.b16 %v3388, %v3372
    %v3933 = vpack.c.b16 %v3389, %v3373
    %v3934 = vpack.c.b16 %v3406, %v3390
    %v3935 = vpack.c.b16 %v3407, %v3391
    %v3936 = vpack.c.b16 %v3408, %v3392
    %v3937 = vpack.c.b16 %v3409, %v3393
    %v3938 = vpack.c.b16 %v3410, %v3394
    %v3939 = vpack.c.b16 %v3411, %v3395
    %v3940 = vpack.c.b16 %v3412, %v3396
    %v3941 = vpack.c.b16 %v3413, %v3397
    %v3942 = vpack.c.b16 %v3414, %v3398
    %v3943 = vpack.c.b16 %v3415, %v3399
    %v3944 = vpack.c.b16 %v3416, %v3400
    %v3945 = vpack.c.b16 %v3417, %v3401
    %v3946 = vpack.c.b16 %v3418, %v3402
    %v3947 = vpack.c.b16 %v3419, %v3403
    %v3948 = vpack.c.b16 %v3420, %v3404
    %v3949 = vpack.c.b16 %v3421, %v3405
    %v3950 = vpack.c.b16 %v3438, %v3422
    %v3951 = vpack.c.b16 %v3439, %v3423
    %v3952 = vpack.c.b16 %v3440, %v3424
    %v3953 = vpack.c.b16 %v3441, %v3425
    %v3954 = vpack.c.b16 %v3442, %v3426
    %v3955 = vpack.c.b16 %v3443, %v3427
    %v3956 = vpack.c.b16 %v3444, %v3428
    %v3957 = vpack.c.b16 %v3445, %v3429
    %v3958 = vpack.c.b16 %v3446, %v3430
    %v3959 = vpack.c.b16 %v3447, %v3431
    %v3960 = vpack.c.b16 %v3448, %v3432
    %v3961 = vpack.c.b16 %v3449, %v3433
    %v3962 = vpack.c.b16 %v3450, %v3434
    %v3963 = vpack.c.b16 %v3451, %v3435
    %v3964 = vpack.c.b16 %v3452, %v3436
    %v3965 = vpack.c.b16 %v3453, %v3437
    %4478 = vmatpush.bf16.msra.mxu0 %v3566
    %4479 = vmatpush.bf16.msra.mxu0 %v3550
    %4480 = vmatpush.bf16.msra.mxu0 %v3534
    %4481 = vmatpush.bf16.msra.mxu0 %v3518
    %4482 = vmatpush.bf16.msra.mxu0 %v3502
    %4483 = vmatpush.bf16.msra.mxu0 %v3486
    %4484 = vmatpush.bf16.msra.mxu0 %v3470
    %4485 = vmatpush.bf16.msra.mxu0 %v3454
    %4486 = vmatmul.bf16.gmra.mxu0 %v1402
    %v4487 = vpop.f32.mrf.mxu0
    %v4488 = vadd.f32 0.0, %v4487
    %v4489 = vpop.f32.mrf.mxu0
    %v4490 = vadd.f32 0.0, %v4489
    %4491 = vdwg.mxu0
    %4492 = vmatpush.bf16.msra.mxu0 %v3694
    %4493 = vmatpush.bf16.msra.mxu0 %v3678
    %4494 = vmatpush.bf16.msra.mxu0 %v3662
    %4495 = vmatpush.bf16.msra.mxu0 %v3646
    %4496 = vmatpush.bf16.msra.mxu0 %v3630
    %4497 = vmatpush.bf16.msra.mxu0 %v3614
    %4498 = vmatpush.bf16.msra.mxu0 %v3598
    %4499 = vmatpush.bf16.msra.mxu0 %v3582
    %4500 = vmatmul.bf16.gmra.mxu0 %v1403
    %v4501 = vpop.f32.mrf.mxu0
    %v4502 = vadd.f32 %v4488, %v4501
    %v4503 = vpop.f32.mrf.mxu0
    %v4504 = vadd.f32 %v4490, %v4503
    %4505 = vdwg.mxu0
    %4506 = vmatpush.bf16.msra.mxu0 %v3822
    %4507 = vmatpush.bf16.msra.mxu0 %v3806
    %4508 = vmatpush.bf16.msra.mxu0 %v3790
    %4509 = vmatpush.bf16.msra.mxu0 %v3774
    %4510 = vmatpush.bf16.msra.mxu0 %v3758
    %4511 = vmatpush.bf16.msra.mxu0 %v3742
    %4512 = vmatpush.bf16.msra.mxu0 %v3726
    %4513 = vmatpush.bf16.msra.mxu0 %v3710
    %4514 = vmatmul.bf16.gmra.mxu0 %v1404
    %v4515 = vpop.f32.mrf.mxu0
    %v4516 = vadd.f32 %v4502, %v4515
    %v4517 = vpop.f32.mrf.mxu0
    %v4518 = vadd.f32 %v4504, %v4517
    %4519 = vdwg.mxu0
    %4520 = vmatpush.bf16.msra.mxu0 %v3950
    %4521 = vmatpush.bf16.msra.mxu0 %v3934
    %4522 = vmatpush.bf16.msra.mxu0 %v3918
    %4523 = vmatpush.bf16.msra.mxu0 %v3902
    %4524 = vmatpush.bf16.msra.mxu0 %v3886
    %4525 = vmatpush.bf16.msra.mxu0 %v3870
    %4526 = vmatpush.bf16.msra.mxu0 %v3854
    %4527 = vmatpush.bf16.msra.mxu0 %v3838
    %4528 = vmatmul.bf16.gmra.mxu0 %v1405
    %v4529 = vpop.f32.mrf.mxu0
    %v4530 = vadd.f32 %v4516, %v4529
    %v4531 = vpop.f32.mrf.mxu0
    %v4532 = vadd.f32 %v4518, %v4531
    %4533 = vdwg.mxu0
    %4534 = vmatpush.bf16.msra.mxu0 %v3567
    %4535 = vmatpush.bf16.msra.mxu0 %v3551
    %4536 = vmatpush.bf16.msra.mxu0 %v3535
    %4537 = vmatpush.bf16.msra.mxu0 %v3519
    %4538 = vmatpush.bf16.msra.mxu0 %v3503
    %4539 = vmatpush.bf16.msra.mxu0 %v3487
    %4540 = vmatpush.bf16.msra.mxu0 %v3471
    %4541 = vmatpush.bf16.msra.mxu0 %v3455
    %4542 = vmatmul.bf16.gmra.mxu0 %v1402
    %v4543 = vpop.f32.mrf.mxu0
    %v4544 = vadd.f32 0.0, %v4543
    %v4545 = vpop.f32.mrf.mxu0
    %v4546 = vadd.f32 0.0, %v4545
    %4547 = vdwg.mxu0
    %4548 = vmatpush.bf16.msra.mxu0 %v3695
    %4549 = vmatpush.bf16.msra.mxu0 %v3679
    %4550 = vmatpush.bf16.msra.mxu0 %v3663
    %4551 = vmatpush.bf16.msra.mxu0 %v3647
    %4552 = vmatpush.bf16.msra.mxu0 %v3631
    %4553 = vmatpush.bf16.msra.mxu0 %v3615
    %4554 = vmatpush.bf16.msra.mxu0 %v3599
    %4555 = vmatpush.bf16.msra.mxu0 %v3583
    %4556 = vmatmul.bf16.gmra.mxu0 %v1403
    %v4557 = vpop.f32.mrf.mxu0
    %v4558 = vadd.f32 %v4544, %v4557
    %v4559 = vpop.f32.mrf.mxu0
    %v4560 = vadd.f32 %v4546, %v4559
    %4561 = vdwg.mxu0
    %4562 = vmatpush.bf16.msra.mxu0 %v3823
    %4563 = vmatpush.bf16.msra.mxu0 %v3807
    %4564 = vmatpush.bf16.msra.mxu0 %v3791
    %4565 = vmatpush.bf16.msra.mxu0 %v3775
    %4566 = vmatpush.bf16.msra.mxu0 %v3759
    %4567 = vmatpush.bf16.msra.mxu0 %v3743
    %4568 = vmatpush.bf16.msra.mxu0 %v3727
    %4569 = vmatpush.bf16.msra.mxu0 %v3711
    %4570 = vmatmul.bf16.gmra.mxu0 %v1404
    %v4571 = vpop.f32.mrf.mxu0
    %v4572 = vadd.f32 %v4558, %v4571
    %v4573 = vpop.f32.mrf.mxu0
    %v4574 = vadd.f32 %v4560, %v4573
    %4575 = vdwg.mxu0
    %4576 = vmatpush.bf16.msra.mxu0 %v3951
    %4577 = vmatpush.bf16.msra.mxu0 %v3935
    %4578 = vmatpush.bf16.msra.mxu0 %v3919
    %4579 = vmatpush.bf16.msra.mxu0 %v3903
    %4580 = vmatpush.bf16.msra.mxu0 %v3887
    %4581 = vmatpush.bf16.msra.mxu0 %v3871
    %4582 = vmatpush.bf16.msra.mxu0 %v3855
    %4583 = vmatpush.bf16.msra.mxu0 %v3839
    %4584 = vmatmul.bf16.gmra.mxu0 %v1405
    %v4585 = vpop.f32.mrf.mxu0
    %v4586 = vadd.f32 %v4572, %v4585
    %v4587 = vpop.f32.mrf.mxu0
    %v4588 = vadd.f32 %v4574, %v4587
    %4589 = vdwg.mxu0
    %4590 = vmatpush.bf16.msra.mxu0 %v3568
    %4591 = vmatpush.bf16.msra.mxu0 %v3552
    %4592 = vmatpush.bf16.msra.mxu0 %v3536
    %4593 = vmatpush.bf16.msra.mxu0 %v3520
    %4594 = vmatpush.bf16.msra.mxu0 %v3504
    %4595 = vmatpush.bf16.msra.mxu0 %v3488
    %4596 = vmatpush.bf16.msra.mxu0 %v3472
    %4597 = vmatpush.bf16.msra.mxu0 %v3456
    %4598 = vmatmul.bf16.gmra.mxu0 %v1402
    %v4599 = vpop.f32.mrf.mxu0
    %v4600 = vadd.f32 0.0, %v4599
    %v4601 = vpop.f32.mrf.mxu0
    %v4602 = vadd.f32 0.0, %v4601
    %4603 = vdwg.mxu0
    %4604 = vmatpush.bf16.msra.mxu0 %v3696
    %4605 = vmatpush.bf16.msra.mxu0 %v3680
    %4606 = vmatpush.bf16.msra.mxu0 %v3664
    %4607 = vmatpush.bf16.msra.mxu0 %v3648
    %4608 = vmatpush.bf16.msra.mxu0 %v3632
    %4609 = vmatpush.bf16.msra.mxu0 %v3616
    %4610 = vmatpush.bf16.msra.mxu0 %v3600
    %4611 = vmatpush.bf16.msra.mxu0 %v3584
    %4612 = vmatmul.bf16.gmra.mxu0 %v1403
    %v4613 = vpop.f32.mrf.mxu0
    %v4614 = vadd.f32 %v4600, %v4613
    %v4615 = vpop.f32.mrf.mxu0
    %v4616 = vadd.f32 %v4602, %v4615
    %4617 = vdwg.mxu0
    %4618 = vmatpush.bf16.msra.mxu0 %v3824
    %4619 = vmatpush.bf16.msra.mxu0 %v3808
    %4620 = vmatpush.bf16.msra.mxu0 %v3792
    %4621 = vmatpush.bf16.msra.mxu0 %v3776
    %4622 = vmatpush.bf16.msra.mxu0 %v3760
    %4623 = vmatpush.bf16.msra.mxu0 %v3744
    %4624 = vmatpush.bf16.msra.mxu0 %v3728
    %4625 = vmatpush.bf16.msra.mxu0 %v3712
    %4626 = vmatmul.bf16.gmra.mxu0 %v1404
    %v4627 = vpop.f32.mrf.mxu0
    %v4628 = vadd.f32 %v4614, %v4627
    %v4629 = vpop.f32.mrf.mxu0
    %v4630 = vadd.f32 %v4616, %v4629
    %4631 = vdwg.mxu0
    %4632 = vmatpush.bf16.msra.mxu0 %v3952
    %4633 = vmatpush.bf16.msra.mxu0 %v3936
    %4634 = vmatpush.bf16.msra.mxu0 %v3920
    %4635 = vmatpush.bf16.msra.mxu0 %v3904
    %4636 = vmatpush.bf16.msra.mxu0 %v3888
    %4637 = vmatpush.bf16.msra.mxu0 %v3872
    %4638 = vmatpush.bf16.msra.mxu0 %v3856
    %4639 = vmatpush.bf16.msra.mxu0 %v3840
    %4640 = vmatmul.bf16.gmra.mxu0 %v1405
    %v4641 = vpop.f32.mrf.mxu0
    %v4642 = vadd.f32 %v4628, %v4641
    %v4643 = vpop.f32.mrf.mxu0
    %v4644 = vadd.f32 %v4630, %v4643
    %4645 = vdwg.mxu0
    %4646 = vmatpush.bf16.msra.mxu0 %v3569
    %4647 = vmatpush.bf16.msra.mxu0 %v3553
    %4648 = vmatpush.bf16.msra.mxu0 %v3537
    %4649 = vmatpush.bf16.msra.mxu0 %v3521
    %4650 = vmatpush.bf16.msra.mxu0 %v3505
    %4651 = vmatpush.bf16.msra.mxu0 %v3489
    %4652 = vmatpush.bf16.msra.mxu0 %v3473
    %4653 = vmatpush.bf16.msra.mxu0 %v3457
    %4654 = vmatmul.bf16.gmra.mxu0 %v1402
    %v4655 = vpop.f32.mrf.mxu0
    %v4656 = vadd.f32 0.0, %v4655
    %v4657 = vpop.f32.mrf.mxu0
    %v4658 = vadd.f32 0.0, %v4657
    %4659 = vdwg.mxu0
    %4660 = vmatpush.bf16.msra.mxu0 %v3697
    %4661 = vmatpush.bf16.msra.mxu0 %v3681
    %4662 = vmatpush.bf16.msra.mxu0 %v3665
    %4663 = vmatpush.bf16.msra.mxu0 %v3649
    %4664 = vmatpush.bf16.msra.mxu0 %v3633
    %4665 = vmatpush.bf16.msra.mxu0 %v3617
    %4666 = vmatpush.bf16.msra.mxu0 %v3601
    %4667 = vmatpush.bf16.msra.mxu0 %v3585
    %4668 = vmatmul.bf16.gmra.mxu0 %v1403
    %v4669 = vpop.f32.mrf.mxu0
    %v4670 = vadd.f32 %v4656, %v4669
    %v4671 = vpop.f32.mrf.mxu0
    %v4672 = vadd.f32 %v4658, %v4671
    %4673 = vdwg.mxu0
    %4674 = vmatpush.bf16.msra.mxu0 %v3825
    %4675 = vmatpush.bf16.msra.mxu0 %v3809
    %4676 = vmatpush.bf16.msra.mxu0 %v3793
    %4677 = vmatpush.bf16.msra.mxu0 %v3777
    %4678 = vmatpush.bf16.msra.mxu0 %v3761
    %4679 = vmatpush.bf16.msra.mxu0 %v3745
    %4680 = vmatpush.bf16.msra.mxu0 %v3729
    %4681 = vmatpush.bf16.msra.mxu0 %v3713
    %4682 = vmatmul.bf16.gmra.mxu0 %v1404
    %v4683 = vpop.f32.mrf.mxu0
    %v4684 = vadd.f32 %v4670, %v4683
    %v4685 = vpop.f32.mrf.mxu0
    %v4686 = vadd.f32 %v4672, %v4685
    %4687 = vdwg.mxu0
    %4688 = vmatpush.bf16.msra.mxu0 %v3953
    %4689 = vmatpush.bf16.msra.mxu0 %v3937
    %4690 = vmatpush.bf16.msra.mxu0 %v3921
    %4691 = vmatpush.bf16.msra.mxu0 %v3905
    %4692 = vmatpush.bf16.msra.mxu0 %v3889
    %4693 = vmatpush.bf16.msra.mxu0 %v3873
    %4694 = vmatpush.bf16.msra.mxu0 %v3857
    %4695 = vmatpush.bf16.msra.mxu0 %v3841
    %4696 = vmatmul.bf16.gmra.mxu0 %v1405
    %v4697 = vpop.f32.mrf.mxu0
    %v4698 = vadd.f32 %v4684, %v4697
    %v4699 = vpop.f32.mrf.mxu0
    %v4700 = vadd.f32 %v4686, %v4699
    %4701 = vdwg.mxu0
    %4702 = vmatpush.bf16.msra.mxu0 %v3570
    %4703 = vmatpush.bf16.msra.mxu0 %v3554
    %4704 = vmatpush.bf16.msra.mxu0 %v3538
    %4705 = vmatpush.bf16.msra.mxu0 %v3522
    %4706 = vmatpush.bf16.msra.mxu0 %v3506
    %4707 = vmatpush.bf16.msra.mxu0 %v3490
    %4708 = vmatpush.bf16.msra.mxu0 %v3474
    %4709 = vmatpush.bf16.msra.mxu0 %v3458
    %4710 = vmatmul.bf16.gmra.mxu0 %v1402
    %v4711 = vpop.f32.mrf.mxu0
    %v4712 = vadd.f32 0.0, %v4711
    %v4713 = vpop.f32.mrf.mxu0
    %v4714 = vadd.f32 0.0, %v4713
    %4715 = vdwg.mxu0
    %4716 = vmatpush.bf16.msra.mxu0 %v3698
    %4717 = vmatpush.bf16.msra.mxu0 %v3682
    %4718 = vmatpush.bf16.msra.mxu0 %v3666
    %4719 = vmatpush.bf16.msra.mxu0 %v3650
    %4720 = vmatpush.bf16.msra.mxu0 %v3634
    %4721 = vmatpush.bf16.msra.mxu0 %v3618
    %4722 = vmatpush.bf16.msra.mxu0 %v3602
    %4723 = vmatpush.bf16.msra.mxu0 %v3586
    %4724 = vmatmul.bf16.gmra.mxu0 %v1403
    %v4725 = vpop.f32.mrf.mxu0
    %v4726 = vadd.f32 %v4712, %v4725
    %v4727 = vpop.f32.mrf.mxu0
    %v4728 = vadd.f32 %v4714, %v4727
    %4729 = vdwg.mxu0
    %4730 = vmatpush.bf16.msra.mxu0 %v3826
    %4731 = vmatpush.bf16.msra.mxu0 %v3810
    %4732 = vmatpush.bf16.msra.mxu0 %v3794
    %4733 = vmatpush.bf16.msra.mxu0 %v3778
    %4734 = vmatpush.bf16.msra.mxu0 %v3762
    %4735 = vmatpush.bf16.msra.mxu0 %v3746
    %4736 = vmatpush.bf16.msra.mxu0 %v3730
    %4737 = vmatpush.bf16.msra.mxu0 %v3714
    %4738 = vmatmul.bf16.gmra.mxu0 %v1404
    %v4739 = vpop.f32.mrf.mxu0
    %v4740 = vadd.f32 %v4726, %v4739
    %v4741 = vpop.f32.mrf.mxu0
    %v4742 = vadd.f32 %v4728, %v4741
    %4743 = vdwg.mxu0
    %4744 = vmatpush.bf16.msra.mxu0 %v3954
    %4745 = vmatpush.bf16.msra.mxu0 %v3938
    %4746 = vmatpush.bf16.msra.mxu0 %v3922
    %4747 = vmatpush.bf16.msra.mxu0 %v3906
    %4748 = vmatpush.bf16.msra.mxu0 %v3890
    %4749 = vmatpush.bf16.msra.mxu0 %v3874
    %4750 = vmatpush.bf16.msra.mxu0 %v3858
    %4751 = vmatpush.bf16.msra.mxu0 %v3842
    %4752 = vmatmul.bf16.gmra.mxu0 %v1405
    %v4753 = vpop.f32.mrf.mxu0
    %v4754 = vadd.f32 %v4740, %v4753
    %v4755 = vpop.f32.mrf.mxu0
    %v4756 = vadd.f32 %v4742, %v4755
    %4757 = vdwg.mxu0
    %4758 = vmatpush.bf16.msra.mxu0 %v3571
    %4759 = vmatpush.bf16.msra.mxu0 %v3555
    %4760 = vmatpush.bf16.msra.mxu0 %v3539
    %4761 = vmatpush.bf16.msra.mxu0 %v3523
    %4762 = vmatpush.bf16.msra.mxu0 %v3507
    %4763 = vmatpush.bf16.msra.mxu0 %v3491
    %4764 = vmatpush.bf16.msra.mxu0 %v3475
    %4765 = vmatpush.bf16.msra.mxu0 %v3459
    %4766 = vmatmul.bf16.gmra.mxu0 %v1402
    %v4767 = vpop.f32.mrf.mxu0
    %v4768 = vadd.f32 0.0, %v4767
    %v4769 = vpop.f32.mrf.mxu0
    %v4770 = vadd.f32 0.0, %v4769
    %4771 = vdwg.mxu0
    %4772 = vmatpush.bf16.msra.mxu0 %v3699
    %4773 = vmatpush.bf16.msra.mxu0 %v3683
    %4774 = vmatpush.bf16.msra.mxu0 %v3667
    %4775 = vmatpush.bf16.msra.mxu0 %v3651
    %4776 = vmatpush.bf16.msra.mxu0 %v3635
    %4777 = vmatpush.bf16.msra.mxu0 %v3619
    %4778 = vmatpush.bf16.msra.mxu0 %v3603
    %4779 = vmatpush.bf16.msra.mxu0 %v3587
    %4780 = vmatmul.bf16.gmra.mxu0 %v1403
    %v4781 = vpop.f32.mrf.mxu0
    %v4782 = vadd.f32 %v4768, %v4781
    %v4783 = vpop.f32.mrf.mxu0
    %v4784 = vadd.f32 %v4770, %v4783
    %4785 = vdwg.mxu0
    %4786 = vmatpush.bf16.msra.mxu0 %v3827
    %4787 = vmatpush.bf16.msra.mxu0 %v3811
    %4788 = vmatpush.bf16.msra.mxu0 %v3795
    %4789 = vmatpush.bf16.msra.mxu0 %v3779
    %4790 = vmatpush.bf16.msra.mxu0 %v3763
    %4791 = vmatpush.bf16.msra.mxu0 %v3747
    %4792 = vmatpush.bf16.msra.mxu0 %v3731
    %4793 = vmatpush.bf16.msra.mxu0 %v3715
    %4794 = vmatmul.bf16.gmra.mxu0 %v1404
    %v4795 = vpop.f32.mrf.mxu0
    %v4796 = vadd.f32 %v4782, %v4795
    %v4797 = vpop.f32.mrf.mxu0
    %v4798 = vadd.f32 %v4784, %v4797
    %4799 = vdwg.mxu0
    %4800 = vmatpush.bf16.msra.mxu0 %v3955
    %4801 = vmatpush.bf16.msra.mxu0 %v3939
    %4802 = vmatpush.bf16.msra.mxu0 %v3923
    %4803 = vmatpush.bf16.msra.mxu0 %v3907
    %4804 = vmatpush.bf16.msra.mxu0 %v3891
    %4805 = vmatpush.bf16.msra.mxu0 %v3875
    %4806 = vmatpush.bf16.msra.mxu0 %v3859
    %4807 = vmatpush.bf16.msra.mxu0 %v3843
    %4808 = vmatmul.bf16.gmra.mxu0 %v1405
    %v4809 = vpop.f32.mrf.mxu0
    %v4810 = vadd.f32 %v4796, %v4809
    %v4811 = vpop.f32.mrf.mxu0
    %v4812 = vadd.f32 %v4798, %v4811
    %4813 = vdwg.mxu0
    %4814 = vmatpush.bf16.msra.mxu0 %v3572
    %4815 = vmatpush.bf16.msra.mxu0 %v3556
    %4816 = vmatpush.bf16.msra.mxu0 %v3540
    %4817 = vmatpush.bf16.msra.mxu0 %v3524
    %4818 = vmatpush.bf16.msra.mxu0 %v3508
    %4819 = vmatpush.bf16.msra.mxu0 %v3492
    %4820 = vmatpush.bf16.msra.mxu0 %v3476
    %4821 = vmatpush.bf16.msra.mxu0 %v3460
    %4822 = vmatmul.bf16.gmra.mxu0 %v1402
    %v4823 = vpop.f32.mrf.mxu0
    %v4824 = vadd.f32 0.0, %v4823
    %v4825 = vpop.f32.mrf.mxu0
    %v4826 = vadd.f32 0.0, %v4825
    %4827 = vdwg.mxu0
    %4828 = vmatpush.bf16.msra.mxu0 %v3700
    %4829 = vmatpush.bf16.msra.mxu0 %v3684
    %4830 = vmatpush.bf16.msra.mxu0 %v3668
    %4831 = vmatpush.bf16.msra.mxu0 %v3652
    %4832 = vmatpush.bf16.msra.mxu0 %v3636
    %4833 = vmatpush.bf16.msra.mxu0 %v3620
    %4834 = vmatpush.bf16.msra.mxu0 %v3604
    %4835 = vmatpush.bf16.msra.mxu0 %v3588
    %4836 = vmatmul.bf16.gmra.mxu0 %v1403
    %v4837 = vpop.f32.mrf.mxu0
    %v4838 = vadd.f32 %v4824, %v4837
    %v4839 = vpop.f32.mrf.mxu0
    %v4840 = vadd.f32 %v4826, %v4839
    %4841 = vdwg.mxu0
    %4842 = vmatpush.bf16.msra.mxu0 %v3828
    %4843 = vmatpush.bf16.msra.mxu0 %v3812
    %4844 = vmatpush.bf16.msra.mxu0 %v3796
    %4845 = vmatpush.bf16.msra.mxu0 %v3780
    %4846 = vmatpush.bf16.msra.mxu0 %v3764
    %4847 = vmatpush.bf16.msra.mxu0 %v3748
    %4848 = vmatpush.bf16.msra.mxu0 %v3732
    %4849 = vmatpush.bf16.msra.mxu0 %v3716
    %4850 = vmatmul.bf16.gmra.mxu0 %v1404
    %v4851 = vpop.f32.mrf.mxu0
    %v4852 = vadd.f32 %v4838, %v4851
    %v4853 = vpop.f32.mrf.mxu0
    %v4854 = vadd.f32 %v4840, %v4853
    %4855 = vdwg.mxu0
    %4856 = vmatpush.bf16.msra.mxu0 %v3956
    %4857 = vmatpush.bf16.msra.mxu0 %v3940
    %4858 = vmatpush.bf16.msra.mxu0 %v3924
    %4859 = vmatpush.bf16.msra.mxu0 %v3908
    %4860 = vmatpush.bf16.msra.mxu0 %v3892
    %4861 = vmatpush.bf16.msra.mxu0 %v3876
    %4862 = vmatpush.bf16.msra.mxu0 %v3860
    %4863 = vmatpush.bf16.msra.mxu0 %v3844
    %4864 = vmatmul.bf16.gmra.mxu0 %v1405
    %v4865 = vpop.f32.mrf.mxu0
    %v4866 = vadd.f32 %v4852, %v4865
    %v4867 = vpop.f32.mrf.mxu0
    %v4868 = vadd.f32 %v4854, %v4867
    %4869 = vdwg.mxu0
    %4870 = vmatpush.bf16.msra.mxu0 %v3573
    %4871 = vmatpush.bf16.msra.mxu0 %v3557
    %4872 = vmatpush.bf16.msra.mxu0 %v3541
    %4873 = vmatpush.bf16.msra.mxu0 %v3525
    %4874 = vmatpush.bf16.msra.mxu0 %v3509
    %4875 = vmatpush.bf16.msra.mxu0 %v3493
    %4876 = vmatpush.bf16.msra.mxu0 %v3477
    %4877 = vmatpush.bf16.msra.mxu0 %v3461
    %4878 = vmatmul.bf16.gmra.mxu0 %v1402
    %v4879 = vpop.f32.mrf.mxu0
    %v4880 = vadd.f32 0.0, %v4879
    %v4881 = vpop.f32.mrf.mxu0
    %v4882 = vadd.f32 0.0, %v4881
    %4883 = vdwg.mxu0
    %4884 = vmatpush.bf16.msra.mxu0 %v3701
    %4885 = vmatpush.bf16.msra.mxu0 %v3685
    %4886 = vmatpush.bf16.msra.mxu0 %v3669
    %4887 = vmatpush.bf16.msra.mxu0 %v3653
    %4888 = vmatpush.bf16.msra.mxu0 %v3637
    %4889 = vmatpush.bf16.msra.mxu0 %v3621
    %4890 = vmatpush.bf16.msra.mxu0 %v3605
    %4891 = vmatpush.bf16.msra.mxu0 %v3589
    %4892 = vmatmul.bf16.gmra.mxu0 %v1403
    %v4893 = vpop.f32.mrf.mxu0
    %v4894 = vadd.f32 %v4880, %v4893
    %v4895 = vpop.f32.mrf.mxu0
    %v4896 = vadd.f32 %v4882, %v4895
    %4897 = vdwg.mxu0
    %4898 = vmatpush.bf16.msra.mxu0 %v3829
    %4899 = vmatpush.bf16.msra.mxu0 %v3813
    %4900 = vmatpush.bf16.msra.mxu0 %v3797
    %4901 = vmatpush.bf16.msra.mxu0 %v3781
    %4902 = vmatpush.bf16.msra.mxu0 %v3765
    %4903 = vmatpush.bf16.msra.mxu0 %v3749
    %4904 = vmatpush.bf16.msra.mxu0 %v3733
    %4905 = vmatpush.bf16.msra.mxu0 %v3717
    %4906 = vmatmul.bf16.gmra.mxu0 %v1404
    %v4907 = vpop.f32.mrf.mxu0
    %v4908 = vadd.f32 %v4894, %v4907
    %v4909 = vpop.f32.mrf.mxu0
    %v4910 = vadd.f32 %v4896, %v4909
    %4911 = vdwg.mxu0
    %4912 = vmatpush.bf16.msra.mxu0 %v3957
    %4913 = vmatpush.bf16.msra.mxu0 %v3941
    %4914 = vmatpush.bf16.msra.mxu0 %v3925
    %4915 = vmatpush.bf16.msra.mxu0 %v3909
    %4916 = vmatpush.bf16.msra.mxu0 %v3893
    %4917 = vmatpush.bf16.msra.mxu0 %v3877
    %4918 = vmatpush.bf16.msra.mxu0 %v3861
    %4919 = vmatpush.bf16.msra.mxu0 %v3845
    %4920 = vmatmul.bf16.gmra.mxu0 %v1405
    %v4921 = vpop.f32.mrf.mxu0
    %v4922 = vadd.f32 %v4908, %v4921
    %v4923 = vpop.f32.mrf.mxu0
    %v4924 = vadd.f32 %v4910, %v4923
    %4925 = vdwg.mxu0
    %4926 = vmatpush.bf16.msra.mxu0 %v3574
    %4927 = vmatpush.bf16.msra.mxu0 %v3558
    %4928 = vmatpush.bf16.msra.mxu0 %v3542
    %4929 = vmatpush.bf16.msra.mxu0 %v3526
    %4930 = vmatpush.bf16.msra.mxu0 %v3510
    %4931 = vmatpush.bf16.msra.mxu0 %v3494
    %4932 = vmatpush.bf16.msra.mxu0 %v3478
    %4933 = vmatpush.bf16.msra.mxu0 %v3462
    %4934 = vmatmul.bf16.gmra.mxu0 %v1402
    %v4935 = vpop.f32.mrf.mxu0
    %v4936 = vadd.f32 0.0, %v4935
    %v4937 = vpop.f32.mrf.mxu0
    %v4938 = vadd.f32 0.0, %v4937
    %4939 = vdwg.mxu0
    %4940 = vmatpush.bf16.msra.mxu0 %v3702
    %4941 = vmatpush.bf16.msra.mxu0 %v3686
    %4942 = vmatpush.bf16.msra.mxu0 %v3670
    %4943 = vmatpush.bf16.msra.mxu0 %v3654
    %4944 = vmatpush.bf16.msra.mxu0 %v3638
    %4945 = vmatpush.bf16.msra.mxu0 %v3622
    %4946 = vmatpush.bf16.msra.mxu0 %v3606
    %4947 = vmatpush.bf16.msra.mxu0 %v3590
    %4948 = vmatmul.bf16.gmra.mxu0 %v1403
    %v4949 = vpop.f32.mrf.mxu0
    %v4950 = vadd.f32 %v4936, %v4949
    %v4951 = vpop.f32.mrf.mxu0
    %v4952 = vadd.f32 %v4938, %v4951
    %4953 = vdwg.mxu0
    %4954 = vmatpush.bf16.msra.mxu0 %v3830
    %4955 = vmatpush.bf16.msra.mxu0 %v3814
    %4956 = vmatpush.bf16.msra.mxu0 %v3798
    %4957 = vmatpush.bf16.msra.mxu0 %v3782
    %4958 = vmatpush.bf16.msra.mxu0 %v3766
    %4959 = vmatpush.bf16.msra.mxu0 %v3750
    %4960 = vmatpush.bf16.msra.mxu0 %v3734
    %4961 = vmatpush.bf16.msra.mxu0 %v3718
    %4962 = vmatmul.bf16.gmra.mxu0 %v1404
    %v4963 = vpop.f32.mrf.mxu0
    %v4964 = vadd.f32 %v4950, %v4963
    %v4965 = vpop.f32.mrf.mxu0
    %v4966 = vadd.f32 %v4952, %v4965
    %4967 = vdwg.mxu0
    %4968 = vmatpush.bf16.msra.mxu0 %v3958
    %4969 = vmatpush.bf16.msra.mxu0 %v3942
    %4970 = vmatpush.bf16.msra.mxu0 %v3926
    %4971 = vmatpush.bf16.msra.mxu0 %v3910
    %4972 = vmatpush.bf16.msra.mxu0 %v3894
    %4973 = vmatpush.bf16.msra.mxu0 %v3878
    %4974 = vmatpush.bf16.msra.mxu0 %v3862
    %4975 = vmatpush.bf16.msra.mxu0 %v3846
    %4976 = vmatmul.bf16.gmra.mxu0 %v1405
    %v4977 = vpop.f32.mrf.mxu0
    %v4978 = vadd.f32 %v4964, %v4977
    %v4979 = vpop.f32.mrf.mxu0
    %v4980 = vadd.f32 %v4966, %v4979
    %4981 = vdwg.mxu0
    %4982 = vmatpush.bf16.msra.mxu0 %v3575
    %4983 = vmatpush.bf16.msra.mxu0 %v3559
    %4984 = vmatpush.bf16.msra.mxu0 %v3543
    %4985 = vmatpush.bf16.msra.mxu0 %v3527
    %4986 = vmatpush.bf16.msra.mxu0 %v3511
    %4987 = vmatpush.bf16.msra.mxu0 %v3495
    %4988 = vmatpush.bf16.msra.mxu0 %v3479
    %4989 = vmatpush.bf16.msra.mxu0 %v3463
    %4990 = vmatmul.bf16.gmra.mxu0 %v1402
    %v4991 = vpop.f32.mrf.mxu0
    %v4992 = vadd.f32 0.0, %v4991
    %v4993 = vpop.f32.mrf.mxu0
    %v4994 = vadd.f32 0.0, %v4993
    %4995 = vdwg.mxu0
    %4996 = vmatpush.bf16.msra.mxu0 %v3703
    %4997 = vmatpush.bf16.msra.mxu0 %v3687
    %4998 = vmatpush.bf16.msra.mxu0 %v3671
    %4999 = vmatpush.bf16.msra.mxu0 %v3655
    %5000 = vmatpush.bf16.msra.mxu0 %v3639
    %5001 = vmatpush.bf16.msra.mxu0 %v3623
    %5002 = vmatpush.bf16.msra.mxu0 %v3607
    %5003 = vmatpush.bf16.msra.mxu0 %v3591
    %5004 = vmatmul.bf16.gmra.mxu0 %v1403
    %v5005 = vpop.f32.mrf.mxu0
    %v5006 = vadd.f32 %v4992, %v5005
    %v5007 = vpop.f32.mrf.mxu0
    %v5008 = vadd.f32 %v4994, %v5007
    %5009 = vdwg.mxu0
    %5010 = vmatpush.bf16.msra.mxu0 %v3831
    %5011 = vmatpush.bf16.msra.mxu0 %v3815
    %5012 = vmatpush.bf16.msra.mxu0 %v3799
    %5013 = vmatpush.bf16.msra.mxu0 %v3783
    %5014 = vmatpush.bf16.msra.mxu0 %v3767
    %5015 = vmatpush.bf16.msra.mxu0 %v3751
    %5016 = vmatpush.bf16.msra.mxu0 %v3735
    %5017 = vmatpush.bf16.msra.mxu0 %v3719
    %5018 = vmatmul.bf16.gmra.mxu0 %v1404
    %v5019 = vpop.f32.mrf.mxu0
    %v5020 = vadd.f32 %v5006, %v5019
    %v5021 = vpop.f32.mrf.mxu0
    %v5022 = vadd.f32 %v5008, %v5021
    %5023 = vdwg.mxu0
    %5024 = vmatpush.bf16.msra.mxu0 %v3959
    %5025 = vmatpush.bf16.msra.mxu0 %v3943
    %5026 = vmatpush.bf16.msra.mxu0 %v3927
    %5027 = vmatpush.bf16.msra.mxu0 %v3911
    %5028 = vmatpush.bf16.msra.mxu0 %v3895
    %5029 = vmatpush.bf16.msra.mxu0 %v3879
    %5030 = vmatpush.bf16.msra.mxu0 %v3863
    %5031 = vmatpush.bf16.msra.mxu0 %v3847
    %5032 = vmatmul.bf16.gmra.mxu0 %v1405
    %v5033 = vpop.f32.mrf.mxu0
    %v5034 = vadd.f32 %v5020, %v5033
    %v5035 = vpop.f32.mrf.mxu0
    %v5036 = vadd.f32 %v5022, %v5035
    %5037 = vdwg.mxu0
    %5038 = vmatpush.bf16.msra.mxu0 %v3576
    %5039 = vmatpush.bf16.msra.mxu0 %v3560
    %5040 = vmatpush.bf16.msra.mxu0 %v3544
    %5041 = vmatpush.bf16.msra.mxu0 %v3528
    %5042 = vmatpush.bf16.msra.mxu0 %v3512
    %5043 = vmatpush.bf16.msra.mxu0 %v3496
    %5044 = vmatpush.bf16.msra.mxu0 %v3480
    %5045 = vmatpush.bf16.msra.mxu0 %v3464
    %5046 = vmatmul.bf16.gmra.mxu0 %v1402
    %v5047 = vpop.f32.mrf.mxu0
    %v5048 = vadd.f32 0.0, %v5047
    %v5049 = vpop.f32.mrf.mxu0
    %v5050 = vadd.f32 0.0, %v5049
    %5051 = vdwg.mxu0
    %5052 = vmatpush.bf16.msra.mxu0 %v3704
    %5053 = vmatpush.bf16.msra.mxu0 %v3688
    %5054 = vmatpush.bf16.msra.mxu0 %v3672
    %5055 = vmatpush.bf16.msra.mxu0 %v3656
    %5056 = vmatpush.bf16.msra.mxu0 %v3640
    %5057 = vmatpush.bf16.msra.mxu0 %v3624
    %5058 = vmatpush.bf16.msra.mxu0 %v3608
    %5059 = vmatpush.bf16.msra.mxu0 %v3592
    %5060 = vmatmul.bf16.gmra.mxu0 %v1403
    %v5061 = vpop.f32.mrf.mxu0
    %v5062 = vadd.f32 %v5048, %v5061
    %v5063 = vpop.f32.mrf.mxu0
    %v5064 = vadd.f32 %v5050, %v5063
    %5065 = vdwg.mxu0
    %5066 = vmatpush.bf16.msra.mxu0 %v3832
    %5067 = vmatpush.bf16.msra.mxu0 %v3816
    %5068 = vmatpush.bf16.msra.mxu0 %v3800
    %5069 = vmatpush.bf16.msra.mxu0 %v3784
    %5070 = vmatpush.bf16.msra.mxu0 %v3768
    %5071 = vmatpush.bf16.msra.mxu0 %v3752
    %5072 = vmatpush.bf16.msra.mxu0 %v3736
    %5073 = vmatpush.bf16.msra.mxu0 %v3720
    %5074 = vmatmul.bf16.gmra.mxu0 %v1404
    %v5075 = vpop.f32.mrf.mxu0
    %v5076 = vadd.f32 %v5062, %v5075
    %v5077 = vpop.f32.mrf.mxu0
    %v5078 = vadd.f32 %v5064, %v5077
    %5079 = vdwg.mxu0
    %5080 = vmatpush.bf16.msra.mxu0 %v3960
    %5081 = vmatpush.bf16.msra.mxu0 %v3944
    %5082 = vmatpush.bf16.msra.mxu0 %v3928
    %5083 = vmatpush.bf16.msra.mxu0 %v3912
    %5084 = vmatpush.bf16.msra.mxu0 %v3896
    %5085 = vmatpush.bf16.msra.mxu0 %v3880
    %5086 = vmatpush.bf16.msra.mxu0 %v3864
    %5087 = vmatpush.bf16.msra.mxu0 %v3848
    %5088 = vmatmul.bf16.gmra.mxu0 %v1405
    %v5089 = vpop.f32.mrf.mxu0
    %v5090 = vadd.f32 %v5076, %v5089
    %v5091 = vpop.f32.mrf.mxu0
    %v5092 = vadd.f32 %v5078, %v5091
    %5093 = vdwg.mxu0
    %5094 = vmatpush.bf16.msra.mxu0 %v3577
    %5095 = vmatpush.bf16.msra.mxu0 %v3561
    %5096 = vmatpush.bf16.msra.mxu0 %v3545
    %5097 = vmatpush.bf16.msra.mxu0 %v3529
    %5098 = vmatpush.bf16.msra.mxu0 %v3513
    %5099 = vmatpush.bf16.msra.mxu0 %v3497
    %5100 = vmatpush.bf16.msra.mxu0 %v3481
    %5101 = vmatpush.bf16.msra.mxu0 %v3465
    %5102 = vmatmul.bf16.gmra.mxu0 %v1402
    %v5103 = vpop.f32.mrf.mxu0
    %v5104 = vadd.f32 0.0, %v5103
    %v5105 = vpop.f32.mrf.mxu0
    %v5106 = vadd.f32 0.0, %v5105
    %5107 = vdwg.mxu0
    %5108 = vmatpush.bf16.msra.mxu0 %v3705
    %5109 = vmatpush.bf16.msra.mxu0 %v3689
    %5110 = vmatpush.bf16.msra.mxu0 %v3673
    %5111 = vmatpush.bf16.msra.mxu0 %v3657
    %5112 = vmatpush.bf16.msra.mxu0 %v3641
    %5113 = vmatpush.bf16.msra.mxu0 %v3625
    %5114 = vmatpush.bf16.msra.mxu0 %v3609
    %5115 = vmatpush.bf16.msra.mxu0 %v3593
    %5116 = vmatmul.bf16.gmra.mxu0 %v1403
    %v5117 = vpop.f32.mrf.mxu0
    %v5118 = vadd.f32 %v5104, %v5117
    %v5119 = vpop.f32.mrf.mxu0
    %v5120 = vadd.f32 %v5106, %v5119
    %5121 = vdwg.mxu0
    %5122 = vmatpush.bf16.msra.mxu0 %v3833
    %5123 = vmatpush.bf16.msra.mxu0 %v3817
    %5124 = vmatpush.bf16.msra.mxu0 %v3801
    %5125 = vmatpush.bf16.msra.mxu0 %v3785
    %5126 = vmatpush.bf16.msra.mxu0 %v3769
    %5127 = vmatpush.bf16.msra.mxu0 %v3753
    %5128 = vmatpush.bf16.msra.mxu0 %v3737
    %5129 = vmatpush.bf16.msra.mxu0 %v3721
    %5130 = vmatmul.bf16.gmra.mxu0 %v1404
    %v5131 = vpop.f32.mrf.mxu0
    %v5132 = vadd.f32 %v5118, %v5131
    %v5133 = vpop.f32.mrf.mxu0
    %v5134 = vadd.f32 %v5120, %v5133
    %5135 = vdwg.mxu0
    %5136 = vmatpush.bf16.msra.mxu0 %v3961
    %5137 = vmatpush.bf16.msra.mxu0 %v3945
    %5138 = vmatpush.bf16.msra.mxu0 %v3929
    %5139 = vmatpush.bf16.msra.mxu0 %v3913
    %5140 = vmatpush.bf16.msra.mxu0 %v3897
    %5141 = vmatpush.bf16.msra.mxu0 %v3881
    %5142 = vmatpush.bf16.msra.mxu0 %v3865
    %5143 = vmatpush.bf16.msra.mxu0 %v3849
    %5144 = vmatmul.bf16.gmra.mxu0 %v1405
    %v5145 = vpop.f32.mrf.mxu0
    %v5146 = vadd.f32 %v5132, %v5145
    %v5147 = vpop.f32.mrf.mxu0
    %v5148 = vadd.f32 %v5134, %v5147
    %5149 = vdwg.mxu0
    %5150 = vmatpush.bf16.msra.mxu0 %v3578
    %5151 = vmatpush.bf16.msra.mxu0 %v3562
    %5152 = vmatpush.bf16.msra.mxu0 %v3546
    %5153 = vmatpush.bf16.msra.mxu0 %v3530
    %5154 = vmatpush.bf16.msra.mxu0 %v3514
    %5155 = vmatpush.bf16.msra.mxu0 %v3498
    %5156 = vmatpush.bf16.msra.mxu0 %v3482
    %5157 = vmatpush.bf16.msra.mxu0 %v3466
    %5158 = vmatmul.bf16.gmra.mxu0 %v1402
    %v5159 = vpop.f32.mrf.mxu0
    %v5160 = vadd.f32 0.0, %v5159
    %v5161 = vpop.f32.mrf.mxu0
    %v5162 = vadd.f32 0.0, %v5161
    %5163 = vdwg.mxu0
    %5164 = vmatpush.bf16.msra.mxu0 %v3706
    %5165 = vmatpush.bf16.msra.mxu0 %v3690
    %5166 = vmatpush.bf16.msra.mxu0 %v3674
    %5167 = vmatpush.bf16.msra.mxu0 %v3658
    %5168 = vmatpush.bf16.msra.mxu0 %v3642
    %5169 = vmatpush.bf16.msra.mxu0 %v3626
    %5170 = vmatpush.bf16.msra.mxu0 %v3610
    %5171 = vmatpush.bf16.msra.mxu0 %v3594
    %5172 = vmatmul.bf16.gmra.mxu0 %v1403
    %v5173 = vpop.f32.mrf.mxu0
    %v5174 = vadd.f32 %v5160, %v5173
    %v5175 = vpop.f32.mrf.mxu0
    %v5176 = vadd.f32 %v5162, %v5175
    %5177 = vdwg.mxu0
    %5178 = vmatpush.bf16.msra.mxu0 %v3834
    %5179 = vmatpush.bf16.msra.mxu0 %v3818
    %5180 = vmatpush.bf16.msra.mxu0 %v3802
    %5181 = vmatpush.bf16.msra.mxu0 %v3786
    %5182 = vmatpush.bf16.msra.mxu0 %v3770
    %5183 = vmatpush.bf16.msra.mxu0 %v3754
    %5184 = vmatpush.bf16.msra.mxu0 %v3738
    %5185 = vmatpush.bf16.msra.mxu0 %v3722
    %5186 = vmatmul.bf16.gmra.mxu0 %v1404
    %v5187 = vpop.f32.mrf.mxu0
    %v5188 = vadd.f32 %v5174, %v5187
    %v5189 = vpop.f32.mrf.mxu0
    %v5190 = vadd.f32 %v5176, %v5189
    %5191 = vdwg.mxu0
    %5192 = vmatpush.bf16.msra.mxu0 %v3962
    %5193 = vmatpush.bf16.msra.mxu0 %v3946
    %5194 = vmatpush.bf16.msra.mxu0 %v3930
    %5195 = vmatpush.bf16.msra.mxu0 %v3914
    %5196 = vmatpush.bf16.msra.mxu0 %v3898
    %5197 = vmatpush.bf16.msra.mxu0 %v3882
    %5198 = vmatpush.bf16.msra.mxu0 %v3866
    %5199 = vmatpush.bf16.msra.mxu0 %v3850
    %5200 = vmatmul.bf16.gmra.mxu0 %v1405
    %v5201 = vpop.f32.mrf.mxu0
    %v5202 = vadd.f32 %v5188, %v5201
    %v5203 = vpop.f32.mrf.mxu0
    %v5204 = vadd.f32 %v5190, %v5203
    %5205 = vdwg.mxu0
    %5206 = vmatpush.bf16.msra.mxu0 %v3579
    %5207 = vmatpush.bf16.msra.mxu0 %v3563
    %5208 = vmatpush.bf16.msra.mxu0 %v3547
    %5209 = vmatpush.bf16.msra.mxu0 %v3531
    %5210 = vmatpush.bf16.msra.mxu0 %v3515
    %5211 = vmatpush.bf16.msra.mxu0 %v3499
    %5212 = vmatpush.bf16.msra.mxu0 %v3483
    %5213 = vmatpush.bf16.msra.mxu0 %v3467
    %5214 = vmatmul.bf16.gmra.mxu0 %v1402
    %v5215 = vpop.f32.mrf.mxu0
    %v5216 = vadd.f32 0.0, %v5215
    %v5217 = vpop.f32.mrf.mxu0
    %v5218 = vadd.f32 0.0, %v5217
    %5219 = vdwg.mxu0
    %5220 = vmatpush.bf16.msra.mxu0 %v3707
    %5221 = vmatpush.bf16.msra.mxu0 %v3691
    %5222 = vmatpush.bf16.msra.mxu0 %v3675
    %5223 = vmatpush.bf16.msra.mxu0 %v3659
    %5224 = vmatpush.bf16.msra.mxu0 %v3643
    %5225 = vmatpush.bf16.msra.mxu0 %v3627
    %5226 = vmatpush.bf16.msra.mxu0 %v3611
    %5227 = vmatpush.bf16.msra.mxu0 %v3595
    %5228 = vmatmul.bf16.gmra.mxu0 %v1403
    %v5229 = vpop.f32.mrf.mxu0
    %v5230 = vadd.f32 %v5216, %v5229
    %v5231 = vpop.f32.mrf.mxu0
    %v5232 = vadd.f32 %v5218, %v5231
    %5233 = vdwg.mxu0
    %5234 = vmatpush.bf16.msra.mxu0 %v3835
    %5235 = vmatpush.bf16.msra.mxu0 %v3819
    %5236 = vmatpush.bf16.msra.mxu0 %v3803
    %5237 = vmatpush.bf16.msra.mxu0 %v3787
    %5238 = vmatpush.bf16.msra.mxu0 %v3771
    %5239 = vmatpush.bf16.msra.mxu0 %v3755
    %5240 = vmatpush.bf16.msra.mxu0 %v3739
    %5241 = vmatpush.bf16.msra.mxu0 %v3723
    %5242 = vmatmul.bf16.gmra.mxu0 %v1404
    %v5243 = vpop.f32.mrf.mxu0
    %v5244 = vadd.f32 %v5230, %v5243
    %v5245 = vpop.f32.mrf.mxu0
    %v5246 = vadd.f32 %v5232, %v5245
    %5247 = vdwg.mxu0
    %5248 = vmatpush.bf16.msra.mxu0 %v3963
    %5249 = vmatpush.bf16.msra.mxu0 %v3947
    %5250 = vmatpush.bf16.msra.mxu0 %v3931
    %5251 = vmatpush.bf16.msra.mxu0 %v3915
    %5252 = vmatpush.bf16.msra.mxu0 %v3899
    %5253 = vmatpush.bf16.msra.mxu0 %v3883
    %5254 = vmatpush.bf16.msra.mxu0 %v3867
    %5255 = vmatpush.bf16.msra.mxu0 %v3851
    %5256 = vmatmul.bf16.gmra.mxu0 %v1405
    %v5257 = vpop.f32.mrf.mxu0
    %v5258 = vadd.f32 %v5244, %v5257
    %v5259 = vpop.f32.mrf.mxu0
    %v5260 = vadd.f32 %v5246, %v5259
    %5261 = vdwg.mxu0
    %5262 = vmatpush.bf16.msra.mxu0 %v3580
    %5263 = vmatpush.bf16.msra.mxu0 %v3564
    %5264 = vmatpush.bf16.msra.mxu0 %v3548
    %5265 = vmatpush.bf16.msra.mxu0 %v3532
    %5266 = vmatpush.bf16.msra.mxu0 %v3516
    %5267 = vmatpush.bf16.msra.mxu0 %v3500
    %5268 = vmatpush.bf16.msra.mxu0 %v3484
    %5269 = vmatpush.bf16.msra.mxu0 %v3468
    %5270 = vmatmul.bf16.gmra.mxu0 %v1402
    %v5271 = vpop.f32.mrf.mxu0
    %v5272 = vadd.f32 0.0, %v5271
    %v5273 = vpop.f32.mrf.mxu0
    %v5274 = vadd.f32 0.0, %v5273
    %5275 = vdwg.mxu0
    %5276 = vmatpush.bf16.msra.mxu0 %v3708
    %5277 = vmatpush.bf16.msra.mxu0 %v3692
    %5278 = vmatpush.bf16.msra.mxu0 %v3676
    %5279 = vmatpush.bf16.msra.mxu0 %v3660
    %5280 = vmatpush.bf16.msra.mxu0 %v3644
    %5281 = vmatpush.bf16.msra.mxu0 %v3628
    %5282 = vmatpush.bf16.msra.mxu0 %v3612
    %5283 = vmatpush.bf16.msra.mxu0 %v3596
    %5284 = vmatmul.bf16.gmra.mxu0 %v1403
    %v5285 = vpop.f32.mrf.mxu0
    %v5286 = vadd.f32 %v5272, %v5285
    %v5287 = vpop.f32.mrf.mxu0
    %v5288 = vadd.f32 %v5274, %v5287
    %5289 = vdwg.mxu0
    %5290 = vmatpush.bf16.msra.mxu0 %v3836
    %5291 = vmatpush.bf16.msra.mxu0 %v3820
    %5292 = vmatpush.bf16.msra.mxu0 %v3804
    %5293 = vmatpush.bf16.msra.mxu0 %v3788
    %5294 = vmatpush.bf16.msra.mxu0 %v3772
    %5295 = vmatpush.bf16.msra.mxu0 %v3756
    %5296 = vmatpush.bf16.msra.mxu0 %v3740
    %5297 = vmatpush.bf16.msra.mxu0 %v3724
    %5298 = vmatmul.bf16.gmra.mxu0 %v1404
    %v5299 = vpop.f32.mrf.mxu0
    %v5300 = vadd.f32 %v5286, %v5299
    %v5301 = vpop.f32.mrf.mxu0
    %v5302 = vadd.f32 %v5288, %v5301
    %5303 = vdwg.mxu0
    %5304 = vmatpush.bf16.msra.mxu0 %v3964
    %5305 = vmatpush.bf16.msra.mxu0 %v3948
    %5306 = vmatpush.bf16.msra.mxu0 %v3932
    %5307 = vmatpush.bf16.msra.mxu0 %v3916
    %5308 = vmatpush.bf16.msra.mxu0 %v3900
    %5309 = vmatpush.bf16.msra.mxu0 %v3884
    %5310 = vmatpush.bf16.msra.mxu0 %v3868
    %5311 = vmatpush.bf16.msra.mxu0 %v3852
    %5312 = vmatmul.bf16.gmra.mxu0 %v1405
    %v5313 = vpop.f32.mrf.mxu0
    %v5314 = vadd.f32 %v5300, %v5313
    %v5315 = vpop.f32.mrf.mxu0
    %v5316 = vadd.f32 %v5302, %v5315
    %5317 = vdwg.mxu0
    %5318 = vmatpush.bf16.msra.mxu0 %v3581
    %5319 = vmatpush.bf16.msra.mxu0 %v3565
    %5320 = vmatpush.bf16.msra.mxu0 %v3549
    %5321 = vmatpush.bf16.msra.mxu0 %v3533
    %5322 = vmatpush.bf16.msra.mxu0 %v3517
    %5323 = vmatpush.bf16.msra.mxu0 %v3501
    %5324 = vmatpush.bf16.msra.mxu0 %v3485
    %5325 = vmatpush.bf16.msra.mxu0 %v3469
    %5326 = vmatmul.bf16.gmra.mxu0 %v1402
    %v5327 = vpop.f32.mrf.mxu0
    %v5328 = vadd.f32 0.0, %v5327
    %v5329 = vpop.f32.mrf.mxu0
    %v5330 = vadd.f32 0.0, %v5329
    %5331 = vdwg.mxu0
    %5332 = vmatpush.bf16.msra.mxu0 %v3709
    %5333 = vmatpush.bf16.msra.mxu0 %v3693
    %5334 = vmatpush.bf16.msra.mxu0 %v3677
    %5335 = vmatpush.bf16.msra.mxu0 %v3661
    %5336 = vmatpush.bf16.msra.mxu0 %v3645
    %5337 = vmatpush.bf16.msra.mxu0 %v3629
    %5338 = vmatpush.bf16.msra.mxu0 %v3613
    %5339 = vmatpush.bf16.msra.mxu0 %v3597
    %5340 = vmatmul.bf16.gmra.mxu0 %v1403
    %v5341 = vpop.f32.mrf.mxu0
    %v5342 = vadd.f32 %v5328, %v5341
    %v5343 = vpop.f32.mrf.mxu0
    %v5344 = vadd.f32 %v5330, %v5343
    %5345 = vdwg.mxu0
    %5346 = vmatpush.bf16.msra.mxu0 %v3837
    %5347 = vmatpush.bf16.msra.mxu0 %v3821
    %5348 = vmatpush.bf16.msra.mxu0 %v3805
    %5349 = vmatpush.bf16.msra.mxu0 %v3789
    %5350 = vmatpush.bf16.msra.mxu0 %v3773
    %5351 = vmatpush.bf16.msra.mxu0 %v3757
    %5352 = vmatpush.bf16.msra.mxu0 %v3741
    %5353 = vmatpush.bf16.msra.mxu0 %v3725
    %5354 = vmatmul.bf16.gmra.mxu0 %v1404
    %v5355 = vpop.f32.mrf.mxu0
    %v5356 = vadd.f32 %v5342, %v5355
    %v5357 = vpop.f32.mrf.mxu0
    %v5358 = vadd.f32 %v5344, %v5357
    %5359 = vdwg.mxu0
    %5360 = vmatpush.bf16.msra.mxu0 %v3965
    %5361 = vmatpush.bf16.msra.mxu0 %v3949
    %5362 = vmatpush.bf16.msra.mxu0 %v3933
    %5363 = vmatpush.bf16.msra.mxu0 %v3917
    %5364 = vmatpush.bf16.msra.mxu0 %v3901
    %5365 = vmatpush.bf16.msra.mxu0 %v3885
    %5366 = vmatpush.bf16.msra.mxu0 %v3869
    %5367 = vmatpush.bf16.msra.mxu0 %v3853
    %5368 = vmatmul.bf16.gmra.mxu0 %v1405
    %v5369 = vpop.f32.mrf.mxu0
    %v5370 = vadd.f32 %v5356, %v5369
    %v5371 = vpop.f32.mrf.mxu0
    %v5372 = vadd.f32 %v5358, %v5371
    %5373 = vdwg.mxu0
    %v5374 = vmax.f32 %v4530, 0.0
    %v5375 = vmax.f32 %v4586, 0.0
    %v5376 = vmax.f32 %v4642, 0.0
    %v5377 = vmax.f32 %v4698, 0.0
    %v5378 = vmax.f32 %v4754, 0.0
    %v5379 = vmax.f32 %v4810, 0.0
    %v5380 = vmax.f32 %v4866, 0.0
    %v5381 = vmax.f32 %v4922, 0.0
    %v5382 = vmax.f32 %v4978, 0.0
    %v5383 = vmax.f32 %v5034, 0.0
    %v5384 = vmax.f32 %v5090, 0.0
    %v5385 = vmax.f32 %v5146, 0.0
    %v5386 = vmax.f32 %v5202, 0.0
    %v5387 = vmax.f32 %v5258, 0.0
    %v5388 = vmax.f32 %v5314, 0.0
    %v5389 = vmax.f32 %v5370, 0.0
    %v5390 = vmax.f32 %v4532, 0.0
    %v5391 = vmax.f32 %v4588, 0.0
    %v5392 = vmax.f32 %v4644, 0.0
    %v5393 = vmax.f32 %v4700, 0.0
    %v5394 = vmax.f32 %v4756, 0.0
    %v5395 = vmax.f32 %v4812, 0.0
    %v5396 = vmax.f32 %v4868, 0.0
    %v5397 = vmax.f32 %v4924, 0.0
    %v5398 = vmax.f32 %v4980, 0.0
    %v5399 = vmax.f32 %v5036, 0.0
    %v5400 = vmax.f32 %v5092, 0.0
    %v5401 = vmax.f32 %v5148, 0.0
    %v5402 = vmax.f32 %v5204, 0.0
    %v5403 = vmax.f32 %v5260, 0.0
    %v5404 = vmax.f32 %v5316, 0.0
    %v5405 = vmax.f32 %v5372, 0.0
    %v5406 = vpack.c.bf16 %v5390, %v5374
    %v5407 = vpack.c.bf16 %v5391, %v5375
    %v5408 = vpack.c.bf16 %v5392, %v5376
    %v5409 = vpack.c.bf16 %v5393, %v5377
    %v5410 = vpack.c.bf16 %v5394, %v5378
    %v5411 = vpack.c.bf16 %v5395, %v5379
    %v5412 = vpack.c.bf16 %v5396, %v5380
    %v5413 = vpack.c.bf16 %v5397, %v5381
    %v5414 = vpack.c.bf16 %v5398, %v5382
    %v5415 = vpack.c.bf16 %v5399, %v5383
    %v5416 = vpack.c.bf16 %v5400, %v5384
    %v5417 = vpack.c.bf16 %v5401, %v5385
    %v5418 = vpack.c.bf16 %v5402, %v5386
    %v5419 = vpack.c.bf16 %v5403, %v5387
    %v5420 = vpack.c.bf16 %v5404, %v5388
    %v5421 = vpack.c.bf16 %v5405, %v5389
    %v5422 = vld [vmem:[%s5] sm:$0xff]
    %v5423 = vld [vmem:[%s5 + $0x8] sm:$0xff]
    %v5424 = vld [vmem:[%s5 + $0x10] sm:$0xff]
    %v5425 = vld [vmem:[%s5 + $0x18] sm:$0xff]
    %v5426 = vld [vmem:[%s5 + $0x20] sm:$0xff]
    %v5427 = vld [vmem:[%s5 + $0x28] sm:$0xff]
    %v5428 = vld [vmem:[%s5 + $0x30] sm:$0xff]
    %v5429 = vld [vmem:[%s5 + $0x38] sm:$0xff]
    %v5430 = vld [vmem:[%s5 + $0x40] sm:$0xff]
    %v5431 = vld [vmem:[%s5 + $0x48] sm:$0xff]
    %v5432 = vld [vmem:[%s5 + $0x50] sm:$0xff]
    %v5433 = vld [vmem:[%s5 + $0x58] sm:$0xff]
    %v5434 = vld [vmem:[%s5 + $0x60] sm:$0xff]
    %v5435 = vld [vmem:[%s5 + $0x68] sm:$0xff]
    %v5436 = vld [vmem:[%s5 + $0x70] sm:$0xff]
    %v5437 = vld [vmem:[%s5 + $0x78] sm:$0xff]
    %v5438 = vld [vmem:[%s5 + $0x80] sm:$0xff]
    %v5439 = vld [vmem:[%s5 + $0x88] sm:$0xff]
    %v5440 = vld [vmem:[%s5 + $0x90] sm:$0xff]
    %v5441 = vld [vmem:[%s5 + $0x98] sm:$0xff]
    %v5442 = vld [vmem:[%s5 + $0xa0] sm:$0xff]
    %v5443 = vld [vmem:[%s5 + $0xa8] sm:$0xff]
    %v5444 = vld [vmem:[%s5 + $0xb0] sm:$0xff]
    %v5445 = vld [vmem:[%s5 + $0xb8] sm:$0xff]
    %v5446 = vld [vmem:[%s5 + $0xc0] sm:$0xff]
    %v5447 = vld [vmem:[%s5 + $0xc8] sm:$0xff]
    %v5448 = vld [vmem:[%s5 + $0xd0] sm:$0xff]
    %v5449 = vld [vmem:[%s5 + $0xd8] sm:$0xff]
    %v5450 = vld [vmem:[%s5 + $0xe0] sm:$0xff]
    %v5451 = vld [vmem:[%s5 + $0xe8] sm:$0xff]
    %v5452 = vld [vmem:[%s5 + $0xf0] sm:$0xff]
    %v5453 = vld [vmem:[%s5 + $0xf8] sm:$0xff]
    %v5454 = vld [vmem:[%s5 + $0x100] sm:$0xff]
    %v5455 = vld [vmem:[%s5 + $0x108] sm:$0xff]
    %v5456 = vld [vmem:[%s5 + $0x110] sm:$0xff]
    %v5457 = vld [vmem:[%s5 + $0x118] sm:$0xff]
    %v5458 = vld [vmem:[%s5 + $0x120] sm:$0xff]
    %v5459 = vld [vmem:[%s5 + $0x128] sm:$0xff]
    %v5460 = vld [vmem:[%s5 + $0x130] sm:$0xff]
    %v5461 = vld [vmem:[%s5 + $0x138] sm:$0xff]
    %v5462 = vld [vmem:[%s5 + $0x140] sm:$0xff]
    %v5463 = vld [vmem:[%s5 + $0x148] sm:$0xff]
    %v5464 = vld [vmem:[%s5 + $0x150] sm:$0xff]
    %v5465 = vld [vmem:[%s5 + $0x158] sm:$0xff]
    %v5466 = vld [vmem:[%s5 + $0x160] sm:$0xff]
    %v5467 = vld [vmem:[%s5 + $0x168] sm:$0xff]
    %v5468 = vld [vmem:[%s5 + $0x170] sm:$0xff]
    %v5469 = vld [vmem:[%s5 + $0x178] sm:$0xff]
    %v5470 = vld [vmem:[%s5 + $0x180] sm:$0xff]
    %v5471 = vld [vmem:[%s5 + $0x188] sm:$0xff]
    %v5472 = vld [vmem:[%s5 + $0x190] sm:$0xff]
    %v5473 = vld [vmem:[%s5 + $0x198] sm:$0xff]
    %v5474 = vld [vmem:[%s5 + $0x1a0] sm:$0xff]
    %v5475 = vld [vmem:[%s5 + $0x1a8] sm:$0xff]
    %v5476 = vld [vmem:[%s5 + $0x1b0] sm:$0xff]
    %v5477 = vld [vmem:[%s5 + $0x1b8] sm:$0xff]
    %v5478 = vld [vmem:[%s5 + $0x1c0] sm:$0xff]
    %v5479 = vld [vmem:[%s5 + $0x1c8] sm:$0xff]
    %v5480 = vld [vmem:[%s5 + $0x1d0] sm:$0xff]
    %v5481 = vld [vmem:[%s5 + $0x1d8] sm:$0xff]
    %v5482 = vld [vmem:[%s5 + $0x1e0] sm:$0xff]
    %v5483 = vld [vmem:[%s5 + $0x1e8] sm:$0xff]
    %v5484 = vld [vmem:[%s5 + $0x1f0] sm:$0xff]
    %v5485 = vld [vmem:[%s5 + $0x1f8] sm:$0xff]
    %v5486 = vld [vmem:[%s5 + $0x200] sm:$0xff]
    %v5487 = vld [vmem:[%s5 + $0x208] sm:$0xff]
    %v5488 = vld [vmem:[%s5 + $0x210] sm:$0xff]
    %v5489 = vld [vmem:[%s5 + $0x218] sm:$0xff]
    %v5490 = vld [vmem:[%s5 + $0x220] sm:$0xff]
    %v5491 = vld [vmem:[%s5 + $0x228] sm:$0xff]
    %v5492 = vld [vmem:[%s5 + $0x230] sm:$0xff]
    %v5493 = vld [vmem:[%s5 + $0x238] sm:$0xff]
    %v5494 = vld [vmem:[%s5 + $0x240] sm:$0xff]
    %v5495 = vld [vmem:[%s5 + $0x248] sm:$0xff]
    %v5496 = vld [vmem:[%s5 + $0x250] sm:$0xff]
    %v5497 = vld [vmem:[%s5 + $0x258] sm:$0xff]
    %v5498 = vld [vmem:[%s5 + $0x260] sm:$0xff]
    %v5499 = vld [vmem:[%s5 + $0x268] sm:$0xff]
    %v5500 = vld [vmem:[%s5 + $0x270] sm:$0xff]
    %v5501 = vld [vmem:[%s5 + $0x278] sm:$0xff]
    %v5502 = vld [vmem:[%s5 + $0x280] sm:$0xff]
    %v5503 = vld [vmem:[%s5 + $0x288] sm:$0xff]
    %v5504 = vld [vmem:[%s5 + $0x290] sm:$0xff]
    %v5505 = vld [vmem:[%s5 + $0x298] sm:$0xff]
    %v5506 = vld [vmem:[%s5 + $0x2a0] sm:$0xff]
    %v5507 = vld [vmem:[%s5 + $0x2a8] sm:$0xff]
    %v5508 = vld [vmem:[%s5 + $0x2b0] sm:$0xff]
    %v5509 = vld [vmem:[%s5 + $0x2b8] sm:$0xff]
    %v5510 = vld [vmem:[%s5 + $0x2c0] sm:$0xff]
    %v5511 = vld [vmem:[%s5 + $0x2c8] sm:$0xff]
    %v5512 = vld [vmem:[%s5 + $0x2d0] sm:$0xff]
    %v5513 = vld [vmem:[%s5 + $0x2d8] sm:$0xff]
    %v5514 = vld [vmem:[%s5 + $0x2e0] sm:$0xff]
    %v5515 = vld [vmem:[%s5 + $0x2e8] sm:$0xff]
    %v5516 = vld [vmem:[%s5 + $0x2f0] sm:$0xff]
    %v5517 = vld [vmem:[%s5 + $0x2f8] sm:$0xff]
    %v5518 = vld [vmem:[%s5 + $0x300] sm:$0xff]
    %v5519 = vld [vmem:[%s5 + $0x308] sm:$0xff]
    %v5520 = vld [vmem:[%s5 + $0x310] sm:$0xff]
    %v5521 = vld [vmem:[%s5 + $0x318] sm:$0xff]
    %v5522 = vld [vmem:[%s5 + $0x320] sm:$0xff]
    %v5523 = vld [vmem:[%s5 + $0x328] sm:$0xff]
    %v5524 = vld [vmem:[%s5 + $0x330] sm:$0xff]
    %v5525 = vld [vmem:[%s5 + $0x338] sm:$0xff]
    %v5526 = vld [vmem:[%s5 + $0x340] sm:$0xff]
    %v5527 = vld [vmem:[%s5 + $0x348] sm:$0xff]
    %v5528 = vld [vmem:[%s5 + $0x350] sm:$0xff]
    %v5529 = vld [vmem:[%s5 + $0x358] sm:$0xff]
    %v5530 = vld [vmem:[%s5 + $0x360] sm:$0xff]
    %v5531 = vld [vmem:[%s5 + $0x368] sm:$0xff]
    %v5532 = vld [vmem:[%s5 + $0x370] sm:$0xff]
    %v5533 = vld [vmem:[%s5 + $0x378] sm:$0xff]
    %v5534 = vld [vmem:[%s5 + $0x380] sm:$0xff]
    %v5535 = vld [vmem:[%s5 + $0x388] sm:$0xff]
    %v5536 = vld [vmem:[%s5 + $0x390] sm:$0xff]
    %v5537 = vld [vmem:[%s5 + $0x398] sm:$0xff]
    %v5538 = vld [vmem:[%s5 + $0x3a0] sm:$0xff]
    %v5539 = vld [vmem:[%s5 + $0x3a8] sm:$0xff]
    %v5540 = vld [vmem:[%s5 + $0x3b0] sm:$0xff]
    %v5541 = vld [vmem:[%s5 + $0x3b8] sm:$0xff]
    %v5542 = vld [vmem:[%s5 + $0x3c0] sm:$0xff]
    %v5543 = vld [vmem:[%s5 + $0x3c8] sm:$0xff]
    %v5544 = vld [vmem:[%s5 + $0x3d0] sm:$0xff]
    %v5545 = vld [vmem:[%s5 + $0x3d8] sm:$0xff]
    %v5546 = vld [vmem:[%s5 + $0x3e0] sm:$0xff]
    %v5547 = vld [vmem:[%s5 + $0x3e8] sm:$0xff]
    %v5548 = vld [vmem:[%s5 + $0x3f0] sm:$0xff]
    %v5549 = vld [vmem:[%s5 + $0x3f8] sm:$0xff]
    %v5550 = vld [vmem:[%s5 + $0x400] sm:$0xff]
    %v5551 = vld [vmem:[%s5 + $0x408] sm:$0xff]
    %v5552 = vld [vmem:[%s5 + $0x410] sm:$0xff]
    %v5553 = vld [vmem:[%s5 + $0x418] sm:$0xff]
    %v5554 = vld [vmem:[%s5 + $0x420] sm:$0xff]
    %v5555 = vld [vmem:[%s5 + $0x428] sm:$0xff]
    %v5556 = vld [vmem:[%s5 + $0x430] sm:$0xff]
    %v5557 = vld [vmem:[%s5 + $0x438] sm:$0xff]
    %v5558 = vld [vmem:[%s5 + $0x440] sm:$0xff]
    %v5559 = vld [vmem:[%s5 + $0x448] sm:$0xff]
    %v5560 = vld [vmem:[%s5 + $0x450] sm:$0xff]
    %v5561 = vld [vmem:[%s5 + $0x458] sm:$0xff]
    %v5562 = vld [vmem:[%s5 + $0x460] sm:$0xff]
    %v5563 = vld [vmem:[%s5 + $0x468] sm:$0xff]
    %v5564 = vld [vmem:[%s5 + $0x470] sm:$0xff]
    %v5565 = vld [vmem:[%s5 + $0x478] sm:$0xff]
    %v5566 = vld [vmem:[%s5 + $0x480] sm:$0xff]
    %v5567 = vld [vmem:[%s5 + $0x488] sm:$0xff]
    %v5568 = vld [vmem:[%s5 + $0x490] sm:$0xff]
    %v5569 = vld [vmem:[%s5 + $0x498] sm:$0xff]
    %v5570 = vld [vmem:[%s5 + $0x4a0] sm:$0xff]
    %v5571 = vld [vmem:[%s5 + $0x4a8] sm:$0xff]
    %v5572 = vld [vmem:[%s5 + $0x4b0] sm:$0xff]
    %v5573 = vld [vmem:[%s5 + $0x4b8] sm:$0xff]
    %v5574 = vld [vmem:[%s5 + $0x4c0] sm:$0xff]
    %v5575 = vld [vmem:[%s5 + $0x4c8] sm:$0xff]
    %v5576 = vld [vmem:[%s5 + $0x4d0] sm:$0xff]
    %v5577 = vld [vmem:[%s5 + $0x4d8] sm:$0xff]
    %v5578 = vld [vmem:[%s5 + $0x4e0] sm:$0xff]
    %v5579 = vld [vmem:[%s5 + $0x4e8] sm:$0xff]
    %v5580 = vld [vmem:[%s5 + $0x4f0] sm:$0xff]
    %v5581 = vld [vmem:[%s5 + $0x4f8] sm:$0xff]
    %v5582 = vld [vmem:[%s5 + $0x500] sm:$0xff]
    %v5583 = vld [vmem:[%s5 + $0x508] sm:$0xff]
    %v5584 = vld [vmem:[%s5 + $0x510] sm:$0xff]
    %v5585 = vld [vmem:[%s5 + $0x518] sm:$0xff]
    %v5586 = vld [vmem:[%s5 + $0x520] sm:$0xff]
    %v5587 = vld [vmem:[%s5 + $0x528] sm:$0xff]
    %v5588 = vld [vmem:[%s5 + $0x530] sm:$0xff]
    %v5589 = vld [vmem:[%s5 + $0x538] sm:$0xff]
    %v5590 = vld [vmem:[%s5 + $0x540] sm:$0xff]
    %v5591 = vld [vmem:[%s5 + $0x548] sm:$0xff]
    %v5592 = vld [vmem:[%s5 + $0x550] sm:$0xff]
    %v5593 = vld [vmem:[%s5 + $0x558] sm:$0xff]
    %v5594 = vld [vmem:[%s5 + $0x560] sm:$0xff]
    %v5595 = vld [vmem:[%s5 + $0x568] sm:$0xff]
    %v5596 = vld [vmem:[%s5 + $0x570] sm:$0xff]
    %v5597 = vld [vmem:[%s5 + $0x578] sm:$0xff]
    %v5598 = vld [vmem:[%s5 + $0x580] sm:$0xff]
    %v5599 = vld [vmem:[%s5 + $0x588] sm:$0xff]
    %v5600 = vld [vmem:[%s5 + $0x590] sm:$0xff]
    %v5601 = vld [vmem:[%s5 + $0x598] sm:$0xff]
    %v5602 = vld [vmem:[%s5 + $0x5a0] sm:$0xff]
    %v5603 = vld [vmem:[%s5 + $0x5a8] sm:$0xff]
    %v5604 = vld [vmem:[%s5 + $0x5b0] sm:$0xff]
    %v5605 = vld [vmem:[%s5 + $0x5b8] sm:$0xff]
    %v5606 = vld [vmem:[%s5 + $0x5c0] sm:$0xff]
    %v5607 = vld [vmem:[%s5 + $0x5c8] sm:$0xff]
    %v5608 = vld [vmem:[%s5 + $0x5d0] sm:$0xff]
    %v5609 = vld [vmem:[%s5 + $0x5d8] sm:$0xff]
    %v5610 = vld [vmem:[%s5 + $0x5e0] sm:$0xff]
    %v5611 = vld [vmem:[%s5 + $0x5e8] sm:$0xff]
    %v5612 = vld [vmem:[%s5 + $0x5f0] sm:$0xff]
    %v5613 = vld [vmem:[%s5 + $0x5f8] sm:$0xff]
    %v5614 = vld [vmem:[%s5 + $0x600] sm:$0xff]
    %v5615 = vld [vmem:[%s5 + $0x608] sm:$0xff]
    %v5616 = vld [vmem:[%s5 + $0x610] sm:$0xff]
    %v5617 = vld [vmem:[%s5 + $0x618] sm:$0xff]
    %v5618 = vld [vmem:[%s5 + $0x620] sm:$0xff]
    %v5619 = vld [vmem:[%s5 + $0x628] sm:$0xff]
    %v5620 = vld [vmem:[%s5 + $0x630] sm:$0xff]
    %v5621 = vld [vmem:[%s5 + $0x638] sm:$0xff]
    %v5622 = vld [vmem:[%s5 + $0x640] sm:$0xff]
    %v5623 = vld [vmem:[%s5 + $0x648] sm:$0xff]
    %v5624 = vld [vmem:[%s5 + $0x650] sm:$0xff]
    %v5625 = vld [vmem:[%s5 + $0x658] sm:$0xff]
    %v5626 = vld [vmem:[%s5 + $0x660] sm:$0xff]
    %v5627 = vld [vmem:[%s5 + $0x668] sm:$0xff]
    %v5628 = vld [vmem:[%s5 + $0x670] sm:$0xff]
    %v5629 = vld [vmem:[%s5 + $0x678] sm:$0xff]
    %v5630 = vld [vmem:[%s5 + $0x680] sm:$0xff]
    %v5631 = vld [vmem:[%s5 + $0x688] sm:$0xff]
    %v5632 = vld [vmem:[%s5 + $0x690] sm:$0xff]
    %v5633 = vld [vmem:[%s5 + $0x698] sm:$0xff]
    %v5634 = vld [vmem:[%s5 + $0x6a0] sm:$0xff]
    %v5635 = vld [vmem:[%s5 + $0x6a8] sm:$0xff]
    %v5636 = vld [vmem:[%s5 + $0x6b0] sm:$0xff]
    %v5637 = vld [vmem:[%s5 + $0x6b8] sm:$0xff]
    %v5638 = vld [vmem:[%s5 + $0x6c0] sm:$0xff]
    %v5639 = vld [vmem:[%s5 + $0x6c8] sm:$0xff]
    %v5640 = vld [vmem:[%s5 + $0x6d0] sm:$0xff]
    %v5641 = vld [vmem:[%s5 + $0x6d8] sm:$0xff]
    %v5642 = vld [vmem:[%s5 + $0x6e0] sm:$0xff]
    %v5643 = vld [vmem:[%s5 + $0x6e8] sm:$0xff]
    %v5644 = vld [vmem:[%s5 + $0x6f0] sm:$0xff]
    %v5645 = vld [vmem:[%s5 + $0x6f8] sm:$0xff]
    %v5646 = vld [vmem:[%s5 + $0x700] sm:$0xff]
    %v5647 = vld [vmem:[%s5 + $0x708] sm:$0xff]
    %v5648 = vld [vmem:[%s5 + $0x710] sm:$0xff]
    %v5649 = vld [vmem:[%s5 + $0x718] sm:$0xff]
    %v5650 = vld [vmem:[%s5 + $0x720] sm:$0xff]
    %v5651 = vld [vmem:[%s5 + $0x728] sm:$0xff]
    %v5652 = vld [vmem:[%s5 + $0x730] sm:$0xff]
    %v5653 = vld [vmem:[%s5 + $0x738] sm:$0xff]
    %v5654 = vld [vmem:[%s5 + $0x740] sm:$0xff]
    %v5655 = vld [vmem:[%s5 + $0x748] sm:$0xff]
    %v5656 = vld [vmem:[%s5 + $0x750] sm:$0xff]
    %v5657 = vld [vmem:[%s5 + $0x758] sm:$0xff]
    %v5658 = vld [vmem:[%s5 + $0x760] sm:$0xff]
    %v5659 = vld [vmem:[%s5 + $0x768] sm:$0xff]
    %v5660 = vld [vmem:[%s5 + $0x770] sm:$0xff]
    %v5661 = vld [vmem:[%s5 + $0x778] sm:$0xff]
    %v5662 = vld [vmem:[%s5 + $0x780] sm:$0xff]
    %v5663 = vld [vmem:[%s5 + $0x788] sm:$0xff]
    %v5664 = vld [vmem:[%s5 + $0x790] sm:$0xff]
    %v5665 = vld [vmem:[%s5 + $0x798] sm:$0xff]
    %v5666 = vld [vmem:[%s5 + $0x7a0] sm:$0xff]
    %v5667 = vld [vmem:[%s5 + $0x7a8] sm:$0xff]
    %v5668 = vld [vmem:[%s5 + $0x7b0] sm:$0xff]
    %v5669 = vld [vmem:[%s5 + $0x7b8] sm:$0xff]
    %v5670 = vld [vmem:[%s5 + $0x7c0] sm:$0xff]
    %v5671 = vld [vmem:[%s5 + $0x7c8] sm:$0xff]
    %v5672 = vld [vmem:[%s5 + $0x7d0] sm:$0xff]
    %v5673 = vld [vmem:[%s5 + $0x7d8] sm:$0xff]
    %v5674 = vld [vmem:[%s5 + $0x7e0] sm:$0xff]
    %v5675 = vld [vmem:[%s5 + $0x7e8] sm:$0xff]
    %v5676 = vld [vmem:[%s5 + $0x7f0] sm:$0xff]
    %v5677 = vld [vmem:[%s5 + $0x7f8] sm:$0xff]
    %v5678 = vld [vmem:[%s5 + $0x800] sm:$0xff]
    %v5679 = vld [vmem:[%s5 + $0x808] sm:$0xff]
    %v5680 = vld [vmem:[%s5 + $0x810] sm:$0xff]
    %v5681 = vld [vmem:[%s5 + $0x818] sm:$0xff]
    %v5682 = vld [vmem:[%s5 + $0x820] sm:$0xff]
    %v5683 = vld [vmem:[%s5 + $0x828] sm:$0xff]
    %v5684 = vld [vmem:[%s5 + $0x830] sm:$0xff]
    %v5685 = vld [vmem:[%s5 + $0x838] sm:$0xff]
    %v5686 = vld [vmem:[%s5 + $0x840] sm:$0xff]
    %v5687 = vld [vmem:[%s5 + $0x848] sm:$0xff]
    %v5688 = vld [vmem:[%s5 + $0x850] sm:$0xff]
    %v5689 = vld [vmem:[%s5 + $0x858] sm:$0xff]
    %v5690 = vld [vmem:[%s5 + $0x860] sm:$0xff]
    %v5691 = vld [vmem:[%s5 + $0x868] sm:$0xff]
    %v5692 = vld [vmem:[%s5 + $0x870] sm:$0xff]
    %v5693 = vld [vmem:[%s5 + $0x878] sm:$0xff]
    %v5694 = vld [vmem:[%s5 + $0x880] sm:$0xff]
    %v5695 = vld [vmem:[%s5 + $0x888] sm:$0xff]
    %v5696 = vld [vmem:[%s5 + $0x890] sm:$0xff]
    %v5697 = vld [vmem:[%s5 + $0x898] sm:$0xff]
    %v5698 = vld [vmem:[%s5 + $0x8a0] sm:$0xff]
    %v5699 = vld [vmem:[%s5 + $0x8a8] sm:$0xff]
    %v5700 = vld [vmem:[%s5 + $0x8b0] sm:$0xff]
    %v5701 = vld [vmem:[%s5 + $0x8b8] sm:$0xff]
    %v5702 = vld [vmem:[%s5 + $0x8c0] sm:$0xff]
    %v5703 = vld [vmem:[%s5 + $0x8c8] sm:$0xff]
    %v5704 = vld [vmem:[%s5 + $0x8d0] sm:$0xff]
    %v5705 = vld [vmem:[%s5 + $0x8d8] sm:$0xff]
    %v5706 = vld [vmem:[%s5 + $0x8e0] sm:$0xff]
    %v5707 = vld [vmem:[%s5 + $0x8e8] sm:$0xff]
    %v5708 = vld [vmem:[%s5 + $0x8f0] sm:$0xff]
    %v5709 = vld [vmem:[%s5 + $0x8f8] sm:$0xff]
    %v5710 = vld [vmem:[%s5 + $0x900] sm:$0xff]
    %v5711 = vld [vmem:[%s5 + $0x908] sm:$0xff]
    %v5712 = vld [vmem:[%s5 + $0x910] sm:$0xff]
    %v5713 = vld [vmem:[%s5 + $0x918] sm:$0xff]
    %v5714 = vld [vmem:[%s5 + $0x920] sm:$0xff]
    %v5715 = vld [vmem:[%s5 + $0x928] sm:$0xff]
    %v5716 = vld [vmem:[%s5 + $0x930] sm:$0xff]
    %v5717 = vld [vmem:[%s5 + $0x938] sm:$0xff]
    %v5718 = vld [vmem:[%s5 + $0x940] sm:$0xff]
    %v5719 = vld [vmem:[%s5 + $0x948] sm:$0xff]
    %v5720 = vld [vmem:[%s5 + $0x950] sm:$0xff]
    %v5721 = vld [vmem:[%s5 + $0x958] sm:$0xff]
    %v5722 = vld [vmem:[%s5 + $0x960] sm:$0xff]
    %v5723 = vld [vmem:[%s5 + $0x968] sm:$0xff]
    %v5724 = vld [vmem:[%s5 + $0x970] sm:$0xff]
    %v5725 = vld [vmem:[%s5 + $0x978] sm:$0xff]
    %v5726 = vld [vmem:[%s5 + $0x980] sm:$0xff]
    %v5727 = vld [vmem:[%s5 + $0x988] sm:$0xff]
    %v5728 = vld [vmem:[%s5 + $0x990] sm:$0xff]
    %v5729 = vld [vmem:[%s5 + $0x998] sm:$0xff]
    %v5730 = vld [vmem:[%s5 + $0x9a0] sm:$0xff]
    %v5731 = vld [vmem:[%s5 + $0x9a8] sm:$0xff]
    %v5732 = vld [vmem:[%s5 + $0x9b0] sm:$0xff]
    %v5733 = vld [vmem:[%s5 + $0x9b8] sm:$0xff]
    %v5734 = vld [vmem:[%s5 + $0x9c0] sm:$0xff]
    %v5735 = vld [vmem:[%s5 + $0x9c8] sm:$0xff]
    %v5736 = vld [vmem:[%s5 + $0x9d0] sm:$0xff]
    %v5737 = vld [vmem:[%s5 + $0x9d8] sm:$0xff]
    %v5738 = vld [vmem:[%s5 + $0x9e0] sm:$0xff]
    %v5739 = vld [vmem:[%s5 + $0x9e8] sm:$0xff]
    %v5740 = vld [vmem:[%s5 + $0x9f0] sm:$0xff]
    %v5741 = vld [vmem:[%s5 + $0x9f8] sm:$0xff]
    %v5742 = vld [vmem:[%s5 + $0xa00] sm:$0xff]
    %v5743 = vld [vmem:[%s5 + $0xa08] sm:$0xff]
    %v5744 = vld [vmem:[%s5 + $0xa10] sm:$0xff]
    %v5745 = vld [vmem:[%s5 + $0xa18] sm:$0xff]
    %v5746 = vld [vmem:[%s5 + $0xa20] sm:$0xff]
    %v5747 = vld [vmem:[%s5 + $0xa28] sm:$0xff]
    %v5748 = vld [vmem:[%s5 + $0xa30] sm:$0xff]
    %v5749 = vld [vmem:[%s5 + $0xa38] sm:$0xff]
    %v5750 = vld [vmem:[%s5 + $0xa40] sm:$0xff]
    %v5751 = vld [vmem:[%s5 + $0xa48] sm:$0xff]
    %v5752 = vld [vmem:[%s5 + $0xa50] sm:$0xff]
    %v5753 = vld [vmem:[%s5 + $0xa58] sm:$0xff]
    %v5754 = vld [vmem:[%s5 + $0xa60] sm:$0xff]
    %v5755 = vld [vmem:[%s5 + $0xa68] sm:$0xff]
    %v5756 = vld [vmem:[%s5 + $0xa70] sm:$0xff]
    %v5757 = vld [vmem:[%s5 + $0xa78] sm:$0xff]
    %v5758 = vld [vmem:[%s5 + $0xa80] sm:$0xff]
    %v5759 = vld [vmem:[%s5 + $0xa88] sm:$0xff]
    %v5760 = vld [vmem:[%s5 + $0xa90] sm:$0xff]
    %v5761 = vld [vmem:[%s5 + $0xa98] sm:$0xff]
    %v5762 = vld [vmem:[%s5 + $0xaa0] sm:$0xff]
    %v5763 = vld [vmem:[%s5 + $0xaa8] sm:$0xff]
    %v5764 = vld [vmem:[%s5 + $0xab0] sm:$0xff]
    %v5765 = vld [vmem:[%s5 + $0xab8] sm:$0xff]
    %v5766 = vld [vmem:[%s5 + $0xac0] sm:$0xff]
    %v5767 = vld [vmem:[%s5 + $0xac8] sm:$0xff]
    %v5768 = vld [vmem:[%s5 + $0xad0] sm:$0xff]
    %v5769 = vld [vmem:[%s5 + $0xad8] sm:$0xff]
    %v5770 = vld [vmem:[%s5 + $0xae0] sm:$0xff]
    %v5771 = vld [vmem:[%s5 + $0xae8] sm:$0xff]
    %v5772 = vld [vmem:[%s5 + $0xaf0] sm:$0xff]
    %v5773 = vld [vmem:[%s5 + $0xaf8] sm:$0xff]
    %v5774 = vld [vmem:[%s5 + $0xb00] sm:$0xff]
    %v5775 = vld [vmem:[%s5 + $0xb08] sm:$0xff]
    %v5776 = vld [vmem:[%s5 + $0xb10] sm:$0xff]
    %v5777 = vld [vmem:[%s5 + $0xb18] sm:$0xff]
    %v5778 = vld [vmem:[%s5 + $0xb20] sm:$0xff]
    %v5779 = vld [vmem:[%s5 + $0xb28] sm:$0xff]
    %v5780 = vld [vmem:[%s5 + $0xb30] sm:$0xff]
    %v5781 = vld [vmem:[%s5 + $0xb38] sm:$0xff]
    %v5782 = vld [vmem:[%s5 + $0xb40] sm:$0xff]
    %v5783 = vld [vmem:[%s5 + $0xb48] sm:$0xff]
    %v5784 = vld [vmem:[%s5 + $0xb50] sm:$0xff]
    %v5785 = vld [vmem:[%s5 + $0xb58] sm:$0xff]
    %v5786 = vld [vmem:[%s5 + $0xb60] sm:$0xff]
    %v5787 = vld [vmem:[%s5 + $0xb68] sm:$0xff]
    %v5788 = vld [vmem:[%s5 + $0xb70] sm:$0xff]
    %v5789 = vld [vmem:[%s5 + $0xb78] sm:$0xff]
    %v5790 = vld [vmem:[%s5 + $0xb80] sm:$0xff]
    %v5791 = vld [vmem:[%s5 + $0xb88] sm:$0xff]
    %v5792 = vld [vmem:[%s5 + $0xb90] sm:$0xff]
    %v5793 = vld [vmem:[%s5 + $0xb98] sm:$0xff]
    %v5794 = vld [vmem:[%s5 + $0xba0] sm:$0xff]
    %v5795 = vld [vmem:[%s5 + $0xba8] sm:$0xff]
    %v5796 = vld [vmem:[%s5 + $0xbb0] sm:$0xff]
    %v5797 = vld [vmem:[%s5 + $0xbb8] sm:$0xff]
    %v5798 = vld [vmem:[%s5 + $0xbc0] sm:$0xff]
    %v5799 = vld [vmem:[%s5 + $0xbc8] sm:$0xff]
    %v5800 = vld [vmem:[%s5 + $0xbd0] sm:$0xff]
    %v5801 = vld [vmem:[%s5 + $0xbd8] sm:$0xff]
    %v5802 = vld [vmem:[%s5 + $0xbe0] sm:$0xff]
    %v5803 = vld [vmem:[%s5 + $0xbe8] sm:$0xff]
    %v5804 = vld [vmem:[%s5 + $0xbf0] sm:$0xff]
    %v5805 = vld [vmem:[%s5 + $0xbf8] sm:$0xff]
    %v5806 = vld [vmem:[%s5 + $0xc00] sm:$0xff]
    %v5807 = vld [vmem:[%s5 + $0xc08] sm:$0xff]
    %v5808 = vld [vmem:[%s5 + $0xc10] sm:$0xff]
    %v5809 = vld [vmem:[%s5 + $0xc18] sm:$0xff]
    %v5810 = vld [vmem:[%s5 + $0xc20] sm:$0xff]
    %v5811 = vld [vmem:[%s5 + $0xc28] sm:$0xff]
    %v5812 = vld [vmem:[%s5 + $0xc30] sm:$0xff]
    %v5813 = vld [vmem:[%s5 + $0xc38] sm:$0xff]
    %v5814 = vld [vmem:[%s5 + $0xc40] sm:$0xff]
    %v5815 = vld [vmem:[%s5 + $0xc48] sm:$0xff]
    %v5816 = vld [vmem:[%s5 + $0xc50] sm:$0xff]
    %v5817 = vld [vmem:[%s5 + $0xc58] sm:$0xff]
    %v5818 = vld [vmem:[%s5 + $0xc60] sm:$0xff]
    %v5819 = vld [vmem:[%s5 + $0xc68] sm:$0xff]
    %v5820 = vld [vmem:[%s5 + $0xc70] sm:$0xff]
    %v5821 = vld [vmem:[%s5 + $0xc78] sm:$0xff]
    %v5822 = vld [vmem:[%s5 + $0xc80] sm:$0xff]
    %v5823 = vld [vmem:[%s5 + $0xc88] sm:$0xff]
    %v5824 = vld [vmem:[%s5 + $0xc90] sm:$0xff]
    %v5825 = vld [vmem:[%s5 + $0xc98] sm:$0xff]
    %v5826 = vld [vmem:[%s5 + $0xca0] sm:$0xff]
    %v5827 = vld [vmem:[%s5 + $0xca8] sm:$0xff]
    %v5828 = vld [vmem:[%s5 + $0xcb0] sm:$0xff]
    %v5829 = vld [vmem:[%s5 + $0xcb8] sm:$0xff]
    %v5830 = vld [vmem:[%s5 + $0xcc0] sm:$0xff]
    %v5831 = vld [vmem:[%s5 + $0xcc8] sm:$0xff]
    %v5832 = vld [vmem:[%s5 + $0xcd0] sm:$0xff]
    %v5833 = vld [vmem:[%s5 + $0xcd8] sm:$0xff]
    %v5834 = vld [vmem:[%s5 + $0xce0] sm:$0xff]
    %v5835 = vld [vmem:[%s5 + $0xce8] sm:$0xff]
    %v5836 = vld [vmem:[%s5 + $0xcf0] sm:$0xff]
    %v5837 = vld [vmem:[%s5 + $0xcf8] sm:$0xff]
    %v5838 = vld [vmem:[%s5 + $0xd00] sm:$0xff]
    %v5839 = vld [vmem:[%s5 + $0xd08] sm:$0xff]
    %v5840 = vld [vmem:[%s5 + $0xd10] sm:$0xff]
    %v5841 = vld [vmem:[%s5 + $0xd18] sm:$0xff]
    %v5842 = vld [vmem:[%s5 + $0xd20] sm:$0xff]
    %v5843 = vld [vmem:[%s5 + $0xd28] sm:$0xff]
    %v5844 = vld [vmem:[%s5 + $0xd30] sm:$0xff]
    %v5845 = vld [vmem:[%s5 + $0xd38] sm:$0xff]
    %v5846 = vld [vmem:[%s5 + $0xd40] sm:$0xff]
    %v5847 = vld [vmem:[%s5 + $0xd48] sm:$0xff]
    %v5848 = vld [vmem:[%s5 + $0xd50] sm:$0xff]
    %v5849 = vld [vmem:[%s5 + $0xd58] sm:$0xff]
    %v5850 = vld [vmem:[%s5 + $0xd60] sm:$0xff]
    %v5851 = vld [vmem:[%s5 + $0xd68] sm:$0xff]
    %v5852 = vld [vmem:[%s5 + $0xd70] sm:$0xff]
    %v5853 = vld [vmem:[%s5 + $0xd78] sm:$0xff]
    %v5854 = vld [vmem:[%s5 + $0xd80] sm:$0xff]
    %v5855 = vld [vmem:[%s5 + $0xd88] sm:$0xff]
    %v5856 = vld [vmem:[%s5 + $0xd90] sm:$0xff]
    %v5857 = vld [vmem:[%s5 + $0xd98] sm:$0xff]
    %v5858 = vld [vmem:[%s5 + $0xda0] sm:$0xff]
    %v5859 = vld [vmem:[%s5 + $0xda8] sm:$0xff]
    %v5860 = vld [vmem:[%s5 + $0xdb0] sm:$0xff]
    %v5861 = vld [vmem:[%s5 + $0xdb8] sm:$0xff]
    %v5862 = vld [vmem:[%s5 + $0xdc0] sm:$0xff]
    %v5863 = vld [vmem:[%s5 + $0xdc8] sm:$0xff]
    %v5864 = vld [vmem:[%s5 + $0xdd0] sm:$0xff]
    %v5865 = vld [vmem:[%s5 + $0xdd8] sm:$0xff]
    %v5866 = vld [vmem:[%s5 + $0xde0] sm:$0xff]
    %v5867 = vld [vmem:[%s5 + $0xde8] sm:$0xff]
    %v5868 = vld [vmem:[%s5 + $0xdf0] sm:$0xff]
    %v5869 = vld [vmem:[%s5 + $0xdf8] sm:$0xff]
    %v5870 = vld [vmem:[%s5 + $0xe00] sm:$0xff]
    %v5871 = vld [vmem:[%s5 + $0xe08] sm:$0xff]
    %v5872 = vld [vmem:[%s5 + $0xe10] sm:$0xff]
    %v5873 = vld [vmem:[%s5 + $0xe18] sm:$0xff]
    %v5874 = vld [vmem:[%s5 + $0xe20] sm:$0xff]
    %v5875 = vld [vmem:[%s5 + $0xe28] sm:$0xff]
    %v5876 = vld [vmem:[%s5 + $0xe30] sm:$0xff]
    %v5877 = vld [vmem:[%s5 + $0xe38] sm:$0xff]
    %v5878 = vld [vmem:[%s5 + $0xe40] sm:$0xff]
    %v5879 = vld [vmem:[%s5 + $0xe48] sm:$0xff]
    %v5880 = vld [vmem:[%s5 + $0xe50] sm:$0xff]
    %v5881 = vld [vmem:[%s5 + $0xe58] sm:$0xff]
    %v5882 = vld [vmem:[%s5 + $0xe60] sm:$0xff]
    %v5883 = vld [vmem:[%s5 + $0xe68] sm:$0xff]
    %v5884 = vld [vmem:[%s5 + $0xe70] sm:$0xff]
    %v5885 = vld [vmem:[%s5 + $0xe78] sm:$0xff]
    %v5886 = vld [vmem:[%s5 + $0xe80] sm:$0xff]
    %v5887 = vld [vmem:[%s5 + $0xe88] sm:$0xff]
    %v5888 = vld [vmem:[%s5 + $0xe90] sm:$0xff]
    %v5889 = vld [vmem:[%s5 + $0xe98] sm:$0xff]
    %v5890 = vld [vmem:[%s5 + $0xea0] sm:$0xff]
    %v5891 = vld [vmem:[%s5 + $0xea8] sm:$0xff]
    %v5892 = vld [vmem:[%s5 + $0xeb0] sm:$0xff]
    %v5893 = vld [vmem:[%s5 + $0xeb8] sm:$0xff]
    %v5894 = vld [vmem:[%s5 + $0xec0] sm:$0xff]
    %v5895 = vld [vmem:[%s5 + $0xec8] sm:$0xff]
    %v5896 = vld [vmem:[%s5 + $0xed0] sm:$0xff]
    %v5897 = vld [vmem:[%s5 + $0xed8] sm:$0xff]
    %v5898 = vld [vmem:[%s5 + $0xee0] sm:$0xff]
    %v5899 = vld [vmem:[%s5 + $0xee8] sm:$0xff]
    %v5900 = vld [vmem:[%s5 + $0xef0] sm:$0xff]
    %v5901 = vld [vmem:[%s5 + $0xef8] sm:$0xff]
    %v5902 = vld [vmem:[%s5 + $0xf00] sm:$0xff]
    %v5903 = vld [vmem:[%s5 + $0xf08] sm:$0xff]
    %v5904 = vld [vmem:[%s5 + $0xf10] sm:$0xff]
    %v5905 = vld [vmem:[%s5 + $0xf18] sm:$0xff]
    %v5906 = vld [vmem:[%s5 + $0xf20] sm:$0xff]
    %v5907 = vld [vmem:[%s5 + $0xf28] sm:$0xff]
    %v5908 = vld [vmem:[%s5 + $0xf30] sm:$0xff]
    %v5909 = vld [vmem:[%s5 + $0xf38] sm:$0xff]
    %v5910 = vld [vmem:[%s5 + $0xf40] sm:$0xff]
    %v5911 = vld [vmem:[%s5 + $0xf48] sm:$0xff]
    %v5912 = vld [vmem:[%s5 + $0xf50] sm:$0xff]
    %v5913 = vld [vmem:[%s5 + $0xf58] sm:$0xff]
    %v5914 = vld [vmem:[%s5 + $0xf60] sm:$0xff]
    %v5915 = vld [vmem:[%s5 + $0xf68] sm:$0xff]
    %v5916 = vld [vmem:[%s5 + $0xf70] sm:$0xff]
    %v5917 = vld [vmem:[%s5 + $0xf78] sm:$0xff]
    %v5918 = vld [vmem:[%s5 + $0xf80] sm:$0xff]
    %v5919 = vld [vmem:[%s5 + $0xf88] sm:$0xff]
    %v5920 = vld [vmem:[%s5 + $0xf90] sm:$0xff]
    %v5921 = vld [vmem:[%s5 + $0xf98] sm:$0xff]
    %v5922 = vld [vmem:[%s5 + $0xfa0] sm:$0xff]
    %v5923 = vld [vmem:[%s5 + $0xfa8] sm:$0xff]
    %v5924 = vld [vmem:[%s5 + $0xfb0] sm:$0xff]
    %v5925 = vld [vmem:[%s5 + $0xfb8] sm:$0xff]
    %v5926 = vld [vmem:[%s5 + $0xfc0] sm:$0xff]
    %v5927 = vld [vmem:[%s5 + $0xfc8] sm:$0xff]
    %v5928 = vld [vmem:[%s5 + $0xfd0] sm:$0xff]
    %v5929 = vld [vmem:[%s5 + $0xfd8] sm:$0xff]
    %v5930 = vld [vmem:[%s5 + $0xfe0] sm:$0xff]
    %v5931 = vld [vmem:[%s5 + $0xfe8] sm:$0xff]
    %v5932 = vld [vmem:[%s5 + $0xff0] sm:$0xff]
    %v5933 = vld [vmem:[%s5 + $0xff8] sm:$0xff]
    %v6446 = vunpack.c.l.b16 %v5422
    %v6447 = vunpack.c.h.b16 %v5422
    %v6448 = vunpack.c.l.b16 %v5423
    %v6449 = vunpack.c.h.b16 %v5423
    %v6450 = vunpack.c.l.b16 %v5424
    %v6451 = vunpack.c.h.b16 %v5424
    %v6452 = vunpack.c.l.b16 %v5425
    %v6453 = vunpack.c.h.b16 %v5425
    %v6454 = vunpack.c.l.b16 %v5426
    %v6455 = vunpack.c.h.b16 %v5426
    %v6456 = vunpack.c.l.b16 %v5427
    %v6457 = vunpack.c.h.b16 %v5427
    %v6458 = vunpack.c.l.b16 %v5428
    %v6459 = vunpack.c.h.b16 %v5428
    %v6460 = vunpack.c.l.b16 %v5429
    %v6461 = vunpack.c.h.b16 %v5429
    %v6462 = vunpack.c.l.b16 %v5430
    %v6463 = vunpack.c.h.b16 %v5430
    %v6464 = vunpack.c.l.b16 %v5431
    %v6465 = vunpack.c.h.b16 %v5431
    %v6466 = vunpack.c.l.b16 %v5432
    %v6467 = vunpack.c.h.b16 %v5432
    %v6468 = vunpack.c.l.b16 %v5433
    %v6469 = vunpack.c.h.b16 %v5433
    %v6470 = vunpack.c.l.b16 %v5434
    %v6471 = vunpack.c.h.b16 %v5434
    %v6472 = vunpack.c.l.b16 %v5435
    %v6473 = vunpack.c.h.b16 %v5435
    %v6474 = vunpack.c.l.b16 %v5436
    %v6475 = vunpack.c.h.b16 %v5436
    %v6476 = vunpack.c.l.b16 %v5437
    %v6477 = vunpack.c.h.b16 %v5437
    %v6478 = vunpack.c.l.b16 %v5438
    %v6479 = vunpack.c.h.b16 %v5438
    %v6480 = vunpack.c.l.b16 %v5439
    %v6481 = vunpack.c.h.b16 %v5439
    %v6482 = vunpack.c.l.b16 %v5440
    %v6483 = vunpack.c.h.b16 %v5440
    %v6484 = vunpack.c.l.b16 %v5441
    %v6485 = vunpack.c.h.b16 %v5441
    %v6486 = vunpack.c.l.b16 %v5442
    %v6487 = vunpack.c.h.b16 %v5442
    %v6488 = vunpack.c.l.b16 %v5443
    %v6489 = vunpack.c.h.b16 %v5443
    %v6490 = vunpack.c.l.b16 %v5444
    %v6491 = vunpack.c.h.b16 %v5444
    %v6492 = vunpack.c.l.b16 %v5445
    %v6493 = vunpack.c.h.b16 %v5445
    %v6494 = vunpack.c.l.b16 %v5446
    %v6495 = vunpack.c.h.b16 %v5446
    %v6496 = vunpack.c.l.b16 %v5447
    %v6497 = vunpack.c.h.b16 %v5447
    %v6498 = vunpack.c.l.b16 %v5448
    %v6499 = vunpack.c.h.b16 %v5448
    %v6500 = vunpack.c.l.b16 %v5449
    %v6501 = vunpack.c.h.b16 %v5449
    %v6502 = vunpack.c.l.b16 %v5450
    %v6503 = vunpack.c.h.b16 %v5450
    %v6504 = vunpack.c.l.b16 %v5451
    %v6505 = vunpack.c.h.b16 %v5451
    %v6506 = vunpack.c.l.b16 %v5452
    %v6507 = vunpack.c.h.b16 %v5452
    %v6508 = vunpack.c.l.b16 %v5453
    %v6509 = vunpack.c.h.b16 %v5453
    %v6510 = vunpack.c.l.b16 %v5454
    %v6511 = vunpack.c.h.b16 %v5454
    %v6512 = vunpack.c.l.b16 %v5455
    %v6513 = vunpack.c.h.b16 %v5455
    %v6514 = vunpack.c.l.b16 %v5456
    %v6515 = vunpack.c.h.b16 %v5456
    %v6516 = vunpack.c.l.b16 %v5457
    %v6517 = vunpack.c.h.b16 %v5457
    %v6518 = vunpack.c.l.b16 %v5458
    %v6519 = vunpack.c.h.b16 %v5458
    %v6520 = vunpack.c.l.b16 %v5459
    %v6521 = vunpack.c.h.b16 %v5459
    %v6522 = vunpack.c.l.b16 %v5460
    %v6523 = vunpack.c.h.b16 %v5460
    %v6524 = vunpack.c.l.b16 %v5461
    %v6525 = vunpack.c.h.b16 %v5461
    %v6526 = vunpack.c.l.b16 %v5462
    %v6527 = vunpack.c.h.b16 %v5462
    %v6528 = vunpack.c.l.b16 %v5463
    %v6529 = vunpack.c.h.b16 %v5463
    %v6530 = vunpack.c.l.b16 %v5464
    %v6531 = vunpack.c.h.b16 %v5464
    %v6532 = vunpack.c.l.b16 %v5465
    %v6533 = vunpack.c.h.b16 %v5465
    %v6534 = vunpack.c.l.b16 %v5466
    %v6535 = vunpack.c.h.b16 %v5466
    %v6536 = vunpack.c.l.b16 %v5467
    %v6537 = vunpack.c.h.b16 %v5467
    %v6538 = vunpack.c.l.b16 %v5468
    %v6539 = vunpack.c.h.b16 %v5468
    %v6540 = vunpack.c.l.b16 %v5469
    %v6541 = vunpack.c.h.b16 %v5469
    %v6542 = vunpack.c.l.b16 %v5470
    %v6543 = vunpack.c.h.b16 %v5470
    %v6544 = vunpack.c.l.b16 %v5471
    %v6545 = vunpack.c.h.b16 %v5471
    %v6546 = vunpack.c.l.b16 %v5472
    %v6547 = vunpack.c.h.b16 %v5472
    %v6548 = vunpack.c.l.b16 %v5473
    %v6549 = vunpack.c.h.b16 %v5473
    %v6550 = vunpack.c.l.b16 %v5474
    %v6551 = vunpack.c.h.b16 %v5474
    %v6552 = vunpack.c.l.b16 %v5475
    %v6553 = vunpack.c.h.b16 %v5475
    %v6554 = vunpack.c.l.b16 %v5476
    %v6555 = vunpack.c.h.b16 %v5476
    %v6556 = vunpack.c.l.b16 %v5477
    %v6557 = vunpack.c.h.b16 %v5477
    %v6558 = vunpack.c.l.b16 %v5478
    %v6559 = vunpack.c.h.b16 %v5478
    %v6560 = vunpack.c.l.b16 %v5479
    %v6561 = vunpack.c.h.b16 %v5479
    %v6562 = vunpack.c.l.b16 %v5480
    %v6563 = vunpack.c.h.b16 %v5480
    %v6564 = vunpack.c.l.b16 %v5481
    %v6565 = vunpack.c.h.b16 %v5481
    %v6566 = vunpack.c.l.b16 %v5482
    %v6567 = vunpack.c.h.b16 %v5482
    %v6568 = vunpack.c.l.b16 %v5483
    %v6569 = vunpack.c.h.b16 %v5483
    %v6570 = vunpack.c.l.b16 %v5484
    %v6571 = vunpack.c.h.b16 %v5484
    %v6572 = vunpack.c.l.b16 %v5485
    %v6573 = vunpack.c.h.b16 %v5485
    %v6574 = vunpack.c.l.b16 %v5486
    %v6575 = vunpack.c.h.b16 %v5486
    %v6576 = vunpack.c.l.b16 %v5487
    %v6577 = vunpack.c.h.b16 %v5487
    %v6578 = vunpack.c.l.b16 %v5488
    %v6579 = vunpack.c.h.b16 %v5488
    %v6580 = vunpack.c.l.b16 %v5489
    %v6581 = vunpack.c.h.b16 %v5489
    %v6582 = vunpack.c.l.b16 %v5490
    %v6583 = vunpack.c.h.b16 %v5490
    %v6584 = vunpack.c.l.b16 %v5491
    %v6585 = vunpack.c.h.b16 %v5491
    %v6586 = vunpack.c.l.b16 %v5492
    %v6587 = vunpack.c.h.b16 %v5492
    %v6588 = vunpack.c.l.b16 %v5493
    %v6589 = vunpack.c.h.b16 %v5493
    %v6590 = vunpack.c.l.b16 %v5494
    %v6591 = vunpack.c.h.b16 %v5494
    %v6592 = vunpack.c.l.b16 %v5495
    %v6593 = vunpack.c.h.b16 %v5495
    %v6594 = vunpack.c.l.b16 %v5496
    %v6595 = vunpack.c.h.b16 %v5496
    %v6596 = vunpack.c.l.b16 %v5497
    %v6597 = vunpack.c.h.b16 %v5497
    %v6598 = vunpack.c.l.b16 %v5498
    %v6599 = vunpack.c.h.b16 %v5498
    %v6600 = vunpack.c.l.b16 %v5499
    %v6601 = vunpack.c.h.b16 %v5499
    %v6602 = vunpack.c.l.b16 %v5500
    %v6603 = vunpack.c.h.b16 %v5500
    %v6604 = vunpack.c.l.b16 %v5501
    %v6605 = vunpack.c.h.b16 %v5501
    %v6606 = vunpack.c.l.b16 %v5502
    %v6607 = vunpack.c.h.b16 %v5502
    %v6608 = vunpack.c.l.b16 %v5503
    %v6609 = vunpack.c.h.b16 %v5503
    %v6610 = vunpack.c.l.b16 %v5504
    %v6611 = vunpack.c.h.b16 %v5504
    %v6612 = vunpack.c.l.b16 %v5505
    %v6613 = vunpack.c.h.b16 %v5505
    %v6614 = vunpack.c.l.b16 %v5506
    %v6615 = vunpack.c.h.b16 %v5506
    %v6616 = vunpack.c.l.b16 %v5507
    %v6617 = vunpack.c.h.b16 %v5507
    %v6618 = vunpack.c.l.b16 %v5508
    %v6619 = vunpack.c.h.b16 %v5508
    %v6620 = vunpack.c.l.b16 %v5509
    %v6621 = vunpack.c.h.b16 %v5509
    %v6622 = vunpack.c.l.b16 %v5510
    %v6623 = vunpack.c.h.b16 %v5510
    %v6624 = vunpack.c.l.b16 %v5511
    %v6625 = vunpack.c.h.b16 %v5511
    %v6626 = vunpack.c.l.b16 %v5512
    %v6627 = vunpack.c.h.b16 %v5512
    %v6628 = vunpack.c.l.b16 %v5513
    %v6629 = vunpack.c.h.b16 %v5513
    %v6630 = vunpack.c.l.b16 %v5514
    %v6631 = vunpack.c.h.b16 %v5514
    %v6632 = vunpack.c.l.b16 %v5515
    %v6633 = vunpack.c.h.b16 %v5515
    %v6634 = vunpack.c.l.b16 %v5516
    %v6635 = vunpack.c.h.b16 %v5516
    %v6636 = vunpack.c.l.b16 %v5517
    %v6637 = vunpack.c.h.b16 %v5517
    %v6638 = vunpack.c.l.b16 %v5518
    %v6639 = vunpack.c.h.b16 %v5518
    %v6640 = vunpack.c.l.b16 %v5519
    %v6641 = vunpack.c.h.b16 %v5519
    %v6642 = vunpack.c.l.b16 %v5520
    %v6643 = vunpack.c.h.b16 %v5520
    %v6644 = vunpack.c.l.b16 %v5521
    %v6645 = vunpack.c.h.b16 %v5521
    %v6646 = vunpack.c.l.b16 %v5522
    %v6647 = vunpack.c.h.b16 %v5522
    %v6648 = vunpack.c.l.b16 %v5523
    %v6649 = vunpack.c.h.b16 %v5523
    %v6650 = vunpack.c.l.b16 %v5524
    %v6651 = vunpack.c.h.b16 %v5524
    %v6652 = vunpack.c.l.b16 %v5525
    %v6653 = vunpack.c.h.b16 %v5525
    %v6654 = vunpack.c.l.b16 %v5526
    %v6655 = vunpack.c.h.b16 %v5526
    %v6656 = vunpack.c.l.b16 %v5527
    %v6657 = vunpack.c.h.b16 %v5527
    %v6658 = vunpack.c.l.b16 %v5528
    %v6659 = vunpack.c.h.b16 %v5528
    %v6660 = vunpack.c.l.b16 %v5529
    %v6661 = vunpack.c.h.b16 %v5529
    %v6662 = vunpack.c.l.b16 %v5530
    %v6663 = vunpack.c.h.b16 %v5530
    %v6664 = vunpack.c.l.b16 %v5531
    %v6665 = vunpack.c.h.b16 %v5531
    %v6666 = vunpack.c.l.b16 %v5532
    %v6667 = vunpack.c.h.b16 %v5532
    %v6668 = vunpack.c.l.b16 %v5533
    %v6669 = vunpack.c.h.b16 %v5533
    %v6670 = vunpack.c.l.b16 %v5534
    %v6671 = vunpack.c.h.b16 %v5534
    %v6672 = vunpack.c.l.b16 %v5535
    %v6673 = vunpack.c.h.b16 %v5535
    %v6674 = vunpack.c.l.b16 %v5536
    %v6675 = vunpack.c.h.b16 %v5536
    %v6676 = vunpack.c.l.b16 %v5537
    %v6677 = vunpack.c.h.b16 %v5537
    %v6678 = vunpack.c.l.b16 %v5538
    %v6679 = vunpack.c.h.b16 %v5538
    %v6680 = vunpack.c.l.b16 %v5539
    %v6681 = vunpack.c.h.b16 %v5539
    %v6682 = vunpack.c.l.b16 %v5540
    %v6683 = vunpack.c.h.b16 %v5540
    %v6684 = vunpack.c.l.b16 %v5541
    %v6685 = vunpack.c.h.b16 %v5541
    %v6686 = vunpack.c.l.b16 %v5542
    %v6687 = vunpack.c.h.b16 %v5542
    %v6688 = vunpack.c.l.b16 %v5543
    %v6689 = vunpack.c.h.b16 %v5543
    %v6690 = vunpack.c.l.b16 %v5544
    %v6691 = vunpack.c.h.b16 %v5544
    %v6692 = vunpack.c.l.b16 %v5545
    %v6693 = vunpack.c.h.b16 %v5545
    %v6694 = vunpack.c.l.b16 %v5546
    %v6695 = vunpack.c.h.b16 %v5546
    %v6696 = vunpack.c.l.b16 %v5547
    %v6697 = vunpack.c.h.b16 %v5547
    %v6698 = vunpack.c.l.b16 %v5548
    %v6699 = vunpack.c.h.b16 %v5548
    %v6700 = vunpack.c.l.b16 %v5549
    %v6701 = vunpack.c.h.b16 %v5549
    %v6702 = vunpack.c.l.b16 %v5550
    %v6703 = vunpack.c.h.b16 %v5550
    %v6704 = vunpack.c.l.b16 %v5551
    %v6705 = vunpack.c.h.b16 %v5551
    %v6706 = vunpack.c.l.b16 %v5552
    %v6707 = vunpack.c.h.b16 %v5552
    %v6708 = vunpack.c.l.b16 %v5553
    %v6709 = vunpack.c.h.b16 %v5553
    %v6710 = vunpack.c.l.b16 %v5554
    %v6711 = vunpack.c.h.b16 %v5554
    %v6712 = vunpack.c.l.b16 %v5555
    %v6713 = vunpack.c.h.b16 %v5555
    %v6714 = vunpack.c.l.b16 %v5556
    %v6715 = vunpack.c.h.b16 %v5556
    %v6716 = vunpack.c.l.b16 %v5557
    %v6717 = vunpack.c.h.b16 %v5557
    %v6718 = vunpack.c.l.b16 %v5558
    %v6719 = vunpack.c.h.b16 %v5558
    %v6720 = vunpack.c.l.b16 %v5559
    %v6721 = vunpack.c.h.b16 %v5559
    %v6722 = vunpack.c.l.b16 %v5560
    %v6723 = vunpack.c.h.b16 %v5560
    %v6724 = vunpack.c.l.b16 %v5561
    %v6725 = vunpack.c.h.b16 %v5561
    %v6726 = vunpack.c.l.b16 %v5562
    %v6727 = vunpack.c.h.b16 %v5562
    %v6728 = vunpack.c.l.b16 %v5563
    %v6729 = vunpack.c.h.b16 %v5563
    %v6730 = vunpack.c.l.b16 %v5564
    %v6731 = vunpack.c.h.b16 %v5564
    %v6732 = vunpack.c.l.b16 %v5565
    %v6733 = vunpack.c.h.b16 %v5565
    %v6734 = vunpack.c.l.b16 %v5566
    %v6735 = vunpack.c.h.b16 %v5566
    %v6736 = vunpack.c.l.b16 %v5567
    %v6737 = vunpack.c.h.b16 %v5567
    %v6738 = vunpack.c.l.b16 %v5568
    %v6739 = vunpack.c.h.b16 %v5568
    %v6740 = vunpack.c.l.b16 %v5569
    %v6741 = vunpack.c.h.b16 %v5569
    %v6742 = vunpack.c.l.b16 %v5570
    %v6743 = vunpack.c.h.b16 %v5570
    %v6744 = vunpack.c.l.b16 %v5571
    %v6745 = vunpack.c.h.b16 %v5571
    %v6746 = vunpack.c.l.b16 %v5572
    %v6747 = vunpack.c.h.b16 %v5572
    %v6748 = vunpack.c.l.b16 %v5573
    %v6749 = vunpack.c.h.b16 %v5573
    %v6750 = vunpack.c.l.b16 %v5574
    %v6751 = vunpack.c.h.b16 %v5574
    %v6752 = vunpack.c.l.b16 %v5575
    %v6753 = vunpack.c.h.b16 %v5575
    %v6754 = vunpack.c.l.b16 %v5576
    %v6755 = vunpack.c.h.b16 %v5576
    %v6756 = vunpack.c.l.b16 %v5577
    %v6757 = vunpack.c.h.b16 %v5577
    %v6758 = vunpack.c.l.b16 %v5578
    %v6759 = vunpack.c.h.b16 %v5578
    %v6760 = vunpack.c.l.b16 %v5579
    %v6761 = vunpack.c.h.b16 %v5579
    %v6762 = vunpack.c.l.b16 %v5580
    %v6763 = vunpack.c.h.b16 %v5580
    %v6764 = vunpack.c.l.b16 %v5581
    %v6765 = vunpack.c.h.b16 %v5581
    %v6766 = vunpack.c.l.b16 %v5582
    %v6767 = vunpack.c.h.b16 %v5582
    %v6768 = vunpack.c.l.b16 %v5583
    %v6769 = vunpack.c.h.b16 %v5583
    %v6770 = vunpack.c.l.b16 %v5584
    %v6771 = vunpack.c.h.b16 %v5584
    %v6772 = vunpack.c.l.b16 %v5585
    %v6773 = vunpack.c.h.b16 %v5585
    %v6774 = vunpack.c.l.b16 %v5586
    %v6775 = vunpack.c.h.b16 %v5586
    %v6776 = vunpack.c.l.b16 %v5587
    %v6777 = vunpack.c.h.b16 %v5587
    %v6778 = vunpack.c.l.b16 %v5588
    %v6779 = vunpack.c.h.b16 %v5588
    %v6780 = vunpack.c.l.b16 %v5589
    %v6781 = vunpack.c.h.b16 %v5589
    %v6782 = vunpack.c.l.b16 %v5590
    %v6783 = vunpack.c.h.b16 %v5590
    %v6784 = vunpack.c.l.b16 %v5591
    %v6785 = vunpack.c.h.b16 %v5591
    %v6786 = vunpack.c.l.b16 %v5592
    %v6787 = vunpack.c.h.b16 %v5592
    %v6788 = vunpack.c.l.b16 %v5593
    %v6789 = vunpack.c.h.b16 %v5593
    %v6790 = vunpack.c.l.b16 %v5594
    %v6791 = vunpack.c.h.b16 %v5594
    %v6792 = vunpack.c.l.b16 %v5595
    %v6793 = vunpack.c.h.b16 %v5595
    %v6794 = vunpack.c.l.b16 %v5596
    %v6795 = vunpack.c.h.b16 %v5596
    %v6796 = vunpack.c.l.b16 %v5597
    %v6797 = vunpack.c.h.b16 %v5597
    %v6798 = vunpack.c.l.b16 %v5598
    %v6799 = vunpack.c.h.b16 %v5598
    %v6800 = vunpack.c.l.b16 %v5599
    %v6801 = vunpack.c.h.b16 %v5599
    %v6802 = vunpack.c.l.b16 %v5600
    %v6803 = vunpack.c.h.b16 %v5600
    %v6804 = vunpack.c.l.b16 %v5601
    %v6805 = vunpack.c.h.b16 %v5601
    %v6806 = vunpack.c.l.b16 %v5602
    %v6807 = vunpack.c.h.b16 %v5602
    %v6808 = vunpack.c.l.b16 %v5603
    %v6809 = vunpack.c.h.b16 %v5603
    %v6810 = vunpack.c.l.b16 %v5604
    %v6811 = vunpack.c.h.b16 %v5604
    %v6812 = vunpack.c.l.b16 %v5605
    %v6813 = vunpack.c.h.b16 %v5605
    %v6814 = vunpack.c.l.b16 %v5606
    %v6815 = vunpack.c.h.b16 %v5606
    %v6816 = vunpack.c.l.b16 %v5607
    %v6817 = vunpack.c.h.b16 %v5607
    %v6818 = vunpack.c.l.b16 %v5608
    %v6819 = vunpack.c.h.b16 %v5608
    %v6820 = vunpack.c.l.b16 %v5609
    %v6821 = vunpack.c.h.b16 %v5609
    %v6822 = vunpack.c.l.b16 %v5610
    %v6823 = vunpack.c.h.b16 %v5610
    %v6824 = vunpack.c.l.b16 %v5611
    %v6825 = vunpack.c.h.b16 %v5611
    %v6826 = vunpack.c.l.b16 %v5612
    %v6827 = vunpack.c.h.b16 %v5612
    %v6828 = vunpack.c.l.b16 %v5613
    %v6829 = vunpack.c.h.b16 %v5613
    %v6830 = vunpack.c.l.b16 %v5614
    %v6831 = vunpack.c.h.b16 %v5614
    %v6832 = vunpack.c.l.b16 %v5615
    %v6833 = vunpack.c.h.b16 %v5615
    %v6834 = vunpack.c.l.b16 %v5616
    %v6835 = vunpack.c.h.b16 %v5616
    %v6836 = vunpack.c.l.b16 %v5617
    %v6837 = vunpack.c.h.b16 %v5617
    %v6838 = vunpack.c.l.b16 %v5618
    %v6839 = vunpack.c.h.b16 %v5618
    %v6840 = vunpack.c.l.b16 %v5619
    %v6841 = vunpack.c.h.b16 %v5619
    %v6842 = vunpack.c.l.b16 %v5620
    %v6843 = vunpack.c.h.b16 %v5620
    %v6844 = vunpack.c.l.b16 %v5621
    %v6845 = vunpack.c.h.b16 %v5621
    %v6846 = vunpack.c.l.b16 %v5622
    %v6847 = vunpack.c.h.b16 %v5622
    %v6848 = vunpack.c.l.b16 %v5623
    %v6849 = vunpack.c.h.b16 %v5623
    %v6850 = vunpack.c.l.b16 %v5624
    %v6851 = vunpack.c.h.b16 %v5624
    %v6852 = vunpack.c.l.b16 %v5625
    %v6853 = vunpack.c.h.b16 %v5625
    %v6854 = vunpack.c.l.b16 %v5626
    %v6855 = vunpack.c.h.b16 %v5626
    %v6856 = vunpack.c.l.b16 %v5627
    %v6857 = vunpack.c.h.b16 %v5627
    %v6858 = vunpack.c.l.b16 %v5628
    %v6859 = vunpack.c.h.b16 %v5628
    %v6860 = vunpack.c.l.b16 %v5629
    %v6861 = vunpack.c.h.b16 %v5629
    %v6862 = vunpack.c.l.b16 %v5630
    %v6863 = vunpack.c.h.b16 %v5630
    %v6864 = vunpack.c.l.b16 %v5631
    %v6865 = vunpack.c.h.b16 %v5631
    %v6866 = vunpack.c.l.b16 %v5632
    %v6867 = vunpack.c.h.b16 %v5632
    %v6868 = vunpack.c.l.b16 %v5633
    %v6869 = vunpack.c.h.b16 %v5633
    %v6870 = vunpack.c.l.b16 %v5634
    %v6871 = vunpack.c.h.b16 %v5634
    %v6872 = vunpack.c.l.b16 %v5635
    %v6873 = vunpack.c.h.b16 %v5635
    %v6874 = vunpack.c.l.b16 %v5636
    %v6875 = vunpack.c.h.b16 %v5636
    %v6876 = vunpack.c.l.b16 %v5637
    %v6877 = vunpack.c.h.b16 %v5637
    %v6878 = vunpack.c.l.b16 %v5638
    %v6879 = vunpack.c.h.b16 %v5638
    %v6880 = vunpack.c.l.b16 %v5639
    %v6881 = vunpack.c.h.b16 %v5639
    %v6882 = vunpack.c.l.b16 %v5640
    %v6883 = vunpack.c.h.b16 %v5640
    %v6884 = vunpack.c.l.b16 %v5641
    %v6885 = vunpack.c.h.b16 %v5641
    %v6886 = vunpack.c.l.b16 %v5642
    %v6887 = vunpack.c.h.b16 %v5642
    %v6888 = vunpack.c.l.b16 %v5643
    %v6889 = vunpack.c.h.b16 %v5643
    %v6890 = vunpack.c.l.b16 %v5644
    %v6891 = vunpack.c.h.b16 %v5644
    %v6892 = vunpack.c.l.b16 %v5645
    %v6893 = vunpack.c.h.b16 %v5645
    %v6894 = vunpack.c.l.b16 %v5646
    %v6895 = vunpack.c.h.b16 %v5646
    %v6896 = vunpack.c.l.b16 %v5647
    %v6897 = vunpack.c.h.b16 %v5647
    %v6898 = vunpack.c.l.b16 %v5648
    %v6899 = vunpack.c.h.b16 %v5648
    %v6900 = vunpack.c.l.b16 %v5649
    %v6901 = vunpack.c.h.b16 %v5649
    %v6902 = vunpack.c.l.b16 %v5650
    %v6903 = vunpack.c.h.b16 %v5650
    %v6904 = vunpack.c.l.b16 %v5651
    %v6905 = vunpack.c.h.b16 %v5651
    %v6906 = vunpack.c.l.b16 %v5652
    %v6907 = vunpack.c.h.b16 %v5652
    %v6908 = vunpack.c.l.b16 %v5653
    %v6909 = vunpack.c.h.b16 %v5653
    %v6910 = vunpack.c.l.b16 %v5654
    %v6911 = vunpack.c.h.b16 %v5654
    %v6912 = vunpack.c.l.b16 %v5655
    %v6913 = vunpack.c.h.b16 %v5655
    %v6914 = vunpack.c.l.b16 %v5656
    %v6915 = vunpack.c.h.b16 %v5656
    %v6916 = vunpack.c.l.b16 %v5657
    %v6917 = vunpack.c.h.b16 %v5657
    %v6918 = vunpack.c.l.b16 %v5658
    %v6919 = vunpack.c.h.b16 %v5658
    %v6920 = vunpack.c.l.b16 %v5659
    %v6921 = vunpack.c.h.b16 %v5659
    %v6922 = vunpack.c.l.b16 %v5660
    %v6923 = vunpack.c.h.b16 %v5660
    %v6924 = vunpack.c.l.b16 %v5661
    %v6925 = vunpack.c.h.b16 %v5661
    %v6926 = vunpack.c.l.b16 %v5662
    %v6927 = vunpack.c.h.b16 %v5662
    %v6928 = vunpack.c.l.b16 %v5663
    %v6929 = vunpack.c.h.b16 %v5663
    %v6930 = vunpack.c.l.b16 %v5664
    %v6931 = vunpack.c.h.b16 %v5664
    %v6932 = vunpack.c.l.b16 %v5665
    %v6933 = vunpack.c.h.b16 %v5665
    %v6934 = vunpack.c.l.b16 %v5666
    %v6935 = vunpack.c.h.b16 %v5666
    %v6936 = vunpack.c.l.b16 %v5667
    %v6937 = vunpack.c.h.b16 %v5667
    %v6938 = vunpack.c.l.b16 %v5668
    %v6939 = vunpack.c.h.b16 %v5668
    %v6940 = vunpack.c.l.b16 %v5669
    %v6941 = vunpack.c.h.b16 %v5669
    %v6942 = vunpack.c.l.b16 %v5670
    %v6943 = vunpack.c.h.b16 %v5670
    %v6944 = vunpack.c.l.b16 %v5671
    %v6945 = vunpack.c.h.b16 %v5671
    %v6946 = vunpack.c.l.b16 %v5672
    %v6947 = vunpack.c.h.b16 %v5672
    %v6948 = vunpack.c.l.b16 %v5673
    %v6949 = vunpack.c.h.b16 %v5673
    %v6950 = vunpack.c.l.b16 %v5674
    %v6951 = vunpack.c.h.b16 %v5674
    %v6952 = vunpack.c.l.b16 %v5675
    %v6953 = vunpack.c.h.b16 %v5675
    %v6954 = vunpack.c.l.b16 %v5676
    %v6955 = vunpack.c.h.b16 %v5676
    %v6956 = vunpack.c.l.b16 %v5677
    %v6957 = vunpack.c.h.b16 %v5677
    %v6958 = vunpack.c.l.b16 %v5678
    %v6959 = vunpack.c.h.b16 %v5678
    %v6960 = vunpack.c.l.b16 %v5679
    %v6961 = vunpack.c.h.b16 %v5679
    %v6962 = vunpack.c.l.b16 %v5680
    %v6963 = vunpack.c.h.b16 %v5680
    %v6964 = vunpack.c.l.b16 %v5681
    %v6965 = vunpack.c.h.b16 %v5681
    %v6966 = vunpack.c.l.b16 %v5682
    %v6967 = vunpack.c.h.b16 %v5682
    %v6968 = vunpack.c.l.b16 %v5683
    %v6969 = vunpack.c.h.b16 %v5683
    %v6970 = vunpack.c.l.b16 %v5684
    %v6971 = vunpack.c.h.b16 %v5684
    %v6972 = vunpack.c.l.b16 %v5685
    %v6973 = vunpack.c.h.b16 %v5685
    %v6974 = vunpack.c.l.b16 %v5686
    %v6975 = vunpack.c.h.b16 %v5686
    %v6976 = vunpack.c.l.b16 %v5687
    %v6977 = vunpack.c.h.b16 %v5687
    %v6978 = vunpack.c.l.b16 %v5688
    %v6979 = vunpack.c.h.b16 %v5688
    %v6980 = vunpack.c.l.b16 %v5689
    %v6981 = vunpack.c.h.b16 %v5689
    %v6982 = vunpack.c.l.b16 %v5690
    %v6983 = vunpack.c.h.b16 %v5690
    %v6984 = vunpack.c.l.b16 %v5691
    %v6985 = vunpack.c.h.b16 %v5691
    %v6986 = vunpack.c.l.b16 %v5692
    %v6987 = vunpack.c.h.b16 %v5692
    %v6988 = vunpack.c.l.b16 %v5693
    %v6989 = vunpack.c.h.b16 %v5693
    %v6990 = vunpack.c.l.b16 %v5694
    %v6991 = vunpack.c.h.b16 %v5694
    %v6992 = vunpack.c.l.b16 %v5695
    %v6993 = vunpack.c.h.b16 %v5695
    %v6994 = vunpack.c.l.b16 %v5696
    %v6995 = vunpack.c.h.b16 %v5696
    %v6996 = vunpack.c.l.b16 %v5697
    %v6997 = vunpack.c.h.b16 %v5697
    %v6998 = vunpack.c.l.b16 %v5698
    %v6999 = vunpack.c.h.b16 %v5698
    %v7000 = vunpack.c.l.b16 %v5699
    %v7001 = vunpack.c.h.b16 %v5699
    %v7002 = vunpack.c.l.b16 %v5700
    %v7003 = vunpack.c.h.b16 %v5700
    %v7004 = vunpack.c.l.b16 %v5701
    %v7005 = vunpack.c.h.b16 %v5701
    %v7006 = vunpack.c.l.b16 %v5702
    %v7007 = vunpack.c.h.b16 %v5702
    %v7008 = vunpack.c.l.b16 %v5703
    %v7009 = vunpack.c.h.b16 %v5703
    %v7010 = vunpack.c.l.b16 %v5704
    %v7011 = vunpack.c.h.b16 %v5704
    %v7012 = vunpack.c.l.b16 %v5705
    %v7013 = vunpack.c.h.b16 %v5705
    %v7014 = vunpack.c.l.b16 %v5706
    %v7015 = vunpack.c.h.b16 %v5706
    %v7016 = vunpack.c.l.b16 %v5707
    %v7017 = vunpack.c.h.b16 %v5707
    %v7018 = vunpack.c.l.b16 %v5708
    %v7019 = vunpack.c.h.b16 %v5708
    %v7020 = vunpack.c.l.b16 %v5709
    %v7021 = vunpack.c.h.b16 %v5709
    %v7022 = vunpack.c.l.b16 %v5710
    %v7023 = vunpack.c.h.b16 %v5710
    %v7024 = vunpack.c.l.b16 %v5711
    %v7025 = vunpack.c.h.b16 %v5711
    %v7026 = vunpack.c.l.b16 %v5712
    %v7027 = vunpack.c.h.b16 %v5712
    %v7028 = vunpack.c.l.b16 %v5713
    %v7029 = vunpack.c.h.b16 %v5713
    %v7030 = vunpack.c.l.b16 %v5714
    %v7031 = vunpack.c.h.b16 %v5714
    %v7032 = vunpack.c.l.b16 %v5715
    %v7033 = vunpack.c.h.b16 %v5715
    %v7034 = vunpack.c.l.b16 %v5716
    %v7035 = vunpack.c.h.b16 %v5716
    %v7036 = vunpack.c.l.b16 %v5717
    %v7037 = vunpack.c.h.b16 %v5717
    %v7038 = vunpack.c.l.b16 %v5718
    %v7039 = vunpack.c.h.b16 %v5718
    %v7040 = vunpack.c.l.b16 %v5719
    %v7041 = vunpack.c.h.b16 %v5719
    %v7042 = vunpack.c.l.b16 %v5720
    %v7043 = vunpack.c.h.b16 %v5720
    %v7044 = vunpack.c.l.b16 %v5721
    %v7045 = vunpack.c.h.b16 %v5721
    %v7046 = vunpack.c.l.b16 %v5722
    %v7047 = vunpack.c.h.b16 %v5722
    %v7048 = vunpack.c.l.b16 %v5723
    %v7049 = vunpack.c.h.b16 %v5723
    %v7050 = vunpack.c.l.b16 %v5724
    %v7051 = vunpack.c.h.b16 %v5724
    %v7052 = vunpack.c.l.b16 %v5725
    %v7053 = vunpack.c.h.b16 %v5725
    %v7054 = vunpack.c.l.b16 %v5726
    %v7055 = vunpack.c.h.b16 %v5726
    %v7056 = vunpack.c.l.b16 %v5727
    %v7057 = vunpack.c.h.b16 %v5727
    %v7058 = vunpack.c.l.b16 %v5728
    %v7059 = vunpack.c.h.b16 %v5728
    %v7060 = vunpack.c.l.b16 %v5729
    %v7061 = vunpack.c.h.b16 %v5729
    %v7062 = vunpack.c.l.b16 %v5730
    %v7063 = vunpack.c.h.b16 %v5730
    %v7064 = vunpack.c.l.b16 %v5731
    %v7065 = vunpack.c.h.b16 %v5731
    %v7066 = vunpack.c.l.b16 %v5732
    %v7067 = vunpack.c.h.b16 %v5732
    %v7068 = vunpack.c.l.b16 %v5733
    %v7069 = vunpack.c.h.b16 %v5733
    %v7070 = vunpack.c.l.b16 %v5734
    %v7071 = vunpack.c.h.b16 %v5734
    %v7072 = vunpack.c.l.b16 %v5735
    %v7073 = vunpack.c.h.b16 %v5735
    %v7074 = vunpack.c.l.b16 %v5736
    %v7075 = vunpack.c.h.b16 %v5736
    %v7076 = vunpack.c.l.b16 %v5737
    %v7077 = vunpack.c.h.b16 %v5737
    %v7078 = vunpack.c.l.b16 %v5738
    %v7079 = vunpack.c.h.b16 %v5738
    %v7080 = vunpack.c.l.b16 %v5739
    %v7081 = vunpack.c.h.b16 %v5739
    %v7082 = vunpack.c.l.b16 %v5740
    %v7083 = vunpack.c.h.b16 %v5740
    %v7084 = vunpack.c.l.b16 %v5741
    %v7085 = vunpack.c.h.b16 %v5741
    %v7086 = vunpack.c.l.b16 %v5742
    %v7087 = vunpack.c.h.b16 %v5742
    %v7088 = vunpack.c.l.b16 %v5743
    %v7089 = vunpack.c.h.b16 %v5743
    %v7090 = vunpack.c.l.b16 %v5744
    %v7091 = vunpack.c.h.b16 %v5744
    %v7092 = vunpack.c.l.b16 %v5745
    %v7093 = vunpack.c.h.b16 %v5745
    %v7094 = vunpack.c.l.b16 %v5746
    %v7095 = vunpack.c.h.b16 %v5746
    %v7096 = vunpack.c.l.b16 %v5747
    %v7097 = vunpack.c.h.b16 %v5747
    %v7098 = vunpack.c.l.b16 %v5748
    %v7099 = vunpack.c.h.b16 %v5748
    %v7100 = vunpack.c.l.b16 %v5749
    %v7101 = vunpack.c.h.b16 %v5749
    %v7102 = vunpack.c.l.b16 %v5750
    %v7103 = vunpack.c.h.b16 %v5750
    %v7104 = vunpack.c.l.b16 %v5751
    %v7105 = vunpack.c.h.b16 %v5751
    %v7106 = vunpack.c.l.b16 %v5752
    %v7107 = vunpack.c.h.b16 %v5752
    %v7108 = vunpack.c.l.b16 %v5753
    %v7109 = vunpack.c.h.b16 %v5753
    %v7110 = vunpack.c.l.b16 %v5754
    %v7111 = vunpack.c.h.b16 %v5754
    %v7112 = vunpack.c.l.b16 %v5755
    %v7113 = vunpack.c.h.b16 %v5755
    %v7114 = vunpack.c.l.b16 %v5756
    %v7115 = vunpack.c.h.b16 %v5756
    %v7116 = vunpack.c.l.b16 %v5757
    %v7117 = vunpack.c.h.b16 %v5757
    %v7118 = vunpack.c.l.b16 %v5758
    %v7119 = vunpack.c.h.b16 %v5758
    %v7120 = vunpack.c.l.b16 %v5759
    %v7121 = vunpack.c.h.b16 %v5759
    %v7122 = vunpack.c.l.b16 %v5760
    %v7123 = vunpack.c.h.b16 %v5760
    %v7124 = vunpack.c.l.b16 %v5761
    %v7125 = vunpack.c.h.b16 %v5761
    %v7126 = vunpack.c.l.b16 %v5762
    %v7127 = vunpack.c.h.b16 %v5762
    %v7128 = vunpack.c.l.b16 %v5763
    %v7129 = vunpack.c.h.b16 %v5763
    %v7130 = vunpack.c.l.b16 %v5764
    %v7131 = vunpack.c.h.b16 %v5764
    %v7132 = vunpack.c.l.b16 %v5765
    %v7133 = vunpack.c.h.b16 %v5765
    %v7134 = vunpack.c.l.b16 %v5766
    %v7135 = vunpack.c.h.b16 %v5766
    %v7136 = vunpack.c.l.b16 %v5767
    %v7137 = vunpack.c.h.b16 %v5767
    %v7138 = vunpack.c.l.b16 %v5768
    %v7139 = vunpack.c.h.b16 %v5768
    %v7140 = vunpack.c.l.b16 %v5769
    %v7141 = vunpack.c.h.b16 %v5769
    %v7142 = vunpack.c.l.b16 %v5770
    %v7143 = vunpack.c.h.b16 %v5770
    %v7144 = vunpack.c.l.b16 %v5771
    %v7145 = vunpack.c.h.b16 %v5771
    %v7146 = vunpack.c.l.b16 %v5772
    %v7147 = vunpack.c.h.b16 %v5772
    %v7148 = vunpack.c.l.b16 %v5773
    %v7149 = vunpack.c.h.b16 %v5773
    %v7150 = vunpack.c.l.b16 %v5774
    %v7151 = vunpack.c.h.b16 %v5774
    %v7152 = vunpack.c.l.b16 %v5775
    %v7153 = vunpack.c.h.b16 %v5775
    %v7154 = vunpack.c.l.b16 %v5776
    %v7155 = vunpack.c.h.b16 %v5776
    %v7156 = vunpack.c.l.b16 %v5777
    %v7157 = vunpack.c.h.b16 %v5777
    %v7158 = vunpack.c.l.b16 %v5778
    %v7159 = vunpack.c.h.b16 %v5778
    %v7160 = vunpack.c.l.b16 %v5779
    %v7161 = vunpack.c.h.b16 %v5779
    %v7162 = vunpack.c.l.b16 %v5780
    %v7163 = vunpack.c.h.b16 %v5780
    %v7164 = vunpack.c.l.b16 %v5781
    %v7165 = vunpack.c.h.b16 %v5781
    %v7166 = vunpack.c.l.b16 %v5782
    %v7167 = vunpack.c.h.b16 %v5782
    %v7168 = vunpack.c.l.b16 %v5783
    %v7169 = vunpack.c.h.b16 %v5783
    %v7170 = vunpack.c.l.b16 %v5784
    %v7171 = vunpack.c.h.b16 %v5784
    %v7172 = vunpack.c.l.b16 %v5785
    %v7173 = vunpack.c.h.b16 %v5785
    %v7174 = vunpack.c.l.b16 %v5786
    %v7175 = vunpack.c.h.b16 %v5786
    %v7176 = vunpack.c.l.b16 %v5787
    %v7177 = vunpack.c.h.b16 %v5787
    %v7178 = vunpack.c.l.b16 %v5788
    %v7179 = vunpack.c.h.b16 %v5788
    %v7180 = vunpack.c.l.b16 %v5789
    %v7181 = vunpack.c.h.b16 %v5789
    %v7182 = vunpack.c.l.b16 %v5790
    %v7183 = vunpack.c.h.b16 %v5790
    %v7184 = vunpack.c.l.b16 %v5791
    %v7185 = vunpack.c.h.b16 %v5791
    %v7186 = vunpack.c.l.b16 %v5792
    %v7187 = vunpack.c.h.b16 %v5792
    %v7188 = vunpack.c.l.b16 %v5793
    %v7189 = vunpack.c.h.b16 %v5793
    %v7190 = vunpack.c.l.b16 %v5794
    %v7191 = vunpack.c.h.b16 %v5794
    %v7192 = vunpack.c.l.b16 %v5795
    %v7193 = vunpack.c.h.b16 %v5795
    %v7194 = vunpack.c.l.b16 %v5796
    %v7195 = vunpack.c.h.b16 %v5796
    %v7196 = vunpack.c.l.b16 %v5797
    %v7197 = vunpack.c.h.b16 %v5797
    %v7198 = vunpack.c.l.b16 %v5798
    %v7199 = vunpack.c.h.b16 %v5798
    %v7200 = vunpack.c.l.b16 %v5799
    %v7201 = vunpack.c.h.b16 %v5799
    %v7202 = vunpack.c.l.b16 %v5800
    %v7203 = vunpack.c.h.b16 %v5800
    %v7204 = vunpack.c.l.b16 %v5801
    %v7205 = vunpack.c.h.b16 %v5801
    %v7206 = vunpack.c.l.b16 %v5802
    %v7207 = vunpack.c.h.b16 %v5802
    %v7208 = vunpack.c.l.b16 %v5803
    %v7209 = vunpack.c.h.b16 %v5803
    %v7210 = vunpack.c.l.b16 %v5804
    %v7211 = vunpack.c.h.b16 %v5804
    %v7212 = vunpack.c.l.b16 %v5805
    %v7213 = vunpack.c.h.b16 %v5805
    %v7214 = vunpack.c.l.b16 %v5806
    %v7215 = vunpack.c.h.b16 %v5806
    %v7216 = vunpack.c.l.b16 %v5807
    %v7217 = vunpack.c.h.b16 %v5807
    %v7218 = vunpack.c.l.b16 %v5808
    %v7219 = vunpack.c.h.b16 %v5808
    %v7220 = vunpack.c.l.b16 %v5809
    %v7221 = vunpack.c.h.b16 %v5809
    %v7222 = vunpack.c.l.b16 %v5810
    %v7223 = vunpack.c.h.b16 %v5810
    %v7224 = vunpack.c.l.b16 %v5811
    %v7225 = vunpack.c.h.b16 %v5811
    %v7226 = vunpack.c.l.b16 %v5812
    %v7227 = vunpack.c.h.b16 %v5812
    %v7228 = vunpack.c.l.b16 %v5813
    %v7229 = vunpack.c.h.b16 %v5813
    %v7230 = vunpack.c.l.b16 %v5814
    %v7231 = vunpack.c.h.b16 %v5814
    %v7232 = vunpack.c.l.b16 %v5815
    %v7233 = vunpack.c.h.b16 %v5815
    %v7234 = vunpack.c.l.b16 %v5816
    %v7235 = vunpack.c.h.b16 %v5816
    %v7236 = vunpack.c.l.b16 %v5817
    %v7237 = vunpack.c.h.b16 %v5817
    %v7238 = vunpack.c.l.b16 %v5818
    %v7239 = vunpack.c.h.b16 %v5818
    %v7240 = vunpack.c.l.b16 %v5819
    %v7241 = vunpack.c.h.b16 %v5819
    %v7242 = vunpack.c.l.b16 %v5820
    %v7243 = vunpack.c.h.b16 %v5820
    %v7244 = vunpack.c.l.b16 %v5821
    %v7245 = vunpack.c.h.b16 %v5821
    %v7246 = vunpack.c.l.b16 %v5822
    %v7247 = vunpack.c.h.b16 %v5822
    %v7248 = vunpack.c.l.b16 %v5823
    %v7249 = vunpack.c.h.b16 %v5823
    %v7250 = vunpack.c.l.b16 %v5824
    %v7251 = vunpack.c.h.b16 %v5824
    %v7252 = vunpack.c.l.b16 %v5825
    %v7253 = vunpack.c.h.b16 %v5825
    %v7254 = vunpack.c.l.b16 %v5826
    %v7255 = vunpack.c.h.b16 %v5826
    %v7256 = vunpack.c.l.b16 %v5827
    %v7257 = vunpack.c.h.b16 %v5827
    %v7258 = vunpack.c.l.b16 %v5828
    %v7259 = vunpack.c.h.b16 %v5828
    %v7260 = vunpack.c.l.b16 %v5829
    %v7261 = vunpack.c.h.b16 %v5829
    %v7262 = vunpack.c.l.b16 %v5830
    %v7263 = vunpack.c.h.b16 %v5830
    %v7264 = vunpack.c.l.b16 %v5831
    %v7265 = vunpack.c.h.b16 %v5831
    %v7266 = vunpack.c.l.b16 %v5832
    %v7267 = vunpack.c.h.b16 %v5832
    %v7268 = vunpack.c.l.b16 %v5833
    %v7269 = vunpack.c.h.b16 %v5833
    %v7270 = vunpack.c.l.b16 %v5834
    %v7271 = vunpack.c.h.b16 %v5834
    %v7272 = vunpack.c.l.b16 %v5835
    %v7273 = vunpack.c.h.b16 %v5835
    %v7274 = vunpack.c.l.b16 %v5836
    %v7275 = vunpack.c.h.b16 %v5836
    %v7276 = vunpack.c.l.b16 %v5837
    %v7277 = vunpack.c.h.b16 %v5837
    %v7278 = vunpack.c.l.b16 %v5838
    %v7279 = vunpack.c.h.b16 %v5838
    %v7280 = vunpack.c.l.b16 %v5839
    %v7281 = vunpack.c.h.b16 %v5839
    %v7282 = vunpack.c.l.b16 %v5840
    %v7283 = vunpack.c.h.b16 %v5840
    %v7284 = vunpack.c.l.b16 %v5841
    %v7285 = vunpack.c.h.b16 %v5841
    %v7286 = vunpack.c.l.b16 %v5842
    %v7287 = vunpack.c.h.b16 %v5842
    %v7288 = vunpack.c.l.b16 %v5843
    %v7289 = vunpack.c.h.b16 %v5843
    %v7290 = vunpack.c.l.b16 %v5844
    %v7291 = vunpack.c.h.b16 %v5844
    %v7292 = vunpack.c.l.b16 %v5845
    %v7293 = vunpack.c.h.b16 %v5845
    %v7294 = vunpack.c.l.b16 %v5846
    %v7295 = vunpack.c.h.b16 %v5846
    %v7296 = vunpack.c.l.b16 %v5847
    %v7297 = vunpack.c.h.b16 %v5847
    %v7298 = vunpack.c.l.b16 %v5848
    %v7299 = vunpack.c.h.b16 %v5848
    %v7300 = vunpack.c.l.b16 %v5849
    %v7301 = vunpack.c.h.b16 %v5849
    %v7302 = vunpack.c.l.b16 %v5850
    %v7303 = vunpack.c.h.b16 %v5850
    %v7304 = vunpack.c.l.b16 %v5851
    %v7305 = vunpack.c.h.b16 %v5851
    %v7306 = vunpack.c.l.b16 %v5852
    %v7307 = vunpack.c.h.b16 %v5852
    %v7308 = vunpack.c.l.b16 %v5853
    %v7309 = vunpack.c.h.b16 %v5853
    %v7310 = vunpack.c.l.b16 %v5854
    %v7311 = vunpack.c.h.b16 %v5854
    %v7312 = vunpack.c.l.b16 %v5855
    %v7313 = vunpack.c.h.b16 %v5855
    %v7314 = vunpack.c.l.b16 %v5856
    %v7315 = vunpack.c.h.b16 %v5856
    %v7316 = vunpack.c.l.b16 %v5857
    %v7317 = vunpack.c.h.b16 %v5857
    %v7318 = vunpack.c.l.b16 %v5858
    %v7319 = vunpack.c.h.b16 %v5858
    %v7320 = vunpack.c.l.b16 %v5859
    %v7321 = vunpack.c.h.b16 %v5859
    %v7322 = vunpack.c.l.b16 %v5860
    %v7323 = vunpack.c.h.b16 %v5860
    %v7324 = vunpack.c.l.b16 %v5861
    %v7325 = vunpack.c.h.b16 %v5861
    %v7326 = vunpack.c.l.b16 %v5862
    %v7327 = vunpack.c.h.b16 %v5862
    %v7328 = vunpack.c.l.b16 %v5863
    %v7329 = vunpack.c.h.b16 %v5863
    %v7330 = vunpack.c.l.b16 %v5864
    %v7331 = vunpack.c.h.b16 %v5864
    %v7332 = vunpack.c.l.b16 %v5865
    %v7333 = vunpack.c.h.b16 %v5865
    %v7334 = vunpack.c.l.b16 %v5866
    %v7335 = vunpack.c.h.b16 %v5866
    %v7336 = vunpack.c.l.b16 %v5867
    %v7337 = vunpack.c.h.b16 %v5867
    %v7338 = vunpack.c.l.b16 %v5868
    %v7339 = vunpack.c.h.b16 %v5868
    %v7340 = vunpack.c.l.b16 %v5869
    %v7341 = vunpack.c.h.b16 %v5869
    %v7342 = vunpack.c.l.b16 %v5870
    %v7343 = vunpack.c.h.b16 %v5870
    %v7344 = vunpack.c.l.b16 %v5871
    %v7345 = vunpack.c.h.b16 %v5871
    %v7346 = vunpack.c.l.b16 %v5872
    %v7347 = vunpack.c.h.b16 %v5872
    %v7348 = vunpack.c.l.b16 %v5873
    %v7349 = vunpack.c.h.b16 %v5873
    %v7350 = vunpack.c.l.b16 %v5874
    %v7351 = vunpack.c.h.b16 %v5874
    %v7352 = vunpack.c.l.b16 %v5875
    %v7353 = vunpack.c.h.b16 %v5875
    %v7354 = vunpack.c.l.b16 %v5876
    %v7355 = vunpack.c.h.b16 %v5876
    %v7356 = vunpack.c.l.b16 %v5877
    %v7357 = vunpack.c.h.b16 %v5877
    %v7358 = vunpack.c.l.b16 %v5878
    %v7359 = vunpack.c.h.b16 %v5878
    %v7360 = vunpack.c.l.b16 %v5879
    %v7361 = vunpack.c.h.b16 %v5879
    %v7362 = vunpack.c.l.b16 %v5880
    %v7363 = vunpack.c.h.b16 %v5880
    %v7364 = vunpack.c.l.b16 %v5881
    %v7365 = vunpack.c.h.b16 %v5881
    %v7366 = vunpack.c.l.b16 %v5882
    %v7367 = vunpack.c.h.b16 %v5882
    %v7368 = vunpack.c.l.b16 %v5883
    %v7369 = vunpack.c.h.b16 %v5883
    %v7370 = vunpack.c.l.b16 %v5884
    %v7371 = vunpack.c.h.b16 %v5884
    %v7372 = vunpack.c.l.b16 %v5885
    %v7373 = vunpack.c.h.b16 %v5885
    %v7374 = vunpack.c.l.b16 %v5886
    %v7375 = vunpack.c.h.b16 %v5886
    %v7376 = vunpack.c.l.b16 %v5887
    %v7377 = vunpack.c.h.b16 %v5887
    %v7378 = vunpack.c.l.b16 %v5888
    %v7379 = vunpack.c.h.b16 %v5888
    %v7380 = vunpack.c.l.b16 %v5889
    %v7381 = vunpack.c.h.b16 %v5889
    %v7382 = vunpack.c.l.b16 %v5890
    %v7383 = vunpack.c.h.b16 %v5890
    %v7384 = vunpack.c.l.b16 %v5891
    %v7385 = vunpack.c.h.b16 %v5891
    %v7386 = vunpack.c.l.b16 %v5892
    %v7387 = vunpack.c.h.b16 %v5892
    %v7388 = vunpack.c.l.b16 %v5893
    %v7389 = vunpack.c.h.b16 %v5893
    %v7390 = vunpack.c.l.b16 %v5894
    %v7391 = vunpack.c.h.b16 %v5894
    %v7392 = vunpack.c.l.b16 %v5895
    %v7393 = vunpack.c.h.b16 %v5895
    %v7394 = vunpack.c.l.b16 %v5896
    %v7395 = vunpack.c.h.b16 %v5896
    %v7396 = vunpack.c.l.b16 %v5897
    %v7397 = vunpack.c.h.b16 %v5897
    %v7398 = vunpack.c.l.b16 %v5898
    %v7399 = vunpack.c.h.b16 %v5898
    %v7400 = vunpack.c.l.b16 %v5899
    %v7401 = vunpack.c.h.b16 %v5899
    %v7402 = vunpack.c.l.b16 %v5900
    %v7403 = vunpack.c.h.b16 %v5900
    %v7404 = vunpack.c.l.b16 %v5901
    %v7405 = vunpack.c.h.b16 %v5901
    %v7406 = vunpack.c.l.b16 %v5902
    %v7407 = vunpack.c.h.b16 %v5902
    %v7408 = vunpack.c.l.b16 %v5903
    %v7409 = vunpack.c.h.b16 %v5903
    %v7410 = vunpack.c.l.b16 %v5904
    %v7411 = vunpack.c.h.b16 %v5904
    %v7412 = vunpack.c.l.b16 %v5905
    %v7413 = vunpack.c.h.b16 %v5905
    %v7414 = vunpack.c.l.b16 %v5906
    %v7415 = vunpack.c.h.b16 %v5906
    %v7416 = vunpack.c.l.b16 %v5907
    %v7417 = vunpack.c.h.b16 %v5907
    %v7418 = vunpack.c.l.b16 %v5908
    %v7419 = vunpack.c.h.b16 %v5908
    %v7420 = vunpack.c.l.b16 %v5909
    %v7421 = vunpack.c.h.b16 %v5909
    %v7422 = vunpack.c.l.b16 %v5910
    %v7423 = vunpack.c.h.b16 %v5910
    %v7424 = vunpack.c.l.b16 %v5911
    %v7425 = vunpack.c.h.b16 %v5911
    %v7426 = vunpack.c.l.b16 %v5912
    %v7427 = vunpack.c.h.b16 %v5912
    %v7428 = vunpack.c.l.b16 %v5913
    %v7429 = vunpack.c.h.b16 %v5913
    %v7430 = vunpack.c.l.b16 %v5914
    %v7431 = vunpack.c.h.b16 %v5914
    %v7432 = vunpack.c.l.b16 %v5915
    %v7433 = vunpack.c.h.b16 %v5915
    %v7434 = vunpack.c.l.b16 %v5916
    %v7435 = vunpack.c.h.b16 %v5916
    %v7436 = vunpack.c.l.b16 %v5917
    %v7437 = vunpack.c.h.b16 %v5917
    %v7438 = vunpack.c.l.b16 %v5918
    %v7439 = vunpack.c.h.b16 %v5918
    %v7440 = vunpack.c.l.b16 %v5919
    %v7441 = vunpack.c.h.b16 %v5919
    %v7442 = vunpack.c.l.b16 %v5920
    %v7443 = vunpack.c.h.b16 %v5920
    %v7444 = vunpack.c.l.b16 %v5921
    %v7445 = vunpack.c.h.b16 %v5921
    %v7446 = vunpack.c.l.b16 %v5922
    %v7447 = vunpack.c.h.b16 %v5922
    %v7448 = vunpack.c.l.b16 %v5923
    %v7449 = vunpack.c.h.b16 %v5923
    %v7450 = vunpack.c.l.b16 %v5924
    %v7451 = vunpack.c.h.b16 %v5924
    %v7452 = vunpack.c.l.b16 %v5925
    %v7453 = vunpack.c.h.b16 %v5925
    %v7454 = vunpack.c.l.b16 %v5926
    %v7455 = vunpack.c.h.b16 %v5926
    %v7456 = vunpack.c.l.b16 %v5927
    %v7457 = vunpack.c.h.b16 %v5927
    %v7458 = vunpack.c.l.b16 %v5928
    %v7459 = vunpack.c.h.b16 %v5928
    %v7460 = vunpack.c.l.b16 %v5929
    %v7461 = vunpack.c.h.b16 %v5929
    %v7462 = vunpack.c.l.b16 %v5930
    %v7463 = vunpack.c.h.b16 %v5930
    %v7464 = vunpack.c.l.b16 %v5931
    %v7465 = vunpack.c.h.b16 %v5931
    %v7466 = vunpack.c.l.b16 %v5932
    %v7467 = vunpack.c.h.b16 %v5932
    %v7468 = vunpack.c.l.b16 %v5933
    %v7469 = vunpack.c.h.b16 %v5933
    %v7470 = vpack.c.b16 %v6450, %v6446
    %v7471 = vpack.c.b16 %v6451, %v6447
    %v7472 = vpack.c.b16 %v6452, %v6448
    %v7473 = vpack.c.b16 %v6453, %v6449
    %v7474 = vpack.c.b16 %v6458, %v6454
    %v7475 = vpack.c.b16 %v6459, %v6455
    %v7476 = vpack.c.b16 %v6460, %v6456
    %v7477 = vpack.c.b16 %v6461, %v6457
    %v7478 = vpack.c.b16 %v6466, %v6462
    %v7479 = vpack.c.b16 %v6467, %v6463
    %v7480 = vpack.c.b16 %v6468, %v6464
    %v7481 = vpack.c.b16 %v6469, %v6465
    %v7482 = vpack.c.b16 %v6474, %v6470
    %v7483 = vpack.c.b16 %v6475, %v6471
    %v7484 = vpack.c.b16 %v6476, %v6472
    %v7485 = vpack.c.b16 %v6477, %v6473
    %v7486 = vpack.c.b16 %v6482, %v6478
    %v7487 = vpack.c.b16 %v6483, %v6479
    %v7488 = vpack.c.b16 %v6484, %v6480
    %v7489 = vpack.c.b16 %v6485, %v6481
    %v7490 = vpack.c.b16 %v6490, %v6486
    %v7491 = vpack.c.b16 %v6491, %v6487
    %v7492 = vpack.c.b16 %v6492, %v6488
    %v7493 = vpack.c.b16 %v6493, %v6489
    %v7494 = vpack.c.b16 %v6498, %v6494
    %v7495 = vpack.c.b16 %v6499, %v6495
    %v7496 = vpack.c.b16 %v6500, %v6496
    %v7497 = vpack.c.b16 %v6501, %v6497
    %v7498 = vpack.c.b16 %v6506, %v6502
    %v7499 = vpack.c.b16 %v6507, %v6503
    %v7500 = vpack.c.b16 %v6508, %v6504
    %v7501 = vpack.c.b16 %v6509, %v6505
    %v7502 = vpack.c.b16 %v6514, %v6510
    %v7503 = vpack.c.b16 %v6515, %v6511
    %v7504 = vpack.c.b16 %v6516, %v6512
    %v7505 = vpack.c.b16 %v6517, %v6513
    %v7506 = vpack.c.b16 %v6522, %v6518
    %v7507 = vpack.c.b16 %v6523, %v6519
    %v7508 = vpack.c.b16 %v6524, %v6520
    %v7509 = vpack.c.b16 %v6525, %v6521
    %v7510 = vpack.c.b16 %v6530, %v6526
    %v7511 = vpack.c.b16 %v6531, %v6527
    %v7512 = vpack.c.b16 %v6532, %v6528
    %v7513 = vpack.c.b16 %v6533, %v6529
    %v7514 = vpack.c.b16 %v6538, %v6534
    %v7515 = vpack.c.b16 %v6539, %v6535
    %v7516 = vpack.c.b16 %v6540, %v6536
    %v7517 = vpack.c.b16 %v6541, %v6537
    %v7518 = vpack.c.b16 %v6546, %v6542
    %v7519 = vpack.c.b16 %v6547, %v6543
    %v7520 = vpack.c.b16 %v6548, %v6544
    %v7521 = vpack.c.b16 %v6549, %v6545
    %v7522 = vpack.c.b16 %v6554, %v6550
    %v7523 = vpack.c.b16 %v6555, %v6551
    %v7524 = vpack.c.b16 %v6556, %v6552
    %v7525 = vpack.c.b16 %v6557, %v6553
    %v7526 = vpack.c.b16 %v6562, %v6558
    %v7527 = vpack.c.b16 %v6563, %v6559
    %v7528 = vpack.c.b16 %v6564, %v6560
    %v7529 = vpack.c.b16 %v6565, %v6561
    %v7530 = vpack.c.b16 %v6570, %v6566
    %v7531 = vpack.c.b16 %v6571, %v6567
    %v7532 = vpack.c.b16 %v6572, %v6568
    %v7533 = vpack.c.b16 %v6573, %v6569
    %v7534 = vpack.c.b16 %v6578, %v6574
    %v7535 = vpack.c.b16 %v6579, %v6575
    %v7536 = vpack.c.b16 %v6580, %v6576
    %v7537 = vpack.c.b16 %v6581, %v6577
    %v7538 = vpack.c.b16 %v6586, %v6582
    %v7539 = vpack.c.b16 %v6587, %v6583
    %v7540 = vpack.c.b16 %v6588, %v6584
    %v7541 = vpack.c.b16 %v6589, %v6585
    %v7542 = vpack.c.b16 %v6594, %v6590
    %v7543 = vpack.c.b16 %v6595, %v6591
    %v7544 = vpack.c.b16 %v6596, %v6592
    %v7545 = vpack.c.b16 %v6597, %v6593
    %v7546 = vpack.c.b16 %v6602, %v6598
    %v7547 = vpack.c.b16 %v6603, %v6599
    %v7548 = vpack.c.b16 %v6604, %v6600
    %v7549 = vpack.c.b16 %v6605, %v6601
    %v7550 = vpack.c.b16 %v6610, %v6606
    %v7551 = vpack.c.b16 %v6611, %v6607
    %v7552 = vpack.c.b16 %v6612, %v6608
    %v7553 = vpack.c.b16 %v6613, %v6609
    %v7554 = vpack.c.b16 %v6618, %v6614
    %v7555 = vpack.c.b16 %v6619, %v6615
    %v7556 = vpack.c.b16 %v6620, %v6616
    %v7557 = vpack.c.b16 %v6621, %v6617
    %v7558 = vpack.c.b16 %v6626, %v6622
    %v7559 = vpack.c.b16 %v6627, %v6623
    %v7560 = vpack.c.b16 %v6628, %v6624
    %v7561 = vpack.c.b16 %v6629, %v6625
    %v7562 = vpack.c.b16 %v6634, %v6630
    %v7563 = vpack.c.b16 %v6635, %v6631
    %v7564 = vpack.c.b16 %v6636, %v6632
    %v7565 = vpack.c.b16 %v6637, %v6633
    %v7566 = vpack.c.b16 %v6642, %v6638
    %v7567 = vpack.c.b16 %v6643, %v6639
    %v7568 = vpack.c.b16 %v6644, %v6640
    %v7569 = vpack.c.b16 %v6645, %v6641
    %v7570 = vpack.c.b16 %v6650, %v6646
    %v7571 = vpack.c.b16 %v6651, %v6647
    %v7572 = vpack.c.b16 %v6652, %v6648
    %v7573 = vpack.c.b16 %v6653, %v6649
    %v7574 = vpack.c.b16 %v6658, %v6654
    %v7575 = vpack.c.b16 %v6659, %v6655
    %v7576 = vpack.c.b16 %v6660, %v6656
    %v7577 = vpack.c.b16 %v6661, %v6657
    %v7578 = vpack.c.b16 %v6666, %v6662
    %v7579 = vpack.c.b16 %v6667, %v6663
    %v7580 = vpack.c.b16 %v6668, %v6664
    %v7581 = vpack.c.b16 %v6669, %v6665
    %v7582 = vpack.c.b16 %v6674, %v6670
    %v7583 = vpack.c.b16 %v6675, %v6671
    %v7584 = vpack.c.b16 %v6676, %v6672
    %v7585 = vpack.c.b16 %v6677, %v6673
    %v7586 = vpack.c.b16 %v6682, %v6678
    %v7587 = vpack.c.b16 %v6683, %v6679
    %v7588 = vpack.c.b16 %v6684, %v6680
    %v7589 = vpack.c.b16 %v6685, %v6681
    %v7590 = vpack.c.b16 %v6690, %v6686
    %v7591 = vpack.c.b16 %v6691, %v6687
    %v7592 = vpack.c.b16 %v6692, %v6688
    %v7593 = vpack.c.b16 %v6693, %v6689
    %v7594 = vpack.c.b16 %v6698, %v6694
    %v7595 = vpack.c.b16 %v6699, %v6695
    %v7596 = vpack.c.b16 %v6700, %v6696
    %v7597 = vpack.c.b16 %v6701, %v6697
    %v7598 = vpack.c.b16 %v6706, %v6702
    %v7599 = vpack.c.b16 %v6707, %v6703
    %v7600 = vpack.c.b16 %v6708, %v6704
    %v7601 = vpack.c.b16 %v6709, %v6705
    %v7602 = vpack.c.b16 %v6714, %v6710
    %v7603 = vpack.c.b16 %v6715, %v6711
    %v7604 = vpack.c.b16 %v6716, %v6712
    %v7605 = vpack.c.b16 %v6717, %v6713
    %v7606 = vpack.c.b16 %v6722, %v6718
    %v7607 = vpack.c.b16 %v6723, %v6719
    %v7608 = vpack.c.b16 %v6724, %v6720
    %v7609 = vpack.c.b16 %v6725, %v6721
    %v7610 = vpack.c.b16 %v6730, %v6726
    %v7611 = vpack.c.b16 %v6731, %v6727
    %v7612 = vpack.c.b16 %v6732, %v6728
    %v7613 = vpack.c.b16 %v6733, %v6729
    %v7614 = vpack.c.b16 %v6738, %v6734
    %v7615 = vpack.c.b16 %v6739, %v6735
    %v7616 = vpack.c.b16 %v6740, %v6736
    %v7617 = vpack.c.b16 %v6741, %v6737
    %v7618 = vpack.c.b16 %v6746, %v6742
    %v7619 = vpack.c.b16 %v6747, %v6743
    %v7620 = vpack.c.b16 %v6748, %v6744
    %v7621 = vpack.c.b16 %v6749, %v6745
    %v7622 = vpack.c.b16 %v6754, %v6750
    %v7623 = vpack.c.b16 %v6755, %v6751
    %v7624 = vpack.c.b16 %v6756, %v6752
    %v7625 = vpack.c.b16 %v6757, %v6753
    %v7626 = vpack.c.b16 %v6762, %v6758
    %v7627 = vpack.c.b16 %v6763, %v6759
    %v7628 = vpack.c.b16 %v6764, %v6760
    %v7629 = vpack.c.b16 %v6765, %v6761
    %v7630 = vpack.c.b16 %v6770, %v6766
    %v7631 = vpack.c.b16 %v6771, %v6767
    %v7632 = vpack.c.b16 %v6772, %v6768
    %v7633 = vpack.c.b16 %v6773, %v6769
    %v7634 = vpack.c.b16 %v6778, %v6774
    %v7635 = vpack.c.b16 %v6779, %v6775
    %v7636 = vpack.c.b16 %v6780, %v6776
    %v7637 = vpack.c.b16 %v6781, %v6777
    %v7638 = vpack.c.b16 %v6786, %v6782
    %v7639 = vpack.c.b16 %v6787, %v6783
    %v7640 = vpack.c.b16 %v6788, %v6784
    %v7641 = vpack.c.b16 %v6789, %v6785
    %v7642 = vpack.c.b16 %v6794, %v6790
    %v7643 = vpack.c.b16 %v6795, %v6791
    %v7644 = vpack.c.b16 %v6796, %v6792
    %v7645 = vpack.c.b16 %v6797, %v6793
    %v7646 = vpack.c.b16 %v6802, %v6798
    %v7647 = vpack.c.b16 %v6803, %v6799
    %v7648 = vpack.c.b16 %v6804, %v6800
    %v7649 = vpack.c.b16 %v6805, %v6801
    %v7650 = vpack.c.b16 %v6810, %v6806
    %v7651 = vpack.c.b16 %v6811, %v6807
    %v7652 = vpack.c.b16 %v6812, %v6808
    %v7653 = vpack.c.b16 %v6813, %v6809
    %v7654 = vpack.c.b16 %v6818, %v6814
    %v7655 = vpack.c.b16 %v6819, %v6815
    %v7656 = vpack.c.b16 %v6820, %v6816
    %v7657 = vpack.c.b16 %v6821, %v6817
    %v7658 = vpack.c.b16 %v6826, %v6822
    %v7659 = vpack.c.b16 %v6827, %v6823
    %v7660 = vpack.c.b16 %v6828, %v6824
    %v7661 = vpack.c.b16 %v6829, %v6825
    %v7662 = vpack.c.b16 %v6834, %v6830
    %v7663 = vpack.c.b16 %v6835, %v6831
    %v7664 = vpack.c.b16 %v6836, %v6832
    %v7665 = vpack.c.b16 %v6837, %v6833
    %v7666 = vpack.c.b16 %v6842, %v6838
    %v7667 = vpack.c.b16 %v6843, %v6839
    %v7668 = vpack.c.b16 %v6844, %v6840
    %v7669 = vpack.c.b16 %v6845, %v6841
    %v7670 = vpack.c.b16 %v6850, %v6846
    %v7671 = vpack.c.b16 %v6851, %v6847
    %v7672 = vpack.c.b16 %v6852, %v6848
    %v7673 = vpack.c.b16 %v6853, %v6849
    %v7674 = vpack.c.b16 %v6858, %v6854
    %v7675 = vpack.c.b16 %v6859, %v6855
    %v7676 = vpack.c.b16 %v6860, %v6856
    %v7677 = vpack.c.b16 %v6861, %v6857
    %v7678 = vpack.c.b16 %v6866, %v6862
    %v7679 = vpack.c.b16 %v6867, %v6863
    %v7680 = vpack.c.b16 %v6868, %v6864
    %v7681 = vpack.c.b16 %v6869, %v6865
    %v7682 = vpack.c.b16 %v6874, %v6870
    %v7683 = vpack.c.b16 %v6875, %v6871
    %v7684 = vpack.c.b16 %v6876, %v6872
    %v7685 = vpack.c.b16 %v6877, %v6873
    %v7686 = vpack.c.b16 %v6882, %v6878
    %v7687 = vpack.c.b16 %v6883, %v6879
    %v7688 = vpack.c.b16 %v6884, %v6880
    %v7689 = vpack.c.b16 %v6885, %v6881
    %v7690 = vpack.c.b16 %v6890, %v6886
    %v7691 = vpack.c.b16 %v6891, %v6887
    %v7692 = vpack.c.b16 %v6892, %v6888
    %v7693 = vpack.c.b16 %v6893, %v6889
    %v7694 = vpack.c.b16 %v6898, %v6894
    %v7695 = vpack.c.b16 %v6899, %v6895
    %v7696 = vpack.c.b16 %v6900, %v6896
    %v7697 = vpack.c.b16 %v6901, %v6897
    %v7698 = vpack.c.b16 %v6906, %v6902
    %v7699 = vpack.c.b16 %v6907, %v6903
    %v7700 = vpack.c.b16 %v6908, %v6904
    %v7701 = vpack.c.b16 %v6909, %v6905
    %v7702 = vpack.c.b16 %v6914, %v6910
    %v7703 = vpack.c.b16 %v6915, %v6911
    %v7704 = vpack.c.b16 %v6916, %v6912
    %v7705 = vpack.c.b16 %v6917, %v6913
    %v7706 = vpack.c.b16 %v6922, %v6918
    %v7707 = vpack.c.b16 %v6923, %v6919
    %v7708 = vpack.c.b16 %v6924, %v6920
    %v7709 = vpack.c.b16 %v6925, %v6921
    %v7710 = vpack.c.b16 %v6930, %v6926
    %v7711 = vpack.c.b16 %v6931, %v6927
    %v7712 = vpack.c.b16 %v6932, %v6928
    %v7713 = vpack.c.b16 %v6933, %v6929
    %v7714 = vpack.c.b16 %v6938, %v6934
    %v7715 = vpack.c.b16 %v6939, %v6935
    %v7716 = vpack.c.b16 %v6940, %v6936
    %v7717 = vpack.c.b16 %v6941, %v6937
    %v7718 = vpack.c.b16 %v6946, %v6942
    %v7719 = vpack.c.b16 %v6947, %v6943
    %v7720 = vpack.c.b16 %v6948, %v6944
    %v7721 = vpack.c.b16 %v6949, %v6945
    %v7722 = vpack.c.b16 %v6954, %v6950
    %v7723 = vpack.c.b16 %v6955, %v6951
    %v7724 = vpack.c.b16 %v6956, %v6952
    %v7725 = vpack.c.b16 %v6957, %v6953
    %v7726 = vpack.c.b16 %v6962, %v6958
    %v7727 = vpack.c.b16 %v6963, %v6959
    %v7728 = vpack.c.b16 %v6964, %v6960
    %v7729 = vpack.c.b16 %v6965, %v6961
    %v7730 = vpack.c.b16 %v6970, %v6966
    %v7731 = vpack.c.b16 %v6971, %v6967
    %v7732 = vpack.c.b16 %v6972, %v6968
    %v7733 = vpack.c.b16 %v6973, %v6969
    %v7734 = vpack.c.b16 %v6978, %v6974
    %v7735 = vpack.c.b16 %v6979, %v6975
    %v7736 = vpack.c.b16 %v6980, %v6976
    %v7737 = vpack.c.b16 %v6981, %v6977
    %v7738 = vpack.c.b16 %v6986, %v6982
    %v7739 = vpack.c.b16 %v6987, %v6983
    %v7740 = vpack.c.b16 %v6988, %v6984
    %v7741 = vpack.c.b16 %v6989, %v6985
    %v7742 = vpack.c.b16 %v6994, %v6990
    %v7743 = vpack.c.b16 %v6995, %v6991
    %v7744 = vpack.c.b16 %v6996, %v6992
    %v7745 = vpack.c.b16 %v6997, %v6993
    %v7746 = vpack.c.b16 %v7002, %v6998
    %v7747 = vpack.c.b16 %v7003, %v6999
    %v7748 = vpack.c.b16 %v7004, %v7000
    %v7749 = vpack.c.b16 %v7005, %v7001
    %v7750 = vpack.c.b16 %v7010, %v7006
    %v7751 = vpack.c.b16 %v7011, %v7007
    %v7752 = vpack.c.b16 %v7012, %v7008
    %v7753 = vpack.c.b16 %v7013, %v7009
    %v7754 = vpack.c.b16 %v7018, %v7014
    %v7755 = vpack.c.b16 %v7019, %v7015
    %v7756 = vpack.c.b16 %v7020, %v7016
    %v7757 = vpack.c.b16 %v7021, %v7017
    %v7758 = vpack.c.b16 %v7026, %v7022
    %v7759 = vpack.c.b16 %v7027, %v7023
    %v7760 = vpack.c.b16 %v7028, %v7024
    %v7761 = vpack.c.b16 %v7029, %v7025
    %v7762 = vpack.c.b16 %v7034, %v7030
    %v7763 = vpack.c.b16 %v7035, %v7031
    %v7764 = vpack.c.b16 %v7036, %v7032
    %v7765 = vpack.c.b16 %v7037, %v7033
    %v7766 = vpack.c.b16 %v7042, %v7038
    %v7767 = vpack.c.b16 %v7043, %v7039
    %v7768 = vpack.c.b16 %v7044, %v7040
    %v7769 = vpack.c.b16 %v7045, %v7041
    %v7770 = vpack.c.b16 %v7050, %v7046
    %v7771 = vpack.c.b16 %v7051, %v7047
    %v7772 = vpack.c.b16 %v7052, %v7048
    %v7773 = vpack.c.b16 %v7053, %v7049
    %v7774 = vpack.c.b16 %v7058, %v7054
    %v7775 = vpack.c.b16 %v7059, %v7055
    %v7776 = vpack.c.b16 %v7060, %v7056
    %v7777 = vpack.c.b16 %v7061, %v7057
    %v7778 = vpack.c.b16 %v7066, %v7062
    %v7779 = vpack.c.b16 %v7067, %v7063
    %v7780 = vpack.c.b16 %v7068, %v7064
    %v7781 = vpack.c.b16 %v7069, %v7065
    %v7782 = vpack.c.b16 %v7074, %v7070
    %v7783 = vpack.c.b16 %v7075, %v7071
    %v7784 = vpack.c.b16 %v7076, %v7072
    %v7785 = vpack.c.b16 %v7077, %v7073
    %v7786 = vpack.c.b16 %v7082, %v7078
    %v7787 = vpack.c.b16 %v7083, %v7079
    %v7788 = vpack.c.b16 %v7084, %v7080
    %v7789 = vpack.c.b16 %v7085, %v7081
    %v7790 = vpack.c.b16 %v7090, %v7086
    %v7791 = vpack.c.b16 %v7091, %v7087
    %v7792 = vpack.c.b16 %v7092, %v7088
    %v7793 = vpack.c.b16 %v7093, %v7089
    %v7794 = vpack.c.b16 %v7098, %v7094
    %v7795 = vpack.c.b16 %v7099, %v7095
    %v7796 = vpack.c.b16 %v7100, %v7096
    %v7797 = vpack.c.b16 %v7101, %v7097
    %v7798 = vpack.c.b16 %v7106, %v7102
    %v7799 = vpack.c.b16 %v7107, %v7103
    %v7800 = vpack.c.b16 %v7108, %v7104
    %v7801 = vpack.c.b16 %v7109, %v7105
    %v7802 = vpack.c.b16 %v7114, %v7110
    %v7803 = vpack.c.b16 %v7115, %v7111
    %v7804 = vpack.c.b16 %v7116, %v7112
    %v7805 = vpack.c.b16 %v7117, %v7113
    %v7806 = vpack.c.b16 %v7122, %v7118
    %v7807 = vpack.c.b16 %v7123, %v7119
    %v7808 = vpack.c.b16 %v7124, %v7120
    %v7809 = vpack.c.b16 %v7125, %v7121
    %v7810 = vpack.c.b16 %v7130, %v7126
    %v7811 = vpack.c.b16 %v7131, %v7127
    %v7812 = vpack.c.b16 %v7132, %v7128
    %v7813 = vpack.c.b16 %v7133, %v7129
    %v7814 = vpack.c.b16 %v7138, %v7134
    %v7815 = vpack.c.b16 %v7139, %v7135
    %v7816 = vpack.c.b16 %v7140, %v7136
    %v7817 = vpack.c.b16 %v7141, %v7137
    %v7818 = vpack.c.b16 %v7146, %v7142
    %v7819 = vpack.c.b16 %v7147, %v7143
    %v7820 = vpack.c.b16 %v7148, %v7144
    %v7821 = vpack.c.b16 %v7149, %v7145
    %v7822 = vpack.c.b16 %v7154, %v7150
    %v7823 = vpack.c.b16 %v7155, %v7151
    %v7824 = vpack.c.b16 %v7156, %v7152
    %v7825 = vpack.c.b16 %v7157, %v7153
    %v7826 = vpack.c.b16 %v7162, %v7158
    %v7827 = vpack.c.b16 %v7163, %v7159
    %v7828 = vpack.c.b16 %v7164, %v7160
    %v7829 = vpack.c.b16 %v7165, %v7161
    %v7830 = vpack.c.b16 %v7170, %v7166
    %v7831 = vpack.c.b16 %v7171, %v7167
    %v7832 = vpack.c.b16 %v7172, %v7168
    %v7833 = vpack.c.b16 %v7173, %v7169
    %v7834 = vpack.c.b16 %v7178, %v7174
    %v7835 = vpack.c.b16 %v7179, %v7175
    %v7836 = vpack.c.b16 %v7180, %v7176
    %v7837 = vpack.c.b16 %v7181, %v7177
    %v7838 = vpack.c.b16 %v7186, %v7182
    %v7839 = vpack.c.b16 %v7187, %v7183
    %v7840 = vpack.c.b16 %v7188, %v7184
    %v7841 = vpack.c.b16 %v7189, %v7185
    %v7842 = vpack.c.b16 %v7194, %v7190
    %v7843 = vpack.c.b16 %v7195, %v7191
    %v7844 = vpack.c.b16 %v7196, %v7192
    %v7845 = vpack.c.b16 %v7197, %v7193
    %v7846 = vpack.c.b16 %v7202, %v7198
    %v7847 = vpack.c.b16 %v7203, %v7199
    %v7848 = vpack.c.b16 %v7204, %v7200
    %v7849 = vpack.c.b16 %v7205, %v7201
    %v7850 = vpack.c.b16 %v7210, %v7206
    %v7851 = vpack.c.b16 %v7211, %v7207
    %v7852 = vpack.c.b16 %v7212, %v7208
    %v7853 = vpack.c.b16 %v7213, %v7209
    %v7854 = vpack.c.b16 %v7218, %v7214
    %v7855 = vpack.c.b16 %v7219, %v7215
    %v7856 = vpack.c.b16 %v7220, %v7216
    %v7857 = vpack.c.b16 %v7221, %v7217
    %v7858 = vpack.c.b16 %v7226, %v7222
    %v7859 = vpack.c.b16 %v7227, %v7223
    %v7860 = vpack.c.b16 %v7228, %v7224
    %v7861 = vpack.c.b16 %v7229, %v7225
    %v7862 = vpack.c.b16 %v7234, %v7230
    %v7863 = vpack.c.b16 %v7235, %v7231
    %v7864 = vpack.c.b16 %v7236, %v7232
    %v7865 = vpack.c.b16 %v7237, %v7233
    %v7866 = vpack.c.b16 %v7242, %v7238
    %v7867 = vpack.c.b16 %v7243, %v7239
    %v7868 = vpack.c.b16 %v7244, %v7240
    %v7869 = vpack.c.b16 %v7245, %v7241
    %v7870 = vpack.c.b16 %v7250, %v7246
    %v7871 = vpack.c.b16 %v7251, %v7247
    %v7872 = vpack.c.b16 %v7252, %v7248
    %v7873 = vpack.c.b16 %v7253, %v7249
    %v7874 = vpack.c.b16 %v7258, %v7254
    %v7875 = vpack.c.b16 %v7259, %v7255
    %v7876 = vpack.c.b16 %v7260, %v7256
    %v7877 = vpack.c.b16 %v7261, %v7257
    %v7878 = vpack.c.b16 %v7266, %v7262
    %v7879 = vpack.c.b16 %v7267, %v7263
    %v7880 = vpack.c.b16 %v7268, %v7264
    %v7881 = vpack.c.b16 %v7269, %v7265
    %v7882 = vpack.c.b16 %v7274, %v7270
    %v7883 = vpack.c.b16 %v7275, %v7271
    %v7884 = vpack.c.b16 %v7276, %v7272
    %v7885 = vpack.c.b16 %v7277, %v7273
    %v7886 = vpack.c.b16 %v7282, %v7278
    %v7887 = vpack.c.b16 %v7283, %v7279
    %v7888 = vpack.c.b16 %v7284, %v7280
    %v7889 = vpack.c.b16 %v7285, %v7281
    %v7890 = vpack.c.b16 %v7290, %v7286
    %v7891 = vpack.c.b16 %v7291, %v7287
    %v7892 = vpack.c.b16 %v7292, %v7288
    %v7893 = vpack.c.b16 %v7293, %v7289
    %v7894 = vpack.c.b16 %v7298, %v7294
    %v7895 = vpack.c.b16 %v7299, %v7295
    %v7896 = vpack.c.b16 %v7300, %v7296
    %v7897 = vpack.c.b16 %v7301, %v7297
    %v7898 = vpack.c.b16 %v7306, %v7302
    %v7899 = vpack.c.b16 %v7307, %v7303
    %v7900 = vpack.c.b16 %v7308, %v7304
    %v7901 = vpack.c.b16 %v7309, %v7305
    %v7902 = vpack.c.b16 %v7314, %v7310
    %v7903 = vpack.c.b16 %v7315, %v7311
    %v7904 = vpack.c.b16 %v7316, %v7312
    %v7905 = vpack.c.b16 %v7317, %v7313
    %v7906 = vpack.c.b16 %v7322, %v7318
    %v7907 = vpack.c.b16 %v7323, %v7319
    %v7908 = vpack.c.b16 %v7324, %v7320
    %v7909 = vpack.c.b16 %v7325, %v7321
    %v7910 = vpack.c.b16 %v7330, %v7326
    %v7911 = vpack.c.b16 %v7331, %v7327
    %v7912 = vpack.c.b16 %v7332, %v7328
    %v7913 = vpack.c.b16 %v7333, %v7329
    %v7914 = vpack.c.b16 %v7338, %v7334
    %v7915 = vpack.c.b16 %v7339, %v7335
    %v7916 = vpack.c.b16 %v7340, %v7336
    %v7917 = vpack.c.b16 %v7341, %v7337
    %v7918 = vpack.c.b16 %v7346, %v7342
    %v7919 = vpack.c.b16 %v7347, %v7343
    %v7920 = vpack.c.b16 %v7348, %v7344
    %v7921 = vpack.c.b16 %v7349, %v7345
    %v7922 = vpack.c.b16 %v7354, %v7350
    %v7923 = vpack.c.b16 %v7355, %v7351
    %v7924 = vpack.c.b16 %v7356, %v7352
    %v7925 = vpack.c.b16 %v7357, %v7353
    %v7926 = vpack.c.b16 %v7362, %v7358
    %v7927 = vpack.c.b16 %v7363, %v7359
    %v7928 = vpack.c.b16 %v7364, %v7360
    %v7929 = vpack.c.b16 %v7365, %v7361
    %v7930 = vpack.c.b16 %v7370, %v7366
    %v7931 = vpack.c.b16 %v7371, %v7367
    %v7932 = vpack.c.b16 %v7372, %v7368
    %v7933 = vpack.c.b16 %v7373, %v7369
    %v7934 = vpack.c.b16 %v7378, %v7374
    %v7935 = vpack.c.b16 %v7379, %v7375
    %v7936 = vpack.c.b16 %v7380, %v7376
    %v7937 = vpack.c.b16 %v7381, %v7377
    %v7938 = vpack.c.b16 %v7386, %v7382
    %v7939 = vpack.c.b16 %v7387, %v7383
    %v7940 = vpack.c.b16 %v7388, %v7384
    %v7941 = vpack.c.b16 %v7389, %v7385
    %v7942 = vpack.c.b16 %v7394, %v7390
    %v7943 = vpack.c.b16 %v7395, %v7391
    %v7944 = vpack.c.b16 %v7396, %v7392
    %v7945 = vpack.c.b16 %v7397, %v7393
    %v7946 = vpack.c.b16 %v7402, %v7398
    %v7947 = vpack.c.b16 %v7403, %v7399
    %v7948 = vpack.c.b16 %v7404, %v7400
    %v7949 = vpack.c.b16 %v7405, %v7401
    %v7950 = vpack.c.b16 %v7410, %v7406
    %v7951 = vpack.c.b16 %v7411, %v7407
    %v7952 = vpack.c.b16 %v7412, %v7408
    %v7953 = vpack.c.b16 %v7413, %v7409
    %v7954 = vpack.c.b16 %v7418, %v7414
    %v7955 = vpack.c.b16 %v7419, %v7415
    %v7956 = vpack.c.b16 %v7420, %v7416
    %v7957 = vpack.c.b16 %v7421, %v7417
    %v7958 = vpack.c.b16 %v7426, %v7422
    %v7959 = vpack.c.b16 %v7427, %v7423
    %v7960 = vpack.c.b16 %v7428, %v7424
    %v7961 = vpack.c.b16 %v7429, %v7425
    %v7962 = vpack.c.b16 %v7434, %v7430
    %v7963 = vpack.c.b16 %v7435, %v7431
    %v7964 = vpack.c.b16 %v7436, %v7432
    %v7965 = vpack.c.b16 %v7437, %v7433
    %v7966 = vpack.c.b16 %v7442, %v7438
    %v7967 = vpack.c.b16 %v7443, %v7439
    %v7968 = vpack.c.b16 %v7444, %v7440
    %v7969 = vpack.c.b16 %v7445, %v7441
    %v7970 = vpack.c.b16 %v7450, %v7446
    %v7971 = vpack.c.b16 %v7451, %v7447
    %v7972 = vpack.c.b16 %v7452, %v7448
    %v7973 = vpack.c.b16 %v7453, %v7449
    %v7974 = vpack.c.b16 %v7458, %v7454
    %v7975 = vpack.c.b16 %v7459, %v7455
    %v7976 = vpack.c.b16 %v7460, %v7456
    %v7977 = vpack.c.b16 %v7461, %v7457
    %v7978 = vpack.c.b16 %v7466, %v7462
    %v7979 = vpack.c.b16 %v7467, %v7463
    %v7980 = vpack.c.b16 %v7468, %v7464
    %v7981 = vpack.c.b16 %v7469, %v7465
    %8494 = vmatpush.bf16.msra.mxu0 %v7498
    %8495 = vmatpush.bf16.msra.mxu0 %v7494
    %8496 = vmatpush.bf16.msra.mxu0 %v7490
    %8497 = vmatpush.bf16.msra.mxu0 %v7486
    %8498 = vmatpush.bf16.msra.mxu0 %v7482
    %8499 = vmatpush.bf16.msra.mxu0 %v7478
    %8500 = vmatpush.bf16.msra.mxu0 %v7474
    %8501 = vmatpush.bf16.msra.mxu0 %v7470
    %8502 = vmatmul.bf16.gmra.mxu0 %v5406
    %v8503 = vpop.f32.mrf.mxu0
    %v8504 = vadd.f32 %v1394, %v8503
    %v8505 = vpop.f32.mrf.mxu0
    %v8506 = vadd.f32 %v1398, %v8505
    %8507 = vdwg.mxu0
    %8508 = vmatpush.bf16.msra.mxu0 %v7530
    %8509 = vmatpush.bf16.msra.mxu0 %v7526
    %8510 = vmatpush.bf16.msra.mxu0 %v7522
    %8511 = vmatpush.bf16.msra.mxu0 %v7518
    %8512 = vmatpush.bf16.msra.mxu0 %v7514
    %8513 = vmatpush.bf16.msra.mxu0 %v7510
    %8514 = vmatpush.bf16.msra.mxu0 %v7506
    %8515 = vmatpush.bf16.msra.mxu0 %v7502
    %8516 = vmatmul.bf16.gmra.mxu0 %v5407
    %v8517 = vpop.f32.mrf.mxu0
    %v8518 = vadd.f32 %v8504, %v8517
    %v8519 = vpop.f32.mrf.mxu0
    %v8520 = vadd.f32 %v8506, %v8519
    %8521 = vdwg.mxu0
    %8522 = vmatpush.bf16.msra.mxu0 %v7562
    %8523 = vmatpush.bf16.msra.mxu0 %v7558
    %8524 = vmatpush.bf16.msra.mxu0 %v7554
    %8525 = vmatpush.bf16.msra.mxu0 %v7550
    %8526 = vmatpush.bf16.msra.mxu0 %v7546
    %8527 = vmatpush.bf16.msra.mxu0 %v7542
    %8528 = vmatpush.bf16.msra.mxu0 %v7538
    %8529 = vmatpush.bf16.msra.mxu0 %v7534
    %8530 = vmatmul.bf16.gmra.mxu0 %v5408
    %v8531 = vpop.f32.mrf.mxu0
    %v8532 = vadd.f32 %v8518, %v8531
    %v8533 = vpop.f32.mrf.mxu0
    %v8534 = vadd.f32 %v8520, %v8533
    %8535 = vdwg.mxu0
    %8536 = vmatpush.bf16.msra.mxu0 %v7594
    %8537 = vmatpush.bf16.msra.mxu0 %v7590
    %8538 = vmatpush.bf16.msra.mxu0 %v7586
    %8539 = vmatpush.bf16.msra.mxu0 %v7582
    %8540 = vmatpush.bf16.msra.mxu0 %v7578
    %8541 = vmatpush.bf16.msra.mxu0 %v7574
    %8542 = vmatpush.bf16.msra.mxu0 %v7570
    %8543 = vmatpush.bf16.msra.mxu0 %v7566
    %8544 = vmatmul.bf16.gmra.mxu0 %v5409
    %v8545 = vpop.f32.mrf.mxu0
    %v8546 = vadd.f32 %v8532, %v8545
    %v8547 = vpop.f32.mrf.mxu0
    %v8548 = vadd.f32 %v8534, %v8547
    %8549 = vdwg.mxu0
    %8550 = vmatpush.bf16.msra.mxu0 %v7626
    %8551 = vmatpush.bf16.msra.mxu0 %v7622
    %8552 = vmatpush.bf16.msra.mxu0 %v7618
    %8553 = vmatpush.bf16.msra.mxu0 %v7614
    %8554 = vmatpush.bf16.msra.mxu0 %v7610
    %8555 = vmatpush.bf16.msra.mxu0 %v7606
    %8556 = vmatpush.bf16.msra.mxu0 %v7602
    %8557 = vmatpush.bf16.msra.mxu0 %v7598
    %8558 = vmatmul.bf16.gmra.mxu0 %v5410
    %v8559 = vpop.f32.mrf.mxu0
    %v8560 = vadd.f32 %v8546, %v8559
    %v8561 = vpop.f32.mrf.mxu0
    %v8562 = vadd.f32 %v8548, %v8561
    %8563 = vdwg.mxu0
    %8564 = vmatpush.bf16.msra.mxu0 %v7658
    %8565 = vmatpush.bf16.msra.mxu0 %v7654
    %8566 = vmatpush.bf16.msra.mxu0 %v7650
    %8567 = vmatpush.bf16.msra.mxu0 %v7646
    %8568 = vmatpush.bf16.msra.mxu0 %v7642
    %8569 = vmatpush.bf16.msra.mxu0 %v7638
    %8570 = vmatpush.bf16.msra.mxu0 %v7634
    %8571 = vmatpush.bf16.msra.mxu0 %v7630
    %8572 = vmatmul.bf16.gmra.mxu0 %v5411
    %v8573 = vpop.f32.mrf.mxu0
    %v8574 = vadd.f32 %v8560, %v8573
    %v8575 = vpop.f32.mrf.mxu0
    %v8576 = vadd.f32 %v8562, %v8575
    %8577 = vdwg.mxu0
    %8578 = vmatpush.bf16.msra.mxu0 %v7690
    %8579 = vmatpush.bf16.msra.mxu0 %v7686
    %8580 = vmatpush.bf16.msra.mxu0 %v7682
    %8581 = vmatpush.bf16.msra.mxu0 %v7678
    %8582 = vmatpush.bf16.msra.mxu0 %v7674
    %8583 = vmatpush.bf16.msra.mxu0 %v7670
    %8584 = vmatpush.bf16.msra.mxu0 %v7666
    %8585 = vmatpush.bf16.msra.mxu0 %v7662
    %8586 = vmatmul.bf16.gmra.mxu0 %v5412
    %v8587 = vpop.f32.mrf.mxu0
    %v8588 = vadd.f32 %v8574, %v8587
    %v8589 = vpop.f32.mrf.mxu0
    %v8590 = vadd.f32 %v8576, %v8589
    %8591 = vdwg.mxu0
    %8592 = vmatpush.bf16.msra.mxu0 %v7722
    %8593 = vmatpush.bf16.msra.mxu0 %v7718
    %8594 = vmatpush.bf16.msra.mxu0 %v7714
    %8595 = vmatpush.bf16.msra.mxu0 %v7710
    %8596 = vmatpush.bf16.msra.mxu0 %v7706
    %8597 = vmatpush.bf16.msra.mxu0 %v7702
    %8598 = vmatpush.bf16.msra.mxu0 %v7698
    %8599 = vmatpush.bf16.msra.mxu0 %v7694
    %8600 = vmatmul.bf16.gmra.mxu0 %v5413
    %v8601 = vpop.f32.mrf.mxu0
    %v8602 = vadd.f32 %v8588, %v8601
    %v8603 = vpop.f32.mrf.mxu0
    %v8604 = vadd.f32 %v8590, %v8603
    %8605 = vdwg.mxu0
    %8606 = vmatpush.bf16.msra.mxu0 %v7754
    %8607 = vmatpush.bf16.msra.mxu0 %v7750
    %8608 = vmatpush.bf16.msra.mxu0 %v7746
    %8609 = vmatpush.bf16.msra.mxu0 %v7742
    %8610 = vmatpush.bf16.msra.mxu0 %v7738
    %8611 = vmatpush.bf16.msra.mxu0 %v7734
    %8612 = vmatpush.bf16.msra.mxu0 %v7730
    %8613 = vmatpush.bf16.msra.mxu0 %v7726
    %8614 = vmatmul.bf16.gmra.mxu0 %v5414
    %v8615 = vpop.f32.mrf.mxu0
    %v8616 = vadd.f32 %v8602, %v8615
    %v8617 = vpop.f32.mrf.mxu0
    %v8618 = vadd.f32 %v8604, %v8617
    %8619 = vdwg.mxu0
    %8620 = vmatpush.bf16.msra.mxu0 %v7786
    %8621 = vmatpush.bf16.msra.mxu0 %v7782
    %8622 = vmatpush.bf16.msra.mxu0 %v7778
    %8623 = vmatpush.bf16.msra.mxu0 %v7774
    %8624 = vmatpush.bf16.msra.mxu0 %v7770
    %8625 = vmatpush.bf16.msra.mxu0 %v7766
    %8626 = vmatpush.bf16.msra.mxu0 %v7762
    %8627 = vmatpush.bf16.msra.mxu0 %v7758
    %8628 = vmatmul.bf16.gmra.mxu0 %v5415
    %v8629 = vpop.f32.mrf.mxu0
    %v8630 = vadd.f32 %v8616, %v8629
    %v8631 = vpop.f32.mrf.mxu0
    %v8632 = vadd.f32 %v8618, %v8631
    %8633 = vdwg.mxu0
    %8634 = vmatpush.bf16.msra.mxu0 %v7818
    %8635 = vmatpush.bf16.msra.mxu0 %v7814
    %8636 = vmatpush.bf16.msra.mxu0 %v7810
    %8637 = vmatpush.bf16.msra.mxu0 %v7806
    %8638 = vmatpush.bf16.msra.mxu0 %v7802
    %8639 = vmatpush.bf16.msra.mxu0 %v7798
    %8640 = vmatpush.bf16.msra.mxu0 %v7794
    %8641 = vmatpush.bf16.msra.mxu0 %v7790
    %8642 = vmatmul.bf16.gmra.mxu0 %v5416
    %v8643 = vpop.f32.mrf.mxu0
    %v8644 = vadd.f32 %v8630, %v8643
    %v8645 = vpop.f32.mrf.mxu0
    %v8646 = vadd.f32 %v8632, %v8645
    %8647 = vdwg.mxu0
    %8648 = vmatpush.bf16.msra.mxu0 %v7850
    %8649 = vmatpush.bf16.msra.mxu0 %v7846
    %8650 = vmatpush.bf16.msra.mxu0 %v7842
    %8651 = vmatpush.bf16.msra.mxu0 %v7838
    %8652 = vmatpush.bf16.msra.mxu0 %v7834
    %8653 = vmatpush.bf16.msra.mxu0 %v7830
    %8654 = vmatpush.bf16.msra.mxu0 %v7826
    %8655 = vmatpush.bf16.msra.mxu0 %v7822
    %8656 = vmatmul.bf16.gmra.mxu0 %v5417
    %v8657 = vpop.f32.mrf.mxu0
    %v8658 = vadd.f32 %v8644, %v8657
    %v8659 = vpop.f32.mrf.mxu0
    %v8660 = vadd.f32 %v8646, %v8659
    %8661 = vdwg.mxu0
    %8662 = vmatpush.bf16.msra.mxu0 %v7882
    %8663 = vmatpush.bf16.msra.mxu0 %v7878
    %8664 = vmatpush.bf16.msra.mxu0 %v7874
    %8665 = vmatpush.bf16.msra.mxu0 %v7870
    %8666 = vmatpush.bf16.msra.mxu0 %v7866
    %8667 = vmatpush.bf16.msra.mxu0 %v7862
    %8668 = vmatpush.bf16.msra.mxu0 %v7858
    %8669 = vmatpush.bf16.msra.mxu0 %v7854
    %8670 = vmatmul.bf16.gmra.mxu0 %v5418
    %v8671 = vpop.f32.mrf.mxu0
    %v8672 = vadd.f32 %v8658, %v8671
    %v8673 = vpop.f32.mrf.mxu0
    %v8674 = vadd.f32 %v8660, %v8673
    %8675 = vdwg.mxu0
    %8676 = vmatpush.bf16.msra.mxu0 %v7914
    %8677 = vmatpush.bf16.msra.mxu0 %v7910
    %8678 = vmatpush.bf16.msra.mxu0 %v7906
    %8679 = vmatpush.bf16.msra.mxu0 %v7902
    %8680 = vmatpush.bf16.msra.mxu0 %v7898
    %8681 = vmatpush.bf16.msra.mxu0 %v7894
    %8682 = vmatpush.bf16.msra.mxu0 %v7890
    %8683 = vmatpush.bf16.msra.mxu0 %v7886
    %8684 = vmatmul.bf16.gmra.mxu0 %v5419
    %v8685 = vpop.f32.mrf.mxu0
    %v8686 = vadd.f32 %v8672, %v8685
    %v8687 = vpop.f32.mrf.mxu0
    %v8688 = vadd.f32 %v8674, %v8687
    %8689 = vdwg.mxu0
    %8690 = vmatpush.bf16.msra.mxu0 %v7946
    %8691 = vmatpush.bf16.msra.mxu0 %v7942
    %8692 = vmatpush.bf16.msra.mxu0 %v7938
    %8693 = vmatpush.bf16.msra.mxu0 %v7934
    %8694 = vmatpush.bf16.msra.mxu0 %v7930
    %8695 = vmatpush.bf16.msra.mxu0 %v7926
    %8696 = vmatpush.bf16.msra.mxu0 %v7922
    %8697 = vmatpush.bf16.msra.mxu0 %v7918
    %8698 = vmatmul.bf16.gmra.mxu0 %v5420
    %v8699 = vpop.f32.mrf.mxu0
    %v8700 = vadd.f32 %v8686, %v8699
    %v8701 = vpop.f32.mrf.mxu0
    %v8702 = vadd.f32 %v8688, %v8701
    %8703 = vdwg.mxu0
    %8704 = vmatpush.bf16.msra.mxu0 %v7978
    %8705 = vmatpush.bf16.msra.mxu0 %v7974
    %8706 = vmatpush.bf16.msra.mxu0 %v7970
    %8707 = vmatpush.bf16.msra.mxu0 %v7966
    %8708 = vmatpush.bf16.msra.mxu0 %v7962
    %8709 = vmatpush.bf16.msra.mxu0 %v7958
    %8710 = vmatpush.bf16.msra.mxu0 %v7954
    %8711 = vmatpush.bf16.msra.mxu0 %v7950
    %8712 = vmatmul.bf16.gmra.mxu0 %v5421
    %v8713 = vpop.f32.mrf.mxu0
    %v8714 = vadd.f32 %v8700, %v8713
    %v8715 = vpop.f32.mrf.mxu0
    %v8716 = vadd.f32 %v8702, %v8715
    %8717 = vdwg.mxu0
    %8718 = vmatpush.bf16.msra.mxu0 %v7499
    %8719 = vmatpush.bf16.msra.mxu0 %v7495
    %8720 = vmatpush.bf16.msra.mxu0 %v7491
    %8721 = vmatpush.bf16.msra.mxu0 %v7487
    %8722 = vmatpush.bf16.msra.mxu0 %v7483
    %8723 = vmatpush.bf16.msra.mxu0 %v7479
    %8724 = vmatpush.bf16.msra.mxu0 %v7475
    %8725 = vmatpush.bf16.msra.mxu0 %v7471
    %8726 = vmatmul.bf16.gmra.mxu0 %v5406
    %v8727 = vpop.f32.mrf.mxu0
    %v8728 = vadd.f32 %v1395, %v8727
    %v8729 = vpop.f32.mrf.mxu0
    %v8730 = vadd.f32 %v1399, %v8729
    %8731 = vdwg.mxu0
    %8732 = vmatpush.bf16.msra.mxu0 %v7531
    %8733 = vmatpush.bf16.msra.mxu0 %v7527
    %8734 = vmatpush.bf16.msra.mxu0 %v7523
    %8735 = vmatpush.bf16.msra.mxu0 %v7519
    %8736 = vmatpush.bf16.msra.mxu0 %v7515
    %8737 = vmatpush.bf16.msra.mxu0 %v7511
    %8738 = vmatpush.bf16.msra.mxu0 %v7507
    %8739 = vmatpush.bf16.msra.mxu0 %v7503
    %8740 = vmatmul.bf16.gmra.mxu0 %v5407
    %v8741 = vpop.f32.mrf.mxu0
    %v8742 = vadd.f32 %v8728, %v8741
    %v8743 = vpop.f32.mrf.mxu0
    %v8744 = vadd.f32 %v8730, %v8743
    %8745 = vdwg.mxu0
    %8746 = vmatpush.bf16.msra.mxu0 %v7563
    %8747 = vmatpush.bf16.msra.mxu0 %v7559
    %8748 = vmatpush.bf16.msra.mxu0 %v7555
    %8749 = vmatpush.bf16.msra.mxu0 %v7551
    %8750 = vmatpush.bf16.msra.mxu0 %v7547
    %8751 = vmatpush.bf16.msra.mxu0 %v7543
    %8752 = vmatpush.bf16.msra.mxu0 %v7539
    %8753 = vmatpush.bf16.msra.mxu0 %v7535
    %8754 = vmatmul.bf16.gmra.mxu0 %v5408
    %v8755 = vpop.f32.mrf.mxu0
    %v8756 = vadd.f32 %v8742, %v8755
    %v8757 = vpop.f32.mrf.mxu0
    %v8758 = vadd.f32 %v8744, %v8757
    %8759 = vdwg.mxu0
    %8760 = vmatpush.bf16.msra.mxu0 %v7595
    %8761 = vmatpush.bf16.msra.mxu0 %v7591
    %8762 = vmatpush.bf16.msra.mxu0 %v7587
    %8763 = vmatpush.bf16.msra.mxu0 %v7583
    %8764 = vmatpush.bf16.msra.mxu0 %v7579
    %8765 = vmatpush.bf16.msra.mxu0 %v7575
    %8766 = vmatpush.bf16.msra.mxu0 %v7571
    %8767 = vmatpush.bf16.msra.mxu0 %v7567
    %8768 = vmatmul.bf16.gmra.mxu0 %v5409
    %v8769 = vpop.f32.mrf.mxu0
    %v8770 = vadd.f32 %v8756, %v8769
    %v8771 = vpop.f32.mrf.mxu0
    %v8772 = vadd.f32 %v8758, %v8771
    %8773 = vdwg.mxu0
    %8774 = vmatpush.bf16.msra.mxu0 %v7627
    %8775 = vmatpush.bf16.msra.mxu0 %v7623
    %8776 = vmatpush.bf16.msra.mxu0 %v7619
    %8777 = vmatpush.bf16.msra.mxu0 %v7615
    %8778 = vmatpush.bf16.msra.mxu0 %v7611
    %8779 = vmatpush.bf16.msra.mxu0 %v7607
    %8780 = vmatpush.bf16.msra.mxu0 %v7603
    %8781 = vmatpush.bf16.msra.mxu0 %v7599
    %8782 = vmatmul.bf16.gmra.mxu0 %v5410
    %v8783 = vpop.f32.mrf.mxu0
    %v8784 = vadd.f32 %v8770, %v8783
    %v8785 = vpop.f32.mrf.mxu0
    %v8786 = vadd.f32 %v8772, %v8785
    %8787 = vdwg.mxu0
    %8788 = vmatpush.bf16.msra.mxu0 %v7659
    %8789 = vmatpush.bf16.msra.mxu0 %v7655
    %8790 = vmatpush.bf16.msra.mxu0 %v7651
    %8791 = vmatpush.bf16.msra.mxu0 %v7647
    %8792 = vmatpush.bf16.msra.mxu0 %v7643
    %8793 = vmatpush.bf16.msra.mxu0 %v7639
    %8794 = vmatpush.bf16.msra.mxu0 %v7635
    %8795 = vmatpush.bf16.msra.mxu0 %v7631
    %8796 = vmatmul.bf16.gmra.mxu0 %v5411
    %v8797 = vpop.f32.mrf.mxu0
    %v8798 = vadd.f32 %v8784, %v8797
    %v8799 = vpop.f32.mrf.mxu0
    %v8800 = vadd.f32 %v8786, %v8799
    %8801 = vdwg.mxu0
    %8802 = vmatpush.bf16.msra.mxu0 %v7691
    %8803 = vmatpush.bf16.msra.mxu0 %v7687
    %8804 = vmatpush.bf16.msra.mxu0 %v7683
    %8805 = vmatpush.bf16.msra.mxu0 %v7679
    %8806 = vmatpush.bf16.msra.mxu0 %v7675
    %8807 = vmatpush.bf16.msra.mxu0 %v7671
    %8808 = vmatpush.bf16.msra.mxu0 %v7667
    %8809 = vmatpush.bf16.msra.mxu0 %v7663
    %8810 = vmatmul.bf16.gmra.mxu0 %v5412
    %v8811 = vpop.f32.mrf.mxu0
    %v8812 = vadd.f32 %v8798, %v8811
    %v8813 = vpop.f32.mrf.mxu0
    %v8814 = vadd.f32 %v8800, %v8813
    %8815 = vdwg.mxu0
    %8816 = vmatpush.bf16.msra.mxu0 %v7723
    %8817 = vmatpush.bf16.msra.mxu0 %v7719
    %8818 = vmatpush.bf16.msra.mxu0 %v7715
    %8819 = vmatpush.bf16.msra.mxu0 %v7711
    %8820 = vmatpush.bf16.msra.mxu0 %v7707
    %8821 = vmatpush.bf16.msra.mxu0 %v7703
    %8822 = vmatpush.bf16.msra.mxu0 %v7699
    %8823 = vmatpush.bf16.msra.mxu0 %v7695
    %8824 = vmatmul.bf16.gmra.mxu0 %v5413
    %v8825 = vpop.f32.mrf.mxu0
    %v8826 = vadd.f32 %v8812, %v8825
    %v8827 = vpop.f32.mrf.mxu0
    %v8828 = vadd.f32 %v8814, %v8827
    %8829 = vdwg.mxu0
    %8830 = vmatpush.bf16.msra.mxu0 %v7755
    %8831 = vmatpush.bf16.msra.mxu0 %v7751
    %8832 = vmatpush.bf16.msra.mxu0 %v7747
    %8833 = vmatpush.bf16.msra.mxu0 %v7743
    %8834 = vmatpush.bf16.msra.mxu0 %v7739
    %8835 = vmatpush.bf16.msra.mxu0 %v7735
    %8836 = vmatpush.bf16.msra.mxu0 %v7731
    %8837 = vmatpush.bf16.msra.mxu0 %v7727
    %8838 = vmatmul.bf16.gmra.mxu0 %v5414
    %v8839 = vpop.f32.mrf.mxu0
    %v8840 = vadd.f32 %v8826, %v8839
    %v8841 = vpop.f32.mrf.mxu0
    %v8842 = vadd.f32 %v8828, %v8841
    %8843 = vdwg.mxu0
    %8844 = vmatpush.bf16.msra.mxu0 %v7787
    %8845 = vmatpush.bf16.msra.mxu0 %v7783
    %8846 = vmatpush.bf16.msra.mxu0 %v7779
    %8847 = vmatpush.bf16.msra.mxu0 %v7775
    %8848 = vmatpush.bf16.msra.mxu0 %v7771
    %8849 = vmatpush.bf16.msra.mxu0 %v7767
    %8850 = vmatpush.bf16.msra.mxu0 %v7763
    %8851 = vmatpush.bf16.msra.mxu0 %v7759
    %8852 = vmatmul.bf16.gmra.mxu0 %v5415
    %v8853 = vpop.f32.mrf.mxu0
    %v8854 = vadd.f32 %v8840, %v8853
    %v8855 = vpop.f32.mrf.mxu0
    %v8856 = vadd.f32 %v8842, %v8855
    %8857 = vdwg.mxu0
    %8858 = vmatpush.bf16.msra.mxu0 %v7819
    %8859 = vmatpush.bf16.msra.mxu0 %v7815
    %8860 = vmatpush.bf16.msra.mxu0 %v7811
    %8861 = vmatpush.bf16.msra.mxu0 %v7807
    %8862 = vmatpush.bf16.msra.mxu0 %v7803
    %8863 = vmatpush.bf16.msra.mxu0 %v7799
    %8864 = vmatpush.bf16.msra.mxu0 %v7795
    %8865 = vmatpush.bf16.msra.mxu0 %v7791
    %8866 = vmatmul.bf16.gmra.mxu0 %v5416
    %v8867 = vpop.f32.mrf.mxu0
    %v8868 = vadd.f32 %v8854, %v8867
    %v8869 = vpop.f32.mrf.mxu0
    %v8870 = vadd.f32 %v8856, %v8869
    %8871 = vdwg.mxu0
    %8872 = vmatpush.bf16.msra.mxu0 %v7851
    %8873 = vmatpush.bf16.msra.mxu0 %v7847
    %8874 = vmatpush.bf16.msra.mxu0 %v7843
    %8875 = vmatpush.bf16.msra.mxu0 %v7839
    %8876 = vmatpush.bf16.msra.mxu0 %v7835
    %8877 = vmatpush.bf16.msra.mxu0 %v7831
    %8878 = vmatpush.bf16.msra.mxu0 %v7827
    %8879 = vmatpush.bf16.msra.mxu0 %v7823
    %8880 = vmatmul.bf16.gmra.mxu0 %v5417
    %v8881 = vpop.f32.mrf.mxu0
    %v8882 = vadd.f32 %v8868, %v8881
    %v8883 = vpop.f32.mrf.mxu0
    %v8884 = vadd.f32 %v8870, %v8883
    %8885 = vdwg.mxu0
    %8886 = vmatpush.bf16.msra.mxu0 %v7883
    %8887 = vmatpush.bf16.msra.mxu0 %v7879
    %8888 = vmatpush.bf16.msra.mxu0 %v7875
    %8889 = vmatpush.bf16.msra.mxu0 %v7871
    %8890 = vmatpush.bf16.msra.mxu0 %v7867
    %8891 = vmatpush.bf16.msra.mxu0 %v7863
    %8892 = vmatpush.bf16.msra.mxu0 %v7859
    %8893 = vmatpush.bf16.msra.mxu0 %v7855
    %8894 = vmatmul.bf16.gmra.mxu0 %v5418
    %v8895 = vpop.f32.mrf.mxu0
    %v8896 = vadd.f32 %v8882, %v8895
    %v8897 = vpop.f32.mrf.mxu0
    %v8898 = vadd.f32 %v8884, %v8897
    %8899 = vdwg.mxu0
    %8900 = vmatpush.bf16.msra.mxu0 %v7915
    %8901 = vmatpush.bf16.msra.mxu0 %v7911
    %8902 = vmatpush.bf16.msra.mxu0 %v7907
    %8903 = vmatpush.bf16.msra.mxu0 %v7903
    %8904 = vmatpush.bf16.msra.mxu0 %v7899
    %8905 = vmatpush.bf16.msra.mxu0 %v7895
    %8906 = vmatpush.bf16.msra.mxu0 %v7891
    %8907 = vmatpush.bf16.msra.mxu0 %v7887
    %8908 = vmatmul.bf16.gmra.mxu0 %v5419
    %v8909 = vpop.f32.mrf.mxu0
    %v8910 = vadd.f32 %v8896, %v8909
    %v8911 = vpop.f32.mrf.mxu0
    %v8912 = vadd.f32 %v8898, %v8911
    %8913 = vdwg.mxu0
    %8914 = vmatpush.bf16.msra.mxu0 %v7947
    %8915 = vmatpush.bf16.msra.mxu0 %v7943
    %8916 = vmatpush.bf16.msra.mxu0 %v7939
    %8917 = vmatpush.bf16.msra.mxu0 %v7935
    %8918 = vmatpush.bf16.msra.mxu0 %v7931
    %8919 = vmatpush.bf16.msra.mxu0 %v7927
    %8920 = vmatpush.bf16.msra.mxu0 %v7923
    %8921 = vmatpush.bf16.msra.mxu0 %v7919
    %8922 = vmatmul.bf16.gmra.mxu0 %v5420
    %v8923 = vpop.f32.mrf.mxu0
    %v8924 = vadd.f32 %v8910, %v8923
    %v8925 = vpop.f32.mrf.mxu0
    %v8926 = vadd.f32 %v8912, %v8925
    %8927 = vdwg.mxu0
    %8928 = vmatpush.bf16.msra.mxu0 %v7979
    %8929 = vmatpush.bf16.msra.mxu0 %v7975
    %8930 = vmatpush.bf16.msra.mxu0 %v7971
    %8931 = vmatpush.bf16.msra.mxu0 %v7967
    %8932 = vmatpush.bf16.msra.mxu0 %v7963
    %8933 = vmatpush.bf16.msra.mxu0 %v7959
    %8934 = vmatpush.bf16.msra.mxu0 %v7955
    %8935 = vmatpush.bf16.msra.mxu0 %v7951
    %8936 = vmatmul.bf16.gmra.mxu0 %v5421
    %v8937 = vpop.f32.mrf.mxu0
    %v8938 = vadd.f32 %v8924, %v8937
    %v8939 = vpop.f32.mrf.mxu0
    %v8940 = vadd.f32 %v8926, %v8939
    %8941 = vdwg.mxu0
    %8942 = vmatpush.bf16.msra.mxu0 %v7500
    %8943 = vmatpush.bf16.msra.mxu0 %v7496
    %8944 = vmatpush.bf16.msra.mxu0 %v7492
    %8945 = vmatpush.bf16.msra.mxu0 %v7488
    %8946 = vmatpush.bf16.msra.mxu0 %v7484
    %8947 = vmatpush.bf16.msra.mxu0 %v7480
    %8948 = vmatpush.bf16.msra.mxu0 %v7476
    %8949 = vmatpush.bf16.msra.mxu0 %v7472
    %8950 = vmatmul.bf16.gmra.mxu0 %v5406
    %v8951 = vpop.f32.mrf.mxu0
    %v8952 = vadd.f32 %v1396, %v8951
    %v8953 = vpop.f32.mrf.mxu0
    %v8954 = vadd.f32 %v1400, %v8953
    %8955 = vdwg.mxu0
    %8956 = vmatpush.bf16.msra.mxu0 %v7532
    %8957 = vmatpush.bf16.msra.mxu0 %v7528
    %8958 = vmatpush.bf16.msra.mxu0 %v7524
    %8959 = vmatpush.bf16.msra.mxu0 %v7520
    %8960 = vmatpush.bf16.msra.mxu0 %v7516
    %8961 = vmatpush.bf16.msra.mxu0 %v7512
    %8962 = vmatpush.bf16.msra.mxu0 %v7508
    %8963 = vmatpush.bf16.msra.mxu0 %v7504
    %8964 = vmatmul.bf16.gmra.mxu0 %v5407
    %v8965 = vpop.f32.mrf.mxu0
    %v8966 = vadd.f32 %v8952, %v8965
    %v8967 = vpop.f32.mrf.mxu0
    %v8968 = vadd.f32 %v8954, %v8967
    %8969 = vdwg.mxu0
    %8970 = vmatpush.bf16.msra.mxu0 %v7564
    %8971 = vmatpush.bf16.msra.mxu0 %v7560
    %8972 = vmatpush.bf16.msra.mxu0 %v7556
    %8973 = vmatpush.bf16.msra.mxu0 %v7552
    %8974 = vmatpush.bf16.msra.mxu0 %v7548
    %8975 = vmatpush.bf16.msra.mxu0 %v7544
    %8976 = vmatpush.bf16.msra.mxu0 %v7540
    %8977 = vmatpush.bf16.msra.mxu0 %v7536
    %8978 = vmatmul.bf16.gmra.mxu0 %v5408
    %v8979 = vpop.f32.mrf.mxu0
    %v8980 = vadd.f32 %v8966, %v8979
    %v8981 = vpop.f32.mrf.mxu0
    %v8982 = vadd.f32 %v8968, %v8981
    %8983 = vdwg.mxu0
    %8984 = vmatpush.bf16.msra.mxu0 %v7596
    %8985 = vmatpush.bf16.msra.mxu0 %v7592
    %8986 = vmatpush.bf16.msra.mxu0 %v7588
    %8987 = vmatpush.bf16.msra.mxu0 %v7584
    %8988 = vmatpush.bf16.msra.mxu0 %v7580
    %8989 = vmatpush.bf16.msra.mxu0 %v7576
    %8990 = vmatpush.bf16.msra.mxu0 %v7572
    %8991 = vmatpush.bf16.msra.mxu0 %v7568
    %8992 = vmatmul.bf16.gmra.mxu0 %v5409
    %v8993 = vpop.f32.mrf.mxu0
    %v8994 = vadd.f32 %v8980, %v8993
    %v8995 = vpop.f32.mrf.mxu0
    %v8996 = vadd.f32 %v8982, %v8995
    %8997 = vdwg.mxu0
    %8998 = vmatpush.bf16.msra.mxu0 %v7628
    %8999 = vmatpush.bf16.msra.mxu0 %v7624
    %9000 = vmatpush.bf16.msra.mxu0 %v7620
    %9001 = vmatpush.bf16.msra.mxu0 %v7616
    %9002 = vmatpush.bf16.msra.mxu0 %v7612
    %9003 = vmatpush.bf16.msra.mxu0 %v7608
    %9004 = vmatpush.bf16.msra.mxu0 %v7604
    %9005 = vmatpush.bf16.msra.mxu0 %v7600
    %9006 = vmatmul.bf16.gmra.mxu0 %v5410
    %v9007 = vpop.f32.mrf.mxu0
    %v9008 = vadd.f32 %v8994, %v9007
    %v9009 = vpop.f32.mrf.mxu0
    %v9010 = vadd.f32 %v8996, %v9009
    %9011 = vdwg.mxu0
    %9012 = vmatpush.bf16.msra.mxu0 %v7660
    %9013 = vmatpush.bf16.msra.mxu0 %v7656
    %9014 = vmatpush.bf16.msra.mxu0 %v7652
    %9015 = vmatpush.bf16.msra.mxu0 %v7648
    %9016 = vmatpush.bf16.msra.mxu0 %v7644
    %9017 = vmatpush.bf16.msra.mxu0 %v7640
    %9018 = vmatpush.bf16.msra.mxu0 %v7636
    %9019 = vmatpush.bf16.msra.mxu0 %v7632
    %9020 = vmatmul.bf16.gmra.mxu0 %v5411
    %v9021 = vpop.f32.mrf.mxu0
    %v9022 = vadd.f32 %v9008, %v9021
    %v9023 = vpop.f32.mrf.mxu0
    %v9024 = vadd.f32 %v9010, %v9023
    %9025 = vdwg.mxu0
    %9026 = vmatpush.bf16.msra.mxu0 %v7692
    %9027 = vmatpush.bf16.msra.mxu0 %v7688
    %9028 = vmatpush.bf16.msra.mxu0 %v7684
    %9029 = vmatpush.bf16.msra.mxu0 %v7680
    %9030 = vmatpush.bf16.msra.mxu0 %v7676
    %9031 = vmatpush.bf16.msra.mxu0 %v7672
    %9032 = vmatpush.bf16.msra.mxu0 %v7668
    %9033 = vmatpush.bf16.msra.mxu0 %v7664
    %9034 = vmatmul.bf16.gmra.mxu0 %v5412
    %v9035 = vpop.f32.mrf.mxu0
    %v9036 = vadd.f32 %v9022, %v9035
    %v9037 = vpop.f32.mrf.mxu0
    %v9038 = vadd.f32 %v9024, %v9037
    %9039 = vdwg.mxu0
    %9040 = vmatpush.bf16.msra.mxu0 %v7724
    %9041 = vmatpush.bf16.msra.mxu0 %v7720
    %9042 = vmatpush.bf16.msra.mxu0 %v7716
    %9043 = vmatpush.bf16.msra.mxu0 %v7712
    %9044 = vmatpush.bf16.msra.mxu0 %v7708
    %9045 = vmatpush.bf16.msra.mxu0 %v7704
    %9046 = vmatpush.bf16.msra.mxu0 %v7700
    %9047 = vmatpush.bf16.msra.mxu0 %v7696
    %9048 = vmatmul.bf16.gmra.mxu0 %v5413
    %v9049 = vpop.f32.mrf.mxu0
    %v9050 = vadd.f32 %v9036, %v9049
    %v9051 = vpop.f32.mrf.mxu0
    %v9052 = vadd.f32 %v9038, %v9051
    %9053 = vdwg.mxu0
    %9054 = vmatpush.bf16.msra.mxu0 %v7756
    %9055 = vmatpush.bf16.msra.mxu0 %v7752
    %9056 = vmatpush.bf16.msra.mxu0 %v7748
    %9057 = vmatpush.bf16.msra.mxu0 %v7744
    %9058 = vmatpush.bf16.msra.mxu0 %v7740
    %9059 = vmatpush.bf16.msra.mxu0 %v7736
    %9060 = vmatpush.bf16.msra.mxu0 %v7732
    %9061 = vmatpush.bf16.msra.mxu0 %v7728
    %9062 = vmatmul.bf16.gmra.mxu0 %v5414
    %v9063 = vpop.f32.mrf.mxu0
    %v9064 = vadd.f32 %v9050, %v9063
    %v9065 = vpop.f32.mrf.mxu0
    %v9066 = vadd.f32 %v9052, %v9065
    %9067 = vdwg.mxu0
    %9068 = vmatpush.bf16.msra.mxu0 %v7788
    %9069 = vmatpush.bf16.msra.mxu0 %v7784
    %9070 = vmatpush.bf16.msra.mxu0 %v7780
    %9071 = vmatpush.bf16.msra.mxu0 %v7776
    %9072 = vmatpush.bf16.msra.mxu0 %v7772
    %9073 = vmatpush.bf16.msra.mxu0 %v7768
    %9074 = vmatpush.bf16.msra.mxu0 %v7764
    %9075 = vmatpush.bf16.msra.mxu0 %v7760
    %9076 = vmatmul.bf16.gmra.mxu0 %v5415
    %v9077 = vpop.f32.mrf.mxu0
    %v9078 = vadd.f32 %v9064, %v9077
    %v9079 = vpop.f32.mrf.mxu0
    %v9080 = vadd.f32 %v9066, %v9079
    %9081 = vdwg.mxu0
    %9082 = vmatpush.bf16.msra.mxu0 %v7820
    %9083 = vmatpush.bf16.msra.mxu0 %v7816
    %9084 = vmatpush.bf16.msra.mxu0 %v7812
    %9085 = vmatpush.bf16.msra.mxu0 %v7808
    %9086 = vmatpush.bf16.msra.mxu0 %v7804
    %9087 = vmatpush.bf16.msra.mxu0 %v7800
    %9088 = vmatpush.bf16.msra.mxu0 %v7796
    %9089 = vmatpush.bf16.msra.mxu0 %v7792
    %9090 = vmatmul.bf16.gmra.mxu0 %v5416
    %v9091 = vpop.f32.mrf.mxu0
    %v9092 = vadd.f32 %v9078, %v9091
    %v9093 = vpop.f32.mrf.mxu0
    %v9094 = vadd.f32 %v9080, %v9093
    %9095 = vdwg.mxu0
    %9096 = vmatpush.bf16.msra.mxu0 %v7852
    %9097 = vmatpush.bf16.msra.mxu0 %v7848
    %9098 = vmatpush.bf16.msra.mxu0 %v7844
    %9099 = vmatpush.bf16.msra.mxu0 %v7840
    %9100 = vmatpush.bf16.msra.mxu0 %v7836
    %9101 = vmatpush.bf16.msra.mxu0 %v7832
    %9102 = vmatpush.bf16.msra.mxu0 %v7828
    %9103 = vmatpush.bf16.msra.mxu0 %v7824
    %9104 = vmatmul.bf16.gmra.mxu0 %v5417
    %v9105 = vpop.f32.mrf.mxu0
    %v9106 = vadd.f32 %v9092, %v9105
    %v9107 = vpop.f32.mrf.mxu0
    %v9108 = vadd.f32 %v9094, %v9107
    %9109 = vdwg.mxu0
    %9110 = vmatpush.bf16.msra.mxu0 %v7884
    %9111 = vmatpush.bf16.msra.mxu0 %v7880
    %9112 = vmatpush.bf16.msra.mxu0 %v7876
    %9113 = vmatpush.bf16.msra.mxu0 %v7872
    %9114 = vmatpush.bf16.msra.mxu0 %v7868
    %9115 = vmatpush.bf16.msra.mxu0 %v7864
    %9116 = vmatpush.bf16.msra.mxu0 %v7860
    %9117 = vmatpush.bf16.msra.mxu0 %v7856
    %9118 = vmatmul.bf16.gmra.mxu0 %v5418
    %v9119 = vpop.f32.mrf.mxu0
    %v9120 = vadd.f32 %v9106, %v9119
    %v9121 = vpop.f32.mrf.mxu0
    %v9122 = vadd.f32 %v9108, %v9121
    %9123 = vdwg.mxu0
    %9124 = vmatpush.bf16.msra.mxu0 %v7916
    %9125 = vmatpush.bf16.msra.mxu0 %v7912
    %9126 = vmatpush.bf16.msra.mxu0 %v7908
    %9127 = vmatpush.bf16.msra.mxu0 %v7904
    %9128 = vmatpush.bf16.msra.mxu0 %v7900
    %9129 = vmatpush.bf16.msra.mxu0 %v7896
    %9130 = vmatpush.bf16.msra.mxu0 %v7892
    %9131 = vmatpush.bf16.msra.mxu0 %v7888
    %9132 = vmatmul.bf16.gmra.mxu0 %v5419
    %v9133 = vpop.f32.mrf.mxu0
    %v9134 = vadd.f32 %v9120, %v9133
    %v9135 = vpop.f32.mrf.mxu0
    %v9136 = vadd.f32 %v9122, %v9135
    %9137 = vdwg.mxu0
    %9138 = vmatpush.bf16.msra.mxu0 %v7948
    %9139 = vmatpush.bf16.msra.mxu0 %v7944
    %9140 = vmatpush.bf16.msra.mxu0 %v7940
    %9141 = vmatpush.bf16.msra.mxu0 %v7936
    %9142 = vmatpush.bf16.msra.mxu0 %v7932
    %9143 = vmatpush.bf16.msra.mxu0 %v7928
    %9144 = vmatpush.bf16.msra.mxu0 %v7924
    %9145 = vmatpush.bf16.msra.mxu0 %v7920
    %9146 = vmatmul.bf16.gmra.mxu0 %v5420
    %v9147 = vpop.f32.mrf.mxu0
    %v9148 = vadd.f32 %v9134, %v9147
    %v9149 = vpop.f32.mrf.mxu0
    %v9150 = vadd.f32 %v9136, %v9149
    %9151 = vdwg.mxu0
    %9152 = vmatpush.bf16.msra.mxu0 %v7980
    %9153 = vmatpush.bf16.msra.mxu0 %v7976
    %9154 = vmatpush.bf16.msra.mxu0 %v7972
    %9155 = vmatpush.bf16.msra.mxu0 %v7968
    %9156 = vmatpush.bf16.msra.mxu0 %v7964
    %9157 = vmatpush.bf16.msra.mxu0 %v7960
    %9158 = vmatpush.bf16.msra.mxu0 %v7956
    %9159 = vmatpush.bf16.msra.mxu0 %v7952
    %9160 = vmatmul.bf16.gmra.mxu0 %v5421
    %v9161 = vpop.f32.mrf.mxu0
    %v9162 = vadd.f32 %v9148, %v9161
    %v9163 = vpop.f32.mrf.mxu0
    %v9164 = vadd.f32 %v9150, %v9163
    %9165 = vdwg.mxu0
    %9166 = vmatpush.bf16.msra.mxu0 %v7501
    %9167 = vmatpush.bf16.msra.mxu0 %v7497
    %9168 = vmatpush.bf16.msra.mxu0 %v7493
    %9169 = vmatpush.bf16.msra.mxu0 %v7489
    %9170 = vmatpush.bf16.msra.mxu0 %v7485
    %9171 = vmatpush.bf16.msra.mxu0 %v7481
    %9172 = vmatpush.bf16.msra.mxu0 %v7477
    %9173 = vmatpush.bf16.msra.mxu0 %v7473
    %9174 = vmatmul.bf16.gmra.mxu0 %v5406
    %v9175 = vpop.f32.mrf.mxu0
    %v9176 = vadd.f32 %v1397, %v9175
    %v9177 = vpop.f32.mrf.mxu0
    %v9178 = vadd.f32 %v1401, %v9177
    %9179 = vdwg.mxu0
    %9180 = vmatpush.bf16.msra.mxu0 %v7533
    %9181 = vmatpush.bf16.msra.mxu0 %v7529
    %9182 = vmatpush.bf16.msra.mxu0 %v7525
    %9183 = vmatpush.bf16.msra.mxu0 %v7521
    %9184 = vmatpush.bf16.msra.mxu0 %v7517
    %9185 = vmatpush.bf16.msra.mxu0 %v7513
    %9186 = vmatpush.bf16.msra.mxu0 %v7509
    %9187 = vmatpush.bf16.msra.mxu0 %v7505
    %9188 = vmatmul.bf16.gmra.mxu0 %v5407
    %v9189 = vpop.f32.mrf.mxu0
    %v9190 = vadd.f32 %v9176, %v9189
    %v9191 = vpop.f32.mrf.mxu0
    %v9192 = vadd.f32 %v9178, %v9191
    %9193 = vdwg.mxu0
    %9194 = vmatpush.bf16.msra.mxu0 %v7565
    %9195 = vmatpush.bf16.msra.mxu0 %v7561
    %9196 = vmatpush.bf16.msra.mxu0 %v7557
    %9197 = vmatpush.bf16.msra.mxu0 %v7553
    %9198 = vmatpush.bf16.msra.mxu0 %v7549
    %9199 = vmatpush.bf16.msra.mxu0 %v7545
    %9200 = vmatpush.bf16.msra.mxu0 %v7541
    %9201 = vmatpush.bf16.msra.mxu0 %v7537
    %9202 = vmatmul.bf16.gmra.mxu0 %v5408
    %v9203 = vpop.f32.mrf.mxu0
    %v9204 = vadd.f32 %v9190, %v9203
    %v9205 = vpop.f32.mrf.mxu0
    %v9206 = vadd.f32 %v9192, %v9205
    %9207 = vdwg.mxu0
    %9208 = vmatpush.bf16.msra.mxu0 %v7597
    %9209 = vmatpush.bf16.msra.mxu0 %v7593
    %9210 = vmatpush.bf16.msra.mxu0 %v7589
    %9211 = vmatpush.bf16.msra.mxu0 %v7585
    %9212 = vmatpush.bf16.msra.mxu0 %v7581
    %9213 = vmatpush.bf16.msra.mxu0 %v7577
    %9214 = vmatpush.bf16.msra.mxu0 %v7573
    %9215 = vmatpush.bf16.msra.mxu0 %v7569
    %9216 = vmatmul.bf16.gmra.mxu0 %v5409
    %v9217 = vpop.f32.mrf.mxu0
    %v9218 = vadd.f32 %v9204, %v9217
    %v9219 = vpop.f32.mrf.mxu0
    %v9220 = vadd.f32 %v9206, %v9219
    %9221 = vdwg.mxu0
    %9222 = vmatpush.bf16.msra.mxu0 %v7629
    %9223 = vmatpush.bf16.msra.mxu0 %v7625
    %9224 = vmatpush.bf16.msra.mxu0 %v7621
    %9225 = vmatpush.bf16.msra.mxu0 %v7617
    %9226 = vmatpush.bf16.msra.mxu0 %v7613
    %9227 = vmatpush.bf16.msra.mxu0 %v7609
    %9228 = vmatpush.bf16.msra.mxu0 %v7605
    %9229 = vmatpush.bf16.msra.mxu0 %v7601
    %9230 = vmatmul.bf16.gmra.mxu0 %v5410
    %v9231 = vpop.f32.mrf.mxu0
    %v9232 = vadd.f32 %v9218, %v9231
    %v9233 = vpop.f32.mrf.mxu0
    %v9234 = vadd.f32 %v9220, %v9233
    %9235 = vdwg.mxu0
    %9236 = vmatpush.bf16.msra.mxu0 %v7661
    %9237 = vmatpush.bf16.msra.mxu0 %v7657
    %9238 = vmatpush.bf16.msra.mxu0 %v7653
    %9239 = vmatpush.bf16.msra.mxu0 %v7649
    %9240 = vmatpush.bf16.msra.mxu0 %v7645
    %9241 = vmatpush.bf16.msra.mxu0 %v7641
    %9242 = vmatpush.bf16.msra.mxu0 %v7637
    %9243 = vmatpush.bf16.msra.mxu0 %v7633
    %9244 = vmatmul.bf16.gmra.mxu0 %v5411
    %v9245 = vpop.f32.mrf.mxu0
    %v9246 = vadd.f32 %v9232, %v9245
    %v9247 = vpop.f32.mrf.mxu0
    %v9248 = vadd.f32 %v9234, %v9247
    %9249 = vdwg.mxu0
    %9250 = vmatpush.bf16.msra.mxu0 %v7693
    %9251 = vmatpush.bf16.msra.mxu0 %v7689
    %9252 = vmatpush.bf16.msra.mxu0 %v7685
    %9253 = vmatpush.bf16.msra.mxu0 %v7681
    %9254 = vmatpush.bf16.msra.mxu0 %v7677
    %9255 = vmatpush.bf16.msra.mxu0 %v7673
    %9256 = vmatpush.bf16.msra.mxu0 %v7669
    %9257 = vmatpush.bf16.msra.mxu0 %v7665
    %9258 = vmatmul.bf16.gmra.mxu0 %v5412
    %v9259 = vpop.f32.mrf.mxu0
    %v9260 = vadd.f32 %v9246, %v9259
    %v9261 = vpop.f32.mrf.mxu0
    %v9262 = vadd.f32 %v9248, %v9261
    %9263 = vdwg.mxu0
    %9264 = vmatpush.bf16.msra.mxu0 %v7725
    %9265 = vmatpush.bf16.msra.mxu0 %v7721
    %9266 = vmatpush.bf16.msra.mxu0 %v7717
    %9267 = vmatpush.bf16.msra.mxu0 %v7713
    %9268 = vmatpush.bf16.msra.mxu0 %v7709
    %9269 = vmatpush.bf16.msra.mxu0 %v7705
    %9270 = vmatpush.bf16.msra.mxu0 %v7701
    %9271 = vmatpush.bf16.msra.mxu0 %v7697
    %9272 = vmatmul.bf16.gmra.mxu0 %v5413
    %v9273 = vpop.f32.mrf.mxu0
    %v9274 = vadd.f32 %v9260, %v9273
    %v9275 = vpop.f32.mrf.mxu0
    %v9276 = vadd.f32 %v9262, %v9275
    %9277 = vdwg.mxu0
    %9278 = vmatpush.bf16.msra.mxu0 %v7757
    %9279 = vmatpush.bf16.msra.mxu0 %v7753
    %9280 = vmatpush.bf16.msra.mxu0 %v7749
    %9281 = vmatpush.bf16.msra.mxu0 %v7745
    %9282 = vmatpush.bf16.msra.mxu0 %v7741
    %9283 = vmatpush.bf16.msra.mxu0 %v7737
    %9284 = vmatpush.bf16.msra.mxu0 %v7733
    %9285 = vmatpush.bf16.msra.mxu0 %v7729
    %9286 = vmatmul.bf16.gmra.mxu0 %v5414
    %v9287 = vpop.f32.mrf.mxu0
    %v9288 = vadd.f32 %v9274, %v9287
    %v9289 = vpop.f32.mrf.mxu0
    %v9290 = vadd.f32 %v9276, %v9289
    %9291 = vdwg.mxu0
    %9292 = vmatpush.bf16.msra.mxu0 %v7789
    %9293 = vmatpush.bf16.msra.mxu0 %v7785
    %9294 = vmatpush.bf16.msra.mxu0 %v7781
    %9295 = vmatpush.bf16.msra.mxu0 %v7777
    %9296 = vmatpush.bf16.msra.mxu0 %v7773
    %9297 = vmatpush.bf16.msra.mxu0 %v7769
    %9298 = vmatpush.bf16.msra.mxu0 %v7765
    %9299 = vmatpush.bf16.msra.mxu0 %v7761
    %9300 = vmatmul.bf16.gmra.mxu0 %v5415
    %v9301 = vpop.f32.mrf.mxu0
    %v9302 = vadd.f32 %v9288, %v9301
    %v9303 = vpop.f32.mrf.mxu0
    %v9304 = vadd.f32 %v9290, %v9303
    %9305 = vdwg.mxu0
    %9306 = vmatpush.bf16.msra.mxu0 %v7821
    %9307 = vmatpush.bf16.msra.mxu0 %v7817
    %9308 = vmatpush.bf16.msra.mxu0 %v7813
    %9309 = vmatpush.bf16.msra.mxu0 %v7809
    %9310 = vmatpush.bf16.msra.mxu0 %v7805
    %9311 = vmatpush.bf16.msra.mxu0 %v7801
    %9312 = vmatpush.bf16.msra.mxu0 %v7797
    %9313 = vmatpush.bf16.msra.mxu0 %v7793
    %9314 = vmatmul.bf16.gmra.mxu0 %v5416
    %v9315 = vpop.f32.mrf.mxu0
    %v9316 = vadd.f32 %v9302, %v9315
    %v9317 = vpop.f32.mrf.mxu0
    %v9318 = vadd.f32 %v9304, %v9317
    %9319 = vdwg.mxu0
    %9320 = vmatpush.bf16.msra.mxu0 %v7853
    %9321 = vmatpush.bf16.msra.mxu0 %v7849
    %9322 = vmatpush.bf16.msra.mxu0 %v7845
    %9323 = vmatpush.bf16.msra.mxu0 %v7841
    %9324 = vmatpush.bf16.msra.mxu0 %v7837
    %9325 = vmatpush.bf16.msra.mxu0 %v7833
    %9326 = vmatpush.bf16.msra.mxu0 %v7829
    %9327 = vmatpush.bf16.msra.mxu0 %v7825
    %9328 = vmatmul.bf16.gmra.mxu0 %v5417
    %v9329 = vpop.f32.mrf.mxu0
    %v9330 = vadd.f32 %v9316, %v9329
    %v9331 = vpop.f32.mrf.mxu0
    %v9332 = vadd.f32 %v9318, %v9331
    %9333 = vdwg.mxu0
    %9334 = vmatpush.bf16.msra.mxu0 %v7885
    %9335 = vmatpush.bf16.msra.mxu0 %v7881
    %9336 = vmatpush.bf16.msra.mxu0 %v7877
    %9337 = vmatpush.bf16.msra.mxu0 %v7873
    %9338 = vmatpush.bf16.msra.mxu0 %v7869
    %9339 = vmatpush.bf16.msra.mxu0 %v7865
    %9340 = vmatpush.bf16.msra.mxu0 %v7861
    %9341 = vmatpush.bf16.msra.mxu0 %v7857
    %9342 = vmatmul.bf16.gmra.mxu0 %v5418
    %v9343 = vpop.f32.mrf.mxu0
    %v9344 = vadd.f32 %v9330, %v9343
    %v9345 = vpop.f32.mrf.mxu0
    %v9346 = vadd.f32 %v9332, %v9345
    %9347 = vdwg.mxu0
    %9348 = vmatpush.bf16.msra.mxu0 %v7917
    %9349 = vmatpush.bf16.msra.mxu0 %v7913
    %9350 = vmatpush.bf16.msra.mxu0 %v7909
    %9351 = vmatpush.bf16.msra.mxu0 %v7905
    %9352 = vmatpush.bf16.msra.mxu0 %v7901
    %9353 = vmatpush.bf16.msra.mxu0 %v7897
    %9354 = vmatpush.bf16.msra.mxu0 %v7893
    %9355 = vmatpush.bf16.msra.mxu0 %v7889
    %9356 = vmatmul.bf16.gmra.mxu0 %v5419
    %v9357 = vpop.f32.mrf.mxu0
    %v9358 = vadd.f32 %v9344, %v9357
    %v9359 = vpop.f32.mrf.mxu0
    %v9360 = vadd.f32 %v9346, %v9359
    %9361 = vdwg.mxu0
    %9362 = vmatpush.bf16.msra.mxu0 %v7949
    %9363 = vmatpush.bf16.msra.mxu0 %v7945
    %9364 = vmatpush.bf16.msra.mxu0 %v7941
    %9365 = vmatpush.bf16.msra.mxu0 %v7937
    %9366 = vmatpush.bf16.msra.mxu0 %v7933
    %9367 = vmatpush.bf16.msra.mxu0 %v7929
    %9368 = vmatpush.bf16.msra.mxu0 %v7925
    %9369 = vmatpush.bf16.msra.mxu0 %v7921
    %9370 = vmatmul.bf16.gmra.mxu0 %v5420
    %v9371 = vpop.f32.mrf.mxu0
    %v9372 = vadd.f32 %v9358, %v9371
    %v9373 = vpop.f32.mrf.mxu0
    %v9374 = vadd.f32 %v9360, %v9373
    %9375 = vdwg.mxu0
    %9376 = vmatpush.bf16.msra.mxu0 %v7981
    %9377 = vmatpush.bf16.msra.mxu0 %v7977
    %9378 = vmatpush.bf16.msra.mxu0 %v7973
    %9379 = vmatpush.bf16.msra.mxu0 %v7969
    %9380 = vmatpush.bf16.msra.mxu0 %v7965
    %9381 = vmatpush.bf16.msra.mxu0 %v7961
    %9382 = vmatpush.bf16.msra.mxu0 %v7957
    %9383 = vmatpush.bf16.msra.mxu0 %v7953
    %9384 = vmatmul.bf16.gmra.mxu0 %v5421
    %v9385 = vpop.f32.mrf.mxu0
    %v9386 = vadd.f32 %v9372, %v9385
    %v9387 = vpop.f32.mrf.mxu0
    %v9388 = vadd.f32 %v9374, %v9387
    %9389 = vdwg.mxu0
    %v9390 = vadd.f32 %v8714, %v8938
    %v9391 = vadd.f32 %v9390, %v9162
    %v9392 = vadd.f32 %v9391, %v9386
    %9393 = vadd.xlane.f32.xlu0 %v9392
    %v9394 = vpop.xlane.xlu0 %9393
    %v9395 = vadd.f32 %v8716, %v8940
    %v9396 = vadd.f32 %v9395, %v9164
    %v9397 = vadd.f32 %v9396, %v9388
    %9398 = vadd.xlane.f32.xlu0 %v9397
    %v9399 = vpop.xlane.xlu0 %9398
    %v9400 = vmul.f32 %v9394, %v1341
    %v9401 = vmul.f32 %v9399, %v1341
    %v9402 = vsub.f32 %v8714, %v9400
    %v9403 = vsub.f32 %v8938, %v9400
    %v9404 = vsub.f32 %v9162, %v9400
    %v9405 = vsub.f32 %v9386, %v9400
    %v9406 = vsub.f32 %v8716, %v9401
    %v9407 = vsub.f32 %v8940, %v9401
    %v9408 = vsub.f32 %v9164, %v9401
    %v9409 = vsub.f32 %v9388, %v9401
    %v9410 = vmul.f32 %v9402, %v9402
    %v9411 = vmul.f32 %v9403, %v9403
    %v9412 = vmul.f32 %v9404, %v9404
    %v9413 = vmul.f32 %v9405, %v9405
    %v9414 = vmul.f32 %v9406, %v9406
    %v9415 = vmul.f32 %v9407, %v9407
    %v9416 = vmul.f32 %v9408, %v9408
    %v9417 = vmul.f32 %v9409, %v9409
    %v9418 = vadd.f32 %v9410, %v9411
    %v9419 = vadd.f32 %v9418, %v9412
    %v9420 = vadd.f32 %v9419, %v9413
    %9421 = vadd.xlane.f32.xlu0 %v9420
    %v9422 = vpop.xlane.xlu0 %9421
    %v9423 = vadd.f32 %v9414, %v9415
    %v9424 = vadd.f32 %v9423, %v9416
    %v9425 = vadd.f32 %v9424, %v9417
    %9426 = vadd.xlane.f32.xlu0 %v9425
    %v9427 = vpop.xlane.xlu0 %9426
    %v9428 = vmul.f32 %v9422, %v1341
    %v9429 = vmul.f32 %v9427, %v1341
    %v9430 = vadd.f32 %v9428, 1e-05
    %v9431 = vadd.f32 %v9429, 1e-05
    %v9432 = vrsqrt.pop %v9430
    %v9433 = vmul.f32 %v9432, %v9430
    %v9434 = vmul.f32 %v9433, %v9432
    %v9435 = vmul.f32 0.5, %v9434
    %v9436 = vsub.f32 1.5, %v9435
    %v9437 = vmul.f32 %v9432, %v9436
    %vm9438 = vweird.f32 %v9430
    %vm9439 = vweird.f32 %v9432
    %vm9440 = vmor %vm9438, %vm9439
    %v9441 = vsel %vm9440, %v9432, %v9437
    %v9442 = vrsqrt.pop %v9431
    %v9443 = vmul.f32 %v9442, %v9431
    %v9444 = vmul.f32 %v9443, %v9442
    %v9445 = vmul.f32 0.5, %v9444
    %v9446 = vsub.f32 1.5, %v9445
    %v9447 = vmul.f32 %v9442, %v9446
    %vm9448 = vweird.f32 %v9431
    %vm9449 = vweird.f32 %v9442
    %vm9450 = vmor %vm9448, %vm9449
    %v9451 = vsel %vm9450, %v9442, %v9447
    %v9452 = vmul.f32 %v9402, %v9441
    %v9453 = vmul.f32 %v9403, %v9441
    %v9454 = vmul.f32 %v9404, %v9441
    %v9455 = vmul.f32 %v9405, %v9441
    %v9456 = vmul.f32 %v9406, %v9451
    %v9457 = vmul.f32 %v9407, %v9451
    %v9458 = vmul.f32 %v9408, %v9451
    %v9459 = vmul.f32 %v9409, %v9451
    %9460 = vst [vmem:[#allocation2] sm:$0xff] %v9452
    %9461 = vst [vmem:[#allocation2 + $0x8] sm:$0xff] %v9453
    %9462 = vst [vmem:[#allocation2 + $0x10] sm:$0xff] %v9454
    %9463 = vst [vmem:[#allocation2 + $0x18] sm:$0xff] %v9455
    %9464 = vst [vmem:[#allocation2 + $0x20] sm:$0xff] %v9456
    %9465 = vst [vmem:[#allocation2 + $0x28] sm:$0xff] %v9457
    %9466 = vst [vmem:[#allocation2 + $0x30] sm:$0xff] %v9458
    %9467 = vst [vmem:[#allocation2 + $0x38] sm:$0xff] %v9459
    // Predicated region
    $region26: #{encoder_forward.1} parent=1 // pred_check
      _
    $region27: #{encoder_forward.1} parent=1 // pred_check_branch
      %9469 = sbr.rel (0) target = $region29
    $region28: #{encoder_forward.1} parent=1 // pred_region
      %9471 = vsyncadd [#allocation3], 0
      %s9472 = sshll.u32 [#allocation2], 4
      %s9473 = int_to_ptr.vmem [resolvable:$true] %s9472
      %s9474 = sshll.u32 %s6, 4
      %s9475 = int_to_ptr.hbm [resolvable:$true] %s9474
      %9480 = dma.vmem_to_hbm [thread:$0]  %s9473, 1024, %s9475, [#allocation3], 512, 512, 32
    $region29: #{encoder_forward.1} parent=1 // pred_fallthru
      _
    // Predicated region
    $region30: #{encoder_forward.1} parent=1 // pred_check
      _
    $region31: #{encoder_forward.1} parent=1 // pred_check_branch
      %9482 = sbr.rel (0) target = $region33
    $region32: #{encoder_forward.1} parent=1 // pred_region
      %9484 = dma.done [#allocation3], 1024
    $region33: #{encoder_forward.1} parent=1 // pred_fallthru
      _
    %9485 = vsyncpa [#allocation3], 1

</llo_original>
